<compile_context>
chip_gen: v7x
topology: tpu7x:2x2x1
jax: 0.10.0
libtpu: 0.0.40
codegen_flags: <defaults>
</compile_context>

<pallas_src>
import functools

import jax
import jax.numpy as jnp
from jax.experimental import pallas as pl
from jax.experimental.pallas import tpu as pltpu

EPS = 1e-5
NEG_SLOPE = 0.01                 # nn.LeakyReLU default negative_slope
MXU_DTYPE = jnp.float32          # set to jnp.bfloat16 on v6e/v7x for speed


# --------------------------------------------------------------------------
# helpers
# --------------------------------------------------------------------------
def _pick_row_tile(H, W, C, budget_bytes=4 << 20):
    """Largest divisor of H whose im2col chunk (TH*W, 9*C) fits the budget."""
    per_row = W * 9 * C * jnp.dtype(MXU_DTYPE).itemsize
    t = max(1, min(H, int(budget_bytes // max(per_row, 1))))
    while H % t:
        t -= 1
    return t


def _vmem_limit_bytes(per_step_bytes):
    """Only override the default scoped VMEM limit when the blocks need it."""
    want = 2 * per_step_bytes + (2 << 20)        # ~double-buffering + slack
    if want <= (16 << 20):
        return None
    return int(min(want, 48 << 20))              # stay under v7x's 64 MiB


def _reflect_pad_into(hp_ref, img, H, W):
    """Write reflect-padded img (H, W, C) into hp_ref ((H+2, W+2, C)) scratch."""
    hp_ref[1:H + 1, 1:W + 1, :] = img
    hp_ref[0:1, 1:W + 1, :] = img[1:2, :, :]
    hp_ref[H + 1:H + 2, 1:W + 1, :] = img[H - 2:H - 1, :, :]
    # columns last so the corners pick up the already-reflected rows
    hp_ref[:, 0:1, :] = hp_ref[:, 2:3, :]
    hp_ref[:, W + 1:W + 2, :] = hp_ref[:, W - 1:W, :]


# --------------------------------------------------------------------------
# kernels
# --------------------------------------------------------------------------
def _conv_bn_stats_kernel(x_ref, w_ref, scale_ref, shift_ref,   # inputs
                          y_ref, st_ref,                        # outputs
                          hp_ref, col_ref,                      # scratch
                          *, H, W, C, TH, pre):
    """One image: (optional BN-affine + LeakyReLU) -> reflect pad -> 3x3 conv
    (single fused im2col matmul per row chunk) -> raw conv output + per-image
    per-channel (sum, sumsq) partials for batch-global BatchNorm."""
    img = x_ref[0].astype(jnp.float32)                          # (H, W, C)
    if pre:
        a = scale_ref[...].reshape(1, 1, C)
        b = shift_ref[...].reshape(1, 1, C)
        img = img * a + b
        img = jnp.where(img > 0, img, NEG_SLOPE * img)          # LeakyReLU
    _reflect_pad_into(hp_ref, img, H, W)

    s = jnp.zeros((1, C), jnp.float32)
    ss = jnp.zeros((1, C), jnp.float32)
    for ci in range(H // TH):                                   # static chunks
        r0 = ci * TH
        # build the (TH*W, 9*C) im2col patch once into VMEM scratch
        for ky in range(3):
            for kx in range(3):
                tap = hp_ref[r0 + ky:r0 + ky + TH, kx:kx + W, :]   # (TH, W, C)
                j0 = (ky * 3 + kx) * C
                col_ref[:, j0:j0 + C] = tap.reshape(TH * W, C).astype(
                    col_ref.dtype)
        # one MXU matmul with K = 9*C (instead of 9 tiny K=C dots)
        acc = jnp.dot(col_ref[...], w_ref[...],
                      preferred_element_type=jnp.float32)          # (TH*W, C)
        y_ref[0, r0:r0 + TH, :, :] = acc.reshape(TH, W, C)
        # single-pass BN statistics: per-channel sum and sum-of-squares
        s = s + jnp.sum(acc, axis=0, keepdims=True)
        ss = ss + jnp.sum(acc * acc, axis=0, keepdims=True)
    st_ref[0, 0:1, :] = s
    st_ref[0, 1:2, :] = ss


def _residual_add_kernel(x_ref, y_ref, scale_ref, shift_ref, o_ref, *, C):
    """out = x + (BN2-affine applied to raw conv2 output)."""
    a = scale_ref[...].reshape(1, 1, C)
    b = shift_ref[...].reshape(1, 1, C)
    x = x_ref[0].astype(jnp.float32)
    o_ref[0] = (x + y_ref[0] * a + b).astype(o_ref.dtype)


# --------------------------------------------------------------------------
# pallas_call wrappers
# --------------------------------------------------------------------------
def _conv_bn_pass(x, w, scale, shift, *, pre, TH):
    B, H, W, C = x.shape
    kernel = functools.partial(_conv_bn_stats_kernel,
                               H=H, W=W, C=C, TH=TH, pre=pre)
    isz = jnp.dtype(MXU_DTYPE).itemsize
    per_step = (2 * H * W * C * 4                       # x block + y block
                + (H + 2) * (W + 2) * C * 4             # padded scratch
                + TH * W * 9 * C * isz                  # im2col scratch
                + 9 * C * C * isz + 6 * C * 4)          # weights + vectors
    return pl.pallas_call(
        kernel,
        out_shape=(jax.ShapeDtypeStruct((B, H, W, C), jnp.float32),
                   jax.ShapeDtypeStruct((B, 2, C), jnp.float32)),
        grid_spec=pltpu.PrefetchScalarGridSpec(
            num_scalar_prefetch=0,
            grid=(B,),
            in_specs=[pl.BlockSpec((1, H, W, C), lambda b: (b, 0, 0, 0)),
                      pl.BlockSpec((9 * C, C), lambda b: (0, 0)),
                      pl.BlockSpec((1, C), lambda b: (0, 0)),
                      pl.BlockSpec((1, C), lambda b: (0, 0))],
            out_specs=(pl.BlockSpec((1, H, W, C), lambda b: (b, 0, 0, 0)),
                       pl.BlockSpec((1, 2, C), lambda b: (b, 0, 0))),
            scratch_shapes=[pltpu.VMEM((H + 2, W + 2, C), jnp.float32),
                            pltpu.VMEM((TH * W, 9 * C), MXU_DTYPE)]),
        compiler_params=pltpu.CompilerParams(
            dimension_semantics=("parallel",),
            vmem_limit_bytes=_vmem_limit_bytes(per_step)),
    )(x, w, scale, shift)


def _residual_pass(x, y, scale, shift):
    B, H, W, C = x.shape
    kernel = functools.partial(_residual_add_kernel, C=C)
    per_step = 3 * H * W * C * 4 + 4 * C * 4
    return pl.pallas_call(
        kernel,
        out_shape=jax.ShapeDtypeStruct((B, H, W, C), x.dtype),
        grid_spec=pltpu.PrefetchScalarGridSpec(
            num_scalar_prefetch=0,
            grid=(B,),
            in_specs=[pl.BlockSpec((1, H, W, C), lambda b: (b, 0, 0, 0)),
                      pl.BlockSpec((1, H, W, C), lambda b: (b, 0, 0, 0)),
                      pl.BlockSpec((1, C), lambda b: (0, 0)),
                      pl.BlockSpec((1, C), lambda b: (0, 0))],
            out_specs=pl.BlockSpec((1, H, W, C), lambda b: (b, 0, 0, 0))),
        compiler_params=pltpu.CompilerParams(
            dimension_semantics=("parallel",),
            vmem_limit_bytes=_vmem_limit_bytes(per_step)),
    )(x, y, scale, shift)


def _bn_affine(st, gamma, beta, n):
    """Fold batch-global BN (training-mode stats) into per-channel a,b."""
    s = jnp.sum(st[:, 0, :], axis=0)
    ss = jnp.sum(st[:, 1, :], axis=0)
    mean = s / n
    var = jnp.maximum(ss / n - mean * mean, 0.0)       # biased variance
    a = gamma.astype(jnp.float32) * jax.lax.rsqrt(var + EPS)
    b = beta.astype(jnp.float32) - a * mean
    return a.reshape(1, -1), b.reshape(1, -1)


def residual_block_pallas_nhwc(x, params):
    """x: (B, H, W, C) float32, NHWC.  Returns (B, H, W, C) float32."""
    B, H, W, C = x.shape
    n = B * H * W
    TH = _pick_row_tile(H, W, C)
    # Fused-tap weights: (3,3,Cin,Cout) -> (9*Cin, Cout).  Conv bias is
    # intentionally dropped: training-mode BN cancels it exactly.
    w1 = params["w1"].reshape(9 * C, C).astype(MXU_DTYPE)
    w2 = params["w2"].reshape(9 * C, C).astype(MXU_DTYPE)
    ones = jnp.ones((1, C), jnp.float32)
    zeros = jnp.zeros((1, C), jnp.float32)

    y1, st1 = _conv_bn_pass(x, w1, ones, zeros, pre=False, TH=TH)
    a1, b1 = _bn_affine(st1, params["g1"], params["be1"], n)
    y2, st2 = _conv_bn_pass(y1, w2, a1, b1, pre=True, TH=TH)
    a2, b2 = _bn_affine(st2, params["g2"], params["be2"], n)
    return _residual_pass(x, y2, a2, b2)


@jax.jit
def residual_block_pallas(x_nchw, params):
    """PyTorch-convention entry point: NCHW in, NCHW out."""
    x = jnp.transpose(x_nchw, (0, 2, 3, 1)).astype(jnp.float32)   # -> NHWC
    out = residual_block_pallas_nhwc(x, params)
    return jnp.transpose(out, (0, 3, 1, 2)).astype(x_nchw.dtype)  # -> NCHW


# ----------------------------- pure-JAX reference -----------------------------
def _convblock_ref(x, w, b, g, be, use_act):
    xp = jnp.pad(x, ((0, 0), (0, 0), (1, 1), (1, 1)), mode="reflect")
    wt = jnp.transpose(w, (3, 2, 0, 1))               # (kH,kW,Cin,Cout) -> OIHW
    y = jax.lax.conv_general_dilated(
        xp, wt, window_strides=(1, 1), padding="VALID",
        dimension_numbers=("NCHW", "OIHW", "NCHW"))
    y = y + b[None, :, None, None]
    mean = jnp.mean(y, axis=(0, 2, 3), keepdims=True)
    var = jnp.mean((y - mean) ** 2, axis=(0, 2, 3), keepdims=True)
    y = (y - mean) * jax.lax.rsqrt(var + EPS)
    y = y * g[None, :, None, None] + be[None, :, None, None]
    if use_act:
        y = jnp.where(y > 0, y, NEG_SLOPE * y)
    return y


def residual_block_ref(x_nchw, p):
    h = _convblock_ref(x_nchw, p["w1"], p["b1"], p["g1"], p["be1"], True)
    h = _convblock_ref(h, p["w2"], p["b2"], p["g2"], p["be2"], False)
    return x_nchw + h


# ------------------------------------ main ------------------------------------
if __name__ == "__main__":
    B, C, H, W = 2, 4, 16, 16

    # Deterministic synthetic parameters (shapes per nn.Conv2d / nn.BatchNorm2d).
    pk = jax.random.split(jax.random.PRNGKey(42), 8)
    params = {
        "w1": jax.random.normal(pk[0], (3, 3, C, C), jnp.float32) * 0.2,
        "b1": jax.random.normal(pk[1], (C,), jnp.float32) * 0.1,
        "g1": 1.0 + 0.1 * jax.random.normal(pk[2], (C,), jnp.float32),
        "be1": 0.1 * jax.random.normal(pk[3], (C,), jnp.float32),
        "w2": jax.random.normal(pk[4], (3, 3, C, C), jnp.float32) * 0.2,
        "b2": jax.random.normal(pk[5], (C,), jnp.float32) * 0.1,
        "g2": 1.0 + 0.1 * jax.random.normal(pk[6], (C,), jnp.float32),
        "be2": 0.1 * jax.random.normal(pk[7], (C,), jnp.float32),
    }

    x = jax.random.normal(jax.random.PRNGKey(0), (B, C, H, W), jnp.float32)

    out = jax.block_until_ready(residual_block_pallas(x, params))
    ref = jax.block_until_ready(residual_block_ref(x, params))

    assert out.shape == (B, C, H, W) and out.dtype == jnp.float32
    assert jnp.allclose(out, ref, atol=2e-4, rtol=2e-4), \
        f"max err = {jnp.max(jnp.abs(out - ref))}"

    print("KERNEL_OK")
</pallas_src>

<mosaic_0001>
module attributes {stable_mosaic.version = 11 : i64} {
  func.func @_conv_bn_stats_kernel(%arg0: i32, %arg1: memref<1x16x16x4xf32, #tpu.memory_space<vmem>>, %arg2: memref<36x4xf32, #tpu.memory_space<vmem>>, %arg3: memref<1x4xf32, #tpu.memory_space<vmem>>, %arg4: memref<1x4xf32, #tpu.memory_space<vmem>>, %arg5: memref<1x16x16x4xf32, #tpu.memory_space<vmem>>, %arg6: memref<1x2x4xf32, #tpu.memory_space<vmem>>, %arg7: memref<18x18x4xf32, #tpu.memory_space<vmem>>, %arg8: memref<256x36xf32, #tpu.memory_space<vmem>>) attributes {dimension_semantics = [#tpu.dimension_semantics<parallel>], iteration_bounds = array<i64: 2>, scalar_prefetch = 0 : i64, scratch_operands = 2 : i64, tpu.core_type = #tpu.core_type<tc>, window_params = [{transform_indices = @transform_0, window_bounds = array<i64: 1, 16, 16, 4>}, {pipeline_mode = #tpu.pipeline_mode<synchronous>, transform_indices = @transform_1, window_bounds = array<i64: 36, 4>}, {pipeline_mode = #tpu.pipeline_mode<synchronous>, transform_indices = @transform_2, window_bounds = array<i64: 1, 4>}, {pipeline_mode = #tpu.pipeline_mode<synchronous>, transform_indices = @transform_3, window_bounds = array<i64: 1, 4>}, {transform_indices = @transform_4, window_bounds = array<i64: 1, 16, 16, 4>}, {transform_indices = @transform_5, window_bounds = array<i64: 1, 2, 4>}]} {
    %c0 = arith.constant 0 : index
    %c0_0 = arith.constant 0 : index
    %c0_1 = arith.constant 0 : index
    %c0_2 = arith.constant 0 : index
    %0 = vector.load %arg1[%c0, %c0_0, %c0_1, %c0_2] : memref<1x16x16x4xf32, #tpu.memory_space<vmem>>, vector<1x16x16x4xf32>
    %1 = vector.shape_cast %0 : vector<1x16x16x4xf32> to vector<16x16x4xf32>
    %c1 = arith.constant 1 : index
    %c1_3 = arith.constant 1 : index
    %c0_4 = arith.constant 0 : index
    %2 = vector.load %arg7[%c1, %c1_3, %c0_4] : memref<18x18x4xf32, #tpu.memory_space<vmem>>, vector<16x16x4xf32>
    tpu.vector_store %arg7[%c1, %c1_3, %c0_4], %1 {strides = array<i32>} : memref<18x18x4xf32, #tpu.memory_space<vmem>>, vector<16x16x4xf32>,
    %3 = vector.extract_strided_slice %1 {offsets = [1, 0, 0], sizes = [1, 16, 4], strides = [1, 1, 1]} : vector<16x16x4xf32> to vector<1x16x4xf32>
    %c0_5 = arith.constant 0 : index
    %c1_6 = arith.constant 1 : index
    %c0_7 = arith.constant 0 : index
    %4 = vector.load %arg7[%c0_5, %c1_6, %c0_7] : memref<18x18x4xf32, #tpu.memory_space<vmem>>, vector<1x16x4xf32>
    tpu.vector_store %arg7[%c0_5, %c1_6, %c0_7], %3 {strides = array<i32>} : memref<18x18x4xf32, #tpu.memory_space<vmem>>, vector<1x16x4xf32>,
    %5 = vector.extract_strided_slice %1 {offsets = [14, 0, 0], sizes = [1, 16, 4], strides = [1, 1, 1]} : vector<16x16x4xf32> to vector<1x16x4xf32>
    %c17 = arith.constant 17 : index
    %c1_8 = arith.constant 1 : index
    %c0_9 = arith.constant 0 : index
    %6 = vector.load %arg7[%c17, %c1_8, %c0_9] : memref<18x18x4xf32, #tpu.memory_space<vmem>>, vector<1x16x4xf32>
    tpu.vector_store %arg7[%c17, %c1_8, %c0_9], %5 {strides = array<i32>} : memref<18x18x4xf32, #tpu.memory_space<vmem>>, vector<1x16x4xf32>,
    %c0_10 = arith.constant 0 : index
    %c2 = arith.constant 2 : index
    %c0_11 = arith.constant 0 : index
    %7 = vector.load %arg7[%c0_10, %c2, %c0_11] : memref<18x18x4xf32, #tpu.memory_space<vmem>>, vector<18x1x4xf32>
    %c0_12 = arith.constant 0 : index
    %c0_13 = arith.constant 0 : index
    %c0_14 = arith.constant 0 : index
    %8 = vector.load %arg7[%c0_12, %c0_13, %c0_14] : memref<18x18x4xf32, #tpu.memory_space<vmem>>, vector<18x1x4xf32>
    tpu.vector_store %arg7[%c0_12, %c0_13, %c0_14], %7 {strides = array<i32>} : memref<18x18x4xf32, #tpu.memory_space<vmem>>, vector<18x1x4xf32>,
    %c0_15 = arith.constant 0 : index
    %c15 = arith.constant 15 : index
    %c0_16 = arith.constant 0 : index
    %9 = vector.load %arg7[%c0_15, %c15, %c0_16] : memref<18x18x4xf32, #tpu.memory_space<vmem>>, vector<18x1x4xf32>
    %c0_17 = arith.constant 0 : index
    %c17_18 = arith.constant 17 : index
    %c0_19 = arith.constant 0 : index
    %10 = vector.load %arg7[%c0_17, %c17_18, %c0_19] : memref<18x18x4xf32, #tpu.memory_space<vmem>>, vector<18x1x4xf32>
    tpu.vector_store %arg7[%c0_17, %c17_18, %c0_19], %9 {strides = array<i32>} : memref<18x18x4xf32, #tpu.memory_space<vmem>>, vector<18x1x4xf32>,
    %cst = arith.constant 0.000000e+00 : f32
    %11 = vector.broadcast %cst : f32 to vector<1x4xf32>
    %cst_20 = arith.constant 0.000000e+00 : f32
    %12 = vector.broadcast %cst_20 : f32 to vector<1x4xf32>
    %c0_21 = arith.constant 0 : index
    %c0_22 = arith.constant 0 : index
    %c0_23 = arith.constant 0 : index
    %13 = vector.load %arg7[%c0_21, %c0_22, %c0_23] : memref<18x18x4xf32, #tpu.memory_space<vmem>>, vector<16x16x4xf32>
    %14 = vector.shape_cast %13 : vector<16x16x4xf32> to vector<256x4xf32>
    %c0_24 = arith.constant 0 : index
    %c0_25 = arith.constant 0 : index
    %15 = vector.load %arg8[%c0_24, %c0_25] : memref<256x36xf32, #tpu.memory_space<vmem>>, vector<256x4xf32>
    tpu.vector_store %arg8[%c0_24, %c0_25], %14 {strides = array<i32>} : memref<256x36xf32, #tpu.memory_space<vmem>>, vector<256x4xf32>,
    %c0_26 = arith.constant 0 : index
    %c1_27 = arith.constant 1 : index
    %c0_28 = arith.constant 0 : index
    %16 = vector.load %arg7[%c0_26, %c1_27, %c0_28] : memref<18x18x4xf32, #tpu.memory_space<vmem>>, vector<16x16x4xf32>
    %17 = vector.shape_cast %16 : vector<16x16x4xf32> to vector<256x4xf32>
    %c0_29 = arith.constant 0 : index
    %c4 = arith.constant 4 : index
    %18 = vector.load %arg8[%c0_29, %c4] : memref<256x36xf32, #tpu.memory_space<vmem>>, vector<256x4xf32>
    tpu.vector_store %arg8[%c0_29, %c4], %17 {strides = array<i32>} : memref<256x36xf32, #tpu.memory_space<vmem>>, vector<256x4xf32>,
    %c0_30 = arith.constant 0 : index
    %c2_31 = arith.constant 2 : index
    %c0_32 = arith.constant 0 : index
    %19 = vector.load %arg7[%c0_30, %c2_31, %c0_32] : memref<18x18x4xf32, #tpu.memory_space<vmem>>, vector<16x16x4xf32>
    %20 = vector.shape_cast %19 : vector<16x16x4xf32> to vector<256x4xf32>
    %c0_33 = arith.constant 0 : index
    %c8 = arith.constant 8 : index
    %21 = vector.load %arg8[%c0_33, %c8] : memref<256x36xf32, #tpu.memory_space<vmem>>, vector<256x4xf32>
    tpu.vector_store %arg8[%c0_33, %c8], %20 {strides = array<i32>} : memref<256x36xf32, #tpu.memory_space<vmem>>, vector<256x4xf32>,
    %c1_34 = arith.constant 1 : index
    %c0_35 = arith.constant 0 : index
    %c0_36 = arith.constant 0 : index
    %22 = vector.load %arg7[%c1_34, %c0_35, %c0_36] : memref<18x18x4xf32, #tpu.memory_space<vmem>>, vector<16x16x4xf32>
    %23 = vector.shape_cast %22 : vector<16x16x4xf32> to vector<256x4xf32>
    %c0_37 = arith.constant 0 : index
    %c12 = arith.constant 12 : index
    %24 = vector.load %arg8[%c0_37, %c12] : memref<256x36xf32, #tpu.memory_space<vmem>>, vector<256x4xf32>
    tpu.vector_store %arg8[%c0_37, %c12], %23 {strides = array<i32>} : memref<256x36xf32, #tpu.memory_space<vmem>>, vector<256x4xf32>,
    %c1_38 = arith.constant 1 : index
    %c1_39 = arith.constant 1 : index
    %c0_40 = arith.constant 0 : index
    %25 = vector.load %arg7[%c1_38, %c1_39, %c0_40] : memref<18x18x4xf32, #tpu.memory_space<vmem>>, vector<16x16x4xf32>
    %26 = vector.shape_cast %25 : vector<16x16x4xf32> to vector<256x4xf32>
    %c0_41 = arith.constant 0 : index
    %c16 = arith.constant 16 : index
    %27 = vector.load %arg8[%c0_41, %c16] : memref<256x36xf32, #tpu.memory_space<vmem>>, vector<256x4xf32>
    tpu.vector_store %arg8[%c0_41, %c16], %26 {strides = array<i32>} : memref<256x36xf32, #tpu.memory_space<vmem>>, vector<256x4xf32>,
    %c1_42 = arith.constant 1 : index
    %c2_43 = arith.constant 2 : index
    %c0_44 = arith.constant 0 : index
    %28 = vector.load %arg7[%c1_42, %c2_43, %c0_44] : memref<18x18x4xf32, #tpu.memory_space<vmem>>, vector<16x16x4xf32>
    %29 = vector.shape_cast %28 : vector<16x16x4xf32> to vector<256x4xf32>
    %c0_45 = arith.constant 0 : index
    %c20 = arith.constant 20 : index
    %30 = vector.load %arg8[%c0_45, %c20] : memref<256x36xf32, #tpu.memory_space<vmem>>, vector<256x4xf32>
    tpu.vector_store %arg8[%c0_45, %c20], %29 {strides = array<i32>} : memref<256x36xf32, #tpu.memory_space<vmem>>, vector<256x4xf32>,
    %c2_46 = arith.constant 2 : index
    %c0_47 = arith.constant 0 : index
    %c0_48 = arith.constant 0 : index
    %31 = vector.load %arg7[%c2_46, %c0_47, %c0_48] : memref<18x18x4xf32, #tpu.memory_space<vmem>>, vector<16x16x4xf32>
    %32 = vector.shape_cast %31 : vector<16x16x4xf32> to vector<256x4xf32>
    %c0_49 = arith.constant 0 : index
    %c24 = arith.constant 24 : index
    %33 = vector.load %arg8[%c0_49, %c24] : memref<256x36xf32, #tpu.memory_space<vmem>>, vector<256x4xf32>
    tpu.vector_store %arg8[%c0_49, %c24], %32 {strides = array<i32>} : memref<256x36xf32, #tpu.memory_space<vmem>>, vector<256x4xf32>,
    %c2_50 = arith.constant 2 : index
    %c1_51 = arith.constant 1 : index
    %c0_52 = arith.constant 0 : index
    %34 = vector.load %arg7[%c2_50, %c1_51, %c0_52] : memref<18x18x4xf32, #tpu.memory_space<vmem>>, vector<16x16x4xf32>
    %35 = vector.shape_cast %34 : vector<16x16x4xf32> to vector<256x4xf32>
    %c0_53 = arith.constant 0 : index
    %c28 = arith.constant 28 : index
    %36 = vector.load %arg8[%c0_53, %c28] : memref<256x36xf32, #tpu.memory_space<vmem>>, vector<256x4xf32>
    tpu.vector_store %arg8[%c0_53, %c28], %35 {strides = array<i32>} : memref<256x36xf32, #tpu.memory_space<vmem>>, vector<256x4xf32>,
    %c2_54 = arith.constant 2 : index
    %c2_55 = arith.constant 2 : index
    %c0_56 = arith.constant 0 : index
    %37 = vector.load %arg7[%c2_54, %c2_55, %c0_56] : memref<18x18x4xf32, #tpu.memory_space<vmem>>, vector<16x16x4xf32>
    %38 = vector.shape_cast %37 : vector<16x16x4xf32> to vector<256x4xf32>
    %c0_57 = arith.constant 0 : index
    %c32 = arith.constant 32 : index
    %39 = vector.load %arg8[%c0_57, %c32] : memref<256x36xf32, #tpu.memory_space<vmem>>, vector<256x4xf32>
    tpu.vector_store %arg8[%c0_57, %c32], %38 {strides = array<i32>} : memref<256x36xf32, #tpu.memory_space<vmem>>, vector<256x4xf32>,
    %c0_58 = arith.constant 0 : index
    %c0_59 = arith.constant 0 : index
    %40 = vector.load %arg8[%c0_58, %c0_59] : memref<256x36xf32, #tpu.memory_space<vmem>>, vector<256x36xf32>
    %c0_60 = arith.constant 0 : index
    %c0_61 = arith.constant 0 : index
    %41 = vector.load %arg2[%c0_60, %c0_61] : memref<36x4xf32, #tpu.memory_space<vmem>>, vector<36x4xf32>
    %cst_62 = arith.constant dense<0.000000e+00> : vector<256x4xf32>
    %42 = tpu.matmul %40, %41, %cst_62 {dimension_numbers = #tpu.dot_dimension_numbers<[1], [0], [0], [1], [0, 0, 1, 1], [], []>} : vector<256x36xf32>, vector<36x4xf32>, vector<256x4xf32> -> vector<256x4xf32>
    %43 = vector.shape_cast %42 : vector<256x4xf32> to vector<16x16x4xf32>
    %c0_63 = arith.constant 0 : index
    %c0_64 = arith.constant 0 : index
    %c0_65 = arith.constant 0 : index
    %c0_66 = arith.constant 0 : index
    %44 = vector.load %arg5[%c0_63, %c0_64, %c0_65, %c0_66] : memref<1x16x16x4xf32, #tpu.memory_space<vmem>>, vector<1x16x16x4xf32>
    %45 = vector.shape_cast %44 : vector<1x16x16x4xf32> to vector<16x16x4xf32>
    %46 = vector.shape_cast %43 : vector<16x16x4xf32> to vector<1x16x16x4xf32>
    tpu.vector_store %arg5[%c0_63, %c0_64, %c0_65, %c0_66], %46 {strides = array<i32>} : memref<1x16x16x4xf32, #tpu.memory_space<vmem>>, vector<1x16x16x4xf32>,
    %cst_67 = arith.constant dense<0.000000e+00> : vector<4xf32>
    %47 = vector.multi_reduction <add>, %42, %cst_67 [0] : vector<256x4xf32> to vector<4xf32>
    %48 = vector.shape_cast %47 : vector<4xf32> to vector<1x4xf32>
    %49 = arith.addf %11, %48 : vector<1x4xf32>
    %50 = arith.mulf %42, %42 : vector<256x4xf32>
    %cst_68 = arith.constant dense<0.000000e+00> : vector<4xf32>
    %51 = vector.multi_reduction <add>, %50, %cst_68 [0] : vector<256x4xf32> to vector<4xf32>
    %52 = vector.shape_cast %51 : vector<4xf32> to vector<1x4xf32>
    %53 = arith.addf %12, %52 : vector<1x4xf32>
    %c0_69 = arith.constant 0 : index
    %c0_70 = arith.constant 0 : index
    %c0_71 = arith.constant 0 : index
    %54 = vector.load %arg6[%c0_69, %c0_70, %c0_71] : memref<1x2x4xf32, #tpu.memory_space<vmem>>, vector<1x1x4xf32>
    %55 = vector.shape_cast %54 : vector<1x1x4xf32> to vector<1x4xf32>
    %56 = vector.shape_cast %49 : vector<1x4xf32> to vector<1x1x4xf32>
    tpu.vector_store %arg6[%c0_69, %c0_70, %c0_71], %56 {strides = array<i32>} : memref<1x2x4xf32, #tpu.memory_space<vmem>>, vector<1x1x4xf32>,
    %c0_72 = arith.constant 0 : index
    %c1_73 = arith.constant 1 : index
    %c0_74 = arith.constant 0 : index
    %57 = vector.load %arg6[%c0_72, %c1_73, %c0_74] : memref<1x2x4xf32, #tpu.memory_space<vmem>>, vector<1x1x4xf32>
    %58 = vector.shape_cast %57 : vector<1x1x4xf32> to vector<1x4xf32>
    %59 = vector.shape_cast %53 : vector<1x4xf32> to vector<1x1x4xf32>
    tpu.vector_store %arg6[%c0_72, %c1_73, %c0_74], %59 {strides = array<i32>} : memref<1x2x4xf32, #tpu.memory_space<vmem>>, vector<1x1x4xf32>,
    return
  }
  func.func @transform_0(%arg0: i32) -> (i32, i32, i32, i32) {
    %c0_i32 = arith.constant 0 : i32
    %c0_i32_0 = arith.constant 0 : i32
    %c0_i32_1 = arith.constant 0 : i32
    %c0_i32_2 = arith.constant 0 : i32
    return %arg0, %c0_i32, %c0_i32_0, %c0_i32_1 : i32, i32, i32, i32
  }
  func.func @transform_1(%arg0: i32) -> (i32, i32) {
    %c0_i32 = arith.constant 0 : i32
    %c0_i32_0 = arith.constant 0 : i32
    %c0_i32_1 = arith.constant 0 : i32
    return %c0_i32, %c0_i32_0 : i32, i32
  }
  func.func @transform_2(%arg0: i32) -> (i32, i32) {
    %c0_i32 = arith.constant 0 : i32
    %c0_i32_0 = arith.constant 0 : i32
    %c0_i32_1 = arith.constant 0 : i32
    return %c0_i32, %c0_i32_0 : i32, i32
  }
  func.func @transform_3(%arg0: i32) -> (i32, i32) {
    %c0_i32 = arith.constant 0 : i32
    %c0_i32_0 = arith.constant 0 : i32
    %c0_i32_1 = arith.constant 0 : i32
    return %c0_i32, %c0_i32_0 : i32, i32
  }
  func.func @transform_4(%arg0: i32) -> (i32, i32, i32, i32) {
    %c0_i32 = arith.constant 0 : i32
    %c0_i32_0 = arith.constant 0 : i32
    %c0_i32_1 = arith.constant 0 : i32
    %c0_i32_2 = arith.constant 0 : i32
    return %arg0, %c0_i32, %c0_i32_0, %c0_i32_1 : i32, i32, i32, i32
  }
  func.func @transform_5(%arg0: i32) -> (i32, i32, i32) {
    %c0_i32 = arith.constant 0 : i32
    %c0_i32_0 = arith.constant 0 : i32
    %c0_i32_1 = arith.constant 0 : i32
    return %arg0, %c0_i32, %c0_i32_0 : i32, i32, i32
  }
}

module attributes {stable_mosaic.version = 11 : i64} {
  func.func @_conv_bn_stats_kernel(%arg0: i32, %arg1: memref<1x16x16x4xf32, #tpu.memory_space<vmem>>, %arg2: memref<36x4xf32, #tpu.memory_space<vmem>>, %arg3: memref<1x4xf32, #tpu.memory_space<vmem>>, %arg4: memref<1x4xf32, #tpu.memory_space<vmem>>, %arg5: memref<1x16x16x4xf32, #tpu.memory_space<vmem>>, %arg6: memref<1x2x4xf32, #tpu.memory_space<vmem>>, %arg7: memref<18x18x4xf32, #tpu.memory_space<vmem>>, %arg8: memref<256x36xf32, #tpu.memory_space<vmem>>) attributes {dimension_semantics = [#tpu.dimension_semantics<parallel>], iteration_bounds = array<i64: 2>, scalar_prefetch = 0 : i64, scratch_operands = 2 : i64, tpu.core_type = #tpu.core_type<tc>, window_params = [{transform_indices = @transform_0, window_bounds = array<i64: 1, 16, 16, 4>}, {pipeline_mode = #tpu.pipeline_mode<synchronous>, transform_indices = @transform_1, window_bounds = array<i64: 36, 4>}, {pipeline_mode = #tpu.pipeline_mode<synchronous>, transform_indices = @transform_2, window_bounds = array<i64: 1, 4>}, {pipeline_mode = #tpu.pipeline_mode<synchronous>, transform_indices = @transform_3, window_bounds = array<i64: 1, 4>}, {transform_indices = @transform_4, window_bounds = array<i64: 1, 16, 16, 4>}, {transform_indices = @transform_5, window_bounds = array<i64: 1, 2, 4>}]} {
    %c0 = arith.constant 0 : index
    %c0_0 = arith.constant 0 : index
    %c0_1 = arith.constant 0 : index
    %c0_2 = arith.constant 0 : index
    %0 = vector.load %arg1[%c0, %c0_0, %c0_1, %c0_2] : memref<1x16x16x4xf32, #tpu.memory_space<vmem>>, vector<1x16x16x4xf32>
    %1 = vector.shape_cast %0 : vector<1x16x16x4xf32> to vector<16x16x4xf32>
    %c0_3 = arith.constant 0 : index
    %c0_4 = arith.constant 0 : index
    %2 = vector.load %arg3[%c0_3, %c0_4] : memref<1x4xf32, #tpu.memory_space<vmem>>, vector<1x4xf32>
    %3 = vector.shape_cast %2 : vector<1x4xf32> to vector<1x1x4xf32>
    %c0_5 = arith.constant 0 : index
    %c0_6 = arith.constant 0 : index
    %4 = vector.load %arg4[%c0_5, %c0_6] : memref<1x4xf32, #tpu.memory_space<vmem>>, vector<1x4xf32>
    %5 = vector.shape_cast %4 : vector<1x4xf32> to vector<1x1x4xf32>
    %6 = vector.broadcast %3 : vector<1x1x4xf32> to vector<16x16x4xf32>
    %7 = arith.mulf %1, %6 : vector<16x16x4xf32>
    %8 = vector.broadcast %5 : vector<1x1x4xf32> to vector<16x16x4xf32>
    %9 = arith.addf %7, %8 : vector<16x16x4xf32>
    %cst = arith.constant 0.000000e+00 : f32
    %10 = vector.broadcast %cst : f32 to vector<16x16x4xf32>
    %11 = arith.cmpf ogt, %9, %10 : vector<16x16x4xf32>
    %cst_7 = arith.constant 0.00999999977 : f32
    %12 = vector.broadcast %cst_7 : f32 to vector<16x16x4xf32>
    %13 = arith.mulf %12, %9 : vector<16x16x4xf32>
    %14 = arith.select %11, %9, %13 : vector<16x16x4xi1>, vector<16x16x4xf32>
    %c1 = arith.constant 1 : index
    %c1_8 = arith.constant 1 : index
    %c0_9 = arith.constant 0 : index
    %15 = vector.load %arg7[%c1, %c1_8, %c0_9] : memref<18x18x4xf32, #tpu.memory_space<vmem>>, vector<16x16x4xf32>
    tpu.vector_store %arg7[%c1, %c1_8, %c0_9], %14 {strides = array<i32>} : memref<18x18x4xf32, #tpu.memory_space<vmem>>, vector<16x16x4xf32>,
    %16 = vector.extract_strided_slice %14 {offsets = [1, 0, 0], sizes = [1, 16, 4], strides = [1, 1, 1]} : vector<16x16x4xf32> to vector<1x16x4xf32>
    %c0_10 = arith.constant 0 : index
    %c1_11 = arith.constant 1 : index
    %c0_12 = arith.constant 0 : index
    %17 = vector.load %arg7[%c0_10, %c1_11, %c0_12] : memref<18x18x4xf32, #tpu.memory_space<vmem>>, vector<1x16x4xf32>
    tpu.vector_store %arg7[%c0_10, %c1_11, %c0_12], %16 {strides = array<i32>} : memref<18x18x4xf32, #tpu.memory_space<vmem>>, vector<1x16x4xf32>,
    %18 = vector.extract_strided_slice %14 {offsets = [14, 0, 0], sizes = [1, 16, 4], strides = [1, 1, 1]} : vector<16x16x4xf32> to vector<1x16x4xf32>
    %c17 = arith.constant 17 : index
    %c1_13 = arith.constant 1 : index
    %c0_14 = arith.constant 0 : index
    %19 = vector.load %arg7[%c17, %c1_13, %c0_14] : memref<18x18x4xf32, #tpu.memory_space<vmem>>, vector<1x16x4xf32>
    tpu.vector_store %arg7[%c17, %c1_13, %c0_14], %18 {strides = array<i32>} : memref<18x18x4xf32, #tpu.memory_space<vmem>>, vector<1x16x4xf32>,
    %c0_15 = arith.constant 0 : index
    %c2 = arith.constant 2 : index
    %c0_16 = arith.constant 0 : index
    %20 = vector.load %arg7[%c0_15, %c2, %c0_16] : memref<18x18x4xf32, #tpu.memory_space<vmem>>, vector<18x1x4xf32>
    %c0_17 = arith.constant 0 : index
    %c0_18 = arith.constant 0 : index
    %c0_19 = arith.constant 0 : index
    %21 = vector.load %arg7[%c0_17, %c0_18, %c0_19] : memref<18x18x4xf32, #tpu.memory_space<vmem>>, vector<18x1x4xf32>
    tpu.vector_store %arg7[%c0_17, %c0_18, %c0_19], %20 {strides = array<i32>} : memref<18x18x4xf32, #tpu.memory_space<vmem>>, vector<18x1x4xf32>,
    %c0_20 = arith.constant 0 : index
    %c15 = arith.constant 15 : index
    %c0_21 = arith.constant 0 : index
    %22 = vector.load %arg7[%c0_20, %c15, %c0_21] : memref<18x18x4xf32, #tpu.memory_space<vmem>>, vector<18x1x4xf32>
    %c0_22 = arith.constant 0 : index
    %c17_23 = arith.constant 17 : index
    %c0_24 = arith.constant 0 : index
    %23 = vector.load %arg7[%c0_22, %c17_23, %c0_24] : memref<18x18x4xf32, #tpu.memory_space<vmem>>, vector<18x1x4xf32>
    tpu.vector_store %arg7[%c0_22, %c17_23, %c0_24], %22 {strides = array<i32>} : memref<18x18x4xf32, #tpu.memory_space<vmem>>, vector<18x1x4xf32>,
    %cst_25 = arith.constant 0.000000e+00 : f32
    %24 = vector.broadcast %cst_25 : f32 to vector<1x4xf32>
    %cst_26 = arith.constant 0.000000e+00 : f32
    %25 = vector.broadcast %cst_26 : f32 to vector<1x4xf32>
    %c0_27 = arith.constant 0 : index
    %c0_28 = arith.constant 0 : index
    %c0_29 = arith.constant 0 : index
    %26 = vector.load %arg7[%c0_27, %c0_28, %c0_29] : memref<18x18x4xf32, #tpu.memory_space<vmem>>, vector<16x16x4xf32>
    %27 = vector.shape_cast %26 : vector<16x16x4xf32> to vector<256x4xf32>
    %c0_30 = arith.constant 0 : index
    %c0_31 = arith.constant 0 : index
    %28 = vector.load %arg8[%c0_30, %c0_31] : memref<256x36xf32, #tpu.memory_space<vmem>>, vector<256x4xf32>
    tpu.vector_store %arg8[%c0_30, %c0_31], %27 {strides = array<i32>} : memref<256x36xf32, #tpu.memory_space<vmem>>, vector<256x4xf32>,
    %c0_32 = arith.constant 0 : index
    %c1_33 = arith.constant 1 : index
    %c0_34 = arith.constant 0 : index
    %29 = vector.load %arg7[%c0_32, %c1_33, %c0_34] : memref<18x18x4xf32, #tpu.memory_space<vmem>>, vector<16x16x4xf32>
    %30 = vector.shape_cast %29 : vector<16x16x4xf32> to vector<256x4xf32>
    %c0_35 = arith.constant 0 : index
    %c4 = arith.constant 4 : index
    %31 = vector.load %arg8[%c0_35, %c4] : memref<256x36xf32, #tpu.memory_space<vmem>>, vector<256x4xf32>
    tpu.vector_store %arg8[%c0_35, %c4], %30 {strides = array<i32>} : memref<256x36xf32, #tpu.memory_space<vmem>>, vector<256x4xf32>,
    %c0_36 = arith.constant 0 : index
    %c2_37 = arith.constant 2 : index
    %c0_38 = arith.constant 0 : index
    %32 = vector.load %arg7[%c0_36, %c2_37, %c0_38] : memref<18x18x4xf32, #tpu.memory_space<vmem>>, vector<16x16x4xf32>
    %33 = vector.shape_cast %32 : vector<16x16x4xf32> to vector<256x4xf32>
    %c0_39 = arith.constant 0 : index
    %c8 = arith.constant 8 : index
    %34 = vector.load %arg8[%c0_39, %c8] : memref<256x36xf32, #tpu.memory_space<vmem>>, vector<256x4xf32>
    tpu.vector_store %arg8[%c0_39, %c8], %33 {strides = array<i32>} : memref<256x36xf32, #tpu.memory_space<vmem>>, vector<256x4xf32>,
    %c1_40 = arith.constant 1 : index
    %c0_41 = arith.constant 0 : index
    %c0_42 = arith.constant 0 : index
    %35 = vector.load %arg7[%c1_40, %c0_41, %c0_42] : memref<18x18x4xf32, #tpu.memory_space<vmem>>, vector<16x16x4xf32>
    %36 = vector.shape_cast %35 : vector<16x16x4xf32> to vector<256x4xf32>
    %c0_43 = arith.constant 0 : index
    %c12 = arith.constant 12 : index
    %37 = vector.load %arg8[%c0_43, %c12] : memref<256x36xf32, #tpu.memory_space<vmem>>, vector<256x4xf32>
    tpu.vector_store %arg8[%c0_43, %c12], %36 {strides = array<i32>} : memref<256x36xf32, #tpu.memory_space<vmem>>, vector<256x4xf32>,
    %c1_44 = arith.constant 1 : index
    %c1_45 = arith.constant 1 : index
    %c0_46 = arith.constant 0 : index
    %38 = vector.load %arg7[%c1_44, %c1_45, %c0_46] : memref<18x18x4xf32, #tpu.memory_space<vmem>>, vector<16x16x4xf32>
    %39 = vector.shape_cast %38 : vector<16x16x4xf32> to vector<256x4xf32>
    %c0_47 = arith.constant 0 : index
    %c16 = arith.constant 16 : index
    %40 = vector.load %arg8[%c0_47, %c16] : memref<256x36xf32, #tpu.memory_space<vmem>>, vector<256x4xf32>
    tpu.vector_store %arg8[%c0_47, %c16], %39 {strides = array<i32>} : memref<256x36xf32, #tpu.memory_space<vmem>>, vector<256x4xf32>,
    %c1_48 = arith.constant 1 : index
    %c2_49 = arith.constant 2 : index
    %c0_50 = arith.constant 0 : index
    %41 = vector.load %arg7[%c1_48, %c2_49, %c0_50] : memref<18x18x4xf32, #tpu.memory_space<vmem>>, vector<16x16x4xf32>
    %42 = vector.shape_cast %41 : vector<16x16x4xf32> to vector<256x4xf32>
    %c0_51 = arith.constant 0 : index
    %c20 = arith.constant 20 : index
    %43 = vector.load %arg8[%c0_51, %c20] : memref<256x36xf32, #tpu.memory_space<vmem>>, vector<256x4xf32>
    tpu.vector_store %arg8[%c0_51, %c20], %42 {strides = array<i32>} : memref<256x36xf32, #tpu.memory_space<vmem>>, vector<256x4xf32>,
    %c2_52 = arith.constant 2 : index
    %c0_53 = arith.constant 0 : index
    %c0_54 = arith.constant 0 : index
    %44 = vector.load %arg7[%c2_52, %c0_53, %c0_54] : memref<18x18x4xf32, #tpu.memory_space<vmem>>, vector<16x16x4xf32>
    %45 = vector.shape_cast %44 : vector<16x16x4xf32> to vector<256x4xf32>
    %c0_55 = arith.constant 0 : index
    %c24 = arith.constant 24 : index
    %46 = vector.load %arg8[%c0_55, %c24] : memref<256x36xf32, #tpu.memory_space<vmem>>, vector<256x4xf32>
    tpu.vector_store %arg8[%c0_55, %c24], %45 {strides = array<i32>} : memref<256x36xf32, #tpu.memory_space<vmem>>, vector<256x4xf32>,
    %c2_56 = arith.constant 2 : index
    %c1_57 = arith.constant 1 : index
    %c0_58 = arith.constant 0 : index
    %47 = vector.load %arg7[%c2_56, %c1_57, %c0_58] : memref<18x18x4xf32, #tpu.memory_space<vmem>>, vector<16x16x4xf32>
    %48 = vector.shape_cast %47 : vector<16x16x4xf32> to vector<256x4xf32>
    %c0_59 = arith.constant 0 : index
    %c28 = arith.constant 28 : index
    %49 = vector.load %arg8[%c0_59, %c28] : memref<256x36xf32, #tpu.memory_space<vmem>>, vector<256x4xf32>
    tpu.vector_store %arg8[%c0_59, %c28], %48 {strides = array<i32>} : memref<256x36xf32, #tpu.memory_space<vmem>>, vector<256x4xf32>,
    %c2_60 = arith.constant 2 : index
    %c2_61 = arith.constant 2 : index
    %c0_62 = arith.constant 0 : index
    %50 = vector.load %arg7[%c2_60, %c2_61, %c0_62] : memref<18x18x4xf32, #tpu.memory_space<vmem>>, vector<16x16x4xf32>
    %51 = vector.shape_cast %50 : vector<16x16x4xf32> to vector<256x4xf32>
    %c0_63 = arith.constant 0 : index
    %c32 = arith.constant 32 : index
    %52 = vector.load %arg8[%c0_63, %c32] : memref<256x36xf32, #tpu.memory_space<vmem>>, vector<256x4xf32>
    tpu.vector_store %arg8[%c0_63, %c32], %51 {strides = array<i32>} : memref<256x36xf32, #tpu.memory_space<vmem>>, vector<256x4xf32>,
    %c0_64 = arith.constant 0 : index
    %c0_65 = arith.constant 0 : index
    %53 = vector.load %arg8[%c0_64, %c0_65] : memref<256x36xf32, #tpu.memory_space<vmem>>, vector<256x36xf32>
    %c0_66 = arith.constant 0 : index
    %c0_67 = arith.constant 0 : index
    %54 = vector.load %arg2[%c0_66, %c0_67] : memref<36x4xf32, #tpu.memory_space<vmem>>, vector<36x4xf32>
    %cst_68 = arith.constant dense<0.000000e+00> : vector<256x4xf32>
    %55 = tpu.matmul %53, %54, %cst_68 {dimension_numbers = #tpu.dot_dimension_numbers<[1], [0], [0], [1], [0, 0, 1, 1], [], []>} : vector<256x36xf32>, vector<36x4xf32>, vector<256x4xf32> -> vector<256x4xf32>
    %56 = vector.shape_cast %55 : vector<256x4xf32> to vector<16x16x4xf32>
    %c0_69 = arith.constant 0 : index
    %c0_70 = arith.constant 0 : index
    %c0_71 = arith.constant 0 : index
    %c0_72 = arith.constant 0 : index
    %57 = vector.load %arg5[%c0_69, %c0_70, %c0_71, %c0_72] : memref<1x16x16x4xf32, #tpu.memory_space<vmem>>, vector<1x16x16x4xf32>
    %58 = vector.shape_cast %57 : vector<1x16x16x4xf32> to vector<16x16x4xf32>
    %59 = vector.shape_cast %56 : vector<16x16x4xf32> to vector<1x16x16x4xf32>
    tpu.vector_store %arg5[%c0_69, %c0_70, %c0_71, %c0_72], %59 {strides = array<i32>} : memref<1x16x16x4xf32, #tpu.memory_space<vmem>>, vector<1x16x16x4xf32>,
    %cst_73 = arith.constant dense<0.000000e+00> : vector<4xf32>
    %60 = vector.multi_reduction <add>, %55, %cst_73 [0] : vector<256x4xf32> to vector<4xf32>
    %61 = vector.shape_cast %60 : vector<4xf32> to vector<1x4xf32>
    %62 = arith.addf %24, %61 : vector<1x4xf32>
    %63 = arith.mulf %55, %55 : vector<256x4xf32>
    %cst_74 = arith.constant dense<0.000000e+00> : vector<4xf32>
    %64 = vector.multi_reduction <add>, %63, %cst_74 [0] : vector<256x4xf32> to vector<4xf32>
    %65 = vector.shape_cast %64 : vector<4xf32> to vector<1x4xf32>
    %66 = arith.addf %25, %65 : vector<1x4xf32>
    %c0_75 = arith.constant 0 : index
    %c0_76 = arith.constant 0 : index
    %c0_77 = arith.constant 0 : index
    %67 = vector.load %arg6[%c0_75, %c0_76, %c0_77] : memref<1x2x4xf32, #tpu.memory_space<vmem>>, vector<1x1x4xf32>
    %68 = vector.shape_cast %67 : vector<1x1x4xf32> to vector<1x4xf32>
    %69 = vector.shape_cast %62 : vector<1x4xf32> to vector<1x1x4xf32>
    tpu.vector_store %arg6[%c0_75, %c0_76, %c0_77], %69 {strides = array<i32>} : memref<1x2x4xf32, #tpu.memory_space<vmem>>, vector<1x1x4xf32>,
    %c0_78 = arith.constant 0 : index
    %c1_79 = arith.constant 1 : index
    %c0_80 = arith.constant 0 : index
    %70 = vector.load %arg6[%c0_78, %c1_79, %c0_80] : memref<1x2x4xf32, #tpu.memory_space<vmem>>, vector<1x1x4xf32>
    %71 = vector.shape_cast %70 : vector<1x1x4xf32> to vector<1x4xf32>
    %72 = vector.shape_cast %66 : vector<1x4xf32> to vector<1x1x4xf32>
    tpu.vector_store %arg6[%c0_78, %c1_79, %c0_80], %72 {strides = array<i32>} : memref<1x2x4xf32, #tpu.memory_space<vmem>>, vector<1x1x4xf32>,
    return
  }
  func.func @transform_0(%arg0: i32) -> (i32, i32, i32, i32) {
    %c0_i32 = arith.constant 0 : i32
    %c0_i32_0 = arith.constant 0 : i32
    %c0_i32_1 = arith.constant 0 : i32
    %c0_i32_2 = arith.constant 0 : i32
    return %arg0, %c0_i32, %c0_i32_0, %c0_i32_1 : i32, i32, i32, i32
  }
  func.func @transform_1(%arg0: i32) -> (i32, i32) {
    %c0_i32 = arith.constant 0 : i32
    %c0_i32_0 = arith.constant 0 : i32
    %c0_i32_1 = arith.constant 0 : i32
    return %c0_i32, %c0_i32_0 : i32, i32
  }
  func.func @transform_2(%arg0: i32) -> (i32, i32) {
    %c0_i32 = arith.constant 0 : i32
    %c0_i32_0 = arith.constant 0 : i32
    %c0_i32_1 = arith.constant 0 : i32
    return %c0_i32, %c0_i32_0 : i32, i32
  }
  func.func @transform_3(%arg0: i32) -> (i32, i32) {
    %c0_i32 = arith.constant 0 : i32
    %c0_i32_0 = arith.constant 0 : i32
    %c0_i32_1 = arith.constant 0 : i32
    return %c0_i32, %c0_i32_0 : i32, i32
  }
  func.func @transform_4(%arg0: i32) -> (i32, i32, i32, i32) {
    %c0_i32 = arith.constant 0 : i32
    %c0_i32_0 = arith.constant 0 : i32
    %c0_i32_1 = arith.constant 0 : i32
    %c0_i32_2 = arith.constant 0 : i32
    return %arg0, %c0_i32, %c0_i32_0, %c0_i32_1 : i32, i32, i32, i32
  }
  func.func @transform_5(%arg0: i32) -> (i32, i32, i32) {
    %c0_i32 = arith.constant 0 : i32
    %c0_i32_0 = arith.constant 0 : i32
    %c0_i32_1 = arith.constant 0 : i32
    return %arg0, %c0_i32, %c0_i32_0 : i32, i32, i32
  }
}

module attributes {stable_mosaic.version = 11 : i64} {
  func.func @_residual_add_kernel(%arg0: i32, %arg1: memref<1x16x16x4xf32, #tpu.memory_space<vmem>>, %arg2: memref<1x16x16x4xf32, #tpu.memory_space<vmem>>, %arg3: memref<1x4xf32, #tpu.memory_space<vmem>>, %arg4: memref<1x4xf32, #tpu.memory_space<vmem>>, %arg5: memref<1x16x16x4xf32, #tpu.memory_space<vmem>>) attributes {dimension_semantics = [#tpu.dimension_semantics<parallel>], iteration_bounds = array<i64: 2>, scalar_prefetch = 0 : i64, scratch_operands = 0 : i64, tpu.core_type = #tpu.core_type<tc>, window_params = [{transform_indices = @transform_0, window_bounds = array<i64: 1, 16, 16, 4>}, {transform_indices = @transform_1, window_bounds = array<i64: 1, 16, 16, 4>}, {pipeline_mode = #tpu.pipeline_mode<synchronous>, transform_indices = @transform_2, window_bounds = array<i64: 1, 4>}, {pipeline_mode = #tpu.pipeline_mode<synchronous>, transform_indices = @transform_3, window_bounds = array<i64: 1, 4>}, {transform_indices = @transform_4, window_bounds = array<i64: 1, 16, 16, 4>}]} {
    %c0 = arith.constant 0 : index
    %c0_0 = arith.constant 0 : index
    %0 = vector.load %arg3[%c0, %c0_0] : memref<1x4xf32, #tpu.memory_space<vmem>>, vector<1x4xf32>
    %1 = vector.shape_cast %0 : vector<1x4xf32> to vector<1x1x4xf32>
    %c0_1 = arith.constant 0 : index
    %c0_2 = arith.constant 0 : index
    %2 = vector.load %arg4[%c0_1, %c0_2] : memref<1x4xf32, #tpu.memory_space<vmem>>, vector<1x4xf32>
    %3 = vector.shape_cast %2 : vector<1x4xf32> to vector<1x1x4xf32>
    %c0_3 = arith.constant 0 : index
    %c0_4 = arith.constant 0 : index
    %c0_5 = arith.constant 0 : index
    %c0_6 = arith.constant 0 : index
    %4 = vector.load %arg1[%c0_3, %c0_4, %c0_5, %c0_6] : memref<1x16x16x4xf32, #tpu.memory_space<vmem>>, vector<1x16x16x4xf32>
    %5 = vector.shape_cast %4 : vector<1x16x16x4xf32> to vector<16x16x4xf32>
    %c0_7 = arith.constant 0 : index
    %c0_8 = arith.constant 0 : index
    %c0_9 = arith.constant 0 : index
    %c0_10 = arith.constant 0 : index
    %6 = vector.load %arg2[%c0_7, %c0_8, %c0_9, %c0_10] : memref<1x16x16x4xf32, #tpu.memory_space<vmem>>, vector<1x16x16x4xf32>
    %7 = vector.shape_cast %6 : vector<1x16x16x4xf32> to vector<16x16x4xf32>
    %8 = vector.broadcast %1 : vector<1x1x4xf32> to vector<16x16x4xf32>
    %9 = arith.mulf %7, %8 : vector<16x16x4xf32>
    %10 = arith.addf %5, %9 : vector<16x16x4xf32>
    %11 = vector.broadcast %3 : vector<1x1x4xf32> to vector<16x16x4xf32>
    %12 = arith.addf %10, %11 : vector<16x16x4xf32>
    %c0_11 = arith.constant 0 : index
    %c0_12 = arith.constant 0 : index
    %c0_13 = arith.constant 0 : index
    %c0_14 = arith.constant 0 : index
    %13 = vector.load %arg5[%c0_11, %c0_12, %c0_13, %c0_14] : memref<1x16x16x4xf32, #tpu.memory_space<vmem>>, vector<1x16x16x4xf32>
    %14 = vector.shape_cast %13 : vector<1x16x16x4xf32> to vector<16x16x4xf32>
    %15 = vector.shape_cast %12 : vector<16x16x4xf32> to vector<1x16x16x4xf32>
    tpu.vector_store %arg5[%c0_11, %c0_12, %c0_13, %c0_14], %15 {strides = array<i32>} : memref<1x16x16x4xf32, #tpu.memory_space<vmem>>, vector<1x16x16x4xf32>,
    return
  }
  func.func @transform_0(%arg0: i32) -> (i32, i32, i32, i32) {
    %c0_i32 = arith.constant 0 : i32
    %c0_i32_0 = arith.constant 0 : i32
    %c0_i32_1 = arith.constant 0 : i32
    %c0_i32_2 = arith.constant 0 : i32
    return %arg0, %c0_i32, %c0_i32_0, %c0_i32_1 : i32, i32, i32, i32
  }
  func.func @transform_1(%arg0: i32) -> (i32, i32, i32, i32) {
    %c0_i32 = arith.constant 0 : i32
    %c0_i32_0 = arith.constant 0 : i32
    %c0_i32_1 = arith.constant 0 : i32
    %c0_i32_2 = arith.constant 0 : i32
    return %arg0, %c0_i32, %c0_i32_0, %c0_i32_1 : i32, i32, i32, i32
  }
  func.func @transform_2(%arg0: i32) -> (i32, i32) {
    %c0_i32 = arith.constant 0 : i32
    %c0_i32_0 = arith.constant 0 : i32
    %c0_i32_1 = arith.constant 0 : i32
    return %c0_i32, %c0_i32_0 : i32, i32
  }
  func.func @transform_3(%arg0: i32) -> (i32, i32) {
    %c0_i32 = arith.constant 0 : i32
    %c0_i32_0 = arith.constant 0 : i32
    %c0_i32_1 = arith.constant 0 : i32
    return %c0_i32, %c0_i32_0 : i32, i32
  }
  func.func @transform_4(%arg0: i32) -> (i32, i32, i32, i32) {
    %c0_i32 = arith.constant 0 : i32
    %c0_i32_0 = arith.constant 0 : i32
    %c0_i32_1 = arith.constant 0 : i32
    %c0_i32_2 = arith.constant 0 : i32
    return %arg0, %c0_i32, %c0_i32_0, %c0_i32_1 : i32, i32, i32, i32
  }
}

</mosaic_0001>

<llo_original>
// kernel: residual_block_pallas.5
$region0: #{residual_block_pallas.5}
  #allocation0 [shape = 'u32[]', space=smem, size = 0x4, offset = 0x4, fixed_abs, tag = 'smem constant byte address 0x4 - core index']
  #allocation1 [shape = 'u32[144,128]{1,0:T(1,128)}', space=vmem, size = 0x12000, scoped, tag = 'internal scratch']
  %s0 = inlined_call_operand.vmem [shape: f32[2,16,16,4], index: 0, kind: input, shape index: {}]
  %s1 = inlined_call_operand.vmem [shape: f32[2,16,16,4], index: 1, kind: input, shape index: {}]
  %s2 = inlined_call_operand.vmem [shape: f32[1,4], index: 2, kind: input, shape index: {}]
  %s3 = inlined_call_operand.vmem [shape: f32[1,4], index: 3, kind: input, shape index: {}]
  %s4 = inlined_call_operand.vmem [shape: f32[2,16,16,4], index: 4, kind: output, shape index: {}]
  %s5 = sld [smem:[#allocation0]]
  $region49: #{residual_block_pallas.5} parent=0
    _
  %s7 = ssub.s32 1, %s5
  %s8 = scalar_select 0, %s7, %s5
  loop: start=0, step=1, limit=4
  $region2: #{residual_block_pallas.5} parent=0 // loop_pre_header
    _
  $region3: #{residual_block_pallas.5} parent=0 // loop_header
    %s10 = sphi 0, %s14
    %p11 = scmp.ge.s32.totalorder %s10, 4
    %s20 = sphi 0, %s22
    %s23 = sphi 0, %s20
    %s24 = sphi 0, %s23
    %s40 = sphi 0, %s24
    %s46 = sphi 0, %s48
    %s49 = sphi 0, %s46
    %s50 = sphi 0, %s49
    %s66 = sphi 0, %s50
    %s70 = sphi 0, %s70
    %s72 = sphi 0, %s70
    %s73 = sphi 0, %s72
    %s87 = sphi 0, %s73
    %s91 = sphi 0, %s91
    %s93 = sphi 0, %s91
    %s94 = sphi 0, %s93
    %s108 = sphi 0, %s94
    %s114 = sphi 0, %s116
    %s117 = sphi 0, %s114
    %s118 = sphi 0, %s117
    %s134 = sphi 0, %s118
  $region4: #{residual_block_pallas.5} parent=0 // loop_header_branch
    %13 = sbr.rel (%p11) target = $region8
  $region5: #{residual_block_pallas.5} parent=0 // loop_body
    %s15 = ssub.s32 %s10, 1
    %s16 = ssub.s32 %s10, 2
    %s17 = sadd.s32 %s10, 1
    %s18 = ssub.s32 %s10, %s17
    %p19 = scmp.eq.s32.totalorder %s18, 0
    %s21 = sadd.s32 %s20, 1
    %s22 = scalar_select %p19, %s20, %s21
    %p25 = pneg %p19
    %p26 = scmp.eq.s32.totalorder %s10, 1
    %p27 = por %p25, %p26
    %p28 = scmp.ne.s32.totalorder %s20, %s23
    %p29 = scmp.eq.s32.totalorder %s10, 0
    %p30 = por %p28, %p29
    %p31 = scmp.ne.s32.totalorder %s20, %s23
    %p32 = scmp.eq.s32.totalorder %s15, 1
    %p33 = por %p31, %p32
    %p34 = scmp.ne.s32.totalorder %s23, %s24
    %p35 = scmp.eq.s32.totalorder %s15, 0
    %p36 = por %p34, %p35
    %p37 = scmp.ne.s32.totalorder %s23, %s24
    %p38 = scmp.eq.s32.totalorder %s16, 1
    %p39 = por %p37, %p38
    %p41 = scmp.ne.s32.totalorder %s24, %s40
    %p42 = scmp.eq.s32.totalorder %s16, 0
    %p43 = por %p41, %p42
    %s44 = ssub.s32 %s10, %s17
    %p45 = scmp.eq.s32.totalorder %s44, 0
    %s47 = sadd.s32 %s46, 1
    %s48 = scalar_select %p45, %s46, %s47
    %p51 = pneg %p45
    %p52 = scmp.eq.s32.totalorder %s10, 1
    %p53 = por %p51, %p52
    %p54 = scmp.ne.s32.totalorder %s46, %s49
    %p55 = scmp.eq.s32.totalorder %s10, 0
    %p56 = por %p54, %p55
    %p57 = scmp.ne.s32.totalorder %s46, %s49
    %p58 = scmp.eq.s32.totalorder %s15, 1
    %p59 = por %p57, %p58
    %p60 = scmp.ne.s32.totalorder %s49, %s50
    %p61 = scmp.eq.s32.totalorder %s15, 0
    %p62 = por %p60, %p61
    %p63 = scmp.ne.s32.totalorder %s49, %s50
    %p64 = scmp.eq.s32.totalorder %s16, 1
    %p65 = por %p63, %p64
    %p67 = scmp.ne.s32.totalorder %s50, %s66
    %p68 = scmp.eq.s32.totalorder %s16, 0
    %p69 = por %p67, %p68
    %s71 = sadd.s32 %s70, 1
    %p74 = scmp.eq.s32.totalorder %s10, 1
    %p75 = scmp.ne.s32.totalorder %s70, %s72
    %p76 = scmp.eq.s32.totalorder %s10, 0
    %p77 = por %p75, %p76
    %p78 = scmp.ne.s32.totalorder %s70, %s72
    %p79 = scmp.eq.s32.totalorder %s15, 1
    %p80 = por %p78, %p79
    %p81 = scmp.ne.s32.totalorder %s72, %s73
    %p82 = scmp.eq.s32.totalorder %s15, 0
    %p83 = por %p81, %p82
    %p84 = scmp.ne.s32.totalorder %s72, %s73
    %p85 = scmp.eq.s32.totalorder %s16, 1
    %p86 = por %p84, %p85
    %p88 = scmp.ne.s32.totalorder %s73, %s87
    %p89 = scmp.eq.s32.totalorder %s16, 0
    %p90 = por %p88, %p89
    %s92 = sadd.s32 %s91, 1
    %p95 = scmp.eq.s32.totalorder %s10, 1
    %p96 = scmp.ne.s32.totalorder %s91, %s93
    %p97 = scmp.eq.s32.totalorder %s10, 0
    %p98 = por %p96, %p97
    %p99 = scmp.ne.s32.totalorder %s91, %s93
    %p100 = scmp.eq.s32.totalorder %s15, 1
    %p101 = por %p99, %p100
    %p102 = scmp.ne.s32.totalorder %s93, %s94
    %p103 = scmp.eq.s32.totalorder %s15, 0
    %p104 = por %p102, %p103
    %p105 = scmp.ne.s32.totalorder %s93, %s94
    %p106 = scmp.eq.s32.totalorder %s16, 1
    %p107 = por %p105, %p106
    %p109 = scmp.ne.s32.totalorder %s94, %s108
    %p110 = scmp.eq.s32.totalorder %s16, 0
    %p111 = por %p109, %p110
    %s112 = ssub.s32 %s10, %s17
    %p113 = scmp.eq.s32.totalorder %s112, 0
    %s115 = sadd.s32 %s114, 1
    %s116 = scalar_select %p113, %s114, %s115
    %p119 = pneg %p113
    %p120 = scmp.eq.s32.totalorder %s10, 1
    %p121 = por %p119, %p120
    %p122 = scmp.ne.s32.totalorder %s114, %s117
    %p123 = scmp.eq.s32.totalorder %s10, 0
    %p124 = por %p122, %p123
    %p125 = scmp.ne.s32.totalorder %s114, %s117
    %p126 = scmp.eq.s32.totalorder %s15, 1
    %p127 = por %p125, %p126
    %p128 = scmp.ne.s32.totalorder %s117, %s118
    %p129 = scmp.eq.s32.totalorder %s15, 0
    %p130 = por %p128, %p129
    %p131 = scmp.ne.s32.totalorder %s117, %s118
    %p132 = scmp.eq.s32.totalorder %s16, 1
    %p133 = por %p131, %p132
    %p135 = scmp.ne.s32.totalorder %s118, %s134
    %p136 = scmp.eq.s32.totalorder %s16, 0
    %p137 = por %p135, %p136
    %p138 = scmp.le.s32.totalorder 1, %s10
    %p139 = scmp.lt.s32.totalorder %s10, 3
    %p140 = pnand %p138, %p139
    %p141 = pneg %p140
    // Predicated region
    $region9: #{residual_block_pallas.5} parent=5 // pred_check
      _
    $region10: #{residual_block_pallas.5} parent=5 // pred_check_branch
      %143 = sbr.rel (%p140) target = $region12
    $region11: #{residual_block_pallas.5} parent=5 // pred_region
      %s144 = ssub.s32 %s10, 1
      // Predicated region
      $region13: #{residual_block_pallas.5} parent=11 // pred_check
        %p145 = pneg %p83
      $region14: #{residual_block_pallas.5} parent=11 // pred_check_branch
        %147 = sbr.rel (%p145) target = $region16
      $region15: #{residual_block_pallas.5} parent=11 // pred_region
        _
      $region16: #{residual_block_pallas.5} parent=11 // pred_fallthru
        _
      // Predicated region
      $region17: #{residual_block_pallas.5} parent=11 // pred_check
        %p148 = pneg %p104
      $region18: #{residual_block_pallas.5} parent=11 // pred_check_branch
        %150 = sbr.rel (%p148) target = $region20
      $region19: #{residual_block_pallas.5} parent=11 // pred_region
        _
      $region20: #{residual_block_pallas.5} parent=11 // pred_fallthru
        _
    $region12: #{residual_block_pallas.5} parent=5 // pred_fallthru
      _
    %p151 = scmp.lt.s32.totalorder %s10, 2
    // Predicated region
    $region21: #{residual_block_pallas.5} parent=5 // pred_check
      %p152 = pneg %p151
    $region22: #{residual_block_pallas.5} parent=5 // pred_check_branch
      %154 = sbr.rel (%p152) target = $region24
    $region23: #{residual_block_pallas.5} parent=5 // pred_region
      // Predicated region
      $region25: #{residual_block_pallas.5} parent=23 // pred_check
        %p155 = pneg %p30
      $region26: #{residual_block_pallas.5} parent=23 // pred_check_branch
        %157 = sbr.rel (%p155) target = $region28
      $region27: #{residual_block_pallas.5} parent=23 // pred_region
        %p158 = scmp.lt.s32.totalorder %s10, 1
        %s159 = scalar_select %p158, %s10, 1
        %s160 = smul.addr %s159, 32
        %s161 = smul.addr %s160, 8
        %s162 = scalar_lea.vmem %s0, %s161
      $region28: #{residual_block_pallas.5} parent=23 // pred_fallthru
        _
      // Predicated region
      $region29: #{residual_block_pallas.5} parent=23 // pred_check
        %p163 = pneg %p56
      $region30: #{residual_block_pallas.5} parent=23 // pred_check_branch
        %165 = sbr.rel (%p163) target = $region32
      $region31: #{residual_block_pallas.5} parent=23 // pred_region
        %p166 = scmp.lt.s32.totalorder %s10, 1
        %s167 = scalar_select %p166, %s10, 1
        %s168 = smul.addr %s167, 32
        %s169 = smul.addr %s168, 8
        %s170 = scalar_lea.vmem %s1, %s169
      $region32: #{residual_block_pallas.5} parent=23 // pred_fallthru
        _
    $region24: #{residual_block_pallas.5} parent=5 // pred_fallthru
      _
    %p171 = scmp.le.s32.totalorder 1, %s10
    %p172 = scmp.lt.s32.totalorder %s10, 3
    %p173 = pnand %p171, %p172
    %p174 = pneg %p173
    // Predicated region
    $region33: #{residual_block_pallas.5} parent=5 // pred_check
      _
    $region34: #{residual_block_pallas.5} parent=5 // pred_check_branch
      %176 = sbr.rel (%p173) target = $region36
    $region35: #{residual_block_pallas.5} parent=5 // pred_region
      %s177 = ssub.s32 %s10, 1
      %p178 = scmp.lt.s32.totalorder %s15, 1
      %s179 = scalar_select %p178, %s15, 1
      %s180 = smul.addr %s179, 32
      %s181 = smul.addr %s180, 8
      %s182 = scalar_lea.vmem %s0, %s181
      %p183 = pneg %p36
      %p184 = pneg %p33
      %p185 = scmp.lt.s32.totalorder %s15, 1
      %s186 = scalar_select %p185, %s15, 1
      %s187 = smul.addr %s186, 32
      %s188 = smul.addr %s187, 8
      %s189 = scalar_lea.vmem %s1, %s188
      %p190 = pneg %p62
      %p191 = pneg %p59
      %p192 = pneg %p83
      %p193 = pneg %p80
      %p194 = pneg %p104
      %p195 = pneg %p101
      %p196 = pneg %p130
      %p197 = pneg %p127
      %p198 = scmp.lt.s32.totalorder %s15, 1
      %s199 = scalar_select %p198, %s15, 1
      %s200 = smul.addr %s199, 32
      %s201 = smul.addr %s200, 8
      %s202 = scalar_lea.vmem %s4, %s201
      %p203 = scmp.lt.s32.totalorder %s15, 1
      %s204 = scalar_select %p203, %s15, 1
      %s205 = smul.addr %s204, 32
      %s206 = smul.addr %s205, 8
      %s207 = scalar_lea.vmem %s0, %s206
      %p208 = scmp.lt.s32.totalorder %s15, 1
      %s209 = scalar_select %p208, %s15, 1
      %s210 = smul.addr %s209, 32
      %s211 = smul.addr %s210, 8
      %s212 = scalar_lea.vmem %s1, %s211
      %p213 = scmp.lt.s32.totalorder %s15, 1
      %s214 = scalar_select %p213, %s15, 1
      %s215 = smul.addr %s214, 32
      %s216 = smul.addr %s215, 8
      %s217 = scalar_lea.vmem %s4, %s216
      %v218 = vld [vmem:[%s2] sm:$0x1]
      %v219 = vld [vmem:[%s3] sm:$0x1]
      %v220 = vld [vmem:[%s207] sm:$0xff]
      %v221 = vld [vmem:[%s207 + $0x8] sm:$0xff]
      %v222 = vld [vmem:[%s207 + $0x10] sm:$0xff]
      %v223 = vld [vmem:[%s207 + $0x18] sm:$0xff]
      %v224 = vld [vmem:[%s207 + $0x20] sm:$0xff]
      %v225 = vld [vmem:[%s207 + $0x28] sm:$0xff]
      %v226 = vld [vmem:[%s207 + $0x30] sm:$0xff]
      %v227 = vld [vmem:[%s207 + $0x38] sm:$0xff]
      %v228 = vld [vmem:[%s207 + $0x40] sm:$0xff]
      %v229 = vld [vmem:[%s207 + $0x48] sm:$0xff]
      %v230 = vld [vmem:[%s207 + $0x50] sm:$0xff]
      %v231 = vld [vmem:[%s207 + $0x58] sm:$0xff]
      %v232 = vld [vmem:[%s207 + $0x60] sm:$0xff]
      %v233 = vld [vmem:[%s207 + $0x68] sm:$0xff]
      %v234 = vld [vmem:[%s207 + $0x70] sm:$0xff]
      %v235 = vld [vmem:[%s207 + $0x78] sm:$0xff]
      %v236 = vld [vmem:[%s207 + $0x80] sm:$0xff]
      %v237 = vld [vmem:[%s207 + $0x88] sm:$0xff]
      %v238 = vld [vmem:[%s207 + $0x90] sm:$0xff]
      %v239 = vld [vmem:[%s207 + $0x98] sm:$0xff]
      %v240 = vld [vmem:[%s207 + $0xa0] sm:$0xff]
      %v241 = vld [vmem:[%s207 + $0xa8] sm:$0xff]
      %v242 = vld [vmem:[%s207 + $0xb0] sm:$0xff]
      %v243 = vld [vmem:[%s207 + $0xb8] sm:$0xff]
      %v244 = vld [vmem:[%s207 + $0xc0] sm:$0xff]
      %v245 = vld [vmem:[%s207 + $0xc8] sm:$0xff]
      %v246 = vld [vmem:[%s207 + $0xd0] sm:$0xff]
      %v247 = vld [vmem:[%s207 + $0xd8] sm:$0xff]
      %v248 = vld [vmem:[%s207 + $0xe0] sm:$0xff]
      %v249 = vld [vmem:[%s207 + $0xe8] sm:$0xff]
      %v250 = vld [vmem:[%s207 + $0xf0] sm:$0xff]
      %v251 = vld [vmem:[%s207 + $0xf8] sm:$0xff]
      %v252 = vld [vmem:[%s212] sm:$0xff]
      %v253 = vld [vmem:[%s212 + $0x8] sm:$0xff]
      %v254 = vld [vmem:[%s212 + $0x10] sm:$0xff]
      %v255 = vld [vmem:[%s212 + $0x18] sm:$0xff]
      %v256 = vld [vmem:[%s212 + $0x20] sm:$0xff]
      %v257 = vld [vmem:[%s212 + $0x28] sm:$0xff]
      %v258 = vld [vmem:[%s212 + $0x30] sm:$0xff]
      %v259 = vld [vmem:[%s212 + $0x38] sm:$0xff]
      %v260 = vld [vmem:[%s212 + $0x40] sm:$0xff]
      %v261 = vld [vmem:[%s212 + $0x48] sm:$0xff]
      %v262 = vld [vmem:[%s212 + $0x50] sm:$0xff]
      %v263 = vld [vmem:[%s212 + $0x58] sm:$0xff]
      %v264 = vld [vmem:[%s212 + $0x60] sm:$0xff]
      %v265 = vld [vmem:[%s212 + $0x68] sm:$0xff]
      %v266 = vld [vmem:[%s212 + $0x70] sm:$0xff]
      %v267 = vld [vmem:[%s212 + $0x78] sm:$0xff]
      %v268 = vld [vmem:[%s212 + $0x80] sm:$0xff]
      %v269 = vld [vmem:[%s212 + $0x88] sm:$0xff]
      %v270 = vld [vmem:[%s212 + $0x90] sm:$0xff]
      %v271 = vld [vmem:[%s212 + $0x98] sm:$0xff]
      %v272 = vld [vmem:[%s212 + $0xa0] sm:$0xff]
      %v273 = vld [vmem:[%s212 + $0xa8] sm:$0xff]
      %v274 = vld [vmem:[%s212 + $0xb0] sm:$0xff]
      %v275 = vld [vmem:[%s212 + $0xb8] sm:$0xff]
      %v276 = vld [vmem:[%s212 + $0xc0] sm:$0xff]
      %v277 = vld [vmem:[%s212 + $0xc8] sm:$0xff]
      %v278 = vld [vmem:[%s212 + $0xd0] sm:$0xff]
      %v279 = vld [vmem:[%s212 + $0xd8] sm:$0xff]
      %v280 = vld [vmem:[%s212 + $0xe0] sm:$0xff]
      %v281 = vld [vmem:[%s212 + $0xe8] sm:$0xff]
      %v282 = vld [vmem:[%s212 + $0xf0] sm:$0xff]
      %v283 = vld [vmem:[%s212 + $0xf8] sm:$0xff]
      %v285 = vlaneseq
      %v286 = vshrl.u32 %v285, 7
      %v287 = vsub.s32 0, %v286
      %v288 = vrot.slane %v218, %v287
      %v290 = vmul.f32 %v252, %v288
      %v291 = vmul.f32 %v253, %v288
      %v292 = vmul.f32 %v254, %v288
      %v293 = vmul.f32 %v255, %v288
      %v294 = vmul.f32 %v256, %v288
      %v295 = vmul.f32 %v257, %v288
      %v296 = vmul.f32 %v258, %v288
      %v297 = vmul.f32 %v259, %v288
      %v298 = vmul.f32 %v260, %v288
      %v299 = vmul.f32 %v261, %v288
      %v300 = vmul.f32 %v262, %v288
      %v301 = vmul.f32 %v263, %v288
      %v302 = vmul.f32 %v264, %v288
      %v303 = vmul.f32 %v265, %v288
      %v304 = vmul.f32 %v266, %v288
      %v305 = vmul.f32 %v267, %v288
      %v306 = vmul.f32 %v268, %v288
      %v307 = vmul.f32 %v269, %v288
      %v308 = vmul.f32 %v270, %v288
      %v309 = vmul.f32 %v271, %v288
      %v310 = vmul.f32 %v272, %v288
      %v311 = vmul.f32 %v273, %v288
      %v312 = vmul.f32 %v274, %v288
      %v313 = vmul.f32 %v275, %v288
      %v314 = vmul.f32 %v276, %v288
      %v315 = vmul.f32 %v277, %v288
      %v316 = vmul.f32 %v278, %v288
      %v317 = vmul.f32 %v279, %v288
      %v318 = vmul.f32 %v280, %v288
      %v319 = vmul.f32 %v281, %v288
      %v320 = vmul.f32 %v282, %v288
      %v321 = vmul.f32 %v283, %v288
      %v322 = vadd.f32 %v220, %v290
      %v323 = vadd.f32 %v221, %v291
      %v324 = vadd.f32 %v222, %v292
      %v325 = vadd.f32 %v223, %v293
      %v326 = vadd.f32 %v224, %v294
      %v327 = vadd.f32 %v225, %v295
      %v328 = vadd.f32 %v226, %v296
      %v329 = vadd.f32 %v227, %v297
      %v330 = vadd.f32 %v228, %v298
      %v331 = vadd.f32 %v229, %v299
      %v332 = vadd.f32 %v230, %v300
      %v333 = vadd.f32 %v231, %v301
      %v334 = vadd.f32 %v232, %v302
      %v335 = vadd.f32 %v233, %v303
      %v336 = vadd.f32 %v234, %v304
      %v337 = vadd.f32 %v235, %v305
      %v338 = vadd.f32 %v236, %v306
      %v339 = vadd.f32 %v237, %v307
      %v340 = vadd.f32 %v238, %v308
      %v341 = vadd.f32 %v239, %v309
      %v342 = vadd.f32 %v240, %v310
      %v343 = vadd.f32 %v241, %v311
      %v344 = vadd.f32 %v242, %v312
      %v345 = vadd.f32 %v243, %v313
      %v346 = vadd.f32 %v244, %v314
      %v347 = vadd.f32 %v245, %v315
      %v348 = vadd.f32 %v246, %v316
      %v349 = vadd.f32 %v247, %v317
      %v350 = vadd.f32 %v248, %v318
      %v351 = vadd.f32 %v249, %v319
      %v352 = vadd.f32 %v250, %v320
      %v353 = vadd.f32 %v251, %v321
      %v355 = vlaneseq
      %v356 = vshrl.u32 %v355, 7
      %v357 = vsub.s32 0, %v356
      %v358 = vrot.slane %v219, %v357
      %v360 = vadd.f32 %v322, %v358
      %v361 = vadd.f32 %v323, %v358
      %v362 = vadd.f32 %v324, %v358
      %v363 = vadd.f32 %v325, %v358
      %v364 = vadd.f32 %v326, %v358
      %v365 = vadd.f32 %v327, %v358
      %v366 = vadd.f32 %v328, %v358
      %v367 = vadd.f32 %v329, %v358
      %v368 = vadd.f32 %v330, %v358
      %v369 = vadd.f32 %v331, %v358
      %v370 = vadd.f32 %v332, %v358
      %v371 = vadd.f32 %v333, %v358
      %v372 = vadd.f32 %v334, %v358
      %v373 = vadd.f32 %v335, %v358
      %v374 = vadd.f32 %v336, %v358
      %v375 = vadd.f32 %v337, %v358
      %v376 = vadd.f32 %v338, %v358
      %v377 = vadd.f32 %v339, %v358
      %v378 = vadd.f32 %v340, %v358
      %v379 = vadd.f32 %v341, %v358
      %v380 = vadd.f32 %v342, %v358
      %v381 = vadd.f32 %v343, %v358
      %v382 = vadd.f32 %v344, %v358
      %v383 = vadd.f32 %v345, %v358
      %v384 = vadd.f32 %v346, %v358
      %v385 = vadd.f32 %v347, %v358
      %v386 = vadd.f32 %v348, %v358
      %v387 = vadd.f32 %v349, %v358
      %v388 = vadd.f32 %v350, %v358
      %v389 = vadd.f32 %v351, %v358
      %v390 = vadd.f32 %v352, %v358
      %v391 = vadd.f32 %v353, %v358
      %vm392 = vcmask 31744
      %393 = vst.msk [vmem:[%s217] sm:$0xff] %vm392, %v360
      %394 = vst.msk [vmem:[%s217 + $0x8] sm:$0xff] %vm392, %v361
      %395 = vst.msk [vmem:[%s217 + $0x10] sm:$0xff] %vm392, %v362
      %396 = vst.msk [vmem:[%s217 + $0x18] sm:$0xff] %vm392, %v363
      %397 = vst.msk [vmem:[%s217 + $0x20] sm:$0xff] %vm392, %v364
      %398 = vst.msk [vmem:[%s217 + $0x28] sm:$0xff] %vm392, %v365
      %399 = vst.msk [vmem:[%s217 + $0x30] sm:$0xff] %vm392, %v366
      %400 = vst.msk [vmem:[%s217 + $0x38] sm:$0xff] %vm392, %v367
      %401 = vst.msk [vmem:[%s217 + $0x40] sm:$0xff] %vm392, %v368
      %402 = vst.msk [vmem:[%s217 + $0x48] sm:$0xff] %vm392, %v369
      %403 = vst.msk [vmem:[%s217 + $0x50] sm:$0xff] %vm392, %v370
      %404 = vst.msk [vmem:[%s217 + $0x58] sm:$0xff] %vm392, %v371
      %405 = vst.msk [vmem:[%s217 + $0x60] sm:$0xff] %vm392, %v372
      %406 = vst.msk [vmem:[%s217 + $0x68] sm:$0xff] %vm392, %v373
      %407 = vst.msk [vmem:[%s217 + $0x70] sm:$0xff] %vm392, %v374
      %408 = vst.msk [vmem:[%s217 + $0x78] sm:$0xff] %vm392, %v375
      %409 = vst.msk [vmem:[%s217 + $0x80] sm:$0xff] %vm392, %v376
      %410 = vst.msk [vmem:[%s217 + $0x88] sm:$0xff] %vm392, %v377
      %411 = vst.msk [vmem:[%s217 + $0x90] sm:$0xff] %vm392, %v378
      %412 = vst.msk [vmem:[%s217 + $0x98] sm:$0xff] %vm392, %v379
      %413 = vst.msk [vmem:[%s217 + $0xa0] sm:$0xff] %vm392, %v380
      %414 = vst.msk [vmem:[%s217 + $0xa8] sm:$0xff] %vm392, %v381
      %415 = vst.msk [vmem:[%s217 + $0xb0] sm:$0xff] %vm392, %v382
      %416 = vst.msk [vmem:[%s217 + $0xb8] sm:$0xff] %vm392, %v383
      %417 = vst.msk [vmem:[%s217 + $0xc0] sm:$0xff] %vm392, %v384
      %418 = vst.msk [vmem:[%s217 + $0xc8] sm:$0xff] %vm392, %v385
      %419 = vst.msk [vmem:[%s217 + $0xd0] sm:$0xff] %vm392, %v386
      %420 = vst.msk [vmem:[%s217 + $0xd8] sm:$0xff] %vm392, %v387
      %421 = vst.msk [vmem:[%s217 + $0xe0] sm:$0xff] %vm392, %v388
      %422 = vst.msk [vmem:[%s217 + $0xe8] sm:$0xff] %vm392, %v389
      %423 = vst.msk [vmem:[%s217 + $0xf0] sm:$0xff] %vm392, %v390
      %424 = vst.msk [vmem:[%s217 + $0xf8] sm:$0xff] %vm392, %v391
      %p425 = scmp.lt.s32.totalorder %s15, 1
      %s426 = scalar_select %p425, %s15, 1
      %s427 = smul.addr %s426, 32
      %s428 = smul.addr %s427, 8
      %s429 = scalar_lea.vmem %s4, %s428
      // Predicated region
      $region37: #{residual_block_pallas.5} parent=35 // pred_check
        %p430 = pneg %p127
      $region38: #{residual_block_pallas.5} parent=35 // pred_check_branch
        %432 = sbr.rel (%p430) target = $region40
      $region39: #{residual_block_pallas.5} parent=35 // pred_region
        _
      $region40: #{residual_block_pallas.5} parent=35 // pred_fallthru
        _
    $region36: #{residual_block_pallas.5} parent=5 // pred_fallthru
      _
    %p433 = scmp.le.s32.totalorder 2, %s10
    // Predicated region
    $region41: #{residual_block_pallas.5} parent=5 // pred_check
      %p434 = pneg %p433
    $region42: #{residual_block_pallas.5} parent=5 // pred_check_branch
      %436 = sbr.rel (%p434) target = $region44
    $region43: #{residual_block_pallas.5} parent=5 // pred_region
      %s437 = ssub.s32 %s10, 2
      // Predicated region
      $region45: #{residual_block_pallas.5} parent=43 // pred_check
        %p438 = pneg %p133
      $region46: #{residual_block_pallas.5} parent=43 // pred_check_branch
        %440 = sbr.rel (%p438) target = $region48
      $region47: #{residual_block_pallas.5} parent=43 // pred_region
        %p441 = scmp.lt.s32.totalorder %s16, 1
        %s442 = scalar_select %p441, %s16, 1
        %s443 = smul.addr %s442, 32
        %s444 = smul.addr %s443, 8
        %s445 = scalar_lea.vmem %s4, %s444
      $region48: #{residual_block_pallas.5} parent=43 // pred_fallthru
        _
    $region44: #{residual_block_pallas.5} parent=5 // pred_fallthru
      _
  $region6: #{residual_block_pallas.5} parent=0 // loop_footer
    %s14 = sadd.s32 1, %s10
  $region7: #{residual_block_pallas.5} parent=0 // loop_footer_branch
    %9 = sbr.rel target = $region3
  $region8: #{residual_block_pallas.5} parent=0 // loop_exit
    _

// kernel: residual_block_pallas.3
$region0: #{residual_block_pallas.3}
  #allocation0 [shape = 'u32[]', space=smem, size = 0x4, offset = 0x4, fixed_abs, tag = 'smem constant byte address 0x4 - core index']
  #allocation1 [shape = 'u32[144,128]{1,0:T(1,128)}', space=vmem, size = 0x12000, scoped, tag = 'internal scratch']
  #allocation2 [shape = 'f32[18,18,4]{2,1,0:T(8,128)}', space=vmem, size = 0x36000, scoped, tag = 'scratch operand']
  #allocation3 [shape = 'f32[256,36]{1,0:T(8,128)}', space=vmem, size = 0x20000, scoped, tag = 'scratch operand']
  %s0 = inlined_call_operand.vmem [shape: f32[2,16,16,4], index: 0, kind: input, shape index: {}]
  %s1 = inlined_call_operand.vmem [shape: f32[36,4], index: 1, kind: input, shape index: {}]
  %s2 = inlined_call_operand.vmem [shape: f32[1,4], index: 2, kind: input, shape index: {}]
  %s3 = inlined_call_operand.vmem [shape: f32[1,4], index: 3, kind: input, shape index: {}]
  %s4 = inlined_call_operand.vmem [shape: f32[2,16,16,4], index: 4, kind: output, shape index: {0}]
  %s5 = inlined_call_operand.vmem [shape: f32[2,2,4], index: 5, kind: output, shape index: {1}]
  %6 = xla_tuple %s4, %s5
  %s7 = sld [smem:[#allocation0]]
  $region57: #{residual_block_pallas.3} parent=0
    _
  %s9 = ssub.s32 1, %s7
  %s10 = scalar_select 0, %s9, %s7
  loop: start=0, step=1, limit=4
  $region2: #{residual_block_pallas.3} parent=0 // loop_pre_header
    _
  $region3: #{residual_block_pallas.3} parent=0 // loop_header
    %s12 = sphi 0, %s16
    %p13 = scmp.ge.s32.totalorder %s12, 4
    %s22 = sphi 0, %s24
    %s25 = sphi 0, %s22
    %s26 = sphi 0, %s25
    %s42 = sphi 0, %s26
    %s46 = sphi 0, %s46
    %s48 = sphi 0, %s46
    %s49 = sphi 0, %s48
    %s63 = sphi 0, %s49
    %s67 = sphi 0, %s67
    %s69 = sphi 0, %s67
    %s70 = sphi 0, %s69
    %s84 = sphi 0, %s70
    %s88 = sphi 0, %s88
    %s90 = sphi 0, %s88
    %s91 = sphi 0, %s90
    %s105 = sphi 0, %s91
    %s111 = sphi 0, %s113
    %s114 = sphi 0, %s111
    %s115 = sphi 0, %s114
    %s131 = sphi 0, %s115
    %s137 = sphi 0, %s139
    %s140 = sphi 0, %s137
    %s141 = sphi 0, %s140
    %s157 = sphi 0, %s141
  $region4: #{residual_block_pallas.3} parent=0 // loop_header_branch
    %15 = sbr.rel (%p13) target = $region8
  $region5: #{residual_block_pallas.3} parent=0 // loop_body
    %s17 = ssub.s32 %s12, 1
    %s18 = ssub.s32 %s12, 2
    %s19 = sadd.s32 %s12, 1
    %s20 = ssub.s32 %s12, %s19
    %p21 = scmp.eq.s32.totalorder %s20, 0
    %s23 = sadd.s32 %s22, 1
    %s24 = scalar_select %p21, %s22, %s23
    %p27 = pneg %p21
    %p28 = scmp.eq.s32.totalorder %s12, 1
    %p29 = por %p27, %p28
    %p30 = scmp.ne.s32.totalorder %s22, %s25
    %p31 = scmp.eq.s32.totalorder %s12, 0
    %p32 = por %p30, %p31
    %p33 = scmp.ne.s32.totalorder %s22, %s25
    %p34 = scmp.eq.s32.totalorder %s17, 1
    %p35 = por %p33, %p34
    %p36 = scmp.ne.s32.totalorder %s25, %s26
    %p37 = scmp.eq.s32.totalorder %s17, 0
    %p38 = por %p36, %p37
    %p39 = scmp.ne.s32.totalorder %s25, %s26
    %p40 = scmp.eq.s32.totalorder %s18, 1
    %p41 = por %p39, %p40
    %p43 = scmp.ne.s32.totalorder %s26, %s42
    %p44 = scmp.eq.s32.totalorder %s18, 0
    %p45 = por %p43, %p44
    %s47 = sadd.s32 %s46, 1
    %p50 = scmp.eq.s32.totalorder %s12, 1
    %p51 = scmp.ne.s32.totalorder %s46, %s48
    %p52 = scmp.eq.s32.totalorder %s12, 0
    %p53 = por %p51, %p52
    %p54 = scmp.ne.s32.totalorder %s46, %s48
    %p55 = scmp.eq.s32.totalorder %s17, 1
    %p56 = por %p54, %p55
    %p57 = scmp.ne.s32.totalorder %s48, %s49
    %p58 = scmp.eq.s32.totalorder %s17, 0
    %p59 = por %p57, %p58
    %p60 = scmp.ne.s32.totalorder %s48, %s49
    %p61 = scmp.eq.s32.totalorder %s18, 1
    %p62 = por %p60, %p61
    %p64 = scmp.ne.s32.totalorder %s49, %s63
    %p65 = scmp.eq.s32.totalorder %s18, 0
    %p66 = por %p64, %p65
    %s68 = sadd.s32 %s67, 1
    %p71 = scmp.eq.s32.totalorder %s12, 1
    %p72 = scmp.ne.s32.totalorder %s67, %s69
    %p73 = scmp.eq.s32.totalorder %s12, 0
    %p74 = por %p72, %p73
    %p75 = scmp.ne.s32.totalorder %s67, %s69
    %p76 = scmp.eq.s32.totalorder %s17, 1
    %p77 = por %p75, %p76
    %p78 = scmp.ne.s32.totalorder %s69, %s70
    %p79 = scmp.eq.s32.totalorder %s17, 0
    %p80 = por %p78, %p79
    %p81 = scmp.ne.s32.totalorder %s69, %s70
    %p82 = scmp.eq.s32.totalorder %s18, 1
    %p83 = por %p81, %p82
    %p85 = scmp.ne.s32.totalorder %s70, %s84
    %p86 = scmp.eq.s32.totalorder %s18, 0
    %p87 = por %p85, %p86
    %s89 = sadd.s32 %s88, 1
    %p92 = scmp.eq.s32.totalorder %s12, 1
    %p93 = scmp.ne.s32.totalorder %s88, %s90
    %p94 = scmp.eq.s32.totalorder %s12, 0
    %p95 = por %p93, %p94
    %p96 = scmp.ne.s32.totalorder %s88, %s90
    %p97 = scmp.eq.s32.totalorder %s17, 1
    %p98 = por %p96, %p97
    %p99 = scmp.ne.s32.totalorder %s90, %s91
    %p100 = scmp.eq.s32.totalorder %s17, 0
    %p101 = por %p99, %p100
    %p102 = scmp.ne.s32.totalorder %s90, %s91
    %p103 = scmp.eq.s32.totalorder %s18, 1
    %p104 = por %p102, %p103
    %p106 = scmp.ne.s32.totalorder %s91, %s105
    %p107 = scmp.eq.s32.totalorder %s18, 0
    %p108 = por %p106, %p107
    %s109 = ssub.s32 %s12, %s19
    %p110 = scmp.eq.s32.totalorder %s109, 0
    %s112 = sadd.s32 %s111, 1
    %s113 = scalar_select %p110, %s111, %s112
    %p116 = pneg %p110
    %p117 = scmp.eq.s32.totalorder %s12, 1
    %p118 = por %p116, %p117
    %p119 = scmp.ne.s32.totalorder %s111, %s114
    %p120 = scmp.eq.s32.totalorder %s12, 0
    %p121 = por %p119, %p120
    %p122 = scmp.ne.s32.totalorder %s111, %s114
    %p123 = scmp.eq.s32.totalorder %s17, 1
    %p124 = por %p122, %p123
    %p125 = scmp.ne.s32.totalorder %s114, %s115
    %p126 = scmp.eq.s32.totalorder %s17, 0
    %p127 = por %p125, %p126
    %p128 = scmp.ne.s32.totalorder %s114, %s115
    %p129 = scmp.eq.s32.totalorder %s18, 1
    %p130 = por %p128, %p129
    %p132 = scmp.ne.s32.totalorder %s115, %s131
    %p133 = scmp.eq.s32.totalorder %s18, 0
    %p134 = por %p132, %p133
    %s135 = ssub.s32 %s12, %s19
    %p136 = scmp.eq.s32.totalorder %s135, 0
    %s138 = sadd.s32 %s137, 1
    %s139 = scalar_select %p136, %s137, %s138
    %p142 = pneg %p136
    %p143 = scmp.eq.s32.totalorder %s12, 1
    %p144 = por %p142, %p143
    %p145 = scmp.ne.s32.totalorder %s137, %s140
    %p146 = scmp.eq.s32.totalorder %s12, 0
    %p147 = por %p145, %p146
    %p148 = scmp.ne.s32.totalorder %s137, %s140
    %p149 = scmp.eq.s32.totalorder %s17, 1
    %p150 = por %p148, %p149
    %p151 = scmp.ne.s32.totalorder %s140, %s141
    %p152 = scmp.eq.s32.totalorder %s17, 0
    %p153 = por %p151, %p152
    %p154 = scmp.ne.s32.totalorder %s140, %s141
    %p155 = scmp.eq.s32.totalorder %s18, 1
    %p156 = por %p154, %p155
    %p158 = scmp.ne.s32.totalorder %s141, %s157
    %p159 = scmp.eq.s32.totalorder %s18, 0
    %p160 = por %p158, %p159
    %p161 = scmp.le.s32.totalorder 1, %s12
    %p162 = scmp.lt.s32.totalorder %s12, 3
    %p163 = pnand %p161, %p162
    %p164 = pneg %p163
    // Predicated region
    $region9: #{residual_block_pallas.3} parent=5 // pred_check
      _
    $region10: #{residual_block_pallas.3} parent=5 // pred_check_branch
      %166 = sbr.rel (%p163) target = $region12
    $region11: #{residual_block_pallas.3} parent=5 // pred_region
      %s167 = ssub.s32 %s12, 1
      // Predicated region
      $region13: #{residual_block_pallas.3} parent=11 // pred_check
        %p168 = pneg %p59
      $region14: #{residual_block_pallas.3} parent=11 // pred_check_branch
        %170 = sbr.rel (%p168) target = $region16
      $region15: #{residual_block_pallas.3} parent=11 // pred_region
        _
      $region16: #{residual_block_pallas.3} parent=11 // pred_fallthru
        _
      // Predicated region
      $region17: #{residual_block_pallas.3} parent=11 // pred_check
        %p171 = pneg %p80
      $region18: #{residual_block_pallas.3} parent=11 // pred_check_branch
        %173 = sbr.rel (%p171) target = $region20
      $region19: #{residual_block_pallas.3} parent=11 // pred_region
        _
      $region20: #{residual_block_pallas.3} parent=11 // pred_fallthru
        _
      // Predicated region
      $region21: #{residual_block_pallas.3} parent=11 // pred_check
        %p174 = pneg %p101
      $region22: #{residual_block_pallas.3} parent=11 // pred_check_branch
        %176 = sbr.rel (%p174) target = $region24
      $region23: #{residual_block_pallas.3} parent=11 // pred_region
        _
      $region24: #{residual_block_pallas.3} parent=11 // pred_fallthru
        _
    $region12: #{residual_block_pallas.3} parent=5 // pred_fallthru
      _
    %p177 = scmp.lt.s32.totalorder %s12, 2
    // Predicated region
    $region25: #{residual_block_pallas.3} parent=5 // pred_check
      %p178 = pneg %p177
    $region26: #{residual_block_pallas.3} parent=5 // pred_check_branch
      %180 = sbr.rel (%p178) target = $region28
    $region27: #{residual_block_pallas.3} parent=5 // pred_region
      // Predicated region
      $region29: #{residual_block_pallas.3} parent=27 // pred_check
        %p181 = pneg %p32
      $region30: #{residual_block_pallas.3} parent=27 // pred_check_branch
        %183 = sbr.rel (%p181) target = $region32
      $region31: #{residual_block_pallas.3} parent=27 // pred_region
        %p184 = scmp.lt.s32.totalorder %s12, 1
        %s185 = scalar_select %p184, %s12, 1
        %s186 = smul.addr %s185, 32
        %s187 = smul.addr %s186, 8
        %s188 = scalar_lea.vmem %s0, %s187
      $region32: #{residual_block_pallas.3} parent=27 // pred_fallthru
        _
    $region28: #{residual_block_pallas.3} parent=5 // pred_fallthru
      _
    %p189 = scmp.le.s32.totalorder 1, %s12
    %p190 = scmp.lt.s32.totalorder %s12, 3
    %p191 = pnand %p189, %p190
    %p192 = pneg %p191
    // Predicated region
    $region33: #{residual_block_pallas.3} parent=5 // pred_check
      _
    $region34: #{residual_block_pallas.3} parent=5 // pred_check_branch
      %194 = sbr.rel (%p191) target = $region36
    $region35: #{residual_block_pallas.3} parent=5 // pred_region
      %s195 = ssub.s32 %s12, 1
      %p196 = scmp.lt.s32.totalorder %s17, 1
      %s197 = scalar_select %p196, %s17, 1
      %s198 = smul.addr %s197, 32
      %s199 = smul.addr %s198, 8
      %s200 = scalar_lea.vmem %s0, %s199
      %p201 = pneg %p38
      %p202 = pneg %p35
      %p203 = pneg %p59
      %p204 = pneg %p56
      %p205 = pneg %p80
      %p206 = pneg %p77
      %p207 = pneg %p101
      %p208 = pneg %p98
      %p209 = pneg %p127
      %p210 = pneg %p124
      %p211 = scmp.lt.s32.totalorder %s17, 1
      %s212 = scalar_select %p211, %s17, 1
      %s213 = smul.addr %s212, 32
      %s214 = smul.addr %s213, 8
      %s215 = scalar_lea.vmem %s4, %s214
      %p216 = pneg %p153
      %p217 = pneg %p150
      %p218 = scmp.lt.s32.totalorder %s17, 1
      %s219 = scalar_select %p218, %s17, 1
      %s220 = smul.addr %s219, 2
      %s221 = scalar_lea.vmem %s5, %s220
      %p222 = scmp.lt.s32.totalorder %s17, 1
      %s223 = scalar_select %p222, %s17, 1
      %s224 = smul.addr %s223, 32
      %s225 = smul.addr %s224, 8
      %s226 = scalar_lea.vmem %s0, %s225
      %p227 = scmp.lt.s32.totalorder %s17, 1
      %s228 = scalar_select %p227, %s17, 1
      %s229 = smul.addr %s228, 32
      %s230 = smul.addr %s229, 8
      %s231 = scalar_lea.vmem %s4, %s230
      %p232 = scmp.lt.s32.totalorder %s17, 1
      %s233 = scalar_select %p232, %s17, 1
      %s234 = smul.addr %s233, 2
      %s235 = scalar_lea.vmem %s5, %s234
      %v236 = vld [vmem:[%s226] sm:$0xff]
      %v237 = vld [vmem:[%s226 + $0x8] sm:$0xff]
      %v238 = vld [vmem:[%s226 + $0x10] sm:$0xff]
      %v239 = vld [vmem:[%s226 + $0x18] sm:$0xff]
      %v240 = vld [vmem:[%s226 + $0x20] sm:$0xff]
      %v241 = vld [vmem:[%s226 + $0x28] sm:$0xff]
      %v242 = vld [vmem:[%s226 + $0x30] sm:$0xff]
      %v243 = vld [vmem:[%s226 + $0x38] sm:$0xff]
      %v244 = vld [vmem:[%s226 + $0x40] sm:$0xff]
      %v245 = vld [vmem:[%s226 + $0x48] sm:$0xff]
      %v246 = vld [vmem:[%s226 + $0x50] sm:$0xff]
      %v247 = vld [vmem:[%s226 + $0x58] sm:$0xff]
      %v248 = vld [vmem:[%s226 + $0x60] sm:$0xff]
      %v249 = vld [vmem:[%s226 + $0x68] sm:$0xff]
      %v250 = vld [vmem:[%s226 + $0x70] sm:$0xff]
      %v251 = vld [vmem:[%s226 + $0x78] sm:$0xff]
      %v252 = vld [vmem:[%s226 + $0x80] sm:$0xff]
      %v253 = vld [vmem:[%s226 + $0x88] sm:$0xff]
      %v254 = vld [vmem:[%s226 + $0x90] sm:$0xff]
      %v255 = vld [vmem:[%s226 + $0x98] sm:$0xff]
      %v256 = vld [vmem:[%s226 + $0xa0] sm:$0xff]
      %v257 = vld [vmem:[%s226 + $0xa8] sm:$0xff]
      %v258 = vld [vmem:[%s226 + $0xb0] sm:$0xff]
      %v259 = vld [vmem:[%s226 + $0xb8] sm:$0xff]
      %v260 = vld [vmem:[%s226 + $0xc0] sm:$0xff]
      %v261 = vld [vmem:[%s226 + $0xc8] sm:$0xff]
      %v262 = vld [vmem:[%s226 + $0xd0] sm:$0xff]
      %v263 = vld [vmem:[%s226 + $0xd8] sm:$0xff]
      %v264 = vld [vmem:[%s226 + $0xe0] sm:$0xff]
      %v265 = vld [vmem:[%s226 + $0xe8] sm:$0xff]
      %v266 = vld [vmem:[%s226 + $0xf0] sm:$0xff]
      %v267 = vld [vmem:[%s226 + $0xf8] sm:$0xff]
      %s268 = scalar_lea.vmem [#allocation2], 24
      %vm269 = vcmask 31744
      %270 = vst.msk [vmem:[%s268 + $0x1] sm:$0xff] %vm269, %v236
      %271 = vst.msk [vmem:[%s268 + $0x9] sm:$0xff] %vm269, %v237
      %272 = vst.msk [vmem:[%s268 + $0x19] sm:$0xff] %vm269, %v238
      %273 = vst.msk [vmem:[%s268 + $0x21] sm:$0xff] %vm269, %v239
      %274 = vst.msk [vmem:[%s268 + $0x31] sm:$0xff] %vm269, %v240
      %275 = vst.msk [vmem:[%s268 + $0x39] sm:$0xff] %vm269, %v241
      %276 = vst.msk [vmem:[%s268 + $0x49] sm:$0xff] %vm269, %v242
      %277 = vst.msk [vmem:[%s268 + $0x51] sm:$0xff] %vm269, %v243
      %278 = vst.msk [vmem:[%s268 + $0x61] sm:$0xff] %vm269, %v244
      %279 = vst.msk [vmem:[%s268 + $0x69] sm:$0xff] %vm269, %v245
      %280 = vst.msk [vmem:[%s268 + $0x79] sm:$0xff] %vm269, %v246
      %281 = vst.msk [vmem:[%s268 + $0x81] sm:$0xff] %vm269, %v247
      %282 = vst.msk [vmem:[%s268 + $0x91] sm:$0xff] %vm269, %v248
      %283 = vst.msk [vmem:[%s268 + $0x99] sm:$0xff] %vm269, %v249
      %284 = vst.msk [vmem:[%s268 + $0xa9] sm:$0xff] %vm269, %v250
      %285 = vst.msk [vmem:[%s268 + $0xb1] sm:$0xff] %vm269, %v251
      %286 = vst.msk [vmem:[%s268 + $0xc1] sm:$0xff] %vm269, %v252
      %287 = vst.msk [vmem:[%s268 + $0xc9] sm:$0xff] %vm269, %v253
      %288 = vst.msk [vmem:[%s268 + $0xd9] sm:$0xff] %vm269, %v254
      %289 = vst.msk [vmem:[%s268 + $0xe1] sm:$0xff] %vm269, %v255
      %290 = vst.msk [vmem:[%s268 + $0xf1] sm:$0xff] %vm269, %v256
      %291 = vst.msk [vmem:[%s268 + $0xf9] sm:$0xff] %vm269, %v257
      %292 = vst.msk [vmem:[%s268 + $0x109] sm:$0xff] %vm269, %v258
      %293 = vst.msk [vmem:[%s268 + $0x111] sm:$0xff] %vm269, %v259
      %294 = vst.msk [vmem:[%s268 + $0x121] sm:$0xff] %vm269, %v260
      %295 = vst.msk [vmem:[%s268 + $0x129] sm:$0xff] %vm269, %v261
      %296 = vst.msk [vmem:[%s268 + $0x139] sm:$0xff] %vm269, %v262
      %297 = vst.msk [vmem:[%s268 + $0x141] sm:$0xff] %vm269, %v263
      %298 = vst.msk [vmem:[%s268 + $0x151] sm:$0xff] %vm269, %v264
      %299 = vst.msk [vmem:[%s268 + $0x159] sm:$0xff] %vm269, %v265
      %300 = vst.msk [vmem:[%s268 + $0x169] sm:$0xff] %vm269, %v266
      %301 = vst.msk [vmem:[%s268 + $0x171] sm:$0xff] %vm269, %v267
      %302 = vst.msk [vmem:[#allocation2 + $0x1] sm:$0xff] %vm269, %v238
      %303 = vst.msk [vmem:[#allocation2 + $0x9] sm:$0xff] %vm269, %v239
      %s304 = scalar_lea.vmem [#allocation2], 408
      %305 = vst.msk [vmem:[%s304 + $0x1] sm:$0xff] %vm269, %v264
      %306 = vst.msk [vmem:[%s304 + $0x9] sm:$0xff] %vm269, %v265
      %v307 = vld [vmem:[#allocation2 + $0x2] sm:$0x1]
      %v308 = vld [vmem:[#allocation2 + $0x1a] sm:$0x1]
      %v309 = vld [vmem:[#allocation2 + $0x32] sm:$0x1]
      %v310 = vld [vmem:[#allocation2 + $0x4a] sm:$0x1]
      %v311 = vld [vmem:[#allocation2 + $0x62] sm:$0x1]
      %v312 = vld [vmem:[#allocation2 + $0x7a] sm:$0x1]
      %v313 = vld [vmem:[#allocation2 + $0x92] sm:$0x1]
      %v314 = vld [vmem:[#allocation2 + $0xaa] sm:$0x1]
      %v315 = vld [vmem:[#allocation2 + $0xc2] sm:$0x1]
      %v316 = vld [vmem:[#allocation2 + $0xda] sm:$0x1]
      %v317 = vld [vmem:[#allocation2 + $0xf2] sm:$0x1]
      %v318 = vld [vmem:[#allocation2 + $0x10a] sm:$0x1]
      %v319 = vld [vmem:[#allocation2 + $0x122] sm:$0x1]
      %v320 = vld [vmem:[#allocation2 + $0x13a] sm:$0x1]
      %v321 = vld [vmem:[#allocation2 + $0x152] sm:$0x1]
      %v322 = vld [vmem:[#allocation2 + $0x16a] sm:$0x1]
      %v323 = vld [vmem:[#allocation2 + $0x182] sm:$0x1]
      %v324 = vld [vmem:[#allocation2 + $0x19a] sm:$0x1]
      %vm325 = vcmask 24576
      %326 = vst.msk [vmem:[#allocation2] sm:$0x1] %vm325, %v307
      %327 = vst.msk [vmem:[#allocation2 + $0x18] sm:$0x1] %vm325, %v308
      %328 = vst.msk [vmem:[#allocation2 + $0x30] sm:$0x1] %vm325, %v309
      %329 = vst.msk [vmem:[#allocation2 + $0x48] sm:$0x1] %vm325, %v310
      %330 = vst.msk [vmem:[#allocation2 + $0x60] sm:$0x1] %vm325, %v311
      %331 = vst.msk [vmem:[#allocation2 + $0x78] sm:$0x1] %vm325, %v312
      %332 = vst.msk [vmem:[#allocation2 + $0x90] sm:$0x1] %vm325, %v313
      %333 = vst.msk [vmem:[#allocation2 + $0xa8] sm:$0x1] %vm325, %v314
      %334 = vst.msk [vmem:[#allocation2 + $0xc0] sm:$0x1] %vm325, %v315
      %335 = vst.msk [vmem:[#allocation2 + $0xd8] sm:$0x1] %vm325, %v316
      %336 = vst.msk [vmem:[#allocation2 + $0xf0] sm:$0x1] %vm325, %v317
      %337 = vst.msk [vmem:[#allocation2 + $0x108] sm:$0x1] %vm325, %v318
      %338 = vst.msk [vmem:[#allocation2 + $0x120] sm:$0x1] %vm325, %v319
      %339 = vst.msk [vmem:[#allocation2 + $0x138] sm:$0x1] %vm325, %v320
      %340 = vst.msk [vmem:[#allocation2 + $0x150] sm:$0x1] %vm325, %v321
      %341 = vst.msk [vmem:[#allocation2 + $0x168] sm:$0x1] %vm325, %v322
      %342 = vst.msk [vmem:[#allocation2 + $0x180] sm:$0x1] %vm325, %v323
      %343 = vst.msk [vmem:[#allocation2 + $0x198] sm:$0x1] %vm325, %v324
      %v344 = vld [vmem:[#allocation2 + $0xf] sm:$0x1]
      %v345 = vld [vmem:[#allocation2 + $0x27] sm:$0x1]
      %v346 = vld [vmem:[#allocation2 + $0x3f] sm:$0x1]
      %v347 = vld [vmem:[#allocation2 + $0x57] sm:$0x1]
      %v348 = vld [vmem:[#allocation2 + $0x6f] sm:$0x1]
      %v349 = vld [vmem:[#allocation2 + $0x87] sm:$0x1]
      %v350 = vld [vmem:[#allocation2 + $0x9f] sm:$0x1]
      %v351 = vld [vmem:[#allocation2 + $0xb7] sm:$0x1]
      %v352 = vld [vmem:[#allocation2 + $0xcf] sm:$0x1]
      %v353 = vld [vmem:[#allocation2 + $0xe7] sm:$0x1]
      %v354 = vld [vmem:[#allocation2 + $0xff] sm:$0x1]
      %v355 = vld [vmem:[#allocation2 + $0x117] sm:$0x1]
      %v356 = vld [vmem:[#allocation2 + $0x12f] sm:$0x1]
      %v357 = vld [vmem:[#allocation2 + $0x147] sm:$0x1]
      %v358 = vld [vmem:[#allocation2 + $0x15f] sm:$0x1]
      %v359 = vld [vmem:[#allocation2 + $0x177] sm:$0x1]
      %v360 = vld [vmem:[#allocation2 + $0x18f] sm:$0x1]
      %v361 = vld [vmem:[#allocation2 + $0x1a7] sm:$0x1]
      %362 = vst.msk [vmem:[#allocation2 + $0x11] sm:$0x1] %vm325, %v344
      %363 = vst.msk [vmem:[#allocation2 + $0x29] sm:$0x1] %vm325, %v345
      %364 = vst.msk [vmem:[#allocation2 + $0x41] sm:$0x1] %vm325, %v346
      %365 = vst.msk [vmem:[#allocation2 + $0x59] sm:$0x1] %vm325, %v347
      %366 = vst.msk [vmem:[#allocation2 + $0x71] sm:$0x1] %vm325, %v348
      %367 = vst.msk [vmem:[#allocation2 + $0x89] sm:$0x1] %vm325, %v349
      %368 = vst.msk [vmem:[#allocation2 + $0xa1] sm:$0x1] %vm325, %v350
      %369 = vst.msk [vmem:[#allocation2 + $0xb9] sm:$0x1] %vm325, %v351
      %370 = vst.msk [vmem:[#allocation2 + $0xd1] sm:$0x1] %vm325, %v352
      %371 = vst.msk [vmem:[#allocation2 + $0xe9] sm:$0x1] %vm325, %v353
      %372 = vst.msk [vmem:[#allocation2 + $0x101] sm:$0x1] %vm325, %v354
      %373 = vst.msk [vmem:[#allocation2 + $0x119] sm:$0x1] %vm325, %v355
      %374 = vst.msk [vmem:[#allocation2 + $0x131] sm:$0x1] %vm325, %v356
      %375 = vst.msk [vmem:[#allocation2 + $0x149] sm:$0x1] %vm325, %v357
      %376 = vst.msk [vmem:[#allocation2 + $0x161] sm:$0x1] %vm325, %v358
      %377 = vst.msk [vmem:[#allocation2 + $0x179] sm:$0x1] %vm325, %v359
      %378 = vst.msk [vmem:[#allocation2 + $0x191] sm:$0x1] %vm325, %v360
      %379 = vst.msk [vmem:[#allocation2 + $0x1a9] sm:$0x1] %vm325, %v361
      %v380 = vld [vmem:[#allocation2] sm:$0xff]
      %v381 = vld [vmem:[#allocation2 + $0x8] sm:$0xff]
      %v382 = vld [vmem:[#allocation2 + $0x18] sm:$0xff]
      %v383 = vld [vmem:[#allocation2 + $0x20] sm:$0xff]
      %v384 = vld [vmem:[#allocation2 + $0x30] sm:$0xff]
      %v385 = vld [vmem:[#allocation2 + $0x38] sm:$0xff]
      %v386 = vld [vmem:[#allocation2 + $0x48] sm:$0xff]
      %v387 = vld [vmem:[#allocation2 + $0x50] sm:$0xff]
      %v388 = vld [vmem:[#allocation2 + $0x60] sm:$0xff]
      %v389 = vld [vmem:[#allocation2 + $0x68] sm:$0xff]
      %v390 = vld [vmem:[#allocation2 + $0x78] sm:$0xff]
      %v391 = vld [vmem:[#allocation2 + $0x80] sm:$0xff]
      %v392 = vld [vmem:[#allocation2 + $0x90] sm:$0xff]
      %v393 = vld [vmem:[#allocation2 + $0x98] sm:$0xff]
      %v394 = vld [vmem:[#allocation2 + $0xa8] sm:$0xff]
      %v395 = vld [vmem:[#allocation2 + $0xb0] sm:$0xff]
      %v396 = vld [vmem:[#allocation2 + $0xc0] sm:$0xff]
      %v397 = vld [vmem:[#allocation2 + $0xc8] sm:$0xff]
      %v398 = vld [vmem:[#allocation2 + $0xd8] sm:$0xff]
      %v399 = vld [vmem:[#allocation2 + $0xe0] sm:$0xff]
      %v400 = vld [vmem:[#allocation2 + $0xf0] sm:$0xff]
      %v401 = vld [vmem:[#allocation2 + $0xf8] sm:$0xff]
      %v402 = vld [vmem:[#allocation2 + $0x108] sm:$0xff]
      %v403 = vld [vmem:[#allocation2 + $0x110] sm:$0xff]
      %v404 = vld [vmem:[#allocation2 + $0x120] sm:$0xff]
      %v405 = vld [vmem:[#allocation2 + $0x128] sm:$0xff]
      %v406 = vld [vmem:[#allocation2 + $0x138] sm:$0xff]
      %v407 = vld [vmem:[#allocation2 + $0x140] sm:$0xff]
      %v408 = vld [vmem:[#allocation2 + $0x150] sm:$0xff]
      %v409 = vld [vmem:[#allocation2 + $0x158] sm:$0xff]
      %v410 = vld [vmem:[#allocation2 + $0x168] sm:$0xff]
      %v411 = vld [vmem:[#allocation2 + $0x170] sm:$0xff]
      %412 = vst.msk [vmem:[#allocation3] sm:$0xff] %vm269, %v380
      %413 = vst.msk [vmem:[#allocation3 + $0x8] sm:$0xff] %vm269, %v381
      %414 = vst.msk [vmem:[#allocation3 + $0x10] sm:$0xff] %vm269, %v382
      %415 = vst.msk [vmem:[#allocation3 + $0x18] sm:$0xff] %vm269, %v383
      %416 = vst.msk [vmem:[#allocation3 + $0x20] sm:$0xff] %vm269, %v384
      %417 = vst.msk [vmem:[#allocation3 + $0x28] sm:$0xff] %vm269, %v385
      %418 = vst.msk [vmem:[#allocation3 + $0x30] sm:$0xff] %vm269, %v386
      %419 = vst.msk [vmem:[#allocation3 + $0x38] sm:$0xff] %vm269, %v387
      %420 = vst.msk [vmem:[#allocation3 + $0x40] sm:$0xff] %vm269, %v388
      %421 = vst.msk [vmem:[#allocation3 + $0x48] sm:$0xff] %vm269, %v389
      %422 = vst.msk [vmem:[#allocation3 + $0x50] sm:$0xff] %vm269, %v390
      %423 = vst.msk [vmem:[#allocation3 + $0x58] sm:$0xff] %vm269, %v391
      %424 = vst.msk [vmem:[#allocation3 + $0x60] sm:$0xff] %vm269, %v392
      %425 = vst.msk [vmem:[#allocation3 + $0x68] sm:$0xff] %vm269, %v393
      %426 = vst.msk [vmem:[#allocation3 + $0x70] sm:$0xff] %vm269, %v394
      %427 = vst.msk [vmem:[#allocation3 + $0x78] sm:$0xff] %vm269, %v395
      %428 = vst.msk [vmem:[#allocation3 + $0x80] sm:$0xff] %vm269, %v396
      %429 = vst.msk [vmem:[#allocation3 + $0x88] sm:$0xff] %vm269, %v397
      %430 = vst.msk [vmem:[#allocation3 + $0x90] sm:$0xff] %vm269, %v398
      %431 = vst.msk [vmem:[#allocation3 + $0x98] sm:$0xff] %vm269, %v399
      %432 = vst.msk [vmem:[#allocation3 + $0xa0] sm:$0xff] %vm269, %v400
      %433 = vst.msk [vmem:[#allocation3 + $0xa8] sm:$0xff] %vm269, %v401
      %434 = vst.msk [vmem:[#allocation3 + $0xb0] sm:$0xff] %vm269, %v402
      %435 = vst.msk [vmem:[#allocation3 + $0xb8] sm:$0xff] %vm269, %v403
      %436 = vst.msk [vmem:[#allocation3 + $0xc0] sm:$0xff] %vm269, %v404
      %437 = vst.msk [vmem:[#allocation3 + $0xc8] sm:$0xff] %vm269, %v405
      %438 = vst.msk [vmem:[#allocation3 + $0xd0] sm:$0xff] %vm269, %v406
      %439 = vst.msk [vmem:[#allocation3 + $0xd8] sm:$0xff] %vm269, %v407
      %440 = vst.msk [vmem:[#allocation3 + $0xe0] sm:$0xff] %vm269, %v408
      %441 = vst.msk [vmem:[#allocation3 + $0xe8] sm:$0xff] %vm269, %v409
      %442 = vst.msk [vmem:[#allocation3 + $0xf0] sm:$0xff] %vm269, %v410
      %443 = vst.msk [vmem:[#allocation3 + $0xf8] sm:$0xff] %vm269, %v411
      %v444 = vld [vmem:[#allocation2 + $0x1] sm:$0xff]
      %v445 = vld [vmem:[#allocation2 + $0x9] sm:$0xff]
      %v446 = vld [vmem:[#allocation2 + $0x19] sm:$0xff]
      %v447 = vld [vmem:[#allocation2 + $0x21] sm:$0xff]
      %v448 = vld [vmem:[#allocation2 + $0x31] sm:$0xff]
      %v449 = vld [vmem:[#allocation2 + $0x39] sm:$0xff]
      %v450 = vld [vmem:[#allocation2 + $0x49] sm:$0xff]
      %v451 = vld [vmem:[#allocation2 + $0x51] sm:$0xff]
      %v452 = vld [vmem:[#allocation2 + $0x61] sm:$0xff]
      %v453 = vld [vmem:[#allocation2 + $0x69] sm:$0xff]
      %v454 = vld [vmem:[#allocation2 + $0x79] sm:$0xff]
      %v455 = vld [vmem:[#allocation2 + $0x81] sm:$0xff]
      %v456 = vld [vmem:[#allocation2 + $0x91] sm:$0xff]
      %v457 = vld [vmem:[#allocation2 + $0x99] sm:$0xff]
      %v458 = vld [vmem:[#allocation2 + $0xa9] sm:$0xff]
      %v459 = vld [vmem:[#allocation2 + $0xb1] sm:$0xff]
      %v460 = vld [vmem:[#allocation2 + $0xc1] sm:$0xff]
      %v461 = vld [vmem:[#allocation2 + $0xc9] sm:$0xff]
      %v462 = vld [vmem:[#allocation2 + $0xd9] sm:$0xff]
      %v463 = vld [vmem:[#allocation2 + $0xe1] sm:$0xff]
      %v464 = vld [vmem:[#allocation2 + $0xf1] sm:$0xff]
      %v465 = vld [vmem:[#allocation2 + $0xf9] sm:$0xff]
      %v466 = vld [vmem:[#allocation2 + $0x109] sm:$0xff]
      %v467 = vld [vmem:[#allocation2 + $0x111] sm:$0xff]
      %v468 = vld [vmem:[#allocation2 + $0x121] sm:$0xff]
      %v469 = vld [vmem:[#allocation2 + $0x129] sm:$0xff]
      %v470 = vld [vmem:[#allocation2 + $0x139] sm:$0xff]
      %v471 = vld [vmem:[#allocation2 + $0x141] sm:$0xff]
      %v472 = vld [vmem:[#allocation2 + $0x151] sm:$0xff]
      %v473 = vld [vmem:[#allocation2 + $0x159] sm:$0xff]
      %v474 = vld [vmem:[#allocation2 + $0x169] sm:$0xff]
      %v475 = vld [vmem:[#allocation2 + $0x171] sm:$0xff]
      %508 = vrot.lane.b32.xlu0 %v444, 4
      %v509 = vpop.permute.xlu0 %508
      %510 = vrot.lane.b32.xlu0 %v445, 4
      %v511 = vpop.permute.xlu0 %510
      %512 = vrot.lane.b32.xlu0 %v446, 4
      %v513 = vpop.permute.xlu0 %512
      %514 = vrot.lane.b32.xlu0 %v447, 4
      %v515 = vpop.permute.xlu0 %514
      %516 = vrot.lane.b32.xlu0 %v448, 4
      %v517 = vpop.permute.xlu0 %516
      %518 = vrot.lane.b32.xlu0 %v449, 4
      %v519 = vpop.permute.xlu0 %518
      %520 = vrot.lane.b32.xlu0 %v450, 4
      %v521 = vpop.permute.xlu0 %520
      %522 = vrot.lane.b32.xlu0 %v451, 4
      %v523 = vpop.permute.xlu0 %522
      %524 = vrot.lane.b32.xlu0 %v452, 4
      %v525 = vpop.permute.xlu0 %524
      %526 = vrot.lane.b32.xlu0 %v453, 4
      %v527 = vpop.permute.xlu0 %526
      %528 = vrot.lane.b32.xlu0 %v454, 4
      %v529 = vpop.permute.xlu0 %528
      %530 = vrot.lane.b32.xlu0 %v455, 4
      %v531 = vpop.permute.xlu0 %530
      %532 = vrot.lane.b32.xlu0 %v456, 4
      %v533 = vpop.permute.xlu0 %532
      %534 = vrot.lane.b32.xlu0 %v457, 4
      %v535 = vpop.permute.xlu0 %534
      %536 = vrot.lane.b32.xlu0 %v458, 4
      %v537 = vpop.permute.xlu0 %536
      %538 = vrot.lane.b32.xlu0 %v459, 4
      %v539 = vpop.permute.xlu0 %538
      %540 = vrot.lane.b32.xlu0 %v460, 4
      %v541 = vpop.permute.xlu0 %540
      %542 = vrot.lane.b32.xlu0 %v461, 4
      %v543 = vpop.permute.xlu0 %542
      %544 = vrot.lane.b32.xlu0 %v462, 4
      %v545 = vpop.permute.xlu0 %544
      %546 = vrot.lane.b32.xlu0 %v463, 4
      %v547 = vpop.permute.xlu0 %546
      %548 = vrot.lane.b32.xlu0 %v464, 4
      %v549 = vpop.permute.xlu0 %548
      %550 = vrot.lane.b32.xlu0 %v465, 4
      %v551 = vpop.permute.xlu0 %550
      %552 = vrot.lane.b32.xlu0 %v466, 4
      %v553 = vpop.permute.xlu0 %552
      %554 = vrot.lane.b32.xlu0 %v467, 4
      %v555 = vpop.permute.xlu0 %554
      %556 = vrot.lane.b32.xlu0 %v468, 4
      %v557 = vpop.permute.xlu0 %556
      %558 = vrot.lane.b32.xlu0 %v469, 4
      %v559 = vpop.permute.xlu0 %558
      %560 = vrot.lane.b32.xlu0 %v470, 4
      %v561 = vpop.permute.xlu0 %560
      %562 = vrot.lane.b32.xlu0 %v471, 4
      %v563 = vpop.permute.xlu0 %562
      %564 = vrot.lane.b32.xlu0 %v472, 4
      %v565 = vpop.permute.xlu0 %564
      %566 = vrot.lane.b32.xlu0 %v473, 4
      %v567 = vpop.permute.xlu0 %566
      %568 = vrot.lane.b32.xlu0 %v474, 4
      %v569 = vpop.permute.xlu0 %568
      %570 = vrot.lane.b32.xlu0 %v475, 4
      %v571 = vpop.permute.xlu0 %570
      %vm604 = vcmask 64544
      %605 = vst.msk [vmem:[#allocation3] sm:$0xff] %vm604, %v509
      %606 = vst.msk [vmem:[#allocation3 + $0x8] sm:$0xff] %vm604, %v511
      %607 = vst.msk [vmem:[#allocation3 + $0x10] sm:$0xff] %vm604, %v513
      %608 = vst.msk [vmem:[#allocation3 + $0x18] sm:$0xff] %vm604, %v515
      %609 = vst.msk [vmem:[#allocation3 + $0x20] sm:$0xff] %vm604, %v517
      %610 = vst.msk [vmem:[#allocation3 + $0x28] sm:$0xff] %vm604, %v519
      %611 = vst.msk [vmem:[#allocation3 + $0x30] sm:$0xff] %vm604, %v521
      %612 = vst.msk [vmem:[#allocation3 + $0x38] sm:$0xff] %vm604, %v523
      %613 = vst.msk [vmem:[#allocation3 + $0x40] sm:$0xff] %vm604, %v525
      %614 = vst.msk [vmem:[#allocation3 + $0x48] sm:$0xff] %vm604, %v527
      %615 = vst.msk [vmem:[#allocation3 + $0x50] sm:$0xff] %vm604, %v529
      %616 = vst.msk [vmem:[#allocation3 + $0x58] sm:$0xff] %vm604, %v531
      %617 = vst.msk [vmem:[#allocation3 + $0x60] sm:$0xff] %vm604, %v533
      %618 = vst.msk [vmem:[#allocation3 + $0x68] sm:$0xff] %vm604, %v535
      %619 = vst.msk [vmem:[#allocation3 + $0x70] sm:$0xff] %vm604, %v537
      %620 = vst.msk [vmem:[#allocation3 + $0x78] sm:$0xff] %vm604, %v539
      %621 = vst.msk [vmem:[#allocation3 + $0x80] sm:$0xff] %vm604, %v541
      %622 = vst.msk [vmem:[#allocation3 + $0x88] sm:$0xff] %vm604, %v543
      %623 = vst.msk [vmem:[#allocation3 + $0x90] sm:$0xff] %vm604, %v545
      %624 = vst.msk [vmem:[#allocation3 + $0x98] sm:$0xff] %vm604, %v547
      %625 = vst.msk [vmem:[#allocation3 + $0xa0] sm:$0xff] %vm604, %v549
      %626 = vst.msk [vmem:[#allocation3 + $0xa8] sm:$0xff] %vm604, %v551
      %627 = vst.msk [vmem:[#allocation3 + $0xb0] sm:$0xff] %vm604, %v553
      %628 = vst.msk [vmem:[#allocation3 + $0xb8] sm:$0xff] %vm604, %v555
      %629 = vst.msk [vmem:[#allocation3 + $0xc0] sm:$0xff] %vm604, %v557
      %630 = vst.msk [vmem:[#allocation3 + $0xc8] sm:$0xff] %vm604, %v559
      %631 = vst.msk [vmem:[#allocation3 + $0xd0] sm:$0xff] %vm604, %v561
      %632 = vst.msk [vmem:[#allocation3 + $0xd8] sm:$0xff] %vm604, %v563
      %633 = vst.msk [vmem:[#allocation3 + $0xe0] sm:$0xff] %vm604, %v565
      %634 = vst.msk [vmem:[#allocation3 + $0xe8] sm:$0xff] %vm604, %v567
      %635 = vst.msk [vmem:[#allocation3 + $0xf0] sm:$0xff] %vm604, %v569
      %636 = vst.msk [vmem:[#allocation3 + $0xf8] sm:$0xff] %vm604, %v571
      %v637 = vld [vmem:[#allocation2 + $0x2] sm:$0xff]
      %v638 = vld [vmem:[#allocation2 + $0xa] sm:$0xff]
      %v639 = vld [vmem:[#allocation2 + $0x1a] sm:$0xff]
      %v640 = vld [vmem:[#allocation2 + $0x22] sm:$0xff]
      %v641 = vld [vmem:[#allocation2 + $0x32] sm:$0xff]
      %v642 = vld [vmem:[#allocation2 + $0x3a] sm:$0xff]
      %v643 = vld [vmem:[#allocation2 + $0x4a] sm:$0xff]
      %v644 = vld [vmem:[#allocation2 + $0x52] sm:$0xff]
      %v645 = vld [vmem:[#allocation2 + $0x62] sm:$0xff]
      %v646 = vld [vmem:[#allocation2 + $0x6a] sm:$0xff]
      %v647 = vld [vmem:[#allocation2 + $0x7a] sm:$0xff]
      %v648 = vld [vmem:[#allocation2 + $0x82] sm:$0xff]
      %v649 = vld [vmem:[#allocation2 + $0x92] sm:$0xff]
      %v650 = vld [vmem:[#allocation2 + $0x9a] sm:$0xff]
      %v651 = vld [vmem:[#allocation2 + $0xaa] sm:$0xff]
      %v652 = vld [vmem:[#allocation2 + $0xb2] sm:$0xff]
      %v653 = vld [vmem:[#allocation2 + $0xc2] sm:$0xff]
      %v654 = vld [vmem:[#allocation2 + $0xca] sm:$0xff]
      %v655 = vld [vmem:[#allocation2 + $0xda] sm:$0xff]
      %v656 = vld [vmem:[#allocation2 + $0xe2] sm:$0xff]
      %v657 = vld [vmem:[#allocation2 + $0xf2] sm:$0xff]
      %v658 = vld [vmem:[#allocation2 + $0xfa] sm:$0xff]
      %v659 = vld [vmem:[#allocation2 + $0x10a] sm:$0xff]
      %v660 = vld [vmem:[#allocation2 + $0x112] sm:$0xff]
      %v661 = vld [vmem:[#allocation2 + $0x122] sm:$0xff]
      %v662 = vld [vmem:[#allocation2 + $0x12a] sm:$0xff]
      %v663 = vld [vmem:[#allocation2 + $0x13a] sm:$0xff]
      %v664 = vld [vmem:[#allocation2 + $0x142] sm:$0xff]
      %v665 = vld [vmem:[#allocation2 + $0x152] sm:$0xff]
      %v666 = vld [vmem:[#allocation2 + $0x15a] sm:$0xff]
      %v667 = vld [vmem:[#allocation2 + $0x16a] sm:$0xff]
      %v668 = vld [vmem:[#allocation2 + $0x172] sm:$0xff]
      %701 = vrot.lane.b32.xlu0 %v637, 8
      %v702 = vpop.permute.xlu0 %701
      %703 = vrot.lane.b32.xlu0 %v638, 8
      %v704 = vpop.permute.xlu0 %703
      %705 = vrot.lane.b32.xlu0 %v639, 8
      %v706 = vpop.permute.xlu0 %705
      %707 = vrot.lane.b32.xlu0 %v640, 8
      %v708 = vpop.permute.xlu0 %707
      %709 = vrot.lane.b32.xlu0 %v641, 8
      %v710 = vpop.permute.xlu0 %709
      %711 = vrot.lane.b32.xlu0 %v642, 8
      %v712 = vpop.permute.xlu0 %711
      %713 = vrot.lane.b32.xlu0 %v643, 8
      %v714 = vpop.permute.xlu0 %713
      %715 = vrot.lane.b32.xlu0 %v644, 8
      %v716 = vpop.permute.xlu0 %715
      %717 = vrot.lane.b32.xlu0 %v645, 8
      %v718 = vpop.permute.xlu0 %717
      %719 = vrot.lane.b32.xlu0 %v646, 8
      %v720 = vpop.permute.xlu0 %719
      %721 = vrot.lane.b32.xlu0 %v647, 8
      %v722 = vpop.permute.xlu0 %721
      %723 = vrot.lane.b32.xlu0 %v648, 8
      %v724 = vpop.permute.xlu0 %723
      %725 = vrot.lane.b32.xlu0 %v649, 8
      %v726 = vpop.permute.xlu0 %725
      %727 = vrot.lane.b32.xlu0 %v650, 8
      %v728 = vpop.permute.xlu0 %727
      %729 = vrot.lane.b32.xlu0 %v651, 8
      %v730 = vpop.permute.xlu0 %729
      %731 = vrot.lane.b32.xlu0 %v652, 8
      %v732 = vpop.permute.xlu0 %731
      %733 = vrot.lane.b32.xlu0 %v653, 8
      %v734 = vpop.permute.xlu0 %733
      %735 = vrot.lane.b32.xlu0 %v654, 8
      %v736 = vpop.permute.xlu0 %735
      %737 = vrot.lane.b32.xlu0 %v655, 8
      %v738 = vpop.permute.xlu0 %737
      %739 = vrot.lane.b32.xlu0 %v656, 8
      %v740 = vpop.permute.xlu0 %739
      %741 = vrot.lane.b32.xlu0 %v657, 8
      %v742 = vpop.permute.xlu0 %741
      %743 = vrot.lane.b32.xlu0 %v658, 8
      %v744 = vpop.permute.xlu0 %743
      %745 = vrot.lane.b32.xlu0 %v659, 8
      %v746 = vpop.permute.xlu0 %745
      %747 = vrot.lane.b32.xlu0 %v660, 8
      %v748 = vpop.permute.xlu0 %747
      %749 = vrot.lane.b32.xlu0 %v661, 8
      %v750 = vpop.permute.xlu0 %749
      %751 = vrot.lane.b32.xlu0 %v662, 8
      %v752 = vpop.permute.xlu0 %751
      %753 = vrot.lane.b32.xlu0 %v663, 8
      %v754 = vpop.permute.xlu0 %753
      %755 = vrot.lane.b32.xlu0 %v664, 8
      %v756 = vpop.permute.xlu0 %755
      %757 = vrot.lane.b32.xlu0 %v665, 8
      %v758 = vpop.permute.xlu0 %757
      %759 = vrot.lane.b32.xlu0 %v666, 8
      %v760 = vpop.permute.xlu0 %759
      %761 = vrot.lane.b32.xlu0 %v667, 8
      %v762 = vpop.permute.xlu0 %761
      %763 = vrot.lane.b32.xlu0 %v668, 8
      %v764 = vpop.permute.xlu0 %763
      %vm797 = vcmask 97344
      %798 = vst.msk [vmem:[#allocation3] sm:$0xff] %vm797, %v702
      %799 = vst.msk [vmem:[#allocation3 + $0x8] sm:$0xff] %vm797, %v704
      %800 = vst.msk [vmem:[#allocation3 + $0x10] sm:$0xff] %vm797, %v706
      %801 = vst.msk [vmem:[#allocation3 + $0x18] sm:$0xff] %vm797, %v708
      %802 = vst.msk [vmem:[#allocation3 + $0x20] sm:$0xff] %vm797, %v710
      %803 = vst.msk [vmem:[#allocation3 + $0x28] sm:$0xff] %vm797, %v712
      %804 = vst.msk [vmem:[#allocation3 + $0x30] sm:$0xff] %vm797, %v714
      %805 = vst.msk [vmem:[#allocation3 + $0x38] sm:$0xff] %vm797, %v716
      %806 = vst.msk [vmem:[#allocation3 + $0x40] sm:$0xff] %vm797, %v718
      %807 = vst.msk [vmem:[#allocation3 + $0x48] sm:$0xff] %vm797, %v720
      %808 = vst.msk [vmem:[#allocation3 + $0x50] sm:$0xff] %vm797, %v722
      %809 = vst.msk [vmem:[#allocation3 + $0x58] sm:$0xff] %vm797, %v724
      %810 = vst.msk [vmem:[#allocation3 + $0x60] sm:$0xff] %vm797, %v726
      %811 = vst.msk [vmem:[#allocation3 + $0x68] sm:$0xff] %vm797, %v728
      %812 = vst.msk [vmem:[#allocation3 + $0x70] sm:$0xff] %vm797, %v730
      %813 = vst.msk [vmem:[#allocation3 + $0x78] sm:$0xff] %vm797, %v732
      %814 = vst.msk [vmem:[#allocation3 + $0x80] sm:$0xff] %vm797, %v734
      %815 = vst.msk [vmem:[#allocation3 + $0x88] sm:$0xff] %vm797, %v736
      %816 = vst.msk [vmem:[#allocation3 + $0x90] sm:$0xff] %vm797, %v738
      %817 = vst.msk [vmem:[#allocation3 + $0x98] sm:$0xff] %vm797, %v740
      %818 = vst.msk [vmem:[#allocation3 + $0xa0] sm:$0xff] %vm797, %v742
      %819 = vst.msk [vmem:[#allocation3 + $0xa8] sm:$0xff] %vm797, %v744
      %820 = vst.msk [vmem:[#allocation3 + $0xb0] sm:$0xff] %vm797, %v746
      %821 = vst.msk [vmem:[#allocation3 + $0xb8] sm:$0xff] %vm797, %v748
      %822 = vst.msk [vmem:[#allocation3 + $0xc0] sm:$0xff] %vm797, %v750
      %823 = vst.msk [vmem:[#allocation3 + $0xc8] sm:$0xff] %vm797, %v752
      %824 = vst.msk [vmem:[#allocation3 + $0xd0] sm:$0xff] %vm797, %v754
      %825 = vst.msk [vmem:[#allocation3 + $0xd8] sm:$0xff] %vm797, %v756
      %826 = vst.msk [vmem:[#allocation3 + $0xe0] sm:$0xff] %vm797, %v758
      %827 = vst.msk [vmem:[#allocation3 + $0xe8] sm:$0xff] %vm797, %v760
      %828 = vst.msk [vmem:[#allocation3 + $0xf0] sm:$0xff] %vm797, %v762
      %829 = vst.msk [vmem:[#allocation3 + $0xf8] sm:$0xff] %vm797, %v764
      %v830 = vld [vmem:[%s268] sm:$0xff]
      %v831 = vld [vmem:[%s268 + $0x8] sm:$0xff]
      %v832 = vld [vmem:[%s268 + $0x18] sm:$0xff]
      %v833 = vld [vmem:[%s268 + $0x20] sm:$0xff]
      %v834 = vld [vmem:[%s268 + $0x30] sm:$0xff]
      %v835 = vld [vmem:[%s268 + $0x38] sm:$0xff]
      %v836 = vld [vmem:[%s268 + $0x48] sm:$0xff]
      %v837 = vld [vmem:[%s268 + $0x50] sm:$0xff]
      %v838 = vld [vmem:[%s268 + $0x60] sm:$0xff]
      %v839 = vld [vmem:[%s268 + $0x68] sm:$0xff]
      %v840 = vld [vmem:[%s268 + $0x78] sm:$0xff]
      %v841 = vld [vmem:[%s268 + $0x80] sm:$0xff]
      %v842 = vld [vmem:[%s268 + $0x90] sm:$0xff]
      %v843 = vld [vmem:[%s268 + $0x98] sm:$0xff]
      %v844 = vld [vmem:[%s268 + $0xa8] sm:$0xff]
      %v845 = vld [vmem:[%s268 + $0xb0] sm:$0xff]
      %v846 = vld [vmem:[%s268 + $0xc0] sm:$0xff]
      %v847 = vld [vmem:[%s268 + $0xc8] sm:$0xff]
      %v848 = vld [vmem:[%s268 + $0xd8] sm:$0xff]
      %v849 = vld [vmem:[%s268 + $0xe0] sm:$0xff]
      %v850 = vld [vmem:[%s268 + $0xf0] sm:$0xff]
      %v851 = vld [vmem:[%s268 + $0xf8] sm:$0xff]
      %v852 = vld [vmem:[%s268 + $0x108] sm:$0xff]
      %v853 = vld [vmem:[%s268 + $0x110] sm:$0xff]
      %v854 = vld [vmem:[%s268 + $0x120] sm:$0xff]
      %v855 = vld [vmem:[%s268 + $0x128] sm:$0xff]
      %v856 = vld [vmem:[%s268 + $0x138] sm:$0xff]
      %v857 = vld [vmem:[%s268 + $0x140] sm:$0xff]
      %v858 = vld [vmem:[%s268 + $0x150] sm:$0xff]
      %v859 = vld [vmem:[%s268 + $0x158] sm:$0xff]
      %v860 = vld [vmem:[%s268 + $0x168] sm:$0xff]
      %v861 = vld [vmem:[%s268 + $0x170] sm:$0xff]
      %894 = vrot.lane.b32.xlu0 %v830, 12
      %v895 = vpop.permute.xlu0 %894
      %896 = vrot.lane.b32.xlu0 %v831, 12
      %v897 = vpop.permute.xlu0 %896
      %898 = vrot.lane.b32.xlu0 %v832, 12
      %v899 = vpop.permute.xlu0 %898
      %900 = vrot.lane.b32.xlu0 %v833, 12
      %v901 = vpop.permute.xlu0 %900
      %902 = vrot.lane.b32.xlu0 %v834, 12
      %v903 = vpop.permute.xlu0 %902
      %904 = vrot.lane.b32.xlu0 %v835, 12
      %v905 = vpop.permute.xlu0 %904
      %906 = vrot.lane.b32.xlu0 %v836, 12
      %v907 = vpop.permute.xlu0 %906
      %908 = vrot.lane.b32.xlu0 %v837, 12
      %v909 = vpop.permute.xlu0 %908
      %910 = vrot.lane.b32.xlu0 %v838, 12
      %v911 = vpop.permute.xlu0 %910
      %912 = vrot.lane.b32.xlu0 %v839, 12
      %v913 = vpop.permute.xlu0 %912
      %914 = vrot.lane.b32.xlu0 %v840, 12
      %v915 = vpop.permute.xlu0 %914
      %916 = vrot.lane.b32.xlu0 %v841, 12
      %v917 = vpop.permute.xlu0 %916
      %918 = vrot.lane.b32.xlu0 %v842, 12
      %v919 = vpop.permute.xlu0 %918
      %920 = vrot.lane.b32.xlu0 %v843, 12
      %v921 = vpop.permute.xlu0 %920
      %922 = vrot.lane.b32.xlu0 %v844, 12
      %v923 = vpop.permute.xlu0 %922
      %924 = vrot.lane.b32.xlu0 %v845, 12
      %v925 = vpop.permute.xlu0 %924
      %926 = vrot.lane.b32.xlu0 %v846, 12
      %v927 = vpop.permute.xlu0 %926
      %928 = vrot.lane.b32.xlu0 %v847, 12
      %v929 = vpop.permute.xlu0 %928
      %930 = vrot.lane.b32.xlu0 %v848, 12
      %v931 = vpop.permute.xlu0 %930
      %932 = vrot.lane.b32.xlu0 %v849, 12
      %v933 = vpop.permute.xlu0 %932
      %934 = vrot.lane.b32.xlu0 %v850, 12
      %v935 = vpop.permute.xlu0 %934
      %936 = vrot.lane.b32.xlu0 %v851, 12
      %v937 = vpop.permute.xlu0 %936
      %938 = vrot.lane.b32.xlu0 %v852, 12
      %v939 = vpop.permute.xlu0 %938
      %940 = vrot.lane.b32.xlu0 %v853, 12
      %v941 = vpop.permute.xlu0 %940
      %942 = vrot.lane.b32.xlu0 %v854, 12
      %v943 = vpop.permute.xlu0 %942
      %944 = vrot.lane.b32.xlu0 %v855, 12
      %v945 = vpop.permute.xlu0 %944
      %946 = vrot.lane.b32.xlu0 %v856, 12
      %v947 = vpop.permute.xlu0 %946
      %948 = vrot.lane.b32.xlu0 %v857, 12
      %v949 = vpop.permute.xlu0 %948
      %950 = vrot.lane.b32.xlu0 %v858, 12
      %v951 = vpop.permute.xlu0 %950
      %952 = vrot.lane.b32.xlu0 %v859, 12
      %v953 = vpop.permute.xlu0 %952
      %954 = vrot.lane.b32.xlu0 %v860, 12
      %v955 = vpop.permute.xlu0 %954
      %956 = vrot.lane.b32.xlu0 %v861, 12
      %v957 = vpop.permute.xlu0 %956
      %vm990 = vcmask 130144
      %991 = vst.msk [vmem:[#allocation3] sm:$0xff] %vm990, %v895
      %992 = vst.msk [vmem:[#allocation3 + $0x8] sm:$0xff] %vm990, %v897
      %993 = vst.msk [vmem:[#allocation3 + $0x10] sm:$0xff] %vm990, %v899
      %994 = vst.msk [vmem:[#allocation3 + $0x18] sm:$0xff] %vm990, %v901
      %995 = vst.msk [vmem:[#allocation3 + $0x20] sm:$0xff] %vm990, %v903
      %996 = vst.msk [vmem:[#allocation3 + $0x28] sm:$0xff] %vm990, %v905
      %997 = vst.msk [vmem:[#allocation3 + $0x30] sm:$0xff] %vm990, %v907
      %998 = vst.msk [vmem:[#allocation3 + $0x38] sm:$0xff] %vm990, %v909
      %999 = vst.msk [vmem:[#allocation3 + $0x40] sm:$0xff] %vm990, %v911
      %1000 = vst.msk [vmem:[#allocation3 + $0x48] sm:$0xff] %vm990, %v913
      %1001 = vst.msk [vmem:[#allocation3 + $0x50] sm:$0xff] %vm990, %v915
      %1002 = vst.msk [vmem:[#allocation3 + $0x58] sm:$0xff] %vm990, %v917
      %1003 = vst.msk [vmem:[#allocation3 + $0x60] sm:$0xff] %vm990, %v919
      %1004 = vst.msk [vmem:[#allocation3 + $0x68] sm:$0xff] %vm990, %v921
      %1005 = vst.msk [vmem:[#allocation3 + $0x70] sm:$0xff] %vm990, %v923
      %1006 = vst.msk [vmem:[#allocation3 + $0x78] sm:$0xff] %vm990, %v925
      %1007 = vst.msk [vmem:[#allocation3 + $0x80] sm:$0xff] %vm990, %v927
      %1008 = vst.msk [vmem:[#allocation3 + $0x88] sm:$0xff] %vm990, %v929
      %1009 = vst.msk [vmem:[#allocation3 + $0x90] sm:$0xff] %vm990, %v931
      %1010 = vst.msk [vmem:[#allocation3 + $0x98] sm:$0xff] %vm990, %v933
      %1011 = vst.msk [vmem:[#allocation3 + $0xa0] sm:$0xff] %vm990, %v935
      %1012 = vst.msk [vmem:[#allocation3 + $0xa8] sm:$0xff] %vm990, %v937
      %1013 = vst.msk [vmem:[#allocation3 + $0xb0] sm:$0xff] %vm990, %v939
      %1014 = vst.msk [vmem:[#allocation3 + $0xb8] sm:$0xff] %vm990, %v941
      %1015 = vst.msk [vmem:[#allocation3 + $0xc0] sm:$0xff] %vm990, %v943
      %1016 = vst.msk [vmem:[#allocation3 + $0xc8] sm:$0xff] %vm990, %v945
      %1017 = vst.msk [vmem:[#allocation3 + $0xd0] sm:$0xff] %vm990, %v947
      %1018 = vst.msk [vmem:[#allocation3 + $0xd8] sm:$0xff] %vm990, %v949
      %1019 = vst.msk [vmem:[#allocation3 + $0xe0] sm:$0xff] %vm990, %v951
      %1020 = vst.msk [vmem:[#allocation3 + $0xe8] sm:$0xff] %vm990, %v953
      %1021 = vst.msk [vmem:[#allocation3 + $0xf0] sm:$0xff] %vm990, %v955
      %1022 = vst.msk [vmem:[#allocation3 + $0xf8] sm:$0xff] %vm990, %v957
      %v1023 = vld [vmem:[%s268 + $0x1] sm:$0xff]
      %v1024 = vld [vmem:[%s268 + $0x9] sm:$0xff]
      %v1025 = vld [vmem:[%s268 + $0x19] sm:$0xff]
      %v1026 = vld [vmem:[%s268 + $0x21] sm:$0xff]
      %v1027 = vld [vmem:[%s268 + $0x31] sm:$0xff]
      %v1028 = vld [vmem:[%s268 + $0x39] sm:$0xff]
      %v1029 = vld [vmem:[%s268 + $0x49] sm:$0xff]
      %v1030 = vld [vmem:[%s268 + $0x51] sm:$0xff]
      %v1031 = vld [vmem:[%s268 + $0x61] sm:$0xff]
      %v1032 = vld [vmem:[%s268 + $0x69] sm:$0xff]
      %v1033 = vld [vmem:[%s268 + $0x79] sm:$0xff]
      %v1034 = vld [vmem:[%s268 + $0x81] sm:$0xff]
      %v1035 = vld [vmem:[%s268 + $0x91] sm:$0xff]
      %v1036 = vld [vmem:[%s268 + $0x99] sm:$0xff]
      %v1037 = vld [vmem:[%s268 + $0xa9] sm:$0xff]
      %v1038 = vld [vmem:[%s268 + $0xb1] sm:$0xff]
      %v1039 = vld [vmem:[%s268 + $0xc1] sm:$0xff]
      %v1040 = vld [vmem:[%s268 + $0xc9] sm:$0xff]
      %v1041 = vld [vmem:[%s268 + $0xd9] sm:$0xff]
      %v1042 = vld [vmem:[%s268 + $0xe1] sm:$0xff]
      %v1043 = vld [vmem:[%s268 + $0xf1] sm:$0xff]
      %v1044 = vld [vmem:[%s268 + $0xf9] sm:$0xff]
      %v1045 = vld [vmem:[%s268 + $0x109] sm:$0xff]
      %v1046 = vld [vmem:[%s268 + $0x111] sm:$0xff]
      %v1047 = vld [vmem:[%s268 + $0x121] sm:$0xff]
      %v1048 = vld [vmem:[%s268 + $0x129] sm:$0xff]
      %v1049 = vld [vmem:[%s268 + $0x139] sm:$0xff]
      %v1050 = vld [vmem:[%s268 + $0x141] sm:$0xff]
      %v1051 = vld [vmem:[%s268 + $0x151] sm:$0xff]
      %v1052 = vld [vmem:[%s268 + $0x159] sm:$0xff]
      %v1053 = vld [vmem:[%s268 + $0x169] sm:$0xff]
      %v1054 = vld [vmem:[%s268 + $0x171] sm:$0xff]
      %1087 = vrot.lane.b32.xlu0 %v1023, 16
      %v1088 = vpop.permute.xlu0 %1087
      %1089 = vrot.lane.b32.xlu0 %v1024, 16
      %v1090 = vpop.permute.xlu0 %1089
      %1091 = vrot.lane.b32.xlu0 %v1025, 16
      %v1092 = vpop.permute.xlu0 %1091
      %1093 = vrot.lane.b32.xlu0 %v1026, 16
      %v1094 = vpop.permute.xlu0 %1093
      %1095 = vrot.lane.b32.xlu0 %v1027, 16
      %v1096 = vpop.permute.xlu0 %1095
      %1097 = vrot.lane.b32.xlu0 %v1028, 16
      %v1098 = vpop.permute.xlu0 %1097
      %1099 = vrot.lane.b32.xlu0 %v1029, 16
      %v1100 = vpop.permute.xlu0 %1099
      %1101 = vrot.lane.b32.xlu0 %v1030, 16
      %v1102 = vpop.permute.xlu0 %1101
      %1103 = vrot.lane.b32.xlu0 %v1031, 16
      %v1104 = vpop.permute.xlu0 %1103
      %1105 = vrot.lane.b32.xlu0 %v1032, 16
      %v1106 = vpop.permute.xlu0 %1105
      %1107 = vrot.lane.b32.xlu0 %v1033, 16
      %v1108 = vpop.permute.xlu0 %1107
      %1109 = vrot.lane.b32.xlu0 %v1034, 16
      %v1110 = vpop.permute.xlu0 %1109
      %1111 = vrot.lane.b32.xlu0 %v1035, 16
      %v1112 = vpop.permute.xlu0 %1111
      %1113 = vrot.lane.b32.xlu0 %v1036, 16
      %v1114 = vpop.permute.xlu0 %1113
      %1115 = vrot.lane.b32.xlu0 %v1037, 16
      %v1116 = vpop.permute.xlu0 %1115
      %1117 = vrot.lane.b32.xlu0 %v1038, 16
      %v1118 = vpop.permute.xlu0 %1117
      %1119 = vrot.lane.b32.xlu0 %v1039, 16
      %v1120 = vpop.permute.xlu0 %1119
      %1121 = vrot.lane.b32.xlu0 %v1040, 16
      %v1122 = vpop.permute.xlu0 %1121
      %1123 = vrot.lane.b32.xlu0 %v1041, 16
      %v1124 = vpop.permute.xlu0 %1123
      %1125 = vrot.lane.b32.xlu0 %v1042, 16
      %v1126 = vpop.permute.xlu0 %1125
      %1127 = vrot.lane.b32.xlu0 %v1043, 16
      %v1128 = vpop.permute.xlu0 %1127
      %1129 = vrot.lane.b32.xlu0 %v1044, 16
      %v1130 = vpop.permute.xlu0 %1129
      %1131 = vrot.lane.b32.xlu0 %v1045, 16
      %v1132 = vpop.permute.xlu0 %1131
      %1133 = vrot.lane.b32.xlu0 %v1046, 16
      %v1134 = vpop.permute.xlu0 %1133
      %1135 = vrot.lane.b32.xlu0 %v1047, 16
      %v1136 = vpop.permute.xlu0 %1135
      %1137 = vrot.lane.b32.xlu0 %v1048, 16
      %v1138 = vpop.permute.xlu0 %1137
      %1139 = vrot.lane.b32.xlu0 %v1049, 16
      %v1140 = vpop.permute.xlu0 %1139
      %1141 = vrot.lane.b32.xlu0 %v1050, 16
      %v1142 = vpop.permute.xlu0 %1141
      %1143 = vrot.lane.b32.xlu0 %v1051, 16
      %v1144 = vpop.permute.xlu0 %1143
      %1145 = vrot.lane.b32.xlu0 %v1052, 16
      %v1146 = vpop.permute.xlu0 %1145
      %1147 = vrot.lane.b32.xlu0 %v1053, 16
      %v1148 = vpop.permute.xlu0 %1147
      %1149 = vrot.lane.b32.xlu0 %v1054, 16
      %v1150 = vpop.permute.xlu0 %1149
      %vm1183 = vcmask 162944
      %1184 = vst.msk [vmem:[#allocation3] sm:$0xff] %vm1183, %v1088
      %1185 = vst.msk [vmem:[#allocation3 + $0x8] sm:$0xff] %vm1183, %v1090
      %1186 = vst.msk [vmem:[#allocation3 + $0x10] sm:$0xff] %vm1183, %v1092
      %1187 = vst.msk [vmem:[#allocation3 + $0x18] sm:$0xff] %vm1183, %v1094
      %1188 = vst.msk [vmem:[#allocation3 + $0x20] sm:$0xff] %vm1183, %v1096
      %1189 = vst.msk [vmem:[#allocation3 + $0x28] sm:$0xff] %vm1183, %v1098
      %1190 = vst.msk [vmem:[#allocation3 + $0x30] sm:$0xff] %vm1183, %v1100
      %1191 = vst.msk [vmem:[#allocation3 + $0x38] sm:$0xff] %vm1183, %v1102
      %1192 = vst.msk [vmem:[#allocation3 + $0x40] sm:$0xff] %vm1183, %v1104
      %1193 = vst.msk [vmem:[#allocation3 + $0x48] sm:$0xff] %vm1183, %v1106
      %1194 = vst.msk [vmem:[#allocation3 + $0x50] sm:$0xff] %vm1183, %v1108
      %1195 = vst.msk [vmem:[#allocation3 + $0x58] sm:$0xff] %vm1183, %v1110
      %1196 = vst.msk [vmem:[#allocation3 + $0x60] sm:$0xff] %vm1183, %v1112
      %1197 = vst.msk [vmem:[#allocation3 + $0x68] sm:$0xff] %vm1183, %v1114
      %1198 = vst.msk [vmem:[#allocation3 + $0x70] sm:$0xff] %vm1183, %v1116
      %1199 = vst.msk [vmem:[#allocation3 + $0x78] sm:$0xff] %vm1183, %v1118
      %1200 = vst.msk [vmem:[#allocation3 + $0x80] sm:$0xff] %vm1183, %v1120
      %1201 = vst.msk [vmem:[#allocation3 + $0x88] sm:$0xff] %vm1183, %v1122
      %1202 = vst.msk [vmem:[#allocation3 + $0x90] sm:$0xff] %vm1183, %v1124
      %1203 = vst.msk [vmem:[#allocation3 + $0x98] sm:$0xff] %vm1183, %v1126
      %1204 = vst.msk [vmem:[#allocation3 + $0xa0] sm:$0xff] %vm1183, %v1128
      %1205 = vst.msk [vmem:[#allocation3 + $0xa8] sm:$0xff] %vm1183, %v1130
      %1206 = vst.msk [vmem:[#allocation3 + $0xb0] sm:$0xff] %vm1183, %v1132
      %1207 = vst.msk [vmem:[#allocation3 + $0xb8] sm:$0xff] %vm1183, %v1134
      %1208 = vst.msk [vmem:[#allocation3 + $0xc0] sm:$0xff] %vm1183, %v1136
      %1209 = vst.msk [vmem:[#allocation3 + $0xc8] sm:$0xff] %vm1183, %v1138
      %1210 = vst.msk [vmem:[#allocation3 + $0xd0] sm:$0xff] %vm1183, %v1140
      %1211 = vst.msk [vmem:[#allocation3 + $0xd8] sm:$0xff] %vm1183, %v1142
      %1212 = vst.msk [vmem:[#allocation3 + $0xe0] sm:$0xff] %vm1183, %v1144
      %1213 = vst.msk [vmem:[#allocation3 + $0xe8] sm:$0xff] %vm1183, %v1146
      %1214 = vst.msk [vmem:[#allocation3 + $0xf0] sm:$0xff] %vm1183, %v1148
      %1215 = vst.msk [vmem:[#allocation3 + $0xf8] sm:$0xff] %vm1183, %v1150
      %v1216 = vld [vmem:[%s268 + $0x2] sm:$0xff]
      %v1217 = vld [vmem:[%s268 + $0xa] sm:$0xff]
      %v1218 = vld [vmem:[%s268 + $0x1a] sm:$0xff]
      %v1219 = vld [vmem:[%s268 + $0x22] sm:$0xff]
      %v1220 = vld [vmem:[%s268 + $0x32] sm:$0xff]
      %v1221 = vld [vmem:[%s268 + $0x3a] sm:$0xff]
      %v1222 = vld [vmem:[%s268 + $0x4a] sm:$0xff]
      %v1223 = vld [vmem:[%s268 + $0x52] sm:$0xff]
      %v1224 = vld [vmem:[%s268 + $0x62] sm:$0xff]
      %v1225 = vld [vmem:[%s268 + $0x6a] sm:$0xff]
      %v1226 = vld [vmem:[%s268 + $0x7a] sm:$0xff]
      %v1227 = vld [vmem:[%s268 + $0x82] sm:$0xff]
      %v1228 = vld [vmem:[%s268 + $0x92] sm:$0xff]
      %v1229 = vld [vmem:[%s268 + $0x9a] sm:$0xff]
      %v1230 = vld [vmem:[%s268 + $0xaa] sm:$0xff]
      %v1231 = vld [vmem:[%s268 + $0xb2] sm:$0xff]
      %v1232 = vld [vmem:[%s268 + $0xc2] sm:$0xff]
      %v1233 = vld [vmem:[%s268 + $0xca] sm:$0xff]
      %v1234 = vld [vmem:[%s268 + $0xda] sm:$0xff]
      %v1235 = vld [vmem:[%s268 + $0xe2] sm:$0xff]
      %v1236 = vld [vmem:[%s268 + $0xf2] sm:$0xff]
      %v1237 = vld [vmem:[%s268 + $0xfa] sm:$0xff]
      %v1238 = vld [vmem:[%s268 + $0x10a] sm:$0xff]
      %v1239 = vld [vmem:[%s268 + $0x112] sm:$0xff]
      %v1240 = vld [vmem:[%s268 + $0x122] sm:$0xff]
      %v1241 = vld [vmem:[%s268 + $0x12a] sm:$0xff]
      %v1242 = vld [vmem:[%s268 + $0x13a] sm:$0xff]
      %v1243 = vld [vmem:[%s268 + $0x142] sm:$0xff]
      %v1244 = vld [vmem:[%s268 + $0x152] sm:$0xff]
      %v1245 = vld [vmem:[%s268 + $0x15a] sm:$0xff]
      %v1246 = vld [vmem:[%s268 + $0x16a] sm:$0xff]
      %v1247 = vld [vmem:[%s268 + $0x172] sm:$0xff]
      %1280 = vrot.lane.b32.xlu0 %v1216, 20
      %v1281 = vpop.permute.xlu0 %1280
      %1282 = vrot.lane.b32.xlu0 %v1217, 20
      %v1283 = vpop.permute.xlu0 %1282
      %1284 = vrot.lane.b32.xlu0 %v1218, 20
      %v1285 = vpop.permute.xlu0 %1284
      %1286 = vrot.lane.b32.xlu0 %v1219, 20
      %v1287 = vpop.permute.xlu0 %1286
      %1288 = vrot.lane.b32.xlu0 %v1220, 20
      %v1289 = vpop.permute.xlu0 %1288
      %1290 = vrot.lane.b32.xlu0 %v1221, 20
      %v1291 = vpop.permute.xlu0 %1290
      %1292 = vrot.lane.b32.xlu0 %v1222, 20
      %v1293 = vpop.permute.xlu0 %1292
      %1294 = vrot.lane.b32.xlu0 %v1223, 20
      %v1295 = vpop.permute.xlu0 %1294
      %1296 = vrot.lane.b32.xlu0 %v1224, 20
      %v1297 = vpop.permute.xlu0 %1296
      %1298 = vrot.lane.b32.xlu0 %v1225, 20
      %v1299 = vpop.permute.xlu0 %1298
      %1300 = vrot.lane.b32.xlu0 %v1226, 20
      %v1301 = vpop.permute.xlu0 %1300
      %1302 = vrot.lane.b32.xlu0 %v1227, 20
      %v1303 = vpop.permute.xlu0 %1302
      %1304 = vrot.lane.b32.xlu0 %v1228, 20
      %v1305 = vpop.permute.xlu0 %1304
      %1306 = vrot.lane.b32.xlu0 %v1229, 20
      %v1307 = vpop.permute.xlu0 %1306
      %1308 = vrot.lane.b32.xlu0 %v1230, 20
      %v1309 = vpop.permute.xlu0 %1308
      %1310 = vrot.lane.b32.xlu0 %v1231, 20
      %v1311 = vpop.permute.xlu0 %1310
      %1312 = vrot.lane.b32.xlu0 %v1232, 20
      %v1313 = vpop.permute.xlu0 %1312
      %1314 = vrot.lane.b32.xlu0 %v1233, 20
      %v1315 = vpop.permute.xlu0 %1314
      %1316 = vrot.lane.b32.xlu0 %v1234, 20
      %v1317 = vpop.permute.xlu0 %1316
      %1318 = vrot.lane.b32.xlu0 %v1235, 20
      %v1319 = vpop.permute.xlu0 %1318
      %1320 = vrot.lane.b32.xlu0 %v1236, 20
      %v1321 = vpop.permute.xlu0 %1320
      %1322 = vrot.lane.b32.xlu0 %v1237, 20
      %v1323 = vpop.permute.xlu0 %1322
      %1324 = vrot.lane.b32.xlu0 %v1238, 20
      %v1325 = vpop.permute.xlu0 %1324
      %1326 = vrot.lane.b32.xlu0 %v1239, 20
      %v1327 = vpop.permute.xlu0 %1326
      %1328 = vrot.lane.b32.xlu0 %v1240, 20
      %v1329 = vpop.permute.xlu0 %1328
      %1330 = vrot.lane.b32.xlu0 %v1241, 20
      %v1331 = vpop.permute.xlu0 %1330
      %1332 = vrot.lane.b32.xlu0 %v1242, 20
      %v1333 = vpop.permute.xlu0 %1332
      %1334 = vrot.lane.b32.xlu0 %v1243, 20
      %v1335 = vpop.permute.xlu0 %1334
      %1336 = vrot.lane.b32.xlu0 %v1244, 20
      %v1337 = vpop.permute.xlu0 %1336
      %1338 = vrot.lane.b32.xlu0 %v1245, 20
      %v1339 = vpop.permute.xlu0 %1338
      %1340 = vrot.lane.b32.xlu0 %v1246, 20
      %v1341 = vpop.permute.xlu0 %1340
      %1342 = vrot.lane.b32.xlu0 %v1247, 20
      %v1343 = vpop.permute.xlu0 %1342
      %vm1376 = vcmask 195744
      %1377 = vst.msk [vmem:[#allocation3] sm:$0xff] %vm1376, %v1281
      %1378 = vst.msk [vmem:[#allocation3 + $0x8] sm:$0xff] %vm1376, %v1283
      %1379 = vst.msk [vmem:[#allocation3 + $0x10] sm:$0xff] %vm1376, %v1285
      %1380 = vst.msk [vmem:[#allocation3 + $0x18] sm:$0xff] %vm1376, %v1287
      %1381 = vst.msk [vmem:[#allocation3 + $0x20] sm:$0xff] %vm1376, %v1289
      %1382 = vst.msk [vmem:[#allocation3 + $0x28] sm:$0xff] %vm1376, %v1291
      %1383 = vst.msk [vmem:[#allocation3 + $0x30] sm:$0xff] %vm1376, %v1293
      %1384 = vst.msk [vmem:[#allocation3 + $0x38] sm:$0xff] %vm1376, %v1295
      %1385 = vst.msk [vmem:[#allocation3 + $0x40] sm:$0xff] %vm1376, %v1297
      %1386 = vst.msk [vmem:[#allocation3 + $0x48] sm:$0xff] %vm1376, %v1299
      %1387 = vst.msk [vmem:[#allocation3 + $0x50] sm:$0xff] %vm1376, %v1301
      %1388 = vst.msk [vmem:[#allocation3 + $0x58] sm:$0xff] %vm1376, %v1303
      %1389 = vst.msk [vmem:[#allocation3 + $0x60] sm:$0xff] %vm1376, %v1305
      %1390 = vst.msk [vmem:[#allocation3 + $0x68] sm:$0xff] %vm1376, %v1307
      %1391 = vst.msk [vmem:[#allocation3 + $0x70] sm:$0xff] %vm1376, %v1309
      %1392 = vst.msk [vmem:[#allocation3 + $0x78] sm:$0xff] %vm1376, %v1311
      %1393 = vst.msk [vmem:[#allocation3 + $0x80] sm:$0xff] %vm1376, %v1313
      %1394 = vst.msk [vmem:[#allocation3 + $0x88] sm:$0xff] %vm1376, %v1315
      %1395 = vst.msk [vmem:[#allocation3 + $0x90] sm:$0xff] %vm1376, %v1317
      %1396 = vst.msk [vmem:[#allocation3 + $0x98] sm:$0xff] %vm1376, %v1319
      %1397 = vst.msk [vmem:[#allocation3 + $0xa0] sm:$0xff] %vm1376, %v1321
      %1398 = vst.msk [vmem:[#allocation3 + $0xa8] sm:$0xff] %vm1376, %v1323
      %1399 = vst.msk [vmem:[#allocation3 + $0xb0] sm:$0xff] %vm1376, %v1325
      %1400 = vst.msk [vmem:[#allocation3 + $0xb8] sm:$0xff] %vm1376, %v1327
      %1401 = vst.msk [vmem:[#allocation3 + $0xc0] sm:$0xff] %vm1376, %v1329
      %1402 = vst.msk [vmem:[#allocation3 + $0xc8] sm:$0xff] %vm1376, %v1331
      %1403 = vst.msk [vmem:[#allocation3 + $0xd0] sm:$0xff] %vm1376, %v1333
      %1404 = vst.msk [vmem:[#allocation3 + $0xd8] sm:$0xff] %vm1376, %v1335
      %1405 = vst.msk [vmem:[#allocation3 + $0xe0] sm:$0xff] %vm1376, %v1337
      %1406 = vst.msk [vmem:[#allocation3 + $0xe8] sm:$0xff] %vm1376, %v1339
      %1407 = vst.msk [vmem:[#allocation3 + $0xf0] sm:$0xff] %vm1376, %v1341
      %1408 = vst.msk [vmem:[#allocation3 + $0xf8] sm:$0xff] %vm1376, %v1343
      %s1409 = scalar_lea.vmem [#allocation2], 48
      %v1410 = vld [vmem:[%s1409] sm:$0xff]
      %v1411 = vld [vmem:[%s1409 + $0x8] sm:$0xff]
      %v1412 = vld [vmem:[%s1409 + $0x18] sm:$0xff]
      %v1413 = vld [vmem:[%s1409 + $0x20] sm:$0xff]
      %v1414 = vld [vmem:[%s1409 + $0x30] sm:$0xff]
      %v1415 = vld [vmem:[%s1409 + $0x38] sm:$0xff]
      %v1416 = vld [vmem:[%s1409 + $0x48] sm:$0xff]
      %v1417 = vld [vmem:[%s1409 + $0x50] sm:$0xff]
      %v1418 = vld [vmem:[%s1409 + $0x60] sm:$0xff]
      %v1419 = vld [vmem:[%s1409 + $0x68] sm:$0xff]
      %v1420 = vld [vmem:[%s1409 + $0x78] sm:$0xff]
      %v1421 = vld [vmem:[%s1409 + $0x80] sm:$0xff]
      %v1422 = vld [vmem:[%s1409 + $0x90] sm:$0xff]
      %v1423 = vld [vmem:[%s1409 + $0x98] sm:$0xff]
      %v1424 = vld [vmem:[%s1409 + $0xa8] sm:$0xff]
      %v1425 = vld [vmem:[%s1409 + $0xb0] sm:$0xff]
      %v1426 = vld [vmem:[%s1409 + $0xc0] sm:$0xff]
      %v1427 = vld [vmem:[%s1409 + $0xc8] sm:$0xff]
      %v1428 = vld [vmem:[%s1409 + $0xd8] sm:$0xff]
      %v1429 = vld [vmem:[%s1409 + $0xe0] sm:$0xff]
      %v1430 = vld [vmem:[%s1409 + $0xf0] sm:$0xff]
      %v1431 = vld [vmem:[%s1409 + $0xf8] sm:$0xff]
      %v1432 = vld [vmem:[%s1409 + $0x108] sm:$0xff]
      %v1433 = vld [vmem:[%s1409 + $0x110] sm:$0xff]
      %v1434 = vld [vmem:[%s1409 + $0x120] sm:$0xff]
      %v1435 = vld [vmem:[%s1409 + $0x128] sm:$0xff]
      %v1436 = vld [vmem:[%s1409 + $0x138] sm:$0xff]
      %v1437 = vld [vmem:[%s1409 + $0x140] sm:$0xff]
      %v1438 = vld [vmem:[%s1409 + $0x150] sm:$0xff]
      %v1439 = vld [vmem:[%s1409 + $0x158] sm:$0xff]
      %v1440 = vld [vmem:[%s1409 + $0x168] sm:$0xff]
      %v1441 = vld [vmem:[%s1409 + $0x170] sm:$0xff]
      %1474 = vrot.lane.b32.xlu0 %v1410, 24
      %v1475 = vpop.permute.xlu0 %1474
      %1476 = vrot.lane.b32.xlu0 %v1411, 24
      %v1477 = vpop.permute.xlu0 %1476
      %1478 = vrot.lane.b32.xlu0 %v1412, 24
      %v1479 = vpop.permute.xlu0 %1478
      %1480 = vrot.lane.b32.xlu0 %v1413, 24
      %v1481 = vpop.permute.xlu0 %1480
      %1482 = vrot.lane.b32.xlu0 %v1414, 24
      %v1483 = vpop.permute.xlu0 %1482
      %1484 = vrot.lane.b32.xlu0 %v1415, 24
      %v1485 = vpop.permute.xlu0 %1484
      %1486 = vrot.lane.b32.xlu0 %v1416, 24
      %v1487 = vpop.permute.xlu0 %1486
      %1488 = vrot.lane.b32.xlu0 %v1417, 24
      %v1489 = vpop.permute.xlu0 %1488
      %1490 = vrot.lane.b32.xlu0 %v1418, 24
      %v1491 = vpop.permute.xlu0 %1490
      %1492 = vrot.lane.b32.xlu0 %v1419, 24
      %v1493 = vpop.permute.xlu0 %1492
      %1494 = vrot.lane.b32.xlu0 %v1420, 24
      %v1495 = vpop.permute.xlu0 %1494
      %1496 = vrot.lane.b32.xlu0 %v1421, 24
      %v1497 = vpop.permute.xlu0 %1496
      %1498 = vrot.lane.b32.xlu0 %v1422, 24
      %v1499 = vpop.permute.xlu0 %1498
      %1500 = vrot.lane.b32.xlu0 %v1423, 24
      %v1501 = vpop.permute.xlu0 %1500
      %1502 = vrot.lane.b32.xlu0 %v1424, 24
      %v1503 = vpop.permute.xlu0 %1502
      %1504 = vrot.lane.b32.xlu0 %v1425, 24
      %v1505 = vpop.permute.xlu0 %1504
      %1506 = vrot.lane.b32.xlu0 %v1426, 24
      %v1507 = vpop.permute.xlu0 %1506
      %1508 = vrot.lane.b32.xlu0 %v1427, 24
      %v1509 = vpop.permute.xlu0 %1508
      %1510 = vrot.lane.b32.xlu0 %v1428, 24
      %v1511 = vpop.permute.xlu0 %1510
      %1512 = vrot.lane.b32.xlu0 %v1429, 24
      %v1513 = vpop.permute.xlu0 %1512
      %1514 = vrot.lane.b32.xlu0 %v1430, 24
      %v1515 = vpop.permute.xlu0 %1514
      %1516 = vrot.lane.b32.xlu0 %v1431, 24
      %v1517 = vpop.permute.xlu0 %1516
      %1518 = vrot.lane.b32.xlu0 %v1432, 24
      %v1519 = vpop.permute.xlu0 %1518
      %1520 = vrot.lane.b32.xlu0 %v1433, 24
      %v1521 = vpop.permute.xlu0 %1520
      %1522 = vrot.lane.b32.xlu0 %v1434, 24
      %v1523 = vpop.permute.xlu0 %1522
      %1524 = vrot.lane.b32.xlu0 %v1435, 24
      %v1525 = vpop.permute.xlu0 %1524
      %1526 = vrot.lane.b32.xlu0 %v1436, 24
      %v1527 = vpop.permute.xlu0 %1526
      %1528 = vrot.lane.b32.xlu0 %v1437, 24
      %v1529 = vpop.permute.xlu0 %1528
      %1530 = vrot.lane.b32.xlu0 %v1438, 24
      %v1531 = vpop.permute.xlu0 %1530
      %1532 = vrot.lane.b32.xlu0 %v1439, 24
      %v1533 = vpop.permute.xlu0 %1532
      %1534 = vrot.lane.b32.xlu0 %v1440, 24
      %v1535 = vpop.permute.xlu0 %1534
      %1536 = vrot.lane.b32.xlu0 %v1441, 24
      %v1537 = vpop.permute.xlu0 %1536
      %vm1570 = vcmask 228544
      %1571 = vst.msk [vmem:[#allocation3] sm:$0xff] %vm1570, %v1475
      %1572 = vst.msk [vmem:[#allocation3 + $0x8] sm:$0xff] %vm1570, %v1477
      %1573 = vst.msk [vmem:[#allocation3 + $0x10] sm:$0xff] %vm1570, %v1479
      %1574 = vst.msk [vmem:[#allocation3 + $0x18] sm:$0xff] %vm1570, %v1481
      %1575 = vst.msk [vmem:[#allocation3 + $0x20] sm:$0xff] %vm1570, %v1483
      %1576 = vst.msk [vmem:[#allocation3 + $0x28] sm:$0xff] %vm1570, %v1485
      %1577 = vst.msk [vmem:[#allocation3 + $0x30] sm:$0xff] %vm1570, %v1487
      %1578 = vst.msk [vmem:[#allocation3 + $0x38] sm:$0xff] %vm1570, %v1489
      %1579 = vst.msk [vmem:[#allocation3 + $0x40] sm:$0xff] %vm1570, %v1491
      %1580 = vst.msk [vmem:[#allocation3 + $0x48] sm:$0xff] %vm1570, %v1493
      %1581 = vst.msk [vmem:[#allocation3 + $0x50] sm:$0xff] %vm1570, %v1495
      %1582 = vst.msk [vmem:[#allocation3 + $0x58] sm:$0xff] %vm1570, %v1497
      %1583 = vst.msk [vmem:[#allocation3 + $0x60] sm:$0xff] %vm1570, %v1499
      %1584 = vst.msk [vmem:[#allocation3 + $0x68] sm:$0xff] %vm1570, %v1501
      %1585 = vst.msk [vmem:[#allocation3 + $0x70] sm:$0xff] %vm1570, %v1503
      %1586 = vst.msk [vmem:[#allocation3 + $0x78] sm:$0xff] %vm1570, %v1505
      %1587 = vst.msk [vmem:[#allocation3 + $0x80] sm:$0xff] %vm1570, %v1507
      %1588 = vst.msk [vmem:[#allocation3 + $0x88] sm:$0xff] %vm1570, %v1509
      %1589 = vst.msk [vmem:[#allocation3 + $0x90] sm:$0xff] %vm1570, %v1511
      %1590 = vst.msk [vmem:[#allocation3 + $0x98] sm:$0xff] %vm1570, %v1513
      %1591 = vst.msk [vmem:[#allocation3 + $0xa0] sm:$0xff] %vm1570, %v1515
      %1592 = vst.msk [vmem:[#allocation3 + $0xa8] sm:$0xff] %vm1570, %v1517
      %1593 = vst.msk [vmem:[#allocation3 + $0xb0] sm:$0xff] %vm1570, %v1519
      %1594 = vst.msk [vmem:[#allocation3 + $0xb8] sm:$0xff] %vm1570, %v1521
      %1595 = vst.msk [vmem:[#allocation3 + $0xc0] sm:$0xff] %vm1570, %v1523
      %1596 = vst.msk [vmem:[#allocation3 + $0xc8] sm:$0xff] %vm1570, %v1525
      %1597 = vst.msk [vmem:[#allocation3 + $0xd0] sm:$0xff] %vm1570, %v1527
      %1598 = vst.msk [vmem:[#allocation3 + $0xd8] sm:$0xff] %vm1570, %v1529
      %1599 = vst.msk [vmem:[#allocation3 + $0xe0] sm:$0xff] %vm1570, %v1531
      %1600 = vst.msk [vmem:[#allocation3 + $0xe8] sm:$0xff] %vm1570, %v1533
      %1601 = vst.msk [vmem:[#allocation3 + $0xf0] sm:$0xff] %vm1570, %v1535
      %1602 = vst.msk [vmem:[#allocation3 + $0xf8] sm:$0xff] %vm1570, %v1537
      %v1603 = vld [vmem:[%s1409 + $0x1] sm:$0xff]
      %v1604 = vld [vmem:[%s1409 + $0x9] sm:$0xff]
      %v1605 = vld [vmem:[%s1409 + $0x19] sm:$0xff]
      %v1606 = vld [vmem:[%s1409 + $0x21] sm:$0xff]
      %v1607 = vld [vmem:[%s1409 + $0x31] sm:$0xff]
      %v1608 = vld [vmem:[%s1409 + $0x39] sm:$0xff]
      %v1609 = vld [vmem:[%s1409 + $0x49] sm:$0xff]
      %v1610 = vld [vmem:[%s1409 + $0x51] sm:$0xff]
      %v1611 = vld [vmem:[%s1409 + $0x61] sm:$0xff]
      %v1612 = vld [vmem:[%s1409 + $0x69] sm:$0xff]
      %v1613 = vld [vmem:[%s1409 + $0x79] sm:$0xff]
      %v1614 = vld [vmem:[%s1409 + $0x81] sm:$0xff]
      %v1615 = vld [vmem:[%s1409 + $0x91] sm:$0xff]
      %v1616 = vld [vmem:[%s1409 + $0x99] sm:$0xff]
      %v1617 = vld [vmem:[%s1409 + $0xa9] sm:$0xff]
      %v1618 = vld [vmem:[%s1409 + $0xb1] sm:$0xff]
      %v1619 = vld [vmem:[%s1409 + $0xc1] sm:$0xff]
      %v1620 = vld [vmem:[%s1409 + $0xc9] sm:$0xff]
      %v1621 = vld [vmem:[%s1409 + $0xd9] sm:$0xff]
      %v1622 = vld [vmem:[%s1409 + $0xe1] sm:$0xff]
      %v1623 = vld [vmem:[%s1409 + $0xf1] sm:$0xff]
      %v1624 = vld [vmem:[%s1409 + $0xf9] sm:$0xff]
      %v1625 = vld [vmem:[%s1409 + $0x109] sm:$0xff]
      %v1626 = vld [vmem:[%s1409 + $0x111] sm:$0xff]
      %v1627 = vld [vmem:[%s1409 + $0x121] sm:$0xff]
      %v1628 = vld [vmem:[%s1409 + $0x129] sm:$0xff]
      %v1629 = vld [vmem:[%s1409 + $0x139] sm:$0xff]
      %v1630 = vld [vmem:[%s1409 + $0x141] sm:$0xff]
      %v1631 = vld [vmem:[%s1409 + $0x151] sm:$0xff]
      %v1632 = vld [vmem:[%s1409 + $0x159] sm:$0xff]
      %v1633 = vld [vmem:[%s1409 + $0x169] sm:$0xff]
      %v1634 = vld [vmem:[%s1409 + $0x171] sm:$0xff]
      %1667 = vrot.lane.b32.xlu0 %v1603, 28
      %v1668 = vpop.permute.xlu0 %1667
      %1669 = vrot.lane.b32.xlu0 %v1604, 28
      %v1670 = vpop.permute.xlu0 %1669
      %1671 = vrot.lane.b32.xlu0 %v1605, 28
      %v1672 = vpop.permute.xlu0 %1671
      %1673 = vrot.lane.b32.xlu0 %v1606, 28
      %v1674 = vpop.permute.xlu0 %1673
      %1675 = vrot.lane.b32.xlu0 %v1607, 28
      %v1676 = vpop.permute.xlu0 %1675
      %1677 = vrot.lane.b32.xlu0 %v1608, 28
      %v1678 = vpop.permute.xlu0 %1677
      %1679 = vrot.lane.b32.xlu0 %v1609, 28
      %v1680 = vpop.permute.xlu0 %1679
      %1681 = vrot.lane.b32.xlu0 %v1610, 28
      %v1682 = vpop.permute.xlu0 %1681
      %1683 = vrot.lane.b32.xlu0 %v1611, 28
      %v1684 = vpop.permute.xlu0 %1683
      %1685 = vrot.lane.b32.xlu0 %v1612, 28
      %v1686 = vpop.permute.xlu0 %1685
      %1687 = vrot.lane.b32.xlu0 %v1613, 28
      %v1688 = vpop.permute.xlu0 %1687
      %1689 = vrot.lane.b32.xlu0 %v1614, 28
      %v1690 = vpop.permute.xlu0 %1689
      %1691 = vrot.lane.b32.xlu0 %v1615, 28
      %v1692 = vpop.permute.xlu0 %1691
      %1693 = vrot.lane.b32.xlu0 %v1616, 28
      %v1694 = vpop.permute.xlu0 %1693
      %1695 = vrot.lane.b32.xlu0 %v1617, 28
      %v1696 = vpop.permute.xlu0 %1695
      %1697 = vrot.lane.b32.xlu0 %v1618, 28
      %v1698 = vpop.permute.xlu0 %1697
      %1699 = vrot.lane.b32.xlu0 %v1619, 28
      %v1700 = vpop.permute.xlu0 %1699
      %1701 = vrot.lane.b32.xlu0 %v1620, 28
      %v1702 = vpop.permute.xlu0 %1701
      %1703 = vrot.lane.b32.xlu0 %v1621, 28
      %v1704 = vpop.permute.xlu0 %1703
      %1705 = vrot.lane.b32.xlu0 %v1622, 28
      %v1706 = vpop.permute.xlu0 %1705
      %1707 = vrot.lane.b32.xlu0 %v1623, 28
      %v1708 = vpop.permute.xlu0 %1707
      %1709 = vrot.lane.b32.xlu0 %v1624, 28
      %v1710 = vpop.permute.xlu0 %1709
      %1711 = vrot.lane.b32.xlu0 %v1625, 28
      %v1712 = vpop.permute.xlu0 %1711
      %1713 = vrot.lane.b32.xlu0 %v1626, 28
      %v1714 = vpop.permute.xlu0 %1713
      %1715 = vrot.lane.b32.xlu0 %v1627, 28
      %v1716 = vpop.permute.xlu0 %1715
      %1717 = vrot.lane.b32.xlu0 %v1628, 28
      %v1718 = vpop.permute.xlu0 %1717
      %1719 = vrot.lane.b32.xlu0 %v1629, 28
      %v1720 = vpop.permute.xlu0 %1719
      %1721 = vrot.lane.b32.xlu0 %v1630, 28
      %v1722 = vpop.permute.xlu0 %1721
      %1723 = vrot.lane.b32.xlu0 %v1631, 28
      %v1724 = vpop.permute.xlu0 %1723
      %1725 = vrot.lane.b32.xlu0 %v1632, 28
      %v1726 = vpop.permute.xlu0 %1725
      %1727 = vrot.lane.b32.xlu0 %v1633, 28
      %v1728 = vpop.permute.xlu0 %1727
      %1729 = vrot.lane.b32.xlu0 %v1634, 28
      %v1730 = vpop.permute.xlu0 %1729
      %vm1763 = vcmask 261344
      %1764 = vst.msk [vmem:[#allocation3] sm:$0xff] %vm1763, %v1668
      %1765 = vst.msk [vmem:[#allocation3 + $0x8] sm:$0xff] %vm1763, %v1670
      %1766 = vst.msk [vmem:[#allocation3 + $0x10] sm:$0xff] %vm1763, %v1672
      %1767 = vst.msk [vmem:[#allocation3 + $0x18] sm:$0xff] %vm1763, %v1674
      %1768 = vst.msk [vmem:[#allocation3 + $0x20] sm:$0xff] %vm1763, %v1676
      %1769 = vst.msk [vmem:[#allocation3 + $0x28] sm:$0xff] %vm1763, %v1678
      %1770 = vst.msk [vmem:[#allocation3 + $0x30] sm:$0xff] %vm1763, %v1680
      %1771 = vst.msk [vmem:[#allocation3 + $0x38] sm:$0xff] %vm1763, %v1682
      %1772 = vst.msk [vmem:[#allocation3 + $0x40] sm:$0xff] %vm1763, %v1684
      %1773 = vst.msk [vmem:[#allocation3 + $0x48] sm:$0xff] %vm1763, %v1686
      %1774 = vst.msk [vmem:[#allocation3 + $0x50] sm:$0xff] %vm1763, %v1688
      %1775 = vst.msk [vmem:[#allocation3 + $0x58] sm:$0xff] %vm1763, %v1690
      %1776 = vst.msk [vmem:[#allocation3 + $0x60] sm:$0xff] %vm1763, %v1692
      %1777 = vst.msk [vmem:[#allocation3 + $0x68] sm:$0xff] %vm1763, %v1694
      %1778 = vst.msk [vmem:[#allocation3 + $0x70] sm:$0xff] %vm1763, %v1696
      %1779 = vst.msk [vmem:[#allocation3 + $0x78] sm:$0xff] %vm1763, %v1698
      %1780 = vst.msk [vmem:[#allocation3 + $0x80] sm:$0xff] %vm1763, %v1700
      %1781 = vst.msk [vmem:[#allocation3 + $0x88] sm:$0xff] %vm1763, %v1702
      %1782 = vst.msk [vmem:[#allocation3 + $0x90] sm:$0xff] %vm1763, %v1704
      %1783 = vst.msk [vmem:[#allocation3 + $0x98] sm:$0xff] %vm1763, %v1706
      %1784 = vst.msk [vmem:[#allocation3 + $0xa0] sm:$0xff] %vm1763, %v1708
      %1785 = vst.msk [vmem:[#allocation3 + $0xa8] sm:$0xff] %vm1763, %v1710
      %1786 = vst.msk [vmem:[#allocation3 + $0xb0] sm:$0xff] %vm1763, %v1712
      %1787 = vst.msk [vmem:[#allocation3 + $0xb8] sm:$0xff] %vm1763, %v1714
      %1788 = vst.msk [vmem:[#allocation3 + $0xc0] sm:$0xff] %vm1763, %v1716
      %1789 = vst.msk [vmem:[#allocation3 + $0xc8] sm:$0xff] %vm1763, %v1718
      %1790 = vst.msk [vmem:[#allocation3 + $0xd0] sm:$0xff] %vm1763, %v1720
      %1791 = vst.msk [vmem:[#allocation3 + $0xd8] sm:$0xff] %vm1763, %v1722
      %1792 = vst.msk [vmem:[#allocation3 + $0xe0] sm:$0xff] %vm1763, %v1724
      %1793 = vst.msk [vmem:[#allocation3 + $0xe8] sm:$0xff] %vm1763, %v1726
      %1794 = vst.msk [vmem:[#allocation3 + $0xf0] sm:$0xff] %vm1763, %v1728
      %1795 = vst.msk [vmem:[#allocation3 + $0xf8] sm:$0xff] %vm1763, %v1730
      %v1796 = vld [vmem:[%s1409 + $0x2] sm:$0xff]
      %v1797 = vld [vmem:[%s1409 + $0xa] sm:$0xff]
      %v1798 = vld [vmem:[%s1409 + $0x1a] sm:$0xff]
      %v1799 = vld [vmem:[%s1409 + $0x22] sm:$0xff]
      %v1800 = vld [vmem:[%s1409 + $0x32] sm:$0xff]
      %v1801 = vld [vmem:[%s1409 + $0x3a] sm:$0xff]
      %v1802 = vld [vmem:[%s1409 + $0x4a] sm:$0xff]
      %v1803 = vld [vmem:[%s1409 + $0x52] sm:$0xff]
      %v1804 = vld [vmem:[%s1409 + $0x62] sm:$0xff]
      %v1805 = vld [vmem:[%s1409 + $0x6a] sm:$0xff]
      %v1806 = vld [vmem:[%s1409 + $0x7a] sm:$0xff]
      %v1807 = vld [vmem:[%s1409 + $0x82] sm:$0xff]
      %v1808 = vld [vmem:[%s1409 + $0x92] sm:$0xff]
      %v1809 = vld [vmem:[%s1409 + $0x9a] sm:$0xff]
      %v1810 = vld [vmem:[%s1409 + $0xaa] sm:$0xff]
      %v1811 = vld [vmem:[%s1409 + $0xb2] sm:$0xff]
      %v1812 = vld [vmem:[%s1409 + $0xc2] sm:$0xff]
      %v1813 = vld [vmem:[%s1409 + $0xca] sm:$0xff]
      %v1814 = vld [vmem:[%s1409 + $0xda] sm:$0xff]
      %v1815 = vld [vmem:[%s1409 + $0xe2] sm:$0xff]
      %v1816 = vld [vmem:[%s1409 + $0xf2] sm:$0xff]
      %v1817 = vld [vmem:[%s1409 + $0xfa] sm:$0xff]
      %v1818 = vld [vmem:[%s1409 + $0x10a] sm:$0xff]
      %v1819 = vld [vmem:[%s1409 + $0x112] sm:$0xff]
      %v1820 = vld [vmem:[%s1409 + $0x122] sm:$0xff]
      %v1821 = vld [vmem:[%s1409 + $0x12a] sm:$0xff]
      %v1822 = vld [vmem:[%s1409 + $0x13a] sm:$0xff]
      %v1823 = vld [vmem:[%s1409 + $0x142] sm:$0xff]
      %v1824 = vld [vmem:[%s1409 + $0x152] sm:$0xff]
      %v1825 = vld [vmem:[%s1409 + $0x15a] sm:$0xff]
      %v1826 = vld [vmem:[%s1409 + $0x16a] sm:$0xff]
      %v1827 = vld [vmem:[%s1409 + $0x172] sm:$0xff]
      %1860 = vrot.lane.b32.xlu0 %v1796, 32
      %v1861 = vpop.permute.xlu0 %1860
      %1862 = vrot.lane.b32.xlu0 %v1797, 32
      %v1863 = vpop.permute.xlu0 %1862
      %1864 = vrot.lane.b32.xlu0 %v1798, 32
      %v1865 = vpop.permute.xlu0 %1864
      %1866 = vrot.lane.b32.xlu0 %v1799, 32
      %v1867 = vpop.permute.xlu0 %1866
      %1868 = vrot.lane.b32.xlu0 %v1800, 32
      %v1869 = vpop.permute.xlu0 %1868
      %1870 = vrot.lane.b32.xlu0 %v1801, 32
      %v1871 = vpop.permute.xlu0 %1870
      %1872 = vrot.lane.b32.xlu0 %v1802, 32
      %v1873 = vpop.permute.xlu0 %1872
      %1874 = vrot.lane.b32.xlu0 %v1803, 32
      %v1875 = vpop.permute.xlu0 %1874
      %1876 = vrot.lane.b32.xlu0 %v1804, 32
      %v1877 = vpop.permute.xlu0 %1876
      %1878 = vrot.lane.b32.xlu0 %v1805, 32
      %v1879 = vpop.permute.xlu0 %1878
      %1880 = vrot.lane.b32.xlu0 %v1806, 32
      %v1881 = vpop.permute.xlu0 %1880
      %1882 = vrot.lane.b32.xlu0 %v1807, 32
      %v1883 = vpop.permute.xlu0 %1882
      %1884 = vrot.lane.b32.xlu0 %v1808, 32
      %v1885 = vpop.permute.xlu0 %1884
      %1886 = vrot.lane.b32.xlu0 %v1809, 32
      %v1887 = vpop.permute.xlu0 %1886
      %1888 = vrot.lane.b32.xlu0 %v1810, 32
      %v1889 = vpop.permute.xlu0 %1888
      %1890 = vrot.lane.b32.xlu0 %v1811, 32
      %v1891 = vpop.permute.xlu0 %1890
      %1892 = vrot.lane.b32.xlu0 %v1812, 32
      %v1893 = vpop.permute.xlu0 %1892
      %1894 = vrot.lane.b32.xlu0 %v1813, 32
      %v1895 = vpop.permute.xlu0 %1894
      %1896 = vrot.lane.b32.xlu0 %v1814, 32
      %v1897 = vpop.permute.xlu0 %1896
      %1898 = vrot.lane.b32.xlu0 %v1815, 32
      %v1899 = vpop.permute.xlu0 %1898
      %1900 = vrot.lane.b32.xlu0 %v1816, 32
      %v1901 = vpop.permute.xlu0 %1900
      %1902 = vrot.lane.b32.xlu0 %v1817, 32
      %v1903 = vpop.permute.xlu0 %1902
      %1904 = vrot.lane.b32.xlu0 %v1818, 32
      %v1905 = vpop.permute.xlu0 %1904
      %1906 = vrot.lane.b32.xlu0 %v1819, 32
      %v1907 = vpop.permute.xlu0 %1906
      %1908 = vrot.lane.b32.xlu0 %v1820, 32
      %v1909 = vpop.permute.xlu0 %1908
      %1910 = vrot.lane.b32.xlu0 %v1821, 32
      %v1911 = vpop.permute.xlu0 %1910
      %1912 = vrot.lane.b32.xlu0 %v1822, 32
      %v1913 = vpop.permute.xlu0 %1912
      %1914 = vrot.lane.b32.xlu0 %v1823, 32
      %v1915 = vpop.permute.xlu0 %1914
      %1916 = vrot.lane.b32.xlu0 %v1824, 32
      %v1917 = vpop.permute.xlu0 %1916
      %1918 = vrot.lane.b32.xlu0 %v1825, 32
      %v1919 = vpop.permute.xlu0 %1918
      %1920 = vrot.lane.b32.xlu0 %v1826, 32
      %v1921 = vpop.permute.xlu0 %1920
      %1922 = vrot.lane.b32.xlu0 %v1827, 32
      %v1923 = vpop.permute.xlu0 %1922
      %vm1956 = vcmask 294144
      %1957 = vst.msk [vmem:[#allocation3] sm:$0xff] %vm1956, %v1861
      %1958 = vst.msk [vmem:[#allocation3 + $0x8] sm:$0xff] %vm1956, %v1863
      %1959 = vst.msk [vmem:[#allocation3 + $0x10] sm:$0xff] %vm1956, %v1865
      %1960 = vst.msk [vmem:[#allocation3 + $0x18] sm:$0xff] %vm1956, %v1867
      %1961 = vst.msk [vmem:[#allocation3 + $0x20] sm:$0xff] %vm1956, %v1869
      %1962 = vst.msk [vmem:[#allocation3 + $0x28] sm:$0xff] %vm1956, %v1871
      %1963 = vst.msk [vmem:[#allocation3 + $0x30] sm:$0xff] %vm1956, %v1873
      %1964 = vst.msk [vmem:[#allocation3 + $0x38] sm:$0xff] %vm1956, %v1875
      %1965 = vst.msk [vmem:[#allocation3 + $0x40] sm:$0xff] %vm1956, %v1877
      %1966 = vst.msk [vmem:[#allocation3 + $0x48] sm:$0xff] %vm1956, %v1879
      %1967 = vst.msk [vmem:[#allocation3 + $0x50] sm:$0xff] %vm1956, %v1881
      %1968 = vst.msk [vmem:[#allocation3 + $0x58] sm:$0xff] %vm1956, %v1883
      %1969 = vst.msk [vmem:[#allocation3 + $0x60] sm:$0xff] %vm1956, %v1885
      %1970 = vst.msk [vmem:[#allocation3 + $0x68] sm:$0xff] %vm1956, %v1887
      %1971 = vst.msk [vmem:[#allocation3 + $0x70] sm:$0xff] %vm1956, %v1889
      %1972 = vst.msk [vmem:[#allocation3 + $0x78] sm:$0xff] %vm1956, %v1891
      %1973 = vst.msk [vmem:[#allocation3 + $0x80] sm:$0xff] %vm1956, %v1893
      %1974 = vst.msk [vmem:[#allocation3 + $0x88] sm:$0xff] %vm1956, %v1895
      %1975 = vst.msk [vmem:[#allocation3 + $0x90] sm:$0xff] %vm1956, %v1897
      %1976 = vst.msk [vmem:[#allocation3 + $0x98] sm:$0xff] %vm1956, %v1899
      %1977 = vst.msk [vmem:[#allocation3 + $0xa0] sm:$0xff] %vm1956, %v1901
      %1978 = vst.msk [vmem:[#allocation3 + $0xa8] sm:$0xff] %vm1956, %v1903
      %1979 = vst.msk [vmem:[#allocation3 + $0xb0] sm:$0xff] %vm1956, %v1905
      %1980 = vst.msk [vmem:[#allocation3 + $0xb8] sm:$0xff] %vm1956, %v1907
      %1981 = vst.msk [vmem:[#allocation3 + $0xc0] sm:$0xff] %vm1956, %v1909
      %1982 = vst.msk [vmem:[#allocation3 + $0xc8] sm:$0xff] %vm1956, %v1911
      %1983 = vst.msk [vmem:[#allocation3 + $0xd0] sm:$0xff] %vm1956, %v1913
      %1984 = vst.msk [vmem:[#allocation3 + $0xd8] sm:$0xff] %vm1956, %v1915
      %1985 = vst.msk [vmem:[#allocation3 + $0xe0] sm:$0xff] %vm1956, %v1917
      %1986 = vst.msk [vmem:[#allocation3 + $0xe8] sm:$0xff] %vm1956, %v1919
      %1987 = vst.msk [vmem:[#allocation3 + $0xf0] sm:$0xff] %vm1956, %v1921
      %1988 = vst.msk [vmem:[#allocation3 + $0xf8] sm:$0xff] %vm1956, %v1923
      %v1989 = vld [vmem:[#allocation3] sm:$0xff]
      %v1990 = vld [vmem:[#allocation3 + $0x8] sm:$0xff]
      %v1991 = vld [vmem:[#allocation3 + $0x10] sm:$0xff]
      %v1992 = vld [vmem:[#allocation3 + $0x18] sm:$0xff]
      %v1993 = vld [vmem:[#allocation3 + $0x20] sm:$0xff]
      %v1994 = vld [vmem:[#allocation3 + $0x28] sm:$0xff]
      %v1995 = vld [vmem:[#allocation3 + $0x30] sm:$0xff]
      %v1996 = vld [vmem:[#allocation3 + $0x38] sm:$0xff]
      %v1997 = vld [vmem:[#allocation3 + $0x40] sm:$0xff]
      %v1998 = vld [vmem:[#allocation3 + $0x48] sm:$0xff]
      %v1999 = vld [vmem:[#allocation3 + $0x50] sm:$0xff]
      %v2000 = vld [vmem:[#allocation3 + $0x58] sm:$0xff]
      %v2001 = vld [vmem:[#allocation3 + $0x60] sm:$0xff]
      %v2002 = vld [vmem:[#allocation3 + $0x68] sm:$0xff]
      %v2003 = vld [vmem:[#allocation3 + $0x70] sm:$0xff]
      %v2004 = vld [vmem:[#allocation3 + $0x78] sm:$0xff]
      %v2005 = vld [vmem:[#allocation3 + $0x80] sm:$0xff]
      %v2006 = vld [vmem:[#allocation3 + $0x88] sm:$0xff]
      %v2007 = vld [vmem:[#allocation3 + $0x90] sm:$0xff]
      %v2008 = vld [vmem:[#allocation3 + $0x98] sm:$0xff]
      %v2009 = vld [vmem:[#allocation3 + $0xa0] sm:$0xff]
      %v2010 = vld [vmem:[#allocation3 + $0xa8] sm:$0xff]
      %v2011 = vld [vmem:[#allocation3 + $0xb0] sm:$0xff]
      %v2012 = vld [vmem:[#allocation3 + $0xb8] sm:$0xff]
      %v2013 = vld [vmem:[#allocation3 + $0xc0] sm:$0xff]
      %v2014 = vld [vmem:[#allocation3 + $0xc8] sm:$0xff]
      %v2015 = vld [vmem:[#allocation3 + $0xd0] sm:$0xff]
      %v2016 = vld [vmem:[#allocation3 + $0xd8] sm:$0xff]
      %v2017 = vld [vmem:[#allocation3 + $0xe0] sm:$0xff]
      %v2018 = vld [vmem:[#allocation3 + $0xe8] sm:$0xff]
      %v2019 = vld [vmem:[#allocation3 + $0xf0] sm:$0xff]
      %v2020 = vld [vmem:[#allocation3 + $0xf8] sm:$0xff]
      %v2021 = vld [vmem:[%s1] sm:$0xff]
      %v2022 = vld [vmem:[%s1 + $0x8] sm:$0xff]
      %v2023 = vld [vmem:[%s1 + $0x10] sm:$0xff]
      %v2024 = vld [vmem:[%s1 + $0x18] sm:$0xff]
      %v2025 = vld [vmem:[%s1 + $0x20] sm:$0xf]
      %vm2026 = vcmask 293888
      %v2028 = vsel %vm2026, %v1989, 0
      %v2031 = vsel %vm2026, %v1990, 0
      %v2034 = vsel %vm2026, %v1991, 0
      %v2037 = vsel %vm2026, %v1992, 0
      %v2040 = vsel %vm2026, %v1993, 0
      %v2043 = vsel %vm2026, %v1994, 0
      %v2046 = vsel %vm2026, %v1995, 0
      %v2049 = vsel %vm2026, %v1996, 0
      %v2052 = vsel %vm2026, %v1997, 0
      %v2055 = vsel %vm2026, %v1998, 0
      %v2058 = vsel %vm2026, %v1999, 0
      %v2061 = vsel %vm2026, %v2000, 0
      %v2064 = vsel %vm2026, %v2001, 0
      %v2067 = vsel %vm2026, %v2002, 0
      %v2070 = vsel %vm2026, %v2003, 0
      %v2073 = vsel %vm2026, %v2004, 0
      %v2076 = vsel %vm2026, %v2005, 0
      %v2079 = vsel %vm2026, %v2006, 0
      %v2082 = vsel %vm2026, %v2007, 0
      %v2085 = vsel %vm2026, %v2008, 0
      %v2088 = vsel %vm2026, %v2009, 0
      %v2091 = vsel %vm2026, %v2010, 0
      %v2094 = vsel %vm2026, %v2011, 0
      %v2097 = vsel %vm2026, %v2012, 0
      %v2100 = vsel %vm2026, %v2013, 0
      %v2103 = vsel %vm2026, %v2014, 0
      %v2106 = vsel %vm2026, %v2015, 0
      %v2109 = vsel %vm2026, %v2016, 0
      %v2112 = vsel %vm2026, %v2017, 0
      %v2115 = vsel %vm2026, %v2018, 0
      %v2118 = vsel %vm2026, %v2019, 0
      %v2121 = vsel %vm2026, %v2020, 0
      %vm2123 = vcmask 1043456
      %v2125 = vsel %vm2123, %v2025, 0
      %2127 = vmatprep.subr.mxu0 0.0
      %2128 = vmatpush1.msra.mxu0 %v2021
      %2129 = vmatprep.subr.mxu0 0.0
      %2130 = vmatpush1.msra.mxu0 %v2022
      %2131 = vmatprep.subr.mxu0 0.0
      %2132 = vmatpush1.msra.mxu0 %v2023
      %2133 = vmatprep.subr.mxu0 0.0
      %2134 = vmatpush1.msra.mxu0 %v2024
      %2135 = vmatprep.subr.mxu0 0.0
      %2136 = vmatpush1.msra.mxu0 %v2125
      %2137 = vmatprep.subr.mxu0 0.0
      %2138 = vmatpush1.msra.mxu0 0.0
      %2139 = vmatprep.subr.mxu0 0.0
      %2140 = vmatpush1.msra.mxu0 0.0
      %2141 = vmatprep.subr.mxu0 0.0
      %2142 = vmatpush1.msra.mxu0 0.0
      %2143 = vmatprep.subr.mxu0 0.0
      %2144 = vmatpush1.msra.mxu0 0.0
      %2145 = vmatprep.subr.mxu0 0.0
      %2146 = vmatpush1.msra.mxu0 0.0
      %2147 = vmatprep.subr.mxu0 0.0
      %2148 = vmatpush1.msra.mxu0 0.0
      %2149 = vmatprep.subr.mxu0 0.0
      %2150 = vmatpush1.msra.mxu0 0.0
      %2151 = vmatprep.subr.mxu0 0.0
      %2152 = vmatpush1.msra.mxu0 0.0
      %2153 = vmatprep.subr.mxu0 0.0
      %2154 = vmatpush1.msra.mxu0 0.0
      %2155 = vmatprep.subr.mxu0 0.0
      %2156 = vmatpush1.msra.mxu0 0.0
      %2157 = vmatprep.subr.mxu0 0.0
      %2158 = vmatpush1.msra.mxu0 0.0
      %2159 = vmatprep.subr.mxu0 0.0
      %2160 = vmatpush1.msra.mxu0 0.0
      %2161 = vmatprep.subr.mxu0 0.0
      %2162 = vmatpush1.msra.mxu0 0.0
      %2163 = vmatprep.subr.mxu0 0.0
      %2164 = vmatpush1.msra.mxu0 0.0
      %2165 = vmatprep.subr.mxu0 0.0
      %2166 = vmatpush1.msra.mxu0 0.0
      %2167 = vmatprep.subr.mxu0 0.0
      %2168 = vmatpush1.msra.mxu0 0.0
      %2169 = vmatprep.subr.mxu0 0.0
      %2170 = vmatpush1.msra.mxu0 0.0
      %2171 = vmatprep.subr.mxu0 0.0
      %2172 = vmatpush1.msra.mxu0 0.0
      %2173 = vmatprep.subr.mxu0 0.0
      %2174 = vmatpush1.msra.mxu0 0.0
      %2175 = vmatprep.subr.mxu0 0.0
      %2176 = vmatpush1.msra.mxu0 0.0
      %2177 = vmatprep.subr.mxu0 0.0
      %2178 = vmatpush1.msra.mxu0 0.0
      %2179 = vmatprep.subr.mxu0 0.0
      %2180 = vmatpush1.msra.mxu0 0.0
      %2181 = vmatprep.subr.mxu0 0.0
      %2182 = vmatpush1.msra.mxu0 0.0
      %2183 = vmatprep.subr.mxu0 0.0
      %2184 = vmatpush1.msra.mxu0 0.0
      %2185 = vmatprep.subr.mxu0 0.0
      %2186 = vmatpush1.msra.mxu0 0.0
      %2187 = vmatprep.subr.mxu0 0.0
      %2188 = vmatpush1.msra.mxu0 0.0
      %2189 = vmatprep.subr.mxu0 0.0
      %2190 = vmatpush1.msra.mxu0 0.0
      %2191 = vmatprep.mubr.f32.mxu0 0.0
      %2192 = vmatmul.mubr.f32.gmra.mrb[0].mxu0 %v2028
      %v2193 = vpop.f32.mrb[0].mxu0
      %v2194 = vadd.f32 0.0, %v2193
      %v2195 = vpop.f32.mrb[0].mxu0
      %2196 = vmatprep.mubr.f32.mxu0 0.0
      %2197 = vmatmul.mubr.f32.gmra.mrb[0].mxu0 %v2031
      %v2198 = vpop.f32.mrb[0].mxu0
      %v2199 = vadd.f32 0.0, %v2198
      %v2200 = vpop.f32.mrb[0].mxu0
      %2201 = vmatprep.mubr.f32.mxu0 0.0
      %2202 = vmatmul.mubr.f32.gmra.mrb[0].mxu0 %v2034
      %v2203 = vpop.f32.mrb[0].mxu0
      %v2204 = vadd.f32 0.0, %v2203
      %v2205 = vpop.f32.mrb[0].mxu0
      %2206 = vmatprep.mubr.f32.mxu0 0.0
      %2207 = vmatmul.mubr.f32.gmra.mrb[0].mxu0 %v2037
      %v2208 = vpop.f32.mrb[0].mxu0
      %v2209 = vadd.f32 0.0, %v2208
      %v2210 = vpop.f32.mrb[0].mxu0
      %2211 = vmatprep.mubr.f32.mxu0 0.0
      %2212 = vmatmul.mubr.f32.gmra.mrb[0].mxu0 %v2040
      %v2213 = vpop.f32.mrb[0].mxu0
      %v2214 = vadd.f32 0.0, %v2213
      %v2215 = vpop.f32.mrb[0].mxu0
      %2216 = vmatprep.mubr.f32.mxu0 0.0
      %2217 = vmatmul.mubr.f32.gmra.mrb[0].mxu0 %v2043
      %v2218 = vpop.f32.mrb[0].mxu0
      %v2219 = vadd.f32 0.0, %v2218
      %v2220 = vpop.f32.mrb[0].mxu0
      %2221 = vmatprep.mubr.f32.mxu0 0.0
      %2222 = vmatmul.mubr.f32.gmra.mrb[0].mxu0 %v2046
      %v2223 = vpop.f32.mrb[0].mxu0
      %v2224 = vadd.f32 0.0, %v2223
      %v2225 = vpop.f32.mrb[0].mxu0
      %2226 = vmatprep.mubr.f32.mxu0 0.0
      %2227 = vmatmul.mubr.f32.gmra.mrb[0].mxu0 %v2049
      %v2228 = vpop.f32.mrb[0].mxu0
      %v2229 = vadd.f32 0.0, %v2228
      %v2230 = vpop.f32.mrb[0].mxu0
      %2231 = vmatprep.mubr.f32.mxu0 0.0
      %2232 = vmatmul.mubr.f32.gmra.mrb[0].mxu0 %v2052
      %v2233 = vpop.f32.mrb[0].mxu0
      %v2234 = vadd.f32 0.0, %v2233
      %v2235 = vpop.f32.mrb[0].mxu0
      %2236 = vmatprep.mubr.f32.mxu0 0.0
      %2237 = vmatmul.mubr.f32.gmra.mrb[0].mxu0 %v2055
      %v2238 = vpop.f32.mrb[0].mxu0
      %v2239 = vadd.f32 0.0, %v2238
      %v2240 = vpop.f32.mrb[0].mxu0
      %2241 = vmatprep.mubr.f32.mxu0 0.0
      %2242 = vmatmul.mubr.f32.gmra.mrb[0].mxu0 %v2058
      %v2243 = vpop.f32.mrb[0].mxu0
      %v2244 = vadd.f32 0.0, %v2243
      %v2245 = vpop.f32.mrb[0].mxu0
      %2246 = vmatprep.mubr.f32.mxu0 0.0
      %2247 = vmatmul.mubr.f32.gmra.mrb[0].mxu0 %v2061
      %v2248 = vpop.f32.mrb[0].mxu0
      %v2249 = vadd.f32 0.0, %v2248
      %v2250 = vpop.f32.mrb[0].mxu0
      %2251 = vmatprep.mubr.f32.mxu0 0.0
      %2252 = vmatmul.mubr.f32.gmra.mrb[0].mxu0 %v2064
      %v2253 = vpop.f32.mrb[0].mxu0
      %v2254 = vadd.f32 0.0, %v2253
      %v2255 = vpop.f32.mrb[0].mxu0
      %2256 = vmatprep.mubr.f32.mxu0 0.0
      %2257 = vmatmul.mubr.f32.gmra.mrb[0].mxu0 %v2067
      %v2258 = vpop.f32.mrb[0].mxu0
      %v2259 = vadd.f32 0.0, %v2258
      %v2260 = vpop.f32.mrb[0].mxu0
      %2261 = vmatprep.mubr.f32.mxu0 0.0
      %2262 = vmatmul.mubr.f32.gmra.mrb[0].mxu0 %v2070
      %v2263 = vpop.f32.mrb[0].mxu0
      %v2264 = vadd.f32 0.0, %v2263
      %v2265 = vpop.f32.mrb[0].mxu0
      %2266 = vmatprep.mubr.f32.mxu0 0.0
      %2267 = vmatmul.mubr.f32.gmra.mrb[0].mxu0 %v2073
      %v2268 = vpop.f32.mrb[0].mxu0
      %v2269 = vadd.f32 0.0, %v2268
      %v2270 = vpop.f32.mrb[0].mxu0
      %2271 = vmatprep.mubr.f32.mxu0 0.0
      %2272 = vmatmul.mubr.f32.gmra.mrb[0].mxu0 %v2076
      %v2273 = vpop.f32.mrb[0].mxu0
      %v2274 = vadd.f32 0.0, %v2273
      %v2275 = vpop.f32.mrb[0].mxu0
      %2276 = vmatprep.mubr.f32.mxu0 0.0
      %2277 = vmatmul.mubr.f32.gmra.mrb[0].mxu0 %v2079
      %v2278 = vpop.f32.mrb[0].mxu0
      %v2279 = vadd.f32 0.0, %v2278
      %v2280 = vpop.f32.mrb[0].mxu0
      %2281 = vmatprep.mubr.f32.mxu0 0.0
      %2282 = vmatmul.mubr.f32.gmra.mrb[0].mxu0 %v2082
      %v2283 = vpop.f32.mrb[0].mxu0
      %v2284 = vadd.f32 0.0, %v2283
      %v2285 = vpop.f32.mrb[0].mxu0
      %2286 = vmatprep.mubr.f32.mxu0 0.0
      %2287 = vmatmul.mubr.f32.gmra.mrb[0].mxu0 %v2085
      %v2288 = vpop.f32.mrb[0].mxu0
      %v2289 = vadd.f32 0.0, %v2288
      %v2290 = vpop.f32.mrb[0].mxu0
      %2291 = vmatprep.mubr.f32.mxu0 0.0
      %2292 = vmatmul.mubr.f32.gmra.mrb[0].mxu0 %v2088
      %v2293 = vpop.f32.mrb[0].mxu0
      %v2294 = vadd.f32 0.0, %v2293
      %v2295 = vpop.f32.mrb[0].mxu0
      %2296 = vmatprep.mubr.f32.mxu0 0.0
      %2297 = vmatmul.mubr.f32.gmra.mrb[0].mxu0 %v2091
      %v2298 = vpop.f32.mrb[0].mxu0
      %v2299 = vadd.f32 0.0, %v2298
      %v2300 = vpop.f32.mrb[0].mxu0
      %2301 = vmatprep.mubr.f32.mxu0 0.0
      %2302 = vmatmul.mubr.f32.gmra.mrb[0].mxu0 %v2094
      %v2303 = vpop.f32.mrb[0].mxu0
      %v2304 = vadd.f32 0.0, %v2303
      %v2305 = vpop.f32.mrb[0].mxu0
      %2306 = vmatprep.mubr.f32.mxu0 0.0
      %2307 = vmatmul.mubr.f32.gmra.mrb[0].mxu0 %v2097
      %v2308 = vpop.f32.mrb[0].mxu0
      %v2309 = vadd.f32 0.0, %v2308
      %v2310 = vpop.f32.mrb[0].mxu0
      %2311 = vmatprep.mubr.f32.mxu0 0.0
      %2312 = vmatmul.mubr.f32.gmra.mrb[0].mxu0 %v2100
      %v2313 = vpop.f32.mrb[0].mxu0
      %v2314 = vadd.f32 0.0, %v2313
      %v2315 = vpop.f32.mrb[0].mxu0
      %2316 = vmatprep.mubr.f32.mxu0 0.0
      %2317 = vmatmul.mubr.f32.gmra.mrb[0].mxu0 %v2103
      %v2318 = vpop.f32.mrb[0].mxu0
      %v2319 = vadd.f32 0.0, %v2318
      %v2320 = vpop.f32.mrb[0].mxu0
      %2321 = vmatprep.mubr.f32.mxu0 0.0
      %2322 = vmatmul.mubr.f32.gmra.mrb[0].mxu0 %v2106
      %v2323 = vpop.f32.mrb[0].mxu0
      %v2324 = vadd.f32 0.0, %v2323
      %v2325 = vpop.f32.mrb[0].mxu0
      %2326 = vmatprep.mubr.f32.mxu0 0.0
      %2327 = vmatmul.mubr.f32.gmra.mrb[0].mxu0 %v2109
      %v2328 = vpop.f32.mrb[0].mxu0
      %v2329 = vadd.f32 0.0, %v2328
      %v2330 = vpop.f32.mrb[0].mxu0
      %2331 = vmatprep.mubr.f32.mxu0 0.0
      %2332 = vmatmul.mubr.f32.gmra.mrb[0].mxu0 %v2112
      %v2333 = vpop.f32.mrb[0].mxu0
      %v2334 = vadd.f32 0.0, %v2333
      %v2335 = vpop.f32.mrb[0].mxu0
      %2336 = vmatprep.mubr.f32.mxu0 0.0
      %2337 = vmatmul.mubr.f32.gmra.mrb[0].mxu0 %v2115
      %v2338 = vpop.f32.mrb[0].mxu0
      %v2339 = vadd.f32 0.0, %v2338
      %v2340 = vpop.f32.mrb[0].mxu0
      %2341 = vmatprep.mubr.f32.mxu0 0.0
      %2342 = vmatmul.mubr.f32.gmra.mrb[0].mxu0 %v2118
      %v2343 = vpop.f32.mrb[0].mxu0
      %v2344 = vadd.f32 0.0, %v2343
      %v2345 = vpop.f32.mrb[0].mxu0
      %2346 = vmatprep.mubr.f32.mxu0 0.0
      %2347 = vmatmul.mubr.f32.gmra.mrb[0].mxu0 %v2121
      %v2348 = vpop.f32.mrb[0].mxu0
      %v2349 = vadd.f32 0.0, %v2348
      %v2350 = vpop.f32.mrb[0].mxu0
      %2351 = vdwg.mxu0
      %2352 = vst.msk [vmem:[%s231] sm:$0xff] %vm269, %v2194
      %2353 = vst.msk [vmem:[%s231 + $0x8] sm:$0xff] %vm269, %v2199
      %2354 = vst.msk [vmem:[%s231 + $0x10] sm:$0xff] %vm269, %v2204
      %2355 = vst.msk [vmem:[%s231 + $0x18] sm:$0xff] %vm269, %v2209
      %2356 = vst.msk [vmem:[%s231 + $0x20] sm:$0xff] %vm269, %v2214
      %2357 = vst.msk [vmem:[%s231 + $0x28] sm:$0xff] %vm269, %v2219
      %2358 = vst.msk [vmem:[%s231 + $0x30] sm:$0xff] %vm269, %v2224
      %2359 = vst.msk [vmem:[%s231 + $0x38] sm:$0xff] %vm269, %v2229
      %2360 = vst.msk [vmem:[%s231 + $0x40] sm:$0xff] %vm269, %v2234
      %2361 = vst.msk [vmem:[%s231 + $0x48] sm:$0xff] %vm269, %v2239
      %2362 = vst.msk [vmem:[%s231 + $0x50] sm:$0xff] %vm269, %v2244
      %2363 = vst.msk [vmem:[%s231 + $0x58] sm:$0xff] %vm269, %v2249
      %2364 = vst.msk [vmem:[%s231 + $0x60] sm:$0xff] %vm269, %v2254
      %2365 = vst.msk [vmem:[%s231 + $0x68] sm:$0xff] %vm269, %v2259
      %2366 = vst.msk [vmem:[%s231 + $0x70] sm:$0xff] %vm269, %v2264
      %2367 = vst.msk [vmem:[%s231 + $0x78] sm:$0xff] %vm269, %v2269
      %2368 = vst.msk [vmem:[%s231 + $0x80] sm:$0xff] %vm269, %v2274
      %2369 = vst.msk [vmem:[%s231 + $0x88] sm:$0xff] %vm269, %v2279
      %2370 = vst.msk [vmem:[%s231 + $0x90] sm:$0xff] %vm269, %v2284
      %2371 = vst.msk [vmem:[%s231 + $0x98] sm:$0xff] %vm269, %v2289
      %2372 = vst.msk [vmem:[%s231 + $0xa0] sm:$0xff] %vm269, %v2294
      %2373 = vst.msk [vmem:[%s231 + $0xa8] sm:$0xff] %vm269, %v2299
      %2374 = vst.msk [vmem:[%s231 + $0xb0] sm:$0xff] %vm269, %v2304
      %2375 = vst.msk [vmem:[%s231 + $0xb8] sm:$0xff] %vm269, %v2309
      %2376 = vst.msk [vmem:[%s231 + $0xc0] sm:$0xff] %vm269, %v2314
      %2377 = vst.msk [vmem:[%s231 + $0xc8] sm:$0xff] %vm269, %v2319
      %2378 = vst.msk [vmem:[%s231 + $0xd0] sm:$0xff] %vm269, %v2324
      %2379 = vst.msk [vmem:[%s231 + $0xd8] sm:$0xff] %vm269, %v2329
      %2380 = vst.msk [vmem:[%s231 + $0xe0] sm:$0xff] %vm269, %v2334
      %2381 = vst.msk [vmem:[%s231 + $0xe8] sm:$0xff] %vm269, %v2339
      %2382 = vst.msk [vmem:[%s231 + $0xf0] sm:$0xff] %vm269, %v2344
      %2383 = vst.msk [vmem:[%s231 + $0xf8] sm:$0xff] %vm269, %v2349
      %v2384 = vsel %vm269, %v2194, 0.0
      %v2385 = vsel %vm269, %v2199, 0.0
      %v2386 = vadd.f32 %v2384, %v2385
      %v2387 = vsel %vm269, %v2204, 0.0
      %v2388 = vadd.f32 %v2386, %v2387
      %v2389 = vsel %vm269, %v2209, 0.0
      %v2390 = vadd.f32 %v2388, %v2389
      %v2391 = vsel %vm269, %v2214, 0.0
      %v2392 = vadd.f32 %v2390, %v2391
      %v2393 = vsel %vm269, %v2219, 0.0
      %v2394 = vadd.f32 %v2392, %v2393
      %v2395 = vsel %vm269, %v2224, 0.0
      %v2396 = vadd.f32 %v2394, %v2395
      %v2397 = vsel %vm269, %v2229, 0.0
      %v2398 = vadd.f32 %v2396, %v2397
      %v2399 = vsel %vm269, %v2234, 0.0
      %v2400 = vadd.f32 %v2398, %v2399
      %v2401 = vsel %vm269, %v2239, 0.0
      %v2402 = vadd.f32 %v2400, %v2401
      %v2403 = vsel %vm269, %v2244, 0.0
      %v2404 = vadd.f32 %v2402, %v2403
      %v2405 = vsel %vm269, %v2249, 0.0
      %v2406 = vadd.f32 %v2404, %v2405
      %v2407 = vsel %vm269, %v2254, 0.0
      %v2408 = vadd.f32 %v2406, %v2407
      %v2409 = vsel %vm269, %v2259, 0.0
      %v2410 = vadd.f32 %v2408, %v2409
      %v2411 = vsel %vm269, %v2264, 0.0
      %v2412 = vadd.f32 %v2410, %v2411
      %v2413 = vsel %vm269, %v2269, 0.0
      %v2414 = vadd.f32 %v2412, %v2413
      %v2415 = vsel %vm269, %v2274, 0.0
      %v2416 = vadd.f32 %v2414, %v2415
      %v2417 = vsel %vm269, %v2279, 0.0
      %v2418 = vadd.f32 %v2416, %v2417
      %v2419 = vsel %vm269, %v2284, 0.0
      %v2420 = vadd.f32 %v2418, %v2419
      %v2421 = vsel %vm269, %v2289, 0.0
      %v2422 = vadd.f32 %v2420, %v2421
      %v2423 = vsel %vm269, %v2294, 0.0
      %v2424 = vadd.f32 %v2422, %v2423
      %v2425 = vsel %vm269, %v2299, 0.0
      %v2426 = vadd.f32 %v2424, %v2425
      %v2427 = vsel %vm269, %v2304, 0.0
      %v2428 = vadd.f32 %v2426, %v2427
      %v2429 = vsel %vm269, %v2309, 0.0
      %v2430 = vadd.f32 %v2428, %v2429
      %v2431 = vsel %vm269, %v2314, 0.0
      %v2432 = vadd.f32 %v2430, %v2431
      %v2433 = vsel %vm269, %v2319, 0.0
      %v2434 = vadd.f32 %v2432, %v2433
      %v2435 = vsel %vm269, %v2324, 0.0
      %v2436 = vadd.f32 %v2434, %v2435
      %v2437 = vsel %vm269, %v2329, 0.0
      %v2438 = vadd.f32 %v2436, %v2437
      %v2439 = vsel %vm269, %v2334, 0.0
      %v2440 = vadd.f32 %v2438, %v2439
      %v2441 = vsel %vm269, %v2339, 0.0
      %v2442 = vadd.f32 %v2440, %v2441
      %v2443 = vsel %vm269, %v2344, 0.0
      %v2444 = vadd.f32 %v2442, %v2443
      %v2445 = vsel %vm269, %v2349, 0.0
      %v2446 = vadd.f32 %v2444, %v2445
      %v2447 = vrot.slane %v2446, 4
      %v2448 = vadd.f32 %v2446, %v2447
      %v2449 = vrot.slane %v2448, 2
      %v2450 = vadd.f32 %v2448, %v2449
      %v2451 = vrot.slane %v2450, 1
      %v2452 = vadd.f32 %v2450, %v2451
      %v2453 = vadd.f32 %v2452, 0.0
      %v2454 = vmul.f32 %v2194, %v2194
      %v2455 = vmul.f32 %v2199, %v2199
      %v2456 = vmul.f32 %v2204, %v2204
      %v2457 = vmul.f32 %v2209, %v2209
      %v2458 = vmul.f32 %v2214, %v2214
      %v2459 = vmul.f32 %v2219, %v2219
      %v2460 = vmul.f32 %v2224, %v2224
      %v2461 = vmul.f32 %v2229, %v2229
      %v2462 = vmul.f32 %v2234, %v2234
      %v2463 = vmul.f32 %v2239, %v2239
      %v2464 = vmul.f32 %v2244, %v2244
      %v2465 = vmul.f32 %v2249, %v2249
      %v2466 = vmul.f32 %v2254, %v2254
      %v2467 = vmul.f32 %v2259, %v2259
      %v2468 = vmul.f32 %v2264, %v2264
      %v2469 = vmul.f32 %v2269, %v2269
      %v2470 = vmul.f32 %v2274, %v2274
      %v2471 = vmul.f32 %v2279, %v2279
      %v2472 = vmul.f32 %v2284, %v2284
      %v2473 = vmul.f32 %v2289, %v2289
      %v2474 = vmul.f32 %v2294, %v2294
      %v2475 = vmul.f32 %v2299, %v2299
      %v2476 = vmul.f32 %v2304, %v2304
      %v2477 = vmul.f32 %v2309, %v2309
      %v2478 = vmul.f32 %v2314, %v2314
      %v2479 = vmul.f32 %v2319, %v2319
      %v2480 = vmul.f32 %v2324, %v2324
      %v2481 = vmul.f32 %v2329, %v2329
      %v2482 = vmul.f32 %v2334, %v2334
      %v2483 = vmul.f32 %v2339, %v2339
      %v2484 = vmul.f32 %v2344, %v2344
      %v2485 = vmul.f32 %v2349, %v2349
      %v2486 = vsel %vm269, %v2454, 0.0
      %v2487 = vsel %vm269, %v2455, 0.0
      %v2488 = vadd.f32 %v2486, %v2487
      %v2489 = vsel %vm269, %v2456, 0.0
      %v2490 = vadd.f32 %v2488, %v2489
      %v2491 = vsel %vm269, %v2457, 0.0
      %v2492 = vadd.f32 %v2490, %v2491
      %v2493 = vsel %vm269, %v2458, 0.0
      %v2494 = vadd.f32 %v2492, %v2493
      %v2495 = vsel %vm269, %v2459, 0.0
      %v2496 = vadd.f32 %v2494, %v2495
      %v2497 = vsel %vm269, %v2460, 0.0
      %v2498 = vadd.f32 %v2496, %v2497
      %v2499 = vsel %vm269, %v2461, 0.0
      %v2500 = vadd.f32 %v2498, %v2499
      %v2501 = vsel %vm269, %v2462, 0.0
      %v2502 = vadd.f32 %v2500, %v2501
      %v2503 = vsel %vm269, %v2463, 0.0
      %v2504 = vadd.f32 %v2502, %v2503
      %v2505 = vsel %vm269, %v2464, 0.0
      %v2506 = vadd.f32 %v2504, %v2505
      %v2507 = vsel %vm269, %v2465, 0.0
      %v2508 = vadd.f32 %v2506, %v2507
      %v2509 = vsel %vm269, %v2466, 0.0
      %v2510 = vadd.f32 %v2508, %v2509
      %v2511 = vsel %vm269, %v2467, 0.0
      %v2512 = vadd.f32 %v2510, %v2511
      %v2513 = vsel %vm269, %v2468, 0.0
      %v2514 = vadd.f32 %v2512, %v2513
      %v2515 = vsel %vm269, %v2469, 0.0
      %v2516 = vadd.f32 %v2514, %v2515
      %v2517 = vsel %vm269, %v2470, 0.0
      %v2518 = vadd.f32 %v2516, %v2517
      %v2519 = vsel %vm269, %v2471, 0.0
      %v2520 = vadd.f32 %v2518, %v2519
      %v2521 = vsel %vm269, %v2472, 0.0
      %v2522 = vadd.f32 %v2520, %v2521
      %v2523 = vsel %vm269, %v2473, 0.0
      %v2524 = vadd.f32 %v2522, %v2523
      %v2525 = vsel %vm269, %v2474, 0.0
      %v2526 = vadd.f32 %v2524, %v2525
      %v2527 = vsel %vm269, %v2475, 0.0
      %v2528 = vadd.f32 %v2526, %v2527
      %v2529 = vsel %vm269, %v2476, 0.0
      %v2530 = vadd.f32 %v2528, %v2529
      %v2531 = vsel %vm269, %v2477, 0.0
      %v2532 = vadd.f32 %v2530, %v2531
      %v2533 = vsel %vm269, %v2478, 0.0
      %v2534 = vadd.f32 %v2532, %v2533
      %v2535 = vsel %vm269, %v2479, 0.0
      %v2536 = vadd.f32 %v2534, %v2535
      %v2537 = vsel %vm269, %v2480, 0.0
      %v2538 = vadd.f32 %v2536, %v2537
      %v2539 = vsel %vm269, %v2481, 0.0
      %v2540 = vadd.f32 %v2538, %v2539
      %v2541 = vsel %vm269, %v2482, 0.0
      %v2542 = vadd.f32 %v2540, %v2541
      %v2543 = vsel %vm269, %v2483, 0.0
      %v2544 = vadd.f32 %v2542, %v2543
      %v2545 = vsel %vm269, %v2484, 0.0
      %v2546 = vadd.f32 %v2544, %v2545
      %v2547 = vsel %vm269, %v2485, 0.0
      %v2548 = vadd.f32 %v2546, %v2547
      %v2549 = vrot.slane %v2548, 4
      %v2550 = vadd.f32 %v2548, %v2549
      %v2551 = vrot.slane %v2550, 2
      %v2552 = vadd.f32 %v2550, %v2551
      %v2553 = vrot.slane %v2552, 1
      %v2554 = vadd.f32 %v2552, %v2553
      %v2555 = vadd.f32 %v2554, 0.0
      %2556 = vst.msk [vmem:[%s235] sm:$0x1] %vm325, %v2453
      %2557 = vst.msk [vmem:[%s235 + $0x1] sm:$0x1] %vm325, %v2555
      %p2558 = scmp.lt.s32.totalorder %s17, 1
      %s2559 = scalar_select %p2558, %s17, 1
      %s2560 = smul.addr %s2559, 32
      %s2561 = smul.addr %s2560, 8
      %s2562 = scalar_lea.vmem %s4, %s2561
      %p2563 = scmp.lt.s32.totalorder %s17, 1
      %s2564 = scalar_select %p2563, %s17, 1
      %s2565 = smul.addr %s2564, 2
      %s2566 = scalar_lea.vmem %s5, %s2565
      // Predicated region
      $region37: #{residual_block_pallas.3} parent=35 // pred_check
        %p2567 = pneg %p124
      $region38: #{residual_block_pallas.3} parent=35 // pred_check_branch
        %2569 = sbr.rel (%p2567) target = $region40
      $region39: #{residual_block_pallas.3} parent=35 // pred_region
        _
      $region40: #{residual_block_pallas.3} parent=35 // pred_fallthru
        _
      // Predicated region
      $region41: #{residual_block_pallas.3} parent=35 // pred_check
        %p2570 = pneg %p150
      $region42: #{residual_block_pallas.3} parent=35 // pred_check_branch
        %2572 = sbr.rel (%p2570) target = $region44
      $region43: #{residual_block_pallas.3} parent=35 // pred_region
        _
      $region44: #{residual_block_pallas.3} parent=35 // pred_fallthru
        _
    $region36: #{residual_block_pallas.3} parent=5 // pred_fallthru
      _
    %p2573 = scmp.le.s32.totalorder 2, %s12
    // Predicated region
    $region45: #{residual_block_pallas.3} parent=5 // pred_check
      %p2574 = pneg %p2573
    $region46: #{residual_block_pallas.3} parent=5 // pred_check_branch
      %2576 = sbr.rel (%p2574) target = $region48
    $region47: #{residual_block_pallas.3} parent=5 // pred_region
      %s2577 = ssub.s32 %s12, 2
      // Predicated region
      $region49: #{residual_block_pallas.3} parent=47 // pred_check
        %p2578 = pneg %p130
      $region50: #{residual_block_pallas.3} parent=47 // pred_check_branch
        %2580 = sbr.rel (%p2578) target = $region52
      $region51: #{residual_block_pallas.3} parent=47 // pred_region
        %p2581 = scmp.lt.s32.totalorder %s18, 1
        %s2582 = scalar_select %p2581, %s18, 1
        %s2583 = smul.addr %s2582, 32
        %s2584 = smul.addr %s2583, 8
        %s2585 = scalar_lea.vmem %s4, %s2584
      $region52: #{residual_block_pallas.3} parent=47 // pred_fallthru
        _
      // Predicated region
      $region53: #{residual_block_pallas.3} parent=47 // pred_check
        %p2586 = pneg %p156
      $region54: #{residual_block_pallas.3} parent=47 // pred_check_branch
        %2588 = sbr.rel (%p2586) target = $region56
      $region55: #{residual_block_pallas.3} parent=47 // pred_region
        %p2589 = scmp.lt.s32.totalorder %s18, 1
        %s2590 = scalar_select %p2589, %s18, 1
        %s2591 = smul.addr %s2590, 2
        %s2592 = scalar_lea.vmem %s5, %s2591
      $region56: #{residual_block_pallas.3} parent=47 // pred_fallthru
        _
    $region48: #{residual_block_pallas.3} parent=5 // pred_fallthru
      _
  $region6: #{residual_block_pallas.3} parent=0 // loop_footer
    %s16 = sadd.s32 1, %s12
  $region7: #{residual_block_pallas.3} parent=0 // loop_footer_branch
    %11 = sbr.rel target = $region3
  $region8: #{residual_block_pallas.3} parent=0 // loop_exit
    _

// kernel: residual_block_pallas.4
$region0: #{residual_block_pallas.4}
  #allocation0 [shape = 'u32[]', space=smem, size = 0x4, offset = 0x4, fixed_abs, tag = 'smem constant byte address 0x4 - core index']
  #allocation1 [shape = 'u32[144,128]{1,0:T(1,128)}', space=vmem, size = 0x12000, scoped, tag = 'internal scratch']
  #allocation2 [shape = 'f32[18,18,4]{2,1,0:T(8,128)}', space=vmem, size = 0x36000, scoped, tag = 'scratch operand']
  #allocation3 [shape = 'f32[256,36]{1,0:T(8,128)}', space=vmem, size = 0x20000, scoped, tag = 'scratch operand']
  %s0 = inlined_call_operand.vmem [shape: f32[2,16,16,4], index: 0, kind: input, shape index: {}]
  %s1 = inlined_call_operand.vmem [shape: f32[36,4], index: 1, kind: input, shape index: {}]
  %s2 = inlined_call_operand.vmem [shape: f32[1,4], index: 2, kind: input, shape index: {}]
  %s3 = inlined_call_operand.vmem [shape: f32[1,4], index: 3, kind: input, shape index: {}]
  %s4 = inlined_call_operand.vmem [shape: f32[2,16,16,4], index: 4, kind: output, shape index: {0}]
  %s5 = inlined_call_operand.vmem [shape: f32[2,2,4], index: 5, kind: output, shape index: {1}]
  %6 = xla_tuple %s4, %s5
  %s7 = sld [smem:[#allocation0]]
  $region57: #{residual_block_pallas.4} parent=0
    _
  %s9 = ssub.s32 1, %s7
  %s10 = scalar_select 0, %s9, %s7
  loop: start=0, step=1, limit=4
  $region2: #{residual_block_pallas.4} parent=0 // loop_pre_header
    _
  $region3: #{residual_block_pallas.4} parent=0 // loop_header
    %s12 = sphi 0, %s16
    %p13 = scmp.ge.s32.totalorder %s12, 4
    %s22 = sphi 0, %s24
    %s25 = sphi 0, %s22
    %s26 = sphi 0, %s25
    %s42 = sphi 0, %s26
    %s46 = sphi 0, %s46
    %s48 = sphi 0, %s46
    %s49 = sphi 0, %s48
    %s63 = sphi 0, %s49
    %s67 = sphi 0, %s67
    %s69 = sphi 0, %s67
    %s70 = sphi 0, %s69
    %s84 = sphi 0, %s70
    %s88 = sphi 0, %s88
    %s90 = sphi 0, %s88
    %s91 = sphi 0, %s90
    %s105 = sphi 0, %s91
    %s111 = sphi 0, %s113
    %s114 = sphi 0, %s111
    %s115 = sphi 0, %s114
    %s131 = sphi 0, %s115
    %s137 = sphi 0, %s139
    %s140 = sphi 0, %s137
    %s141 = sphi 0, %s140
    %s157 = sphi 0, %s141
  $region4: #{residual_block_pallas.4} parent=0 // loop_header_branch
    %15 = sbr.rel (%p13) target = $region8
  $region5: #{residual_block_pallas.4} parent=0 // loop_body
    %s17 = ssub.s32 %s12, 1
    %s18 = ssub.s32 %s12, 2
    %s19 = sadd.s32 %s12, 1
    %s20 = ssub.s32 %s12, %s19
    %p21 = scmp.eq.s32.totalorder %s20, 0
    %s23 = sadd.s32 %s22, 1
    %s24 = scalar_select %p21, %s22, %s23
    %p27 = pneg %p21
    %p28 = scmp.eq.s32.totalorder %s12, 1
    %p29 = por %p27, %p28
    %p30 = scmp.ne.s32.totalorder %s22, %s25
    %p31 = scmp.eq.s32.totalorder %s12, 0
    %p32 = por %p30, %p31
    %p33 = scmp.ne.s32.totalorder %s22, %s25
    %p34 = scmp.eq.s32.totalorder %s17, 1
    %p35 = por %p33, %p34
    %p36 = scmp.ne.s32.totalorder %s25, %s26
    %p37 = scmp.eq.s32.totalorder %s17, 0
    %p38 = por %p36, %p37
    %p39 = scmp.ne.s32.totalorder %s25, %s26
    %p40 = scmp.eq.s32.totalorder %s18, 1
    %p41 = por %p39, %p40
    %p43 = scmp.ne.s32.totalorder %s26, %s42
    %p44 = scmp.eq.s32.totalorder %s18, 0
    %p45 = por %p43, %p44
    %s47 = sadd.s32 %s46, 1
    %p50 = scmp.eq.s32.totalorder %s12, 1
    %p51 = scmp.ne.s32.totalorder %s46, %s48
    %p52 = scmp.eq.s32.totalorder %s12, 0
    %p53 = por %p51, %p52
    %p54 = scmp.ne.s32.totalorder %s46, %s48
    %p55 = scmp.eq.s32.totalorder %s17, 1
    %p56 = por %p54, %p55
    %p57 = scmp.ne.s32.totalorder %s48, %s49
    %p58 = scmp.eq.s32.totalorder %s17, 0
    %p59 = por %p57, %p58
    %p60 = scmp.ne.s32.totalorder %s48, %s49
    %p61 = scmp.eq.s32.totalorder %s18, 1
    %p62 = por %p60, %p61
    %p64 = scmp.ne.s32.totalorder %s49, %s63
    %p65 = scmp.eq.s32.totalorder %s18, 0
    %p66 = por %p64, %p65
    %s68 = sadd.s32 %s67, 1
    %p71 = scmp.eq.s32.totalorder %s12, 1
    %p72 = scmp.ne.s32.totalorder %s67, %s69
    %p73 = scmp.eq.s32.totalorder %s12, 0
    %p74 = por %p72, %p73
    %p75 = scmp.ne.s32.totalorder %s67, %s69
    %p76 = scmp.eq.s32.totalorder %s17, 1
    %p77 = por %p75, %p76
    %p78 = scmp.ne.s32.totalorder %s69, %s70
    %p79 = scmp.eq.s32.totalorder %s17, 0
    %p80 = por %p78, %p79
    %p81 = scmp.ne.s32.totalorder %s69, %s70
    %p82 = scmp.eq.s32.totalorder %s18, 1
    %p83 = por %p81, %p82
    %p85 = scmp.ne.s32.totalorder %s70, %s84
    %p86 = scmp.eq.s32.totalorder %s18, 0
    %p87 = por %p85, %p86
    %s89 = sadd.s32 %s88, 1
    %p92 = scmp.eq.s32.totalorder %s12, 1
    %p93 = scmp.ne.s32.totalorder %s88, %s90
    %p94 = scmp.eq.s32.totalorder %s12, 0
    %p95 = por %p93, %p94
    %p96 = scmp.ne.s32.totalorder %s88, %s90
    %p97 = scmp.eq.s32.totalorder %s17, 1
    %p98 = por %p96, %p97
    %p99 = scmp.ne.s32.totalorder %s90, %s91
    %p100 = scmp.eq.s32.totalorder %s17, 0
    %p101 = por %p99, %p100
    %p102 = scmp.ne.s32.totalorder %s90, %s91
    %p103 = scmp.eq.s32.totalorder %s18, 1
    %p104 = por %p102, %p103
    %p106 = scmp.ne.s32.totalorder %s91, %s105
    %p107 = scmp.eq.s32.totalorder %s18, 0
    %p108 = por %p106, %p107
    %s109 = ssub.s32 %s12, %s19
    %p110 = scmp.eq.s32.totalorder %s109, 0
    %s112 = sadd.s32 %s111, 1
    %s113 = scalar_select %p110, %s111, %s112
    %p116 = pneg %p110
    %p117 = scmp.eq.s32.totalorder %s12, 1
    %p118 = por %p116, %p117
    %p119 = scmp.ne.s32.totalorder %s111, %s114
    %p120 = scmp.eq.s32.totalorder %s12, 0
    %p121 = por %p119, %p120
    %p122 = scmp.ne.s32.totalorder %s111, %s114
    %p123 = scmp.eq.s32.totalorder %s17, 1
    %p124 = por %p122, %p123
    %p125 = scmp.ne.s32.totalorder %s114, %s115
    %p126 = scmp.eq.s32.totalorder %s17, 0
    %p127 = por %p125, %p126
    %p128 = scmp.ne.s32.totalorder %s114, %s115
    %p129 = scmp.eq.s32.totalorder %s18, 1
    %p130 = por %p128, %p129
    %p132 = scmp.ne.s32.totalorder %s115, %s131
    %p133 = scmp.eq.s32.totalorder %s18, 0
    %p134 = por %p132, %p133
    %s135 = ssub.s32 %s12, %s19
    %p136 = scmp.eq.s32.totalorder %s135, 0
    %s138 = sadd.s32 %s137, 1
    %s139 = scalar_select %p136, %s137, %s138
    %p142 = pneg %p136
    %p143 = scmp.eq.s32.totalorder %s12, 1
    %p144 = por %p142, %p143
    %p145 = scmp.ne.s32.totalorder %s137, %s140
    %p146 = scmp.eq.s32.totalorder %s12, 0
    %p147 = por %p145, %p146
    %p148 = scmp.ne.s32.totalorder %s137, %s140
    %p149 = scmp.eq.s32.totalorder %s17, 1
    %p150 = por %p148, %p149
    %p151 = scmp.ne.s32.totalorder %s140, %s141
    %p152 = scmp.eq.s32.totalorder %s17, 0
    %p153 = por %p151, %p152
    %p154 = scmp.ne.s32.totalorder %s140, %s141
    %p155 = scmp.eq.s32.totalorder %s18, 1
    %p156 = por %p154, %p155
    %p158 = scmp.ne.s32.totalorder %s141, %s157
    %p159 = scmp.eq.s32.totalorder %s18, 0
    %p160 = por %p158, %p159
    %p161 = scmp.le.s32.totalorder 1, %s12
    %p162 = scmp.lt.s32.totalorder %s12, 3
    %p163 = pnand %p161, %p162
    %p164 = pneg %p163
    // Predicated region
    $region9: #{residual_block_pallas.4} parent=5 // pred_check
      _
    $region10: #{residual_block_pallas.4} parent=5 // pred_check_branch
      %166 = sbr.rel (%p163) target = $region12
    $region11: #{residual_block_pallas.4} parent=5 // pred_region
      %s167 = ssub.s32 %s12, 1
      // Predicated region
      $region13: #{residual_block_pallas.4} parent=11 // pred_check
        %p168 = pneg %p59
      $region14: #{residual_block_pallas.4} parent=11 // pred_check_branch
        %170 = sbr.rel (%p168) target = $region16
      $region15: #{residual_block_pallas.4} parent=11 // pred_region
        _
      $region16: #{residual_block_pallas.4} parent=11 // pred_fallthru
        _
      // Predicated region
      $region17: #{residual_block_pallas.4} parent=11 // pred_check
        %p171 = pneg %p80
      $region18: #{residual_block_pallas.4} parent=11 // pred_check_branch
        %173 = sbr.rel (%p171) target = $region20
      $region19: #{residual_block_pallas.4} parent=11 // pred_region
        _
      $region20: #{residual_block_pallas.4} parent=11 // pred_fallthru
        _
      // Predicated region
      $region21: #{residual_block_pallas.4} parent=11 // pred_check
        %p174 = pneg %p101
      $region22: #{residual_block_pallas.4} parent=11 // pred_check_branch
        %176 = sbr.rel (%p174) target = $region24
      $region23: #{residual_block_pallas.4} parent=11 // pred_region
        _
      $region24: #{residual_block_pallas.4} parent=11 // pred_fallthru
        _
    $region12: #{residual_block_pallas.4} parent=5 // pred_fallthru
      _
    %p177 = scmp.lt.s32.totalorder %s12, 2
    // Predicated region
    $region25: #{residual_block_pallas.4} parent=5 // pred_check
      %p178 = pneg %p177
    $region26: #{residual_block_pallas.4} parent=5 // pred_check_branch
      %180 = sbr.rel (%p178) target = $region28
    $region27: #{residual_block_pallas.4} parent=5 // pred_region
      // Predicated region
      $region29: #{residual_block_pallas.4} parent=27 // pred_check
        %p181 = pneg %p32
      $region30: #{residual_block_pallas.4} parent=27 // pred_check_branch
        %183 = sbr.rel (%p181) target = $region32
      $region31: #{residual_block_pallas.4} parent=27 // pred_region
        %p184 = scmp.lt.s32.totalorder %s12, 1
        %s185 = scalar_select %p184, %s12, 1
        %s186 = smul.addr %s185, 32
        %s187 = smul.addr %s186, 8
        %s188 = scalar_lea.vmem %s0, %s187
      $region32: #{residual_block_pallas.4} parent=27 // pred_fallthru
        _
    $region28: #{residual_block_pallas.4} parent=5 // pred_fallthru
      _
    %p189 = scmp.le.s32.totalorder 1, %s12
    %p190 = scmp.lt.s32.totalorder %s12, 3
    %p191 = pnand %p189, %p190
    %p192 = pneg %p191
    // Predicated region
    $region33: #{residual_block_pallas.4} parent=5 // pred_check
      _
    $region34: #{residual_block_pallas.4} parent=5 // pred_check_branch
      %194 = sbr.rel (%p191) target = $region36
    $region35: #{residual_block_pallas.4} parent=5 // pred_region
      %s195 = ssub.s32 %s12, 1
      %p196 = scmp.lt.s32.totalorder %s17, 1
      %s197 = scalar_select %p196, %s17, 1
      %s198 = smul.addr %s197, 32
      %s199 = smul.addr %s198, 8
      %s200 = scalar_lea.vmem %s0, %s199
      %p201 = pneg %p38
      %p202 = pneg %p35
      %p203 = pneg %p59
      %p204 = pneg %p56
      %p205 = pneg %p80
      %p206 = pneg %p77
      %p207 = pneg %p101
      %p208 = pneg %p98
      %p209 = pneg %p127
      %p210 = pneg %p124
      %p211 = scmp.lt.s32.totalorder %s17, 1
      %s212 = scalar_select %p211, %s17, 1
      %s213 = smul.addr %s212, 32
      %s214 = smul.addr %s213, 8
      %s215 = scalar_lea.vmem %s4, %s214
      %p216 = pneg %p153
      %p217 = pneg %p150
      %p218 = scmp.lt.s32.totalorder %s17, 1
      %s219 = scalar_select %p218, %s17, 1
      %s220 = smul.addr %s219, 2
      %s221 = scalar_lea.vmem %s5, %s220
      %p222 = scmp.lt.s32.totalorder %s17, 1
      %s223 = scalar_select %p222, %s17, 1
      %s224 = smul.addr %s223, 32
      %s225 = smul.addr %s224, 8
      %s226 = scalar_lea.vmem %s0, %s225
      %p227 = scmp.lt.s32.totalorder %s17, 1
      %s228 = scalar_select %p227, %s17, 1
      %s229 = smul.addr %s228, 32
      %s230 = smul.addr %s229, 8
      %s231 = scalar_lea.vmem %s4, %s230
      %p232 = scmp.lt.s32.totalorder %s17, 1
      %s233 = scalar_select %p232, %s17, 1
      %s234 = smul.addr %s233, 2
      %s235 = scalar_lea.vmem %s5, %s234
      %v236 = vld [vmem:[%s226] sm:$0xff]
      %v237 = vld [vmem:[%s226 + $0x8] sm:$0xff]
      %v238 = vld [vmem:[%s226 + $0x10] sm:$0xff]
      %v239 = vld [vmem:[%s226 + $0x18] sm:$0xff]
      %v240 = vld [vmem:[%s226 + $0x20] sm:$0xff]
      %v241 = vld [vmem:[%s226 + $0x28] sm:$0xff]
      %v242 = vld [vmem:[%s226 + $0x30] sm:$0xff]
      %v243 = vld [vmem:[%s226 + $0x38] sm:$0xff]
      %v244 = vld [vmem:[%s226 + $0x40] sm:$0xff]
      %v245 = vld [vmem:[%s226 + $0x48] sm:$0xff]
      %v246 = vld [vmem:[%s226 + $0x50] sm:$0xff]
      %v247 = vld [vmem:[%s226 + $0x58] sm:$0xff]
      %v248 = vld [vmem:[%s226 + $0x60] sm:$0xff]
      %v249 = vld [vmem:[%s226 + $0x68] sm:$0xff]
      %v250 = vld [vmem:[%s226 + $0x70] sm:$0xff]
      %v251 = vld [vmem:[%s226 + $0x78] sm:$0xff]
      %v252 = vld [vmem:[%s226 + $0x80] sm:$0xff]
      %v253 = vld [vmem:[%s226 + $0x88] sm:$0xff]
      %v254 = vld [vmem:[%s226 + $0x90] sm:$0xff]
      %v255 = vld [vmem:[%s226 + $0x98] sm:$0xff]
      %v256 = vld [vmem:[%s226 + $0xa0] sm:$0xff]
      %v257 = vld [vmem:[%s226 + $0xa8] sm:$0xff]
      %v258 = vld [vmem:[%s226 + $0xb0] sm:$0xff]
      %v259 = vld [vmem:[%s226 + $0xb8] sm:$0xff]
      %v260 = vld [vmem:[%s226 + $0xc0] sm:$0xff]
      %v261 = vld [vmem:[%s226 + $0xc8] sm:$0xff]
      %v262 = vld [vmem:[%s226 + $0xd0] sm:$0xff]
      %v263 = vld [vmem:[%s226 + $0xd8] sm:$0xff]
      %v264 = vld [vmem:[%s226 + $0xe0] sm:$0xff]
      %v265 = vld [vmem:[%s226 + $0xe8] sm:$0xff]
      %v266 = vld [vmem:[%s226 + $0xf0] sm:$0xff]
      %v267 = vld [vmem:[%s226 + $0xf8] sm:$0xff]
      %v268 = vld [vmem:[%s2] sm:$0x1]
      %v269 = vld [vmem:[%s3] sm:$0x1]
      %v271 = vlaneseq
      %v272 = vshrl.u32 %v271, 7
      %v273 = vsub.s32 0, %v272
      %v274 = vrot.slane %v268, %v273
      %v276 = vmul.f32 %v236, %v274
      %v277 = vmul.f32 %v237, %v274
      %v278 = vmul.f32 %v238, %v274
      %v279 = vmul.f32 %v239, %v274
      %v280 = vmul.f32 %v240, %v274
      %v281 = vmul.f32 %v241, %v274
      %v282 = vmul.f32 %v242, %v274
      %v283 = vmul.f32 %v243, %v274
      %v284 = vmul.f32 %v244, %v274
      %v285 = vmul.f32 %v245, %v274
      %v286 = vmul.f32 %v246, %v274
      %v287 = vmul.f32 %v247, %v274
      %v288 = vmul.f32 %v248, %v274
      %v289 = vmul.f32 %v249, %v274
      %v290 = vmul.f32 %v250, %v274
      %v291 = vmul.f32 %v251, %v274
      %v292 = vmul.f32 %v252, %v274
      %v293 = vmul.f32 %v253, %v274
      %v294 = vmul.f32 %v254, %v274
      %v295 = vmul.f32 %v255, %v274
      %v296 = vmul.f32 %v256, %v274
      %v297 = vmul.f32 %v257, %v274
      %v298 = vmul.f32 %v258, %v274
      %v299 = vmul.f32 %v259, %v274
      %v300 = vmul.f32 %v260, %v274
      %v301 = vmul.f32 %v261, %v274
      %v302 = vmul.f32 %v262, %v274
      %v303 = vmul.f32 %v263, %v274
      %v304 = vmul.f32 %v264, %v274
      %v305 = vmul.f32 %v265, %v274
      %v306 = vmul.f32 %v266, %v274
      %v307 = vmul.f32 %v267, %v274
      %v309 = vlaneseq
      %v310 = vshrl.u32 %v309, 7
      %v311 = vsub.s32 0, %v310
      %v312 = vrot.slane %v269, %v311
      %v314 = vadd.f32 %v276, %v312
      %v315 = vadd.f32 %v277, %v312
      %v316 = vadd.f32 %v278, %v312
      %v317 = vadd.f32 %v279, %v312
      %v318 = vadd.f32 %v280, %v312
      %v319 = vadd.f32 %v281, %v312
      %v320 = vadd.f32 %v282, %v312
      %v321 = vadd.f32 %v283, %v312
      %v322 = vadd.f32 %v284, %v312
      %v323 = vadd.f32 %v285, %v312
      %v324 = vadd.f32 %v286, %v312
      %v325 = vadd.f32 %v287, %v312
      %v326 = vadd.f32 %v288, %v312
      %v327 = vadd.f32 %v289, %v312
      %v328 = vadd.f32 %v290, %v312
      %v329 = vadd.f32 %v291, %v312
      %v330 = vadd.f32 %v292, %v312
      %v331 = vadd.f32 %v293, %v312
      %v332 = vadd.f32 %v294, %v312
      %v333 = vadd.f32 %v295, %v312
      %v334 = vadd.f32 %v296, %v312
      %v335 = vadd.f32 %v297, %v312
      %v336 = vadd.f32 %v298, %v312
      %v337 = vadd.f32 %v299, %v312
      %v338 = vadd.f32 %v300, %v312
      %v339 = vadd.f32 %v301, %v312
      %v340 = vadd.f32 %v302, %v312
      %v341 = vadd.f32 %v303, %v312
      %v342 = vadd.f32 %v304, %v312
      %v343 = vadd.f32 %v305, %v312
      %v344 = vadd.f32 %v306, %v312
      %v345 = vadd.f32 %v307, %v312
      %vm346 = vcmp.gt.f32.partialorder %v314, 0.0
      %vm347 = vcmp.gt.f32.partialorder %v315, 0.0
      %vm348 = vcmp.gt.f32.partialorder %v316, 0.0
      %vm349 = vcmp.gt.f32.partialorder %v317, 0.0
      %vm350 = vcmp.gt.f32.partialorder %v318, 0.0
      %vm351 = vcmp.gt.f32.partialorder %v319, 0.0
      %vm352 = vcmp.gt.f32.partialorder %v320, 0.0
      %vm353 = vcmp.gt.f32.partialorder %v321, 0.0
      %vm354 = vcmp.gt.f32.partialorder %v322, 0.0
      %vm355 = vcmp.gt.f32.partialorder %v323, 0.0
      %vm356 = vcmp.gt.f32.partialorder %v324, 0.0
      %vm357 = vcmp.gt.f32.partialorder %v325, 0.0
      %vm358 = vcmp.gt.f32.partialorder %v326, 0.0
      %vm359 = vcmp.gt.f32.partialorder %v327, 0.0
      %vm360 = vcmp.gt.f32.partialorder %v328, 0.0
      %vm361 = vcmp.gt.f32.partialorder %v329, 0.0
      %vm362 = vcmp.gt.f32.partialorder %v330, 0.0
      %vm363 = vcmp.gt.f32.partialorder %v331, 0.0
      %vm364 = vcmp.gt.f32.partialorder %v332, 0.0
      %vm365 = vcmp.gt.f32.partialorder %v333, 0.0
      %vm366 = vcmp.gt.f32.partialorder %v334, 0.0
      %vm367 = vcmp.gt.f32.partialorder %v335, 0.0
      %vm368 = vcmp.gt.f32.partialorder %v336, 0.0
      %vm369 = vcmp.gt.f32.partialorder %v337, 0.0
      %vm370 = vcmp.gt.f32.partialorder %v338, 0.0
      %vm371 = vcmp.gt.f32.partialorder %v339, 0.0
      %vm372 = vcmp.gt.f32.partialorder %v340, 0.0
      %vm373 = vcmp.gt.f32.partialorder %v341, 0.0
      %vm374 = vcmp.gt.f32.partialorder %v342, 0.0
      %vm375 = vcmp.gt.f32.partialorder %v343, 0.0
      %vm376 = vcmp.gt.f32.partialorder %v344, 0.0
      %vm377 = vcmp.gt.f32.partialorder %v345, 0.0
      %v378 = vmul.f32 %v314, 0.01
      %v379 = vmul.f32 %v315, 0.01
      %v380 = vmul.f32 %v316, 0.01
      %v381 = vmul.f32 %v317, 0.01
      %v382 = vmul.f32 %v318, 0.01
      %v383 = vmul.f32 %v319, 0.01
      %v384 = vmul.f32 %v320, 0.01
      %v385 = vmul.f32 %v321, 0.01
      %v386 = vmul.f32 %v322, 0.01
      %v387 = vmul.f32 %v323, 0.01
      %v388 = vmul.f32 %v324, 0.01
      %v389 = vmul.f32 %v325, 0.01
      %v390 = vmul.f32 %v326, 0.01
      %v391 = vmul.f32 %v327, 0.01
      %v392 = vmul.f32 %v328, 0.01
      %v393 = vmul.f32 %v329, 0.01
      %v394 = vmul.f32 %v330, 0.01
      %v395 = vmul.f32 %v331, 0.01
      %v396 = vmul.f32 %v332, 0.01
      %v397 = vmul.f32 %v333, 0.01
      %v398 = vmul.f32 %v334, 0.01
      %v399 = vmul.f32 %v335, 0.01
      %v400 = vmul.f32 %v336, 0.01
      %v401 = vmul.f32 %v337, 0.01
      %v402 = vmul.f32 %v338, 0.01
      %v403 = vmul.f32 %v339, 0.01
      %v404 = vmul.f32 %v340, 0.01
      %v405 = vmul.f32 %v341, 0.01
      %v406 = vmul.f32 %v342, 0.01
      %v407 = vmul.f32 %v343, 0.01
      %v408 = vmul.f32 %v344, 0.01
      %v409 = vmul.f32 %v345, 0.01
      %v410 = vsel %vm346, %v314, %v378
      %v411 = vsel %vm347, %v315, %v379
      %v412 = vsel %vm348, %v316, %v380
      %v413 = vsel %vm349, %v317, %v381
      %v414 = vsel %vm350, %v318, %v382
      %v415 = vsel %vm351, %v319, %v383
      %v416 = vsel %vm352, %v320, %v384
      %v417 = vsel %vm353, %v321, %v385
      %v418 = vsel %vm354, %v322, %v386
      %v419 = vsel %vm355, %v323, %v387
      %v420 = vsel %vm356, %v324, %v388
      %v421 = vsel %vm357, %v325, %v389
      %v422 = vsel %vm358, %v326, %v390
      %v423 = vsel %vm359, %v327, %v391
      %v424 = vsel %vm360, %v328, %v392
      %v425 = vsel %vm361, %v329, %v393
      %v426 = vsel %vm362, %v330, %v394
      %v427 = vsel %vm363, %v331, %v395
      %v428 = vsel %vm364, %v332, %v396
      %v429 = vsel %vm365, %v333, %v397
      %v430 = vsel %vm366, %v334, %v398
      %v431 = vsel %vm367, %v335, %v399
      %v432 = vsel %vm368, %v336, %v400
      %v433 = vsel %vm369, %v337, %v401
      %v434 = vsel %vm370, %v338, %v402
      %v435 = vsel %vm371, %v339, %v403
      %v436 = vsel %vm372, %v340, %v404
      %v437 = vsel %vm373, %v341, %v405
      %v438 = vsel %vm374, %v342, %v406
      %v439 = vsel %vm375, %v343, %v407
      %v440 = vsel %vm376, %v344, %v408
      %v441 = vsel %vm377, %v345, %v409
      %s442 = scalar_lea.vmem [#allocation2], 24
      %vm443 = vcmask 31744
      %444 = vst.msk [vmem:[%s442 + $0x1] sm:$0xff] %vm443, %v410
      %445 = vst.msk [vmem:[%s442 + $0x9] sm:$0xff] %vm443, %v411
      %446 = vst.msk [vmem:[%s442 + $0x19] sm:$0xff] %vm443, %v412
      %447 = vst.msk [vmem:[%s442 + $0x21] sm:$0xff] %vm443, %v413
      %448 = vst.msk [vmem:[%s442 + $0x31] sm:$0xff] %vm443, %v414
      %449 = vst.msk [vmem:[%s442 + $0x39] sm:$0xff] %vm443, %v415
      %450 = vst.msk [vmem:[%s442 + $0x49] sm:$0xff] %vm443, %v416
      %451 = vst.msk [vmem:[%s442 + $0x51] sm:$0xff] %vm443, %v417
      %452 = vst.msk [vmem:[%s442 + $0x61] sm:$0xff] %vm443, %v418
      %453 = vst.msk [vmem:[%s442 + $0x69] sm:$0xff] %vm443, %v419
      %454 = vst.msk [vmem:[%s442 + $0x79] sm:$0xff] %vm443, %v420
      %455 = vst.msk [vmem:[%s442 + $0x81] sm:$0xff] %vm443, %v421
      %456 = vst.msk [vmem:[%s442 + $0x91] sm:$0xff] %vm443, %v422
      %457 = vst.msk [vmem:[%s442 + $0x99] sm:$0xff] %vm443, %v423
      %458 = vst.msk [vmem:[%s442 + $0xa9] sm:$0xff] %vm443, %v424
      %459 = vst.msk [vmem:[%s442 + $0xb1] sm:$0xff] %vm443, %v425
      %460 = vst.msk [vmem:[%s442 + $0xc1] sm:$0xff] %vm443, %v426
      %461 = vst.msk [vmem:[%s442 + $0xc9] sm:$0xff] %vm443, %v427
      %462 = vst.msk [vmem:[%s442 + $0xd9] sm:$0xff] %vm443, %v428
      %463 = vst.msk [vmem:[%s442 + $0xe1] sm:$0xff] %vm443, %v429
      %464 = vst.msk [vmem:[%s442 + $0xf1] sm:$0xff] %vm443, %v430
      %465 = vst.msk [vmem:[%s442 + $0xf9] sm:$0xff] %vm443, %v431
      %466 = vst.msk [vmem:[%s442 + $0x109] sm:$0xff] %vm443, %v432
      %467 = vst.msk [vmem:[%s442 + $0x111] sm:$0xff] %vm443, %v433
      %468 = vst.msk [vmem:[%s442 + $0x121] sm:$0xff] %vm443, %v434
      %469 = vst.msk [vmem:[%s442 + $0x129] sm:$0xff] %vm443, %v435
      %470 = vst.msk [vmem:[%s442 + $0x139] sm:$0xff] %vm443, %v436
      %471 = vst.msk [vmem:[%s442 + $0x141] sm:$0xff] %vm443, %v437
      %472 = vst.msk [vmem:[%s442 + $0x151] sm:$0xff] %vm443, %v438
      %473 = vst.msk [vmem:[%s442 + $0x159] sm:$0xff] %vm443, %v439
      %474 = vst.msk [vmem:[%s442 + $0x169] sm:$0xff] %vm443, %v440
      %475 = vst.msk [vmem:[%s442 + $0x171] sm:$0xff] %vm443, %v441
      %476 = vst.msk [vmem:[#allocation2 + $0x1] sm:$0xff] %vm443, %v412
      %477 = vst.msk [vmem:[#allocation2 + $0x9] sm:$0xff] %vm443, %v413
      %s478 = scalar_lea.vmem [#allocation2], 408
      %479 = vst.msk [vmem:[%s478 + $0x1] sm:$0xff] %vm443, %v438
      %480 = vst.msk [vmem:[%s478 + $0x9] sm:$0xff] %vm443, %v439
      %v481 = vld [vmem:[#allocation2 + $0x2] sm:$0x1]
      %v482 = vld [vmem:[#allocation2 + $0x1a] sm:$0x1]
      %v483 = vld [vmem:[#allocation2 + $0x32] sm:$0x1]
      %v484 = vld [vmem:[#allocation2 + $0x4a] sm:$0x1]
      %v485 = vld [vmem:[#allocation2 + $0x62] sm:$0x1]
      %v486 = vld [vmem:[#allocation2 + $0x7a] sm:$0x1]
      %v487 = vld [vmem:[#allocation2 + $0x92] sm:$0x1]
      %v488 = vld [vmem:[#allocation2 + $0xaa] sm:$0x1]
      %v489 = vld [vmem:[#allocation2 + $0xc2] sm:$0x1]
      %v490 = vld [vmem:[#allocation2 + $0xda] sm:$0x1]
      %v491 = vld [vmem:[#allocation2 + $0xf2] sm:$0x1]
      %v492 = vld [vmem:[#allocation2 + $0x10a] sm:$0x1]
      %v493 = vld [vmem:[#allocation2 + $0x122] sm:$0x1]
      %v494 = vld [vmem:[#allocation2 + $0x13a] sm:$0x1]
      %v495 = vld [vmem:[#allocation2 + $0x152] sm:$0x1]
      %v496 = vld [vmem:[#allocation2 + $0x16a] sm:$0x1]
      %v497 = vld [vmem:[#allocation2 + $0x182] sm:$0x1]
      %v498 = vld [vmem:[#allocation2 + $0x19a] sm:$0x1]
      %vm499 = vcmask 24576
      %500 = vst.msk [vmem:[#allocation2] sm:$0x1] %vm499, %v481
      %501 = vst.msk [vmem:[#allocation2 + $0x18] sm:$0x1] %vm499, %v482
      %502 = vst.msk [vmem:[#allocation2 + $0x30] sm:$0x1] %vm499, %v483
      %503 = vst.msk [vmem:[#allocation2 + $0x48] sm:$0x1] %vm499, %v484
      %504 = vst.msk [vmem:[#allocation2 + $0x60] sm:$0x1] %vm499, %v485
      %505 = vst.msk [vmem:[#allocation2 + $0x78] sm:$0x1] %vm499, %v486
      %506 = vst.msk [vmem:[#allocation2 + $0x90] sm:$0x1] %vm499, %v487
      %507 = vst.msk [vmem:[#allocation2 + $0xa8] sm:$0x1] %vm499, %v488
      %508 = vst.msk [vmem:[#allocation2 + $0xc0] sm:$0x1] %vm499, %v489
      %509 = vst.msk [vmem:[#allocation2 + $0xd8] sm:$0x1] %vm499, %v490
      %510 = vst.msk [vmem:[#allocation2 + $0xf0] sm:$0x1] %vm499, %v491
      %511 = vst.msk [vmem:[#allocation2 + $0x108] sm:$0x1] %vm499, %v492
      %512 = vst.msk [vmem:[#allocation2 + $0x120] sm:$0x1] %vm499, %v493
      %513 = vst.msk [vmem:[#allocation2 + $0x138] sm:$0x1] %vm499, %v494
      %514 = vst.msk [vmem:[#allocation2 + $0x150] sm:$0x1] %vm499, %v495
      %515 = vst.msk [vmem:[#allocation2 + $0x168] sm:$0x1] %vm499, %v496
      %516 = vst.msk [vmem:[#allocation2 + $0x180] sm:$0x1] %vm499, %v497
      %517 = vst.msk [vmem:[#allocation2 + $0x198] sm:$0x1] %vm499, %v498
      %v518 = vld [vmem:[#allocation2 + $0xf] sm:$0x1]
      %v519 = vld [vmem:[#allocation2 + $0x27] sm:$0x1]
      %v520 = vld [vmem:[#allocation2 + $0x3f] sm:$0x1]
      %v521 = vld [vmem:[#allocation2 + $0x57] sm:$0x1]
      %v522 = vld [vmem:[#allocation2 + $0x6f] sm:$0x1]
      %v523 = vld [vmem:[#allocation2 + $0x87] sm:$0x1]
      %v524 = vld [vmem:[#allocation2 + $0x9f] sm:$0x1]
      %v525 = vld [vmem:[#allocation2 + $0xb7] sm:$0x1]
      %v526 = vld [vmem:[#allocation2 + $0xcf] sm:$0x1]
      %v527 = vld [vmem:[#allocation2 + $0xe7] sm:$0x1]
      %v528 = vld [vmem:[#allocation2 + $0xff] sm:$0x1]
      %v529 = vld [vmem:[#allocation2 + $0x117] sm:$0x1]
      %v530 = vld [vmem:[#allocation2 + $0x12f] sm:$0x1]
      %v531 = vld [vmem:[#allocation2 + $0x147] sm:$0x1]
      %v532 = vld [vmem:[#allocation2 + $0x15f] sm:$0x1]
      %v533 = vld [vmem:[#allocation2 + $0x177] sm:$0x1]
      %v534 = vld [vmem:[#allocation2 + $0x18f] sm:$0x1]
      %v535 = vld [vmem:[#allocation2 + $0x1a7] sm:$0x1]
      %536 = vst.msk [vmem:[#allocation2 + $0x11] sm:$0x1] %vm499, %v518
      %537 = vst.msk [vmem:[#allocation2 + $0x29] sm:$0x1] %vm499, %v519
      %538 = vst.msk [vmem:[#allocation2 + $0x41] sm:$0x1] %vm499, %v520
      %539 = vst.msk [vmem:[#allocation2 + $0x59] sm:$0x1] %vm499, %v521
      %540 = vst.msk [vmem:[#allocation2 + $0x71] sm:$0x1] %vm499, %v522
      %541 = vst.msk [vmem:[#allocation2 + $0x89] sm:$0x1] %vm499, %v523
      %542 = vst.msk [vmem:[#allocation2 + $0xa1] sm:$0x1] %vm499, %v524
      %543 = vst.msk [vmem:[#allocation2 + $0xb9] sm:$0x1] %vm499, %v525
      %544 = vst.msk [vmem:[#allocation2 + $0xd1] sm:$0x1] %vm499, %v526
      %545 = vst.msk [vmem:[#allocation2 + $0xe9] sm:$0x1] %vm499, %v527
      %546 = vst.msk [vmem:[#allocation2 + $0x101] sm:$0x1] %vm499, %v528
      %547 = vst.msk [vmem:[#allocation2 + $0x119] sm:$0x1] %vm499, %v529
      %548 = vst.msk [vmem:[#allocation2 + $0x131] sm:$0x1] %vm499, %v530
      %549 = vst.msk [vmem:[#allocation2 + $0x149] sm:$0x1] %vm499, %v531
      %550 = vst.msk [vmem:[#allocation2 + $0x161] sm:$0x1] %vm499, %v532
      %551 = vst.msk [vmem:[#allocation2 + $0x179] sm:$0x1] %vm499, %v533
      %552 = vst.msk [vmem:[#allocation2 + $0x191] sm:$0x1] %vm499, %v534
      %553 = vst.msk [vmem:[#allocation2 + $0x1a9] sm:$0x1] %vm499, %v535
      %v554 = vld [vmem:[#allocation2] sm:$0xff]
      %v555 = vld [vmem:[#allocation2 + $0x8] sm:$0xff]
      %v556 = vld [vmem:[#allocation2 + $0x18] sm:$0xff]
      %v557 = vld [vmem:[#allocation2 + $0x20] sm:$0xff]
      %v558 = vld [vmem:[#allocation2 + $0x30] sm:$0xff]
      %v559 = vld [vmem:[#allocation2 + $0x38] sm:$0xff]
      %v560 = vld [vmem:[#allocation2 + $0x48] sm:$0xff]
      %v561 = vld [vmem:[#allocation2 + $0x50] sm:$0xff]
      %v562 = vld [vmem:[#allocation2 + $0x60] sm:$0xff]
      %v563 = vld [vmem:[#allocation2 + $0x68] sm:$0xff]
      %v564 = vld [vmem:[#allocation2 + $0x78] sm:$0xff]
      %v565 = vld [vmem:[#allocation2 + $0x80] sm:$0xff]
      %v566 = vld [vmem:[#allocation2 + $0x90] sm:$0xff]
      %v567 = vld [vmem:[#allocation2 + $0x98] sm:$0xff]
      %v568 = vld [vmem:[#allocation2 + $0xa8] sm:$0xff]
      %v569 = vld [vmem:[#allocation2 + $0xb0] sm:$0xff]
      %v570 = vld [vmem:[#allocation2 + $0xc0] sm:$0xff]
      %v571 = vld [vmem:[#allocation2 + $0xc8] sm:$0xff]
      %v572 = vld [vmem:[#allocation2 + $0xd8] sm:$0xff]
      %v573 = vld [vmem:[#allocation2 + $0xe0] sm:$0xff]
      %v574 = vld [vmem:[#allocation2 + $0xf0] sm:$0xff]
      %v575 = vld [vmem:[#allocation2 + $0xf8] sm:$0xff]
      %v576 = vld [vmem:[#allocation2 + $0x108] sm:$0xff]
      %v577 = vld [vmem:[#allocation2 + $0x110] sm:$0xff]
      %v578 = vld [vmem:[#allocation2 + $0x120] sm:$0xff]
      %v579 = vld [vmem:[#allocation2 + $0x128] sm:$0xff]
      %v580 = vld [vmem:[#allocation2 + $0x138] sm:$0xff]
      %v581 = vld [vmem:[#allocation2 + $0x140] sm:$0xff]
      %v582 = vld [vmem:[#allocation2 + $0x150] sm:$0xff]
      %v583 = vld [vmem:[#allocation2 + $0x158] sm:$0xff]
      %v584 = vld [vmem:[#allocation2 + $0x168] sm:$0xff]
      %v585 = vld [vmem:[#allocation2 + $0x170] sm:$0xff]
      %586 = vst.msk [vmem:[#allocation3] sm:$0xff] %vm443, %v554
      %587 = vst.msk [vmem:[#allocation3 + $0x8] sm:$0xff] %vm443, %v555
      %588 = vst.msk [vmem:[#allocation3 + $0x10] sm:$0xff] %vm443, %v556
      %589 = vst.msk [vmem:[#allocation3 + $0x18] sm:$0xff] %vm443, %v557
      %590 = vst.msk [vmem:[#allocation3 + $0x20] sm:$0xff] %vm443, %v558
      %591 = vst.msk [vmem:[#allocation3 + $0x28] sm:$0xff] %vm443, %v559
      %592 = vst.msk [vmem:[#allocation3 + $0x30] sm:$0xff] %vm443, %v560
      %593 = vst.msk [vmem:[#allocation3 + $0x38] sm:$0xff] %vm443, %v561
      %594 = vst.msk [vmem:[#allocation3 + $0x40] sm:$0xff] %vm443, %v562
      %595 = vst.msk [vmem:[#allocation3 + $0x48] sm:$0xff] %vm443, %v563
      %596 = vst.msk [vmem:[#allocation3 + $0x50] sm:$0xff] %vm443, %v564
      %597 = vst.msk [vmem:[#allocation3 + $0x58] sm:$0xff] %vm443, %v565
      %598 = vst.msk [vmem:[#allocation3 + $0x60] sm:$0xff] %vm443, %v566
      %599 = vst.msk [vmem:[#allocation3 + $0x68] sm:$0xff] %vm443, %v567
      %600 = vst.msk [vmem:[#allocation3 + $0x70] sm:$0xff] %vm443, %v568
      %601 = vst.msk [vmem:[#allocation3 + $0x78] sm:$0xff] %vm443, %v569
      %602 = vst.msk [vmem:[#allocation3 + $0x80] sm:$0xff] %vm443, %v570
      %603 = vst.msk [vmem:[#allocation3 + $0x88] sm:$0xff] %vm443, %v571
      %604 = vst.msk [vmem:[#allocation3 + $0x90] sm:$0xff] %vm443, %v572
      %605 = vst.msk [vmem:[#allocation3 + $0x98] sm:$0xff] %vm443, %v573
      %606 = vst.msk [vmem:[#allocation3 + $0xa0] sm:$0xff] %vm443, %v574
      %607 = vst.msk [vmem:[#allocation3 + $0xa8] sm:$0xff] %vm443, %v575
      %608 = vst.msk [vmem:[#allocation3 + $0xb0] sm:$0xff] %vm443, %v576
      %609 = vst.msk [vmem:[#allocation3 + $0xb8] sm:$0xff] %vm443, %v577
      %610 = vst.msk [vmem:[#allocation3 + $0xc0] sm:$0xff] %vm443, %v578
      %611 = vst.msk [vmem:[#allocation3 + $0xc8] sm:$0xff] %vm443, %v579
      %612 = vst.msk [vmem:[#allocation3 + $0xd0] sm:$0xff] %vm443, %v580
      %613 = vst.msk [vmem:[#allocation3 + $0xd8] sm:$0xff] %vm443, %v581
      %614 = vst.msk [vmem:[#allocation3 + $0xe0] sm:$0xff] %vm443, %v582
      %615 = vst.msk [vmem:[#allocation3 + $0xe8] sm:$0xff] %vm443, %v583
      %616 = vst.msk [vmem:[#allocation3 + $0xf0] sm:$0xff] %vm443, %v584
      %617 = vst.msk [vmem:[#allocation3 + $0xf8] sm:$0xff] %vm443, %v585
      %v618 = vld [vmem:[#allocation2 + $0x1] sm:$0xff]
      %v619 = vld [vmem:[#allocation2 + $0x9] sm:$0xff]
      %v620 = vld [vmem:[#allocation2 + $0x19] sm:$0xff]
      %v621 = vld [vmem:[#allocation2 + $0x21] sm:$0xff]
      %v622 = vld [vmem:[#allocation2 + $0x31] sm:$0xff]
      %v623 = vld [vmem:[#allocation2 + $0x39] sm:$0xff]
      %v624 = vld [vmem:[#allocation2 + $0x49] sm:$0xff]
      %v625 = vld [vmem:[#allocation2 + $0x51] sm:$0xff]
      %v626 = vld [vmem:[#allocation2 + $0x61] sm:$0xff]
      %v627 = vld [vmem:[#allocation2 + $0x69] sm:$0xff]
      %v628 = vld [vmem:[#allocation2 + $0x79] sm:$0xff]
      %v629 = vld [vmem:[#allocation2 + $0x81] sm:$0xff]
      %v630 = vld [vmem:[#allocation2 + $0x91] sm:$0xff]
      %v631 = vld [vmem:[#allocation2 + $0x99] sm:$0xff]
      %v632 = vld [vmem:[#allocation2 + $0xa9] sm:$0xff]
      %v633 = vld [vmem:[#allocation2 + $0xb1] sm:$0xff]
      %v634 = vld [vmem:[#allocation2 + $0xc1] sm:$0xff]
      %v635 = vld [vmem:[#allocation2 + $0xc9] sm:$0xff]
      %v636 = vld [vmem:[#allocation2 + $0xd9] sm:$0xff]
      %v637 = vld [vmem:[#allocation2 + $0xe1] sm:$0xff]
      %v638 = vld [vmem:[#allocation2 + $0xf1] sm:$0xff]
      %v639 = vld [vmem:[#allocation2 + $0xf9] sm:$0xff]
      %v640 = vld [vmem:[#allocation2 + $0x109] sm:$0xff]
      %v641 = vld [vmem:[#allocation2 + $0x111] sm:$0xff]
      %v642 = vld [vmem:[#allocation2 + $0x121] sm:$0xff]
      %v643 = vld [vmem:[#allocation2 + $0x129] sm:$0xff]
      %v644 = vld [vmem:[#allocation2 + $0x139] sm:$0xff]
      %v645 = vld [vmem:[#allocation2 + $0x141] sm:$0xff]
      %v646 = vld [vmem:[#allocation2 + $0x151] sm:$0xff]
      %v647 = vld [vmem:[#allocation2 + $0x159] sm:$0xff]
      %v648 = vld [vmem:[#allocation2 + $0x169] sm:$0xff]
      %v649 = vld [vmem:[#allocation2 + $0x171] sm:$0xff]
      %682 = vrot.lane.b32.xlu0 %v618, 4
      %v683 = vpop.permute.xlu0 %682
      %684 = vrot.lane.b32.xlu0 %v619, 4
      %v685 = vpop.permute.xlu0 %684
      %686 = vrot.lane.b32.xlu0 %v620, 4
      %v687 = vpop.permute.xlu0 %686
      %688 = vrot.lane.b32.xlu0 %v621, 4
      %v689 = vpop.permute.xlu0 %688
      %690 = vrot.lane.b32.xlu0 %v622, 4
      %v691 = vpop.permute.xlu0 %690
      %692 = vrot.lane.b32.xlu0 %v623, 4
      %v693 = vpop.permute.xlu0 %692
      %694 = vrot.lane.b32.xlu0 %v624, 4
      %v695 = vpop.permute.xlu0 %694
      %696 = vrot.lane.b32.xlu0 %v625, 4
      %v697 = vpop.permute.xlu0 %696
      %698 = vrot.lane.b32.xlu0 %v626, 4
      %v699 = vpop.permute.xlu0 %698
      %700 = vrot.lane.b32.xlu0 %v627, 4
      %v701 = vpop.permute.xlu0 %700
      %702 = vrot.lane.b32.xlu0 %v628, 4
      %v703 = vpop.permute.xlu0 %702
      %704 = vrot.lane.b32.xlu0 %v629, 4
      %v705 = vpop.permute.xlu0 %704
      %706 = vrot.lane.b32.xlu0 %v630, 4
      %v707 = vpop.permute.xlu0 %706
      %708 = vrot.lane.b32.xlu0 %v631, 4
      %v709 = vpop.permute.xlu0 %708
      %710 = vrot.lane.b32.xlu0 %v632, 4
      %v711 = vpop.permute.xlu0 %710
      %712 = vrot.lane.b32.xlu0 %v633, 4
      %v713 = vpop.permute.xlu0 %712
      %714 = vrot.lane.b32.xlu0 %v634, 4
      %v715 = vpop.permute.xlu0 %714
      %716 = vrot.lane.b32.xlu0 %v635, 4
      %v717 = vpop.permute.xlu0 %716
      %718 = vrot.lane.b32.xlu0 %v636, 4
      %v719 = vpop.permute.xlu0 %718
      %720 = vrot.lane.b32.xlu0 %v637, 4
      %v721 = vpop.permute.xlu0 %720
      %722 = vrot.lane.b32.xlu0 %v638, 4
      %v723 = vpop.permute.xlu0 %722
      %724 = vrot.lane.b32.xlu0 %v639, 4
      %v725 = vpop.permute.xlu0 %724
      %726 = vrot.lane.b32.xlu0 %v640, 4
      %v727 = vpop.permute.xlu0 %726
      %728 = vrot.lane.b32.xlu0 %v641, 4
      %v729 = vpop.permute.xlu0 %728
      %730 = vrot.lane.b32.xlu0 %v642, 4
      %v731 = vpop.permute.xlu0 %730
      %732 = vrot.lane.b32.xlu0 %v643, 4
      %v733 = vpop.permute.xlu0 %732
      %734 = vrot.lane.b32.xlu0 %v644, 4
      %v735 = vpop.permute.xlu0 %734
      %736 = vrot.lane.b32.xlu0 %v645, 4
      %v737 = vpop.permute.xlu0 %736
      %738 = vrot.lane.b32.xlu0 %v646, 4
      %v739 = vpop.permute.xlu0 %738
      %740 = vrot.lane.b32.xlu0 %v647, 4
      %v741 = vpop.permute.xlu0 %740
      %742 = vrot.lane.b32.xlu0 %v648, 4
      %v743 = vpop.permute.xlu0 %742
      %744 = vrot.lane.b32.xlu0 %v649, 4
      %v745 = vpop.permute.xlu0 %744
      %vm778 = vcmask 64544
      %779 = vst.msk [vmem:[#allocation3] sm:$0xff] %vm778, %v683
      %780 = vst.msk [vmem:[#allocation3 + $0x8] sm:$0xff] %vm778, %v685
      %781 = vst.msk [vmem:[#allocation3 + $0x10] sm:$0xff] %vm778, %v687
      %782 = vst.msk [vmem:[#allocation3 + $0x18] sm:$0xff] %vm778, %v689
      %783 = vst.msk [vmem:[#allocation3 + $0x20] sm:$0xff] %vm778, %v691
      %784 = vst.msk [vmem:[#allocation3 + $0x28] sm:$0xff] %vm778, %v693
      %785 = vst.msk [vmem:[#allocation3 + $0x30] sm:$0xff] %vm778, %v695
      %786 = vst.msk [vmem:[#allocation3 + $0x38] sm:$0xff] %vm778, %v697
      %787 = vst.msk [vmem:[#allocation3 + $0x40] sm:$0xff] %vm778, %v699
      %788 = vst.msk [vmem:[#allocation3 + $0x48] sm:$0xff] %vm778, %v701
      %789 = vst.msk [vmem:[#allocation3 + $0x50] sm:$0xff] %vm778, %v703
      %790 = vst.msk [vmem:[#allocation3 + $0x58] sm:$0xff] %vm778, %v705
      %791 = vst.msk [vmem:[#allocation3 + $0x60] sm:$0xff] %vm778, %v707
      %792 = vst.msk [vmem:[#allocation3 + $0x68] sm:$0xff] %vm778, %v709
      %793 = vst.msk [vmem:[#allocation3 + $0x70] sm:$0xff] %vm778, %v711
      %794 = vst.msk [vmem:[#allocation3 + $0x78] sm:$0xff] %vm778, %v713
      %795 = vst.msk [vmem:[#allocation3 + $0x80] sm:$0xff] %vm778, %v715
      %796 = vst.msk [vmem:[#allocation3 + $0x88] sm:$0xff] %vm778, %v717
      %797 = vst.msk [vmem:[#allocation3 + $0x90] sm:$0xff] %vm778, %v719
      %798 = vst.msk [vmem:[#allocation3 + $0x98] sm:$0xff] %vm778, %v721
      %799 = vst.msk [vmem:[#allocation3 + $0xa0] sm:$0xff] %vm778, %v723
      %800 = vst.msk [vmem:[#allocation3 + $0xa8] sm:$0xff] %vm778, %v725
      %801 = vst.msk [vmem:[#allocation3 + $0xb0] sm:$0xff] %vm778, %v727
      %802 = vst.msk [vmem:[#allocation3 + $0xb8] sm:$0xff] %vm778, %v729
      %803 = vst.msk [vmem:[#allocation3 + $0xc0] sm:$0xff] %vm778, %v731
      %804 = vst.msk [vmem:[#allocation3 + $0xc8] sm:$0xff] %vm778, %v733
      %805 = vst.msk [vmem:[#allocation3 + $0xd0] sm:$0xff] %vm778, %v735
      %806 = vst.msk [vmem:[#allocation3 + $0xd8] sm:$0xff] %vm778, %v737
      %807 = vst.msk [vmem:[#allocation3 + $0xe0] sm:$0xff] %vm778, %v739
      %808 = vst.msk [vmem:[#allocation3 + $0xe8] sm:$0xff] %vm778, %v741
      %809 = vst.msk [vmem:[#allocation3 + $0xf0] sm:$0xff] %vm778, %v743
      %810 = vst.msk [vmem:[#allocation3 + $0xf8] sm:$0xff] %vm778, %v745
      %v811 = vld [vmem:[#allocation2 + $0x2] sm:$0xff]
      %v812 = vld [vmem:[#allocation2 + $0xa] sm:$0xff]
      %v813 = vld [vmem:[#allocation2 + $0x1a] sm:$0xff]
      %v814 = vld [vmem:[#allocation2 + $0x22] sm:$0xff]
      %v815 = vld [vmem:[#allocation2 + $0x32] sm:$0xff]
      %v816 = vld [vmem:[#allocation2 + $0x3a] sm:$0xff]
      %v817 = vld [vmem:[#allocation2 + $0x4a] sm:$0xff]
      %v818 = vld [vmem:[#allocation2 + $0x52] sm:$0xff]
      %v819 = vld [vmem:[#allocation2 + $0x62] sm:$0xff]
      %v820 = vld [vmem:[#allocation2 + $0x6a] sm:$0xff]
      %v821 = vld [vmem:[#allocation2 + $0x7a] sm:$0xff]
      %v822 = vld [vmem:[#allocation2 + $0x82] sm:$0xff]
      %v823 = vld [vmem:[#allocation2 + $0x92] sm:$0xff]
      %v824 = vld [vmem:[#allocation2 + $0x9a] sm:$0xff]
      %v825 = vld [vmem:[#allocation2 + $0xaa] sm:$0xff]
      %v826 = vld [vmem:[#allocation2 + $0xb2] sm:$0xff]
      %v827 = vld [vmem:[#allocation2 + $0xc2] sm:$0xff]
      %v828 = vld [vmem:[#allocation2 + $0xca] sm:$0xff]
      %v829 = vld [vmem:[#allocation2 + $0xda] sm:$0xff]
      %v830 = vld [vmem:[#allocation2 + $0xe2] sm:$0xff]
      %v831 = vld [vmem:[#allocation2 + $0xf2] sm:$0xff]
      %v832 = vld [vmem:[#allocation2 + $0xfa] sm:$0xff]
      %v833 = vld [vmem:[#allocation2 + $0x10a] sm:$0xff]
      %v834 = vld [vmem:[#allocation2 + $0x112] sm:$0xff]
      %v835 = vld [vmem:[#allocation2 + $0x122] sm:$0xff]
      %v836 = vld [vmem:[#allocation2 + $0x12a] sm:$0xff]
      %v837 = vld [vmem:[#allocation2 + $0x13a] sm:$0xff]
      %v838 = vld [vmem:[#allocation2 + $0x142] sm:$0xff]
      %v839 = vld [vmem:[#allocation2 + $0x152] sm:$0xff]
      %v840 = vld [vmem:[#allocation2 + $0x15a] sm:$0xff]
      %v841 = vld [vmem:[#allocation2 + $0x16a] sm:$0xff]
      %v842 = vld [vmem:[#allocation2 + $0x172] sm:$0xff]
      %875 = vrot.lane.b32.xlu0 %v811, 8
      %v876 = vpop.permute.xlu0 %875
      %877 = vrot.lane.b32.xlu0 %v812, 8
      %v878 = vpop.permute.xlu0 %877
      %879 = vrot.lane.b32.xlu0 %v813, 8
      %v880 = vpop.permute.xlu0 %879
      %881 = vrot.lane.b32.xlu0 %v814, 8
      %v882 = vpop.permute.xlu0 %881
      %883 = vrot.lane.b32.xlu0 %v815, 8
      %v884 = vpop.permute.xlu0 %883
      %885 = vrot.lane.b32.xlu0 %v816, 8
      %v886 = vpop.permute.xlu0 %885
      %887 = vrot.lane.b32.xlu0 %v817, 8
      %v888 = vpop.permute.xlu0 %887
      %889 = vrot.lane.b32.xlu0 %v818, 8
      %v890 = vpop.permute.xlu0 %889
      %891 = vrot.lane.b32.xlu0 %v819, 8
      %v892 = vpop.permute.xlu0 %891
      %893 = vrot.lane.b32.xlu0 %v820, 8
      %v894 = vpop.permute.xlu0 %893
      %895 = vrot.lane.b32.xlu0 %v821, 8
      %v896 = vpop.permute.xlu0 %895
      %897 = vrot.lane.b32.xlu0 %v822, 8
      %v898 = vpop.permute.xlu0 %897
      %899 = vrot.lane.b32.xlu0 %v823, 8
      %v900 = vpop.permute.xlu0 %899
      %901 = vrot.lane.b32.xlu0 %v824, 8
      %v902 = vpop.permute.xlu0 %901
      %903 = vrot.lane.b32.xlu0 %v825, 8
      %v904 = vpop.permute.xlu0 %903
      %905 = vrot.lane.b32.xlu0 %v826, 8
      %v906 = vpop.permute.xlu0 %905
      %907 = vrot.lane.b32.xlu0 %v827, 8
      %v908 = vpop.permute.xlu0 %907
      %909 = vrot.lane.b32.xlu0 %v828, 8
      %v910 = vpop.permute.xlu0 %909
      %911 = vrot.lane.b32.xlu0 %v829, 8
      %v912 = vpop.permute.xlu0 %911
      %913 = vrot.lane.b32.xlu0 %v830, 8
      %v914 = vpop.permute.xlu0 %913
      %915 = vrot.lane.b32.xlu0 %v831, 8
      %v916 = vpop.permute.xlu0 %915
      %917 = vrot.lane.b32.xlu0 %v832, 8
      %v918 = vpop.permute.xlu0 %917
      %919 = vrot.lane.b32.xlu0 %v833, 8
      %v920 = vpop.permute.xlu0 %919
      %921 = vrot.lane.b32.xlu0 %v834, 8
      %v922 = vpop.permute.xlu0 %921
      %923 = vrot.lane.b32.xlu0 %v835, 8
      %v924 = vpop.permute.xlu0 %923
      %925 = vrot.lane.b32.xlu0 %v836, 8
      %v926 = vpop.permute.xlu0 %925
      %927 = vrot.lane.b32.xlu0 %v837, 8
      %v928 = vpop.permute.xlu0 %927
      %929 = vrot.lane.b32.xlu0 %v838, 8
      %v930 = vpop.permute.xlu0 %929
      %931 = vrot.lane.b32.xlu0 %v839, 8
      %v932 = vpop.permute.xlu0 %931
      %933 = vrot.lane.b32.xlu0 %v840, 8
      %v934 = vpop.permute.xlu0 %933
      %935 = vrot.lane.b32.xlu0 %v841, 8
      %v936 = vpop.permute.xlu0 %935
      %937 = vrot.lane.b32.xlu0 %v842, 8
      %v938 = vpop.permute.xlu0 %937
      %vm971 = vcmask 97344
      %972 = vst.msk [vmem:[#allocation3] sm:$0xff] %vm971, %v876
      %973 = vst.msk [vmem:[#allocation3 + $0x8] sm:$0xff] %vm971, %v878
      %974 = vst.msk [vmem:[#allocation3 + $0x10] sm:$0xff] %vm971, %v880
      %975 = vst.msk [vmem:[#allocation3 + $0x18] sm:$0xff] %vm971, %v882
      %976 = vst.msk [vmem:[#allocation3 + $0x20] sm:$0xff] %vm971, %v884
      %977 = vst.msk [vmem:[#allocation3 + $0x28] sm:$0xff] %vm971, %v886
      %978 = vst.msk [vmem:[#allocation3 + $0x30] sm:$0xff] %vm971, %v888
      %979 = vst.msk [vmem:[#allocation3 + $0x38] sm:$0xff] %vm971, %v890
      %980 = vst.msk [vmem:[#allocation3 + $0x40] sm:$0xff] %vm971, %v892
      %981 = vst.msk [vmem:[#allocation3 + $0x48] sm:$0xff] %vm971, %v894
      %982 = vst.msk [vmem:[#allocation3 + $0x50] sm:$0xff] %vm971, %v896
      %983 = vst.msk [vmem:[#allocation3 + $0x58] sm:$0xff] %vm971, %v898
      %984 = vst.msk [vmem:[#allocation3 + $0x60] sm:$0xff] %vm971, %v900
      %985 = vst.msk [vmem:[#allocation3 + $0x68] sm:$0xff] %vm971, %v902
      %986 = vst.msk [vmem:[#allocation3 + $0x70] sm:$0xff] %vm971, %v904
      %987 = vst.msk [vmem:[#allocation3 + $0x78] sm:$0xff] %vm971, %v906
      %988 = vst.msk [vmem:[#allocation3 + $0x80] sm:$0xff] %vm971, %v908
      %989 = vst.msk [vmem:[#allocation3 + $0x88] sm:$0xff] %vm971, %v910
      %990 = vst.msk [vmem:[#allocation3 + $0x90] sm:$0xff] %vm971, %v912
      %991 = vst.msk [vmem:[#allocation3 + $0x98] sm:$0xff] %vm971, %v914
      %992 = vst.msk [vmem:[#allocation3 + $0xa0] sm:$0xff] %vm971, %v916
      %993 = vst.msk [vmem:[#allocation3 + $0xa8] sm:$0xff] %vm971, %v918
      %994 = vst.msk [vmem:[#allocation3 + $0xb0] sm:$0xff] %vm971, %v920
      %995 = vst.msk [vmem:[#allocation3 + $0xb8] sm:$0xff] %vm971, %v922
      %996 = vst.msk [vmem:[#allocation3 + $0xc0] sm:$0xff] %vm971, %v924
      %997 = vst.msk [vmem:[#allocation3 + $0xc8] sm:$0xff] %vm971, %v926
      %998 = vst.msk [vmem:[#allocation3 + $0xd0] sm:$0xff] %vm971, %v928
      %999 = vst.msk [vmem:[#allocation3 + $0xd8] sm:$0xff] %vm971, %v930
      %1000 = vst.msk [vmem:[#allocation3 + $0xe0] sm:$0xff] %vm971, %v932
      %1001 = vst.msk [vmem:[#allocation3 + $0xe8] sm:$0xff] %vm971, %v934
      %1002 = vst.msk [vmem:[#allocation3 + $0xf0] sm:$0xff] %vm971, %v936
      %1003 = vst.msk [vmem:[#allocation3 + $0xf8] sm:$0xff] %vm971, %v938
      %v1004 = vld [vmem:[%s442] sm:$0xff]
      %v1005 = vld [vmem:[%s442 + $0x8] sm:$0xff]
      %v1006 = vld [vmem:[%s442 + $0x18] sm:$0xff]
      %v1007 = vld [vmem:[%s442 + $0x20] sm:$0xff]
      %v1008 = vld [vmem:[%s442 + $0x30] sm:$0xff]
      %v1009 = vld [vmem:[%s442 + $0x38] sm:$0xff]
      %v1010 = vld [vmem:[%s442 + $0x48] sm:$0xff]
      %v1011 = vld [vmem:[%s442 + $0x50] sm:$0xff]
      %v1012 = vld [vmem:[%s442 + $0x60] sm:$0xff]
      %v1013 = vld [vmem:[%s442 + $0x68] sm:$0xff]
      %v1014 = vld [vmem:[%s442 + $0x78] sm:$0xff]
      %v1015 = vld [vmem:[%s442 + $0x80] sm:$0xff]
      %v1016 = vld [vmem:[%s442 + $0x90] sm:$0xff]
      %v1017 = vld [vmem:[%s442 + $0x98] sm:$0xff]
      %v1018 = vld [vmem:[%s442 + $0xa8] sm:$0xff]
      %v1019 = vld [vmem:[%s442 + $0xb0] sm:$0xff]
      %v1020 = vld [vmem:[%s442 + $0xc0] sm:$0xff]
      %v1021 = vld [vmem:[%s442 + $0xc8] sm:$0xff]
      %v1022 = vld [vmem:[%s442 + $0xd8] sm:$0xff]
      %v1023 = vld [vmem:[%s442 + $0xe0] sm:$0xff]
      %v1024 = vld [vmem:[%s442 + $0xf0] sm:$0xff]
      %v1025 = vld [vmem:[%s442 + $0xf8] sm:$0xff]
      %v1026 = vld [vmem:[%s442 + $0x108] sm:$0xff]
      %v1027 = vld [vmem:[%s442 + $0x110] sm:$0xff]
      %v1028 = vld [vmem:[%s442 + $0x120] sm:$0xff]
      %v1029 = vld [vmem:[%s442 + $0x128] sm:$0xff]
      %v1030 = vld [vmem:[%s442 + $0x138] sm:$0xff]
      %v1031 = vld [vmem:[%s442 + $0x140] sm:$0xff]
      %v1032 = vld [vmem:[%s442 + $0x150] sm:$0xff]
      %v1033 = vld [vmem:[%s442 + $0x158] sm:$0xff]
      %v1034 = vld [vmem:[%s442 + $0x168] sm:$0xff]
      %v1035 = vld [vmem:[%s442 + $0x170] sm:$0xff]
      %1068 = vrot.lane.b32.xlu0 %v1004, 12
      %v1069 = vpop.permute.xlu0 %1068
      %1070 = vrot.lane.b32.xlu0 %v1005, 12
      %v1071 = vpop.permute.xlu0 %1070
      %1072 = vrot.lane.b32.xlu0 %v1006, 12
      %v1073 = vpop.permute.xlu0 %1072
      %1074 = vrot.lane.b32.xlu0 %v1007, 12
      %v1075 = vpop.permute.xlu0 %1074
      %1076 = vrot.lane.b32.xlu0 %v1008, 12
      %v1077 = vpop.permute.xlu0 %1076
      %1078 = vrot.lane.b32.xlu0 %v1009, 12
      %v1079 = vpop.permute.xlu0 %1078
      %1080 = vrot.lane.b32.xlu0 %v1010, 12
      %v1081 = vpop.permute.xlu0 %1080
      %1082 = vrot.lane.b32.xlu0 %v1011, 12
      %v1083 = vpop.permute.xlu0 %1082
      %1084 = vrot.lane.b32.xlu0 %v1012, 12
      %v1085 = vpop.permute.xlu0 %1084
      %1086 = vrot.lane.b32.xlu0 %v1013, 12
      %v1087 = vpop.permute.xlu0 %1086
      %1088 = vrot.lane.b32.xlu0 %v1014, 12
      %v1089 = vpop.permute.xlu0 %1088
      %1090 = vrot.lane.b32.xlu0 %v1015, 12
      %v1091 = vpop.permute.xlu0 %1090
      %1092 = vrot.lane.b32.xlu0 %v1016, 12
      %v1093 = vpop.permute.xlu0 %1092
      %1094 = vrot.lane.b32.xlu0 %v1017, 12
      %v1095 = vpop.permute.xlu0 %1094
      %1096 = vrot.lane.b32.xlu0 %v1018, 12
      %v1097 = vpop.permute.xlu0 %1096
      %1098 = vrot.lane.b32.xlu0 %v1019, 12
      %v1099 = vpop.permute.xlu0 %1098
      %1100 = vrot.lane.b32.xlu0 %v1020, 12
      %v1101 = vpop.permute.xlu0 %1100
      %1102 = vrot.lane.b32.xlu0 %v1021, 12
      %v1103 = vpop.permute.xlu0 %1102
      %1104 = vrot.lane.b32.xlu0 %v1022, 12
      %v1105 = vpop.permute.xlu0 %1104
      %1106 = vrot.lane.b32.xlu0 %v1023, 12
      %v1107 = vpop.permute.xlu0 %1106
      %1108 = vrot.lane.b32.xlu0 %v1024, 12
      %v1109 = vpop.permute.xlu0 %1108
      %1110 = vrot.lane.b32.xlu0 %v1025, 12
      %v1111 = vpop.permute.xlu0 %1110
      %1112 = vrot.lane.b32.xlu0 %v1026, 12
      %v1113 = vpop.permute.xlu0 %1112
      %1114 = vrot.lane.b32.xlu0 %v1027, 12
      %v1115 = vpop.permute.xlu0 %1114
      %1116 = vrot.lane.b32.xlu0 %v1028, 12
      %v1117 = vpop.permute.xlu0 %1116
      %1118 = vrot.lane.b32.xlu0 %v1029, 12
      %v1119 = vpop.permute.xlu0 %1118
      %1120 = vrot.lane.b32.xlu0 %v1030, 12
      %v1121 = vpop.permute.xlu0 %1120
      %1122 = vrot.lane.b32.xlu0 %v1031, 12
      %v1123 = vpop.permute.xlu0 %1122
      %1124 = vrot.lane.b32.xlu0 %v1032, 12
      %v1125 = vpop.permute.xlu0 %1124
      %1126 = vrot.lane.b32.xlu0 %v1033, 12
      %v1127 = vpop.permute.xlu0 %1126
      %1128 = vrot.lane.b32.xlu0 %v1034, 12
      %v1129 = vpop.permute.xlu0 %1128
      %1130 = vrot.lane.b32.xlu0 %v1035, 12
      %v1131 = vpop.permute.xlu0 %1130
      %vm1164 = vcmask 130144
      %1165 = vst.msk [vmem:[#allocation3] sm:$0xff] %vm1164, %v1069
      %1166 = vst.msk [vmem:[#allocation3 + $0x8] sm:$0xff] %vm1164, %v1071
      %1167 = vst.msk [vmem:[#allocation3 + $0x10] sm:$0xff] %vm1164, %v1073
      %1168 = vst.msk [vmem:[#allocation3 + $0x18] sm:$0xff] %vm1164, %v1075
      %1169 = vst.msk [vmem:[#allocation3 + $0x20] sm:$0xff] %vm1164, %v1077
      %1170 = vst.msk [vmem:[#allocation3 + $0x28] sm:$0xff] %vm1164, %v1079
      %1171 = vst.msk [vmem:[#allocation3 + $0x30] sm:$0xff] %vm1164, %v1081
      %1172 = vst.msk [vmem:[#allocation3 + $0x38] sm:$0xff] %vm1164, %v1083
      %1173 = vst.msk [vmem:[#allocation3 + $0x40] sm:$0xff] %vm1164, %v1085
      %1174 = vst.msk [vmem:[#allocation3 + $0x48] sm:$0xff] %vm1164, %v1087
      %1175 = vst.msk [vmem:[#allocation3 + $0x50] sm:$0xff] %vm1164, %v1089
      %1176 = vst.msk [vmem:[#allocation3 + $0x58] sm:$0xff] %vm1164, %v1091
      %1177 = vst.msk [vmem:[#allocation3 + $0x60] sm:$0xff] %vm1164, %v1093
      %1178 = vst.msk [vmem:[#allocation3 + $0x68] sm:$0xff] %vm1164, %v1095
      %1179 = vst.msk [vmem:[#allocation3 + $0x70] sm:$0xff] %vm1164, %v1097
      %1180 = vst.msk [vmem:[#allocation3 + $0x78] sm:$0xff] %vm1164, %v1099
      %1181 = vst.msk [vmem:[#allocation3 + $0x80] sm:$0xff] %vm1164, %v1101
      %1182 = vst.msk [vmem:[#allocation3 + $0x88] sm:$0xff] %vm1164, %v1103
      %1183 = vst.msk [vmem:[#allocation3 + $0x90] sm:$0xff] %vm1164, %v1105
      %1184 = vst.msk [vmem:[#allocation3 + $0x98] sm:$0xff] %vm1164, %v1107
      %1185 = vst.msk [vmem:[#allocation3 + $0xa0] sm:$0xff] %vm1164, %v1109
      %1186 = vst.msk [vmem:[#allocation3 + $0xa8] sm:$0xff] %vm1164, %v1111
      %1187 = vst.msk [vmem:[#allocation3 + $0xb0] sm:$0xff] %vm1164, %v1113
      %1188 = vst.msk [vmem:[#allocation3 + $0xb8] sm:$0xff] %vm1164, %v1115
      %1189 = vst.msk [vmem:[#allocation3 + $0xc0] sm:$0xff] %vm1164, %v1117
      %1190 = vst.msk [vmem:[#allocation3 + $0xc8] sm:$0xff] %vm1164, %v1119
      %1191 = vst.msk [vmem:[#allocation3 + $0xd0] sm:$0xff] %vm1164, %v1121
      %1192 = vst.msk [vmem:[#allocation3 + $0xd8] sm:$0xff] %vm1164, %v1123
      %1193 = vst.msk [vmem:[#allocation3 + $0xe0] sm:$0xff] %vm1164, %v1125
      %1194 = vst.msk [vmem:[#allocation3 + $0xe8] sm:$0xff] %vm1164, %v1127
      %1195 = vst.msk [vmem:[#allocation3 + $0xf0] sm:$0xff] %vm1164, %v1129
      %1196 = vst.msk [vmem:[#allocation3 + $0xf8] sm:$0xff] %vm1164, %v1131
      %v1197 = vld [vmem:[%s442 + $0x1] sm:$0xff]
      %v1198 = vld [vmem:[%s442 + $0x9] sm:$0xff]
      %v1199 = vld [vmem:[%s442 + $0x19] sm:$0xff]
      %v1200 = vld [vmem:[%s442 + $0x21] sm:$0xff]
      %v1201 = vld [vmem:[%s442 + $0x31] sm:$0xff]
      %v1202 = vld [vmem:[%s442 + $0x39] sm:$0xff]
      %v1203 = vld [vmem:[%s442 + $0x49] sm:$0xff]
      %v1204 = vld [vmem:[%s442 + $0x51] sm:$0xff]
      %v1205 = vld [vmem:[%s442 + $0x61] sm:$0xff]
      %v1206 = vld [vmem:[%s442 + $0x69] sm:$0xff]
      %v1207 = vld [vmem:[%s442 + $0x79] sm:$0xff]
      %v1208 = vld [vmem:[%s442 + $0x81] sm:$0xff]
      %v1209 = vld [vmem:[%s442 + $0x91] sm:$0xff]
      %v1210 = vld [vmem:[%s442 + $0x99] sm:$0xff]
      %v1211 = vld [vmem:[%s442 + $0xa9] sm:$0xff]
      %v1212 = vld [vmem:[%s442 + $0xb1] sm:$0xff]
      %v1213 = vld [vmem:[%s442 + $0xc1] sm:$0xff]
      %v1214 = vld [vmem:[%s442 + $0xc9] sm:$0xff]
      %v1215 = vld [vmem:[%s442 + $0xd9] sm:$0xff]
      %v1216 = vld [vmem:[%s442 + $0xe1] sm:$0xff]
      %v1217 = vld [vmem:[%s442 + $0xf1] sm:$0xff]
      %v1218 = vld [vmem:[%s442 + $0xf9] sm:$0xff]
      %v1219 = vld [vmem:[%s442 + $0x109] sm:$0xff]
      %v1220 = vld [vmem:[%s442 + $0x111] sm:$0xff]
      %v1221 = vld [vmem:[%s442 + $0x121] sm:$0xff]
      %v1222 = vld [vmem:[%s442 + $0x129] sm:$0xff]
      %v1223 = vld [vmem:[%s442 + $0x139] sm:$0xff]
      %v1224 = vld [vmem:[%s442 + $0x141] sm:$0xff]
      %v1225 = vld [vmem:[%s442 + $0x151] sm:$0xff]
      %v1226 = vld [vmem:[%s442 + $0x159] sm:$0xff]
      %v1227 = vld [vmem:[%s442 + $0x169] sm:$0xff]
      %v1228 = vld [vmem:[%s442 + $0x171] sm:$0xff]
      %1261 = vrot.lane.b32.xlu0 %v1197, 16
      %v1262 = vpop.permute.xlu0 %1261
      %1263 = vrot.lane.b32.xlu0 %v1198, 16
      %v1264 = vpop.permute.xlu0 %1263
      %1265 = vrot.lane.b32.xlu0 %v1199, 16
      %v1266 = vpop.permute.xlu0 %1265
      %1267 = vrot.lane.b32.xlu0 %v1200, 16
      %v1268 = vpop.permute.xlu0 %1267
      %1269 = vrot.lane.b32.xlu0 %v1201, 16
      %v1270 = vpop.permute.xlu0 %1269
      %1271 = vrot.lane.b32.xlu0 %v1202, 16
      %v1272 = vpop.permute.xlu0 %1271
      %1273 = vrot.lane.b32.xlu0 %v1203, 16
      %v1274 = vpop.permute.xlu0 %1273
      %1275 = vrot.lane.b32.xlu0 %v1204, 16
      %v1276 = vpop.permute.xlu0 %1275
      %1277 = vrot.lane.b32.xlu0 %v1205, 16
      %v1278 = vpop.permute.xlu0 %1277
      %1279 = vrot.lane.b32.xlu0 %v1206, 16
      %v1280 = vpop.permute.xlu0 %1279
      %1281 = vrot.lane.b32.xlu0 %v1207, 16
      %v1282 = vpop.permute.xlu0 %1281
      %1283 = vrot.lane.b32.xlu0 %v1208, 16
      %v1284 = vpop.permute.xlu0 %1283
      %1285 = vrot.lane.b32.xlu0 %v1209, 16
      %v1286 = vpop.permute.xlu0 %1285
      %1287 = vrot.lane.b32.xlu0 %v1210, 16
      %v1288 = vpop.permute.xlu0 %1287
      %1289 = vrot.lane.b32.xlu0 %v1211, 16
      %v1290 = vpop.permute.xlu0 %1289
      %1291 = vrot.lane.b32.xlu0 %v1212, 16
      %v1292 = vpop.permute.xlu0 %1291
      %1293 = vrot.lane.b32.xlu0 %v1213, 16
      %v1294 = vpop.permute.xlu0 %1293
      %1295 = vrot.lane.b32.xlu0 %v1214, 16
      %v1296 = vpop.permute.xlu0 %1295
      %1297 = vrot.lane.b32.xlu0 %v1215, 16
      %v1298 = vpop.permute.xlu0 %1297
      %1299 = vrot.lane.b32.xlu0 %v1216, 16
      %v1300 = vpop.permute.xlu0 %1299
      %1301 = vrot.lane.b32.xlu0 %v1217, 16
      %v1302 = vpop.permute.xlu0 %1301
      %1303 = vrot.lane.b32.xlu0 %v1218, 16
      %v1304 = vpop.permute.xlu0 %1303
      %1305 = vrot.lane.b32.xlu0 %v1219, 16
      %v1306 = vpop.permute.xlu0 %1305
      %1307 = vrot.lane.b32.xlu0 %v1220, 16
      %v1308 = vpop.permute.xlu0 %1307
      %1309 = vrot.lane.b32.xlu0 %v1221, 16
      %v1310 = vpop.permute.xlu0 %1309
      %1311 = vrot.lane.b32.xlu0 %v1222, 16
      %v1312 = vpop.permute.xlu0 %1311
      %1313 = vrot.lane.b32.xlu0 %v1223, 16
      %v1314 = vpop.permute.xlu0 %1313
      %1315 = vrot.lane.b32.xlu0 %v1224, 16
      %v1316 = vpop.permute.xlu0 %1315
      %1317 = vrot.lane.b32.xlu0 %v1225, 16
      %v1318 = vpop.permute.xlu0 %1317
      %1319 = vrot.lane.b32.xlu0 %v1226, 16
      %v1320 = vpop.permute.xlu0 %1319
      %1321 = vrot.lane.b32.xlu0 %v1227, 16
      %v1322 = vpop.permute.xlu0 %1321
      %1323 = vrot.lane.b32.xlu0 %v1228, 16
      %v1324 = vpop.permute.xlu0 %1323
      %vm1357 = vcmask 162944
      %1358 = vst.msk [vmem:[#allocation3] sm:$0xff] %vm1357, %v1262
      %1359 = vst.msk [vmem:[#allocation3 + $0x8] sm:$0xff] %vm1357, %v1264
      %1360 = vst.msk [vmem:[#allocation3 + $0x10] sm:$0xff] %vm1357, %v1266
      %1361 = vst.msk [vmem:[#allocation3 + $0x18] sm:$0xff] %vm1357, %v1268
      %1362 = vst.msk [vmem:[#allocation3 + $0x20] sm:$0xff] %vm1357, %v1270
      %1363 = vst.msk [vmem:[#allocation3 + $0x28] sm:$0xff] %vm1357, %v1272
      %1364 = vst.msk [vmem:[#allocation3 + $0x30] sm:$0xff] %vm1357, %v1274
      %1365 = vst.msk [vmem:[#allocation3 + $0x38] sm:$0xff] %vm1357, %v1276
      %1366 = vst.msk [vmem:[#allocation3 + $0x40] sm:$0xff] %vm1357, %v1278
      %1367 = vst.msk [vmem:[#allocation3 + $0x48] sm:$0xff] %vm1357, %v1280
      %1368 = vst.msk [vmem:[#allocation3 + $0x50] sm:$0xff] %vm1357, %v1282
      %1369 = vst.msk [vmem:[#allocation3 + $0x58] sm:$0xff] %vm1357, %v1284
      %1370 = vst.msk [vmem:[#allocation3 + $0x60] sm:$0xff] %vm1357, %v1286
      %1371 = vst.msk [vmem:[#allocation3 + $0x68] sm:$0xff] %vm1357, %v1288
      %1372 = vst.msk [vmem:[#allocation3 + $0x70] sm:$0xff] %vm1357, %v1290
      %1373 = vst.msk [vmem:[#allocation3 + $0x78] sm:$0xff] %vm1357, %v1292
      %1374 = vst.msk [vmem:[#allocation3 + $0x80] sm:$0xff] %vm1357, %v1294
      %1375 = vst.msk [vmem:[#allocation3 + $0x88] sm:$0xff] %vm1357, %v1296
      %1376 = vst.msk [vmem:[#allocation3 + $0x90] sm:$0xff] %vm1357, %v1298
      %1377 = vst.msk [vmem:[#allocation3 + $0x98] sm:$0xff] %vm1357, %v1300
      %1378 = vst.msk [vmem:[#allocation3 + $0xa0] sm:$0xff] %vm1357, %v1302
      %1379 = vst.msk [vmem:[#allocation3 + $0xa8] sm:$0xff] %vm1357, %v1304
      %1380 = vst.msk [vmem:[#allocation3 + $0xb0] sm:$0xff] %vm1357, %v1306
      %1381 = vst.msk [vmem:[#allocation3 + $0xb8] sm:$0xff] %vm1357, %v1308
      %1382 = vst.msk [vmem:[#allocation3 + $0xc0] sm:$0xff] %vm1357, %v1310
      %1383 = vst.msk [vmem:[#allocation3 + $0xc8] sm:$0xff] %vm1357, %v1312
      %1384 = vst.msk [vmem:[#allocation3 + $0xd0] sm:$0xff] %vm1357, %v1314
      %1385 = vst.msk [vmem:[#allocation3 + $0xd8] sm:$0xff] %vm1357, %v1316
      %1386 = vst.msk [vmem:[#allocation3 + $0xe0] sm:$0xff] %vm1357, %v1318
      %1387 = vst.msk [vmem:[#allocation3 + $0xe8] sm:$0xff] %vm1357, %v1320
      %1388 = vst.msk [vmem:[#allocation3 + $0xf0] sm:$0xff] %vm1357, %v1322
      %1389 = vst.msk [vmem:[#allocation3 + $0xf8] sm:$0xff] %vm1357, %v1324
      %v1390 = vld [vmem:[%s442 + $0x2] sm:$0xff]
      %v1391 = vld [vmem:[%s442 + $0xa] sm:$0xff]
      %v1392 = vld [vmem:[%s442 + $0x1a] sm:$0xff]
      %v1393 = vld [vmem:[%s442 + $0x22] sm:$0xff]
      %v1394 = vld [vmem:[%s442 + $0x32] sm:$0xff]
      %v1395 = vld [vmem:[%s442 + $0x3a] sm:$0xff]
      %v1396 = vld [vmem:[%s442 + $0x4a] sm:$0xff]
      %v1397 = vld [vmem:[%s442 + $0x52] sm:$0xff]
      %v1398 = vld [vmem:[%s442 + $0x62] sm:$0xff]
      %v1399 = vld [vmem:[%s442 + $0x6a] sm:$0xff]
      %v1400 = vld [vmem:[%s442 + $0x7a] sm:$0xff]
      %v1401 = vld [vmem:[%s442 + $0x82] sm:$0xff]
      %v1402 = vld [vmem:[%s442 + $0x92] sm:$0xff]
      %v1403 = vld [vmem:[%s442 + $0x9a] sm:$0xff]
      %v1404 = vld [vmem:[%s442 + $0xaa] sm:$0xff]
      %v1405 = vld [vmem:[%s442 + $0xb2] sm:$0xff]
      %v1406 = vld [vmem:[%s442 + $0xc2] sm:$0xff]
      %v1407 = vld [vmem:[%s442 + $0xca] sm:$0xff]
      %v1408 = vld [vmem:[%s442 + $0xda] sm:$0xff]
      %v1409 = vld [vmem:[%s442 + $0xe2] sm:$0xff]
      %v1410 = vld [vmem:[%s442 + $0xf2] sm:$0xff]
      %v1411 = vld [vmem:[%s442 + $0xfa] sm:$0xff]
      %v1412 = vld [vmem:[%s442 + $0x10a] sm:$0xff]
      %v1413 = vld [vmem:[%s442 + $0x112] sm:$0xff]
      %v1414 = vld [vmem:[%s442 + $0x122] sm:$0xff]
      %v1415 = vld [vmem:[%s442 + $0x12a] sm:$0xff]
      %v1416 = vld [vmem:[%s442 + $0x13a] sm:$0xff]
      %v1417 = vld [vmem:[%s442 + $0x142] sm:$0xff]
      %v1418 = vld [vmem:[%s442 + $0x152] sm:$0xff]
      %v1419 = vld [vmem:[%s442 + $0x15a] sm:$0xff]
      %v1420 = vld [vmem:[%s442 + $0x16a] sm:$0xff]
      %v1421 = vld [vmem:[%s442 + $0x172] sm:$0xff]
      %1454 = vrot.lane.b32.xlu0 %v1390, 20
      %v1455 = vpop.permute.xlu0 %1454
      %1456 = vrot.lane.b32.xlu0 %v1391, 20
      %v1457 = vpop.permute.xlu0 %1456
      %1458 = vrot.lane.b32.xlu0 %v1392, 20
      %v1459 = vpop.permute.xlu0 %1458
      %1460 = vrot.lane.b32.xlu0 %v1393, 20
      %v1461 = vpop.permute.xlu0 %1460
      %1462 = vrot.lane.b32.xlu0 %v1394, 20
      %v1463 = vpop.permute.xlu0 %1462
      %1464 = vrot.lane.b32.xlu0 %v1395, 20
      %v1465 = vpop.permute.xlu0 %1464
      %1466 = vrot.lane.b32.xlu0 %v1396, 20
      %v1467 = vpop.permute.xlu0 %1466
      %1468 = vrot.lane.b32.xlu0 %v1397, 20
      %v1469 = vpop.permute.xlu0 %1468
      %1470 = vrot.lane.b32.xlu0 %v1398, 20
      %v1471 = vpop.permute.xlu0 %1470
      %1472 = vrot.lane.b32.xlu0 %v1399, 20
      %v1473 = vpop.permute.xlu0 %1472
      %1474 = vrot.lane.b32.xlu0 %v1400, 20
      %v1475 = vpop.permute.xlu0 %1474
      %1476 = vrot.lane.b32.xlu0 %v1401, 20
      %v1477 = vpop.permute.xlu0 %1476
      %1478 = vrot.lane.b32.xlu0 %v1402, 20
      %v1479 = vpop.permute.xlu0 %1478
      %1480 = vrot.lane.b32.xlu0 %v1403, 20
      %v1481 = vpop.permute.xlu0 %1480
      %1482 = vrot.lane.b32.xlu0 %v1404, 20
      %v1483 = vpop.permute.xlu0 %1482
      %1484 = vrot.lane.b32.xlu0 %v1405, 20
      %v1485 = vpop.permute.xlu0 %1484
      %1486 = vrot.lane.b32.xlu0 %v1406, 20
      %v1487 = vpop.permute.xlu0 %1486
      %1488 = vrot.lane.b32.xlu0 %v1407, 20
      %v1489 = vpop.permute.xlu0 %1488
      %1490 = vrot.lane.b32.xlu0 %v1408, 20
      %v1491 = vpop.permute.xlu0 %1490
      %1492 = vrot.lane.b32.xlu0 %v1409, 20
      %v1493 = vpop.permute.xlu0 %1492
      %1494 = vrot.lane.b32.xlu0 %v1410, 20
      %v1495 = vpop.permute.xlu0 %1494
      %1496 = vrot.lane.b32.xlu0 %v1411, 20
      %v1497 = vpop.permute.xlu0 %1496
      %1498 = vrot.lane.b32.xlu0 %v1412, 20
      %v1499 = vpop.permute.xlu0 %1498
      %1500 = vrot.lane.b32.xlu0 %v1413, 20
      %v1501 = vpop.permute.xlu0 %1500
      %1502 = vrot.lane.b32.xlu0 %v1414, 20
      %v1503 = vpop.permute.xlu0 %1502
      %1504 = vrot.lane.b32.xlu0 %v1415, 20
      %v1505 = vpop.permute.xlu0 %1504
      %1506 = vrot.lane.b32.xlu0 %v1416, 20
      %v1507 = vpop.permute.xlu0 %1506
      %1508 = vrot.lane.b32.xlu0 %v1417, 20
      %v1509 = vpop.permute.xlu0 %1508
      %1510 = vrot.lane.b32.xlu0 %v1418, 20
      %v1511 = vpop.permute.xlu0 %1510
      %1512 = vrot.lane.b32.xlu0 %v1419, 20
      %v1513 = vpop.permute.xlu0 %1512
      %1514 = vrot.lane.b32.xlu0 %v1420, 20
      %v1515 = vpop.permute.xlu0 %1514
      %1516 = vrot.lane.b32.xlu0 %v1421, 20
      %v1517 = vpop.permute.xlu0 %1516
      %vm1550 = vcmask 195744
      %1551 = vst.msk [vmem:[#allocation3] sm:$0xff] %vm1550, %v1455
      %1552 = vst.msk [vmem:[#allocation3 + $0x8] sm:$0xff] %vm1550, %v1457
      %1553 = vst.msk [vmem:[#allocation3 + $0x10] sm:$0xff] %vm1550, %v1459
      %1554 = vst.msk [vmem:[#allocation3 + $0x18] sm:$0xff] %vm1550, %v1461
      %1555 = vst.msk [vmem:[#allocation3 + $0x20] sm:$0xff] %vm1550, %v1463
      %1556 = vst.msk [vmem:[#allocation3 + $0x28] sm:$0xff] %vm1550, %v1465
      %1557 = vst.msk [vmem:[#allocation3 + $0x30] sm:$0xff] %vm1550, %v1467
      %1558 = vst.msk [vmem:[#allocation3 + $0x38] sm:$0xff] %vm1550, %v1469
      %1559 = vst.msk [vmem:[#allocation3 + $0x40] sm:$0xff] %vm1550, %v1471
      %1560 = vst.msk [vmem:[#allocation3 + $0x48] sm:$0xff] %vm1550, %v1473
      %1561 = vst.msk [vmem:[#allocation3 + $0x50] sm:$0xff] %vm1550, %v1475
      %1562 = vst.msk [vmem:[#allocation3 + $0x58] sm:$0xff] %vm1550, %v1477
      %1563 = vst.msk [vmem:[#allocation3 + $0x60] sm:$0xff] %vm1550, %v1479
      %1564 = vst.msk [vmem:[#allocation3 + $0x68] sm:$0xff] %vm1550, %v1481
      %1565 = vst.msk [vmem:[#allocation3 + $0x70] sm:$0xff] %vm1550, %v1483
      %1566 = vst.msk [vmem:[#allocation3 + $0x78] sm:$0xff] %vm1550, %v1485
      %1567 = vst.msk [vmem:[#allocation3 + $0x80] sm:$0xff] %vm1550, %v1487
      %1568 = vst.msk [vmem:[#allocation3 + $0x88] sm:$0xff] %vm1550, %v1489
      %1569 = vst.msk [vmem:[#allocation3 + $0x90] sm:$0xff] %vm1550, %v1491
      %1570 = vst.msk [vmem:[#allocation3 + $0x98] sm:$0xff] %vm1550, %v1493
      %1571 = vst.msk [vmem:[#allocation3 + $0xa0] sm:$0xff] %vm1550, %v1495
      %1572 = vst.msk [vmem:[#allocation3 + $0xa8] sm:$0xff] %vm1550, %v1497
      %1573 = vst.msk [vmem:[#allocation3 + $0xb0] sm:$0xff] %vm1550, %v1499
      %1574 = vst.msk [vmem:[#allocation3 + $0xb8] sm:$0xff] %vm1550, %v1501
      %1575 = vst.msk [vmem:[#allocation3 + $0xc0] sm:$0xff] %vm1550, %v1503
      %1576 = vst.msk [vmem:[#allocation3 + $0xc8] sm:$0xff] %vm1550, %v1505
      %1577 = vst.msk [vmem:[#allocation3 + $0xd0] sm:$0xff] %vm1550, %v1507
      %1578 = vst.msk [vmem:[#allocation3 + $0xd8] sm:$0xff] %vm1550, %v1509
      %1579 = vst.msk [vmem:[#allocation3 + $0xe0] sm:$0xff] %vm1550, %v1511
      %1580 = vst.msk [vmem:[#allocation3 + $0xe8] sm:$0xff] %vm1550, %v1513
      %1581 = vst.msk [vmem:[#allocation3 + $0xf0] sm:$0xff] %vm1550, %v1515
      %1582 = vst.msk [vmem:[#allocation3 + $0xf8] sm:$0xff] %vm1550, %v1517
      %s1583 = scalar_lea.vmem [#allocation2], 48
      %v1584 = vld [vmem:[%s1583] sm:$0xff]
      %v1585 = vld [vmem:[%s1583 + $0x8] sm:$0xff]
      %v1586 = vld [vmem:[%s1583 + $0x18] sm:$0xff]
      %v1587 = vld [vmem:[%s1583 + $0x20] sm:$0xff]
      %v1588 = vld [vmem:[%s1583 + $0x30] sm:$0xff]
      %v1589 = vld [vmem:[%s1583 + $0x38] sm:$0xff]
      %v1590 = vld [vmem:[%s1583 + $0x48] sm:$0xff]
      %v1591 = vld [vmem:[%s1583 + $0x50] sm:$0xff]
      %v1592 = vld [vmem:[%s1583 + $0x60] sm:$0xff]
      %v1593 = vld [vmem:[%s1583 + $0x68] sm:$0xff]
      %v1594 = vld [vmem:[%s1583 + $0x78] sm:$0xff]
      %v1595 = vld [vmem:[%s1583 + $0x80] sm:$0xff]
      %v1596 = vld [vmem:[%s1583 + $0x90] sm:$0xff]
      %v1597 = vld [vmem:[%s1583 + $0x98] sm:$0xff]
      %v1598 = vld [vmem:[%s1583 + $0xa8] sm:$0xff]
      %v1599 = vld [vmem:[%s1583 + $0xb0] sm:$0xff]
      %v1600 = vld [vmem:[%s1583 + $0xc0] sm:$0xff]
      %v1601 = vld [vmem:[%s1583 + $0xc8] sm:$0xff]
      %v1602 = vld [vmem:[%s1583 + $0xd8] sm:$0xff]
      %v1603 = vld [vmem:[%s1583 + $0xe0] sm:$0xff]
      %v1604 = vld [vmem:[%s1583 + $0xf0] sm:$0xff]
      %v1605 = vld [vmem:[%s1583 + $0xf8] sm:$0xff]
      %v1606 = vld [vmem:[%s1583 + $0x108] sm:$0xff]
      %v1607 = vld [vmem:[%s1583 + $0x110] sm:$0xff]
      %v1608 = vld [vmem:[%s1583 + $0x120] sm:$0xff]
      %v1609 = vld [vmem:[%s1583 + $0x128] sm:$0xff]
      %v1610 = vld [vmem:[%s1583 + $0x138] sm:$0xff]
      %v1611 = vld [vmem:[%s1583 + $0x140] sm:$0xff]
      %v1612 = vld [vmem:[%s1583 + $0x150] sm:$0xff]
      %v1613 = vld [vmem:[%s1583 + $0x158] sm:$0xff]
      %v1614 = vld [vmem:[%s1583 + $0x168] sm:$0xff]
      %v1615 = vld [vmem:[%s1583 + $0x170] sm:$0xff]
      %1648 = vrot.lane.b32.xlu0 %v1584, 24
      %v1649 = vpop.permute.xlu0 %1648
      %1650 = vrot.lane.b32.xlu0 %v1585, 24
      %v1651 = vpop.permute.xlu0 %1650
      %1652 = vrot.lane.b32.xlu0 %v1586, 24
      %v1653 = vpop.permute.xlu0 %1652
      %1654 = vrot.lane.b32.xlu0 %v1587, 24
      %v1655 = vpop.permute.xlu0 %1654
      %1656 = vrot.lane.b32.xlu0 %v1588, 24
      %v1657 = vpop.permute.xlu0 %1656
      %1658 = vrot.lane.b32.xlu0 %v1589, 24
      %v1659 = vpop.permute.xlu0 %1658
      %1660 = vrot.lane.b32.xlu0 %v1590, 24
      %v1661 = vpop.permute.xlu0 %1660
      %1662 = vrot.lane.b32.xlu0 %v1591, 24
      %v1663 = vpop.permute.xlu0 %1662
      %1664 = vrot.lane.b32.xlu0 %v1592, 24
      %v1665 = vpop.permute.xlu0 %1664
      %1666 = vrot.lane.b32.xlu0 %v1593, 24
      %v1667 = vpop.permute.xlu0 %1666
      %1668 = vrot.lane.b32.xlu0 %v1594, 24
      %v1669 = vpop.permute.xlu0 %1668
      %1670 = vrot.lane.b32.xlu0 %v1595, 24
      %v1671 = vpop.permute.xlu0 %1670
      %1672 = vrot.lane.b32.xlu0 %v1596, 24
      %v1673 = vpop.permute.xlu0 %1672
      %1674 = vrot.lane.b32.xlu0 %v1597, 24
      %v1675 = vpop.permute.xlu0 %1674
      %1676 = vrot.lane.b32.xlu0 %v1598, 24
      %v1677 = vpop.permute.xlu0 %1676
      %1678 = vrot.lane.b32.xlu0 %v1599, 24
      %v1679 = vpop.permute.xlu0 %1678
      %1680 = vrot.lane.b32.xlu0 %v1600, 24
      %v1681 = vpop.permute.xlu0 %1680
      %1682 = vrot.lane.b32.xlu0 %v1601, 24
      %v1683 = vpop.permute.xlu0 %1682
      %1684 = vrot.lane.b32.xlu0 %v1602, 24
      %v1685 = vpop.permute.xlu0 %1684
      %1686 = vrot.lane.b32.xlu0 %v1603, 24
      %v1687 = vpop.permute.xlu0 %1686
      %1688 = vrot.lane.b32.xlu0 %v1604, 24
      %v1689 = vpop.permute.xlu0 %1688
      %1690 = vrot.lane.b32.xlu0 %v1605, 24
      %v1691 = vpop.permute.xlu0 %1690
      %1692 = vrot.lane.b32.xlu0 %v1606, 24
      %v1693 = vpop.permute.xlu0 %1692
      %1694 = vrot.lane.b32.xlu0 %v1607, 24
      %v1695 = vpop.permute.xlu0 %1694
      %1696 = vrot.lane.b32.xlu0 %v1608, 24
      %v1697 = vpop.permute.xlu0 %1696
      %1698 = vrot.lane.b32.xlu0 %v1609, 24
      %v1699 = vpop.permute.xlu0 %1698
      %1700 = vrot.lane.b32.xlu0 %v1610, 24
      %v1701 = vpop.permute.xlu0 %1700
      %1702 = vrot.lane.b32.xlu0 %v1611, 24
      %v1703 = vpop.permute.xlu0 %1702
      %1704 = vrot.lane.b32.xlu0 %v1612, 24
      %v1705 = vpop.permute.xlu0 %1704
      %1706 = vrot.lane.b32.xlu0 %v1613, 24
      %v1707 = vpop.permute.xlu0 %1706
      %1708 = vrot.lane.b32.xlu0 %v1614, 24
      %v1709 = vpop.permute.xlu0 %1708
      %1710 = vrot.lane.b32.xlu0 %v1615, 24
      %v1711 = vpop.permute.xlu0 %1710
      %vm1744 = vcmask 228544
      %1745 = vst.msk [vmem:[#allocation3] sm:$0xff] %vm1744, %v1649
      %1746 = vst.msk [vmem:[#allocation3 + $0x8] sm:$0xff] %vm1744, %v1651
      %1747 = vst.msk [vmem:[#allocation3 + $0x10] sm:$0xff] %vm1744, %v1653
      %1748 = vst.msk [vmem:[#allocation3 + $0x18] sm:$0xff] %vm1744, %v1655
      %1749 = vst.msk [vmem:[#allocation3 + $0x20] sm:$0xff] %vm1744, %v1657
      %1750 = vst.msk [vmem:[#allocation3 + $0x28] sm:$0xff] %vm1744, %v1659
      %1751 = vst.msk [vmem:[#allocation3 + $0x30] sm:$0xff] %vm1744, %v1661
      %1752 = vst.msk [vmem:[#allocation3 + $0x38] sm:$0xff] %vm1744, %v1663
      %1753 = vst.msk [vmem:[#allocation3 + $0x40] sm:$0xff] %vm1744, %v1665
      %1754 = vst.msk [vmem:[#allocation3 + $0x48] sm:$0xff] %vm1744, %v1667
      %1755 = vst.msk [vmem:[#allocation3 + $0x50] sm:$0xff] %vm1744, %v1669
      %1756 = vst.msk [vmem:[#allocation3 + $0x58] sm:$0xff] %vm1744, %v1671
      %1757 = vst.msk [vmem:[#allocation3 + $0x60] sm:$0xff] %vm1744, %v1673
      %1758 = vst.msk [vmem:[#allocation3 + $0x68] sm:$0xff] %vm1744, %v1675
      %1759 = vst.msk [vmem:[#allocation3 + $0x70] sm:$0xff] %vm1744, %v1677
      %1760 = vst.msk [vmem:[#allocation3 + $0x78] sm:$0xff] %vm1744, %v1679
      %1761 = vst.msk [vmem:[#allocation3 + $0x80] sm:$0xff] %vm1744, %v1681
      %1762 = vst.msk [vmem:[#allocation3 + $0x88] sm:$0xff] %vm1744, %v1683
      %1763 = vst.msk [vmem:[#allocation3 + $0x90] sm:$0xff] %vm1744, %v1685
      %1764 = vst.msk [vmem:[#allocation3 + $0x98] sm:$0xff] %vm1744, %v1687
      %1765 = vst.msk [vmem:[#allocation3 + $0xa0] sm:$0xff] %vm1744, %v1689
      %1766 = vst.msk [vmem:[#allocation3 + $0xa8] sm:$0xff] %vm1744, %v1691
      %1767 = vst.msk [vmem:[#allocation3 + $0xb0] sm:$0xff] %vm1744, %v1693
      %1768 = vst.msk [vmem:[#allocation3 + $0xb8] sm:$0xff] %vm1744, %v1695
      %1769 = vst.msk [vmem:[#allocation3 + $0xc0] sm:$0xff] %vm1744, %v1697
      %1770 = vst.msk [vmem:[#allocation3 + $0xc8] sm:$0xff] %vm1744, %v1699
      %1771 = vst.msk [vmem:[#allocation3 + $0xd0] sm:$0xff] %vm1744, %v1701
      %1772 = vst.msk [vmem:[#allocation3 + $0xd8] sm:$0xff] %vm1744, %v1703
      %1773 = vst.msk [vmem:[#allocation3 + $0xe0] sm:$0xff] %vm1744, %v1705
      %1774 = vst.msk [vmem:[#allocation3 + $0xe8] sm:$0xff] %vm1744, %v1707
      %1775 = vst.msk [vmem:[#allocation3 + $0xf0] sm:$0xff] %vm1744, %v1709
      %1776 = vst.msk [vmem:[#allocation3 + $0xf8] sm:$0xff] %vm1744, %v1711
      %v1777 = vld [vmem:[%s1583 + $0x1] sm:$0xff]
      %v1778 = vld [vmem:[%s1583 + $0x9] sm:$0xff]
      %v1779 = vld [vmem:[%s1583 + $0x19] sm:$0xff]
      %v1780 = vld [vmem:[%s1583 + $0x21] sm:$0xff]
      %v1781 = vld [vmem:[%s1583 + $0x31] sm:$0xff]
      %v1782 = vld [vmem:[%s1583 + $0x39] sm:$0xff]
      %v1783 = vld [vmem:[%s1583 + $0x49] sm:$0xff]
      %v1784 = vld [vmem:[%s1583 + $0x51] sm:$0xff]
      %v1785 = vld [vmem:[%s1583 + $0x61] sm:$0xff]
      %v1786 = vld [vmem:[%s1583 + $0x69] sm:$0xff]
      %v1787 = vld [vmem:[%s1583 + $0x79] sm:$0xff]
      %v1788 = vld [vmem:[%s1583 + $0x81] sm:$0xff]
      %v1789 = vld [vmem:[%s1583 + $0x91] sm:$0xff]
      %v1790 = vld [vmem:[%s1583 + $0x99] sm:$0xff]
      %v1791 = vld [vmem:[%s1583 + $0xa9] sm:$0xff]
      %v1792 = vld [vmem:[%s1583 + $0xb1] sm:$0xff]
      %v1793 = vld [vmem:[%s1583 + $0xc1] sm:$0xff]
      %v1794 = vld [vmem:[%s1583 + $0xc9] sm:$0xff]
      %v1795 = vld [vmem:[%s1583 + $0xd9] sm:$0xff]
      %v1796 = vld [vmem:[%s1583 + $0xe1] sm:$0xff]
      %v1797 = vld [vmem:[%s1583 + $0xf1] sm:$0xff]
      %v1798 = vld [vmem:[%s1583 + $0xf9] sm:$0xff]
      %v1799 = vld [vmem:[%s1583 + $0x109] sm:$0xff]
      %v1800 = vld [vmem:[%s1583 + $0x111] sm:$0xff]
      %v1801 = vld [vmem:[%s1583 + $0x121] sm:$0xff]
      %v1802 = vld [vmem:[%s1583 + $0x129] sm:$0xff]
      %v1803 = vld [vmem:[%s1583 + $0x139] sm:$0xff]
      %v1804 = vld [vmem:[%s1583 + $0x141] sm:$0xff]
      %v1805 = vld [vmem:[%s1583 + $0x151] sm:$0xff]
      %v1806 = vld [vmem:[%s1583 + $0x159] sm:$0xff]
      %v1807 = vld [vmem:[%s1583 + $0x169] sm:$0xff]
      %v1808 = vld [vmem:[%s1583 + $0x171] sm:$0xff]
      %1841 = vrot.lane.b32.xlu0 %v1777, 28
      %v1842 = vpop.permute.xlu0 %1841
      %1843 = vrot.lane.b32.xlu0 %v1778, 28
      %v1844 = vpop.permute.xlu0 %1843
      %1845 = vrot.lane.b32.xlu0 %v1779, 28
      %v1846 = vpop.permute.xlu0 %1845
      %1847 = vrot.lane.b32.xlu0 %v1780, 28
      %v1848 = vpop.permute.xlu0 %1847
      %1849 = vrot.lane.b32.xlu0 %v1781, 28
      %v1850 = vpop.permute.xlu0 %1849
      %1851 = vrot.lane.b32.xlu0 %v1782, 28
      %v1852 = vpop.permute.xlu0 %1851
      %1853 = vrot.lane.b32.xlu0 %v1783, 28
      %v1854 = vpop.permute.xlu0 %1853
      %1855 = vrot.lane.b32.xlu0 %v1784, 28
      %v1856 = vpop.permute.xlu0 %1855
      %1857 = vrot.lane.b32.xlu0 %v1785, 28
      %v1858 = vpop.permute.xlu0 %1857
      %1859 = vrot.lane.b32.xlu0 %v1786, 28
      %v1860 = vpop.permute.xlu0 %1859
      %1861 = vrot.lane.b32.xlu0 %v1787, 28
      %v1862 = vpop.permute.xlu0 %1861
      %1863 = vrot.lane.b32.xlu0 %v1788, 28
      %v1864 = vpop.permute.xlu0 %1863
      %1865 = vrot.lane.b32.xlu0 %v1789, 28
      %v1866 = vpop.permute.xlu0 %1865
      %1867 = vrot.lane.b32.xlu0 %v1790, 28
      %v1868 = vpop.permute.xlu0 %1867
      %1869 = vrot.lane.b32.xlu0 %v1791, 28
      %v1870 = vpop.permute.xlu0 %1869
      %1871 = vrot.lane.b32.xlu0 %v1792, 28
      %v1872 = vpop.permute.xlu0 %1871
      %1873 = vrot.lane.b32.xlu0 %v1793, 28
      %v1874 = vpop.permute.xlu0 %1873
      %1875 = vrot.lane.b32.xlu0 %v1794, 28
      %v1876 = vpop.permute.xlu0 %1875
      %1877 = vrot.lane.b32.xlu0 %v1795, 28
      %v1878 = vpop.permute.xlu0 %1877
      %1879 = vrot.lane.b32.xlu0 %v1796, 28
      %v1880 = vpop.permute.xlu0 %1879
      %1881 = vrot.lane.b32.xlu0 %v1797, 28
      %v1882 = vpop.permute.xlu0 %1881
      %1883 = vrot.lane.b32.xlu0 %v1798, 28
      %v1884 = vpop.permute.xlu0 %1883
      %1885 = vrot.lane.b32.xlu0 %v1799, 28
      %v1886 = vpop.permute.xlu0 %1885
      %1887 = vrot.lane.b32.xlu0 %v1800, 28
      %v1888 = vpop.permute.xlu0 %1887
      %1889 = vrot.lane.b32.xlu0 %v1801, 28
      %v1890 = vpop.permute.xlu0 %1889
      %1891 = vrot.lane.b32.xlu0 %v1802, 28
      %v1892 = vpop.permute.xlu0 %1891
      %1893 = vrot.lane.b32.xlu0 %v1803, 28
      %v1894 = vpop.permute.xlu0 %1893
      %1895 = vrot.lane.b32.xlu0 %v1804, 28
      %v1896 = vpop.permute.xlu0 %1895
      %1897 = vrot.lane.b32.xlu0 %v1805, 28
      %v1898 = vpop.permute.xlu0 %1897
      %1899 = vrot.lane.b32.xlu0 %v1806, 28
      %v1900 = vpop.permute.xlu0 %1899
      %1901 = vrot.lane.b32.xlu0 %v1807, 28
      %v1902 = vpop.permute.xlu0 %1901
      %1903 = vrot.lane.b32.xlu0 %v1808, 28
      %v1904 = vpop.permute.xlu0 %1903
      %vm1937 = vcmask 261344
      %1938 = vst.msk [vmem:[#allocation3] sm:$0xff] %vm1937, %v1842
      %1939 = vst.msk [vmem:[#allocation3 + $0x8] sm:$0xff] %vm1937, %v1844
      %1940 = vst.msk [vmem:[#allocation3 + $0x10] sm:$0xff] %vm1937, %v1846
      %1941 = vst.msk [vmem:[#allocation3 + $0x18] sm:$0xff] %vm1937, %v1848
      %1942 = vst.msk [vmem:[#allocation3 + $0x20] sm:$0xff] %vm1937, %v1850
      %1943 = vst.msk [vmem:[#allocation3 + $0x28] sm:$0xff] %vm1937, %v1852
      %1944 = vst.msk [vmem:[#allocation3 + $0x30] sm:$0xff] %vm1937, %v1854
      %1945 = vst.msk [vmem:[#allocation3 + $0x38] sm:$0xff] %vm1937, %v1856
      %1946 = vst.msk [vmem:[#allocation3 + $0x40] sm:$0xff] %vm1937, %v1858
      %1947 = vst.msk [vmem:[#allocation3 + $0x48] sm:$0xff] %vm1937, %v1860
      %1948 = vst.msk [vmem:[#allocation3 + $0x50] sm:$0xff] %vm1937, %v1862
      %1949 = vst.msk [vmem:[#allocation3 + $0x58] sm:$0xff] %vm1937, %v1864
      %1950 = vst.msk [vmem:[#allocation3 + $0x60] sm:$0xff] %vm1937, %v1866
      %1951 = vst.msk [vmem:[#allocation3 + $0x68] sm:$0xff] %vm1937, %v1868
      %1952 = vst.msk [vmem:[#allocation3 + $0x70] sm:$0xff] %vm1937, %v1870
      %1953 = vst.msk [vmem:[#allocation3 + $0x78] sm:$0xff] %vm1937, %v1872
      %1954 = vst.msk [vmem:[#allocation3 + $0x80] sm:$0xff] %vm1937, %v1874
      %1955 = vst.msk [vmem:[#allocation3 + $0x88] sm:$0xff] %vm1937, %v1876
      %1956 = vst.msk [vmem:[#allocation3 + $0x90] sm:$0xff] %vm1937, %v1878
      %1957 = vst.msk [vmem:[#allocation3 + $0x98] sm:$0xff] %vm1937, %v1880
      %1958 = vst.msk [vmem:[#allocation3 + $0xa0] sm:$0xff] %vm1937, %v1882
      %1959 = vst.msk [vmem:[#allocation3 + $0xa8] sm:$0xff] %vm1937, %v1884
      %1960 = vst.msk [vmem:[#allocation3 + $0xb0] sm:$0xff] %vm1937, %v1886
      %1961 = vst.msk [vmem:[#allocation3 + $0xb8] sm:$0xff] %vm1937, %v1888
      %1962 = vst.msk [vmem:[#allocation3 + $0xc0] sm:$0xff] %vm1937, %v1890
      %1963 = vst.msk [vmem:[#allocation3 + $0xc8] sm:$0xff] %vm1937, %v1892
      %1964 = vst.msk [vmem:[#allocation3 + $0xd0] sm:$0xff] %vm1937, %v1894
      %1965 = vst.msk [vmem:[#allocation3 + $0xd8] sm:$0xff] %vm1937, %v1896
      %1966 = vst.msk [vmem:[#allocation3 + $0xe0] sm:$0xff] %vm1937, %v1898
      %1967 = vst.msk [vmem:[#allocation3 + $0xe8] sm:$0xff] %vm1937, %v1900
      %1968 = vst.msk [vmem:[#allocation3 + $0xf0] sm:$0xff] %vm1937, %v1902
      %1969 = vst.msk [vmem:[#allocation3 + $0xf8] sm:$0xff] %vm1937, %v1904
      %v1970 = vld [vmem:[%s1583 + $0x2] sm:$0xff]
      %v1971 = vld [vmem:[%s1583 + $0xa] sm:$0xff]
      %v1972 = vld [vmem:[%s1583 + $0x1a] sm:$0xff]
      %v1973 = vld [vmem:[%s1583 + $0x22] sm:$0xff]
      %v1974 = vld [vmem:[%s1583 + $0x32] sm:$0xff]
      %v1975 = vld [vmem:[%s1583 + $0x3a] sm:$0xff]
      %v1976 = vld [vmem:[%s1583 + $0x4a] sm:$0xff]
      %v1977 = vld [vmem:[%s1583 + $0x52] sm:$0xff]
      %v1978 = vld [vmem:[%s1583 + $0x62] sm:$0xff]
      %v1979 = vld [vmem:[%s1583 + $0x6a] sm:$0xff]
      %v1980 = vld [vmem:[%s1583 + $0x7a] sm:$0xff]
      %v1981 = vld [vmem:[%s1583 + $0x82] sm:$0xff]
      %v1982 = vld [vmem:[%s1583 + $0x92] sm:$0xff]
      %v1983 = vld [vmem:[%s1583 + $0x9a] sm:$0xff]
      %v1984 = vld [vmem:[%s1583 + $0xaa] sm:$0xff]
      %v1985 = vld [vmem:[%s1583 + $0xb2] sm:$0xff]
      %v1986 = vld [vmem:[%s1583 + $0xc2] sm:$0xff]
      %v1987 = vld [vmem:[%s1583 + $0xca] sm:$0xff]
      %v1988 = vld [vmem:[%s1583 + $0xda] sm:$0xff]
      %v1989 = vld [vmem:[%s1583 + $0xe2] sm:$0xff]
      %v1990 = vld [vmem:[%s1583 + $0xf2] sm:$0xff]
      %v1991 = vld [vmem:[%s1583 + $0xfa] sm:$0xff]
      %v1992 = vld [vmem:[%s1583 + $0x10a] sm:$0xff]
      %v1993 = vld [vmem:[%s1583 + $0x112] sm:$0xff]
      %v1994 = vld [vmem:[%s1583 + $0x122] sm:$0xff]
      %v1995 = vld [vmem:[%s1583 + $0x12a] sm:$0xff]
      %v1996 = vld [vmem:[%s1583 + $0x13a] sm:$0xff]
      %v1997 = vld [vmem:[%s1583 + $0x142] sm:$0xff]
      %v1998 = vld [vmem:[%s1583 + $0x152] sm:$0xff]
      %v1999 = vld [vmem:[%s1583 + $0x15a] sm:$0xff]
      %v2000 = vld [vmem:[%s1583 + $0x16a] sm:$0xff]
      %v2001 = vld [vmem:[%s1583 + $0x172] sm:$0xff]
      %2034 = vrot.lane.b32.xlu0 %v1970, 32
      %v2035 = vpop.permute.xlu0 %2034
      %2036 = vrot.lane.b32.xlu0 %v1971, 32
      %v2037 = vpop.permute.xlu0 %2036
      %2038 = vrot.lane.b32.xlu0 %v1972, 32
      %v2039 = vpop.permute.xlu0 %2038
      %2040 = vrot.lane.b32.xlu0 %v1973, 32
      %v2041 = vpop.permute.xlu0 %2040
      %2042 = vrot.lane.b32.xlu0 %v1974, 32
      %v2043 = vpop.permute.xlu0 %2042
      %2044 = vrot.lane.b32.xlu0 %v1975, 32
      %v2045 = vpop.permute.xlu0 %2044
      %2046 = vrot.lane.b32.xlu0 %v1976, 32
      %v2047 = vpop.permute.xlu0 %2046
      %2048 = vrot.lane.b32.xlu0 %v1977, 32
      %v2049 = vpop.permute.xlu0 %2048
      %2050 = vrot.lane.b32.xlu0 %v1978, 32
      %v2051 = vpop.permute.xlu0 %2050
      %2052 = vrot.lane.b32.xlu0 %v1979, 32
      %v2053 = vpop.permute.xlu0 %2052
      %2054 = vrot.lane.b32.xlu0 %v1980, 32
      %v2055 = vpop.permute.xlu0 %2054
      %2056 = vrot.lane.b32.xlu0 %v1981, 32
      %v2057 = vpop.permute.xlu0 %2056
      %2058 = vrot.lane.b32.xlu0 %v1982, 32
      %v2059 = vpop.permute.xlu0 %2058
      %2060 = vrot.lane.b32.xlu0 %v1983, 32
      %v2061 = vpop.permute.xlu0 %2060
      %2062 = vrot.lane.b32.xlu0 %v1984, 32
      %v2063 = vpop.permute.xlu0 %2062
      %2064 = vrot.lane.b32.xlu0 %v1985, 32
      %v2065 = vpop.permute.xlu0 %2064
      %2066 = vrot.lane.b32.xlu0 %v1986, 32
      %v2067 = vpop.permute.xlu0 %2066
      %2068 = vrot.lane.b32.xlu0 %v1987, 32
      %v2069 = vpop.permute.xlu0 %2068
      %2070 = vrot.lane.b32.xlu0 %v1988, 32
      %v2071 = vpop.permute.xlu0 %2070
      %2072 = vrot.lane.b32.xlu0 %v1989, 32
      %v2073 = vpop.permute.xlu0 %2072
      %2074 = vrot.lane.b32.xlu0 %v1990, 32
      %v2075 = vpop.permute.xlu0 %2074
      %2076 = vrot.lane.b32.xlu0 %v1991, 32
      %v2077 = vpop.permute.xlu0 %2076
      %2078 = vrot.lane.b32.xlu0 %v1992, 32
      %v2079 = vpop.permute.xlu0 %2078
      %2080 = vrot.lane.b32.xlu0 %v1993, 32
      %v2081 = vpop.permute.xlu0 %2080
      %2082 = vrot.lane.b32.xlu0 %v1994, 32
      %v2083 = vpop.permute.xlu0 %2082
      %2084 = vrot.lane.b32.xlu0 %v1995, 32
      %v2085 = vpop.permute.xlu0 %2084
      %2086 = vrot.lane.b32.xlu0 %v1996, 32
      %v2087 = vpop.permute.xlu0 %2086
      %2088 = vrot.lane.b32.xlu0 %v1997, 32
      %v2089 = vpop.permute.xlu0 %2088
      %2090 = vrot.lane.b32.xlu0 %v1998, 32
      %v2091 = vpop.permute.xlu0 %2090
      %2092 = vrot.lane.b32.xlu0 %v1999, 32
      %v2093 = vpop.permute.xlu0 %2092
      %2094 = vrot.lane.b32.xlu0 %v2000, 32
      %v2095 = vpop.permute.xlu0 %2094
      %2096 = vrot.lane.b32.xlu0 %v2001, 32
      %v2097 = vpop.permute.xlu0 %2096
      %vm2130 = vcmask 294144
      %2131 = vst.msk [vmem:[#allocation3] sm:$0xff] %vm2130, %v2035
      %2132 = vst.msk [vmem:[#allocation3 + $0x8] sm:$0xff] %vm2130, %v2037
      %2133 = vst.msk [vmem:[#allocation3 + $0x10] sm:$0xff] %vm2130, %v2039
      %2134 = vst.msk [vmem:[#allocation3 + $0x18] sm:$0xff] %vm2130, %v2041
      %2135 = vst.msk [vmem:[#allocation3 + $0x20] sm:$0xff] %vm2130, %v2043
      %2136 = vst.msk [vmem:[#allocation3 + $0x28] sm:$0xff] %vm2130, %v2045
      %2137 = vst.msk [vmem:[#allocation3 + $0x30] sm:$0xff] %vm2130, %v2047
      %2138 = vst.msk [vmem:[#allocation3 + $0x38] sm:$0xff] %vm2130, %v2049
      %2139 = vst.msk [vmem:[#allocation3 + $0x40] sm:$0xff] %vm2130, %v2051
      %2140 = vst.msk [vmem:[#allocation3 + $0x48] sm:$0xff] %vm2130, %v2053
      %2141 = vst.msk [vmem:[#allocation3 + $0x50] sm:$0xff] %vm2130, %v2055
      %2142 = vst.msk [vmem:[#allocation3 + $0x58] sm:$0xff] %vm2130, %v2057
      %2143 = vst.msk [vmem:[#allocation3 + $0x60] sm:$0xff] %vm2130, %v2059
      %2144 = vst.msk [vmem:[#allocation3 + $0x68] sm:$0xff] %vm2130, %v2061
      %2145 = vst.msk [vmem:[#allocation3 + $0x70] sm:$0xff] %vm2130, %v2063
      %2146 = vst.msk [vmem:[#allocation3 + $0x78] sm:$0xff] %vm2130, %v2065
      %2147 = vst.msk [vmem:[#allocation3 + $0x80] sm:$0xff] %vm2130, %v2067
      %2148 = vst.msk [vmem:[#allocation3 + $0x88] sm:$0xff] %vm2130, %v2069
      %2149 = vst.msk [vmem:[#allocation3 + $0x90] sm:$0xff] %vm2130, %v2071
      %2150 = vst.msk [vmem:[#allocation3 + $0x98] sm:$0xff] %vm2130, %v2073
      %2151 = vst.msk [vmem:[#allocation3 + $0xa0] sm:$0xff] %vm2130, %v2075
      %2152 = vst.msk [vmem:[#allocation3 + $0xa8] sm:$0xff] %vm2130, %v2077
      %2153 = vst.msk [vmem:[#allocation3 + $0xb0] sm:$0xff] %vm2130, %v2079
      %2154 = vst.msk [vmem:[#allocation3 + $0xb8] sm:$0xff] %vm2130, %v2081
      %2155 = vst.msk [vmem:[#allocation3 + $0xc0] sm:$0xff] %vm2130, %v2083
      %2156 = vst.msk [vmem:[#allocation3 + $0xc8] sm:$0xff] %vm2130, %v2085
      %2157 = vst.msk [vmem:[#allocation3 + $0xd0] sm:$0xff] %vm2130, %v2087
      %2158 = vst.msk [vmem:[#allocation3 + $0xd8] sm:$0xff] %vm2130, %v2089
      %2159 = vst.msk [vmem:[#allocation3 + $0xe0] sm:$0xff] %vm2130, %v2091
      %2160 = vst.msk [vmem:[#allocation3 + $0xe8] sm:$0xff] %vm2130, %v2093
      %2161 = vst.msk [vmem:[#allocation3 + $0xf0] sm:$0xff] %vm2130, %v2095
      %2162 = vst.msk [vmem:[#allocation3 + $0xf8] sm:$0xff] %vm2130, %v2097
      %v2163 = vld [vmem:[#allocation3] sm:$0xff]
      %v2164 = vld [vmem:[#allocation3 + $0x8] sm:$0xff]
      %v2165 = vld [vmem:[#allocation3 + $0x10] sm:$0xff]
      %v2166 = vld [vmem:[#allocation3 + $0x18] sm:$0xff]
      %v2167 = vld [vmem:[#allocation3 + $0x20] sm:$0xff]
      %v2168 = vld [vmem:[#allocation3 + $0x28] sm:$0xff]
      %v2169 = vld [vmem:[#allocation3 + $0x30] sm:$0xff]
      %v2170 = vld [vmem:[#allocation3 + $0x38] sm:$0xff]
      %v2171 = vld [vmem:[#allocation3 + $0x40] sm:$0xff]
      %v2172 = vld [vmem:[#allocation3 + $0x48] sm:$0xff]
      %v2173 = vld [vmem:[#allocation3 + $0x50] sm:$0xff]
      %v2174 = vld [vmem:[#allocation3 + $0x58] sm:$0xff]
      %v2175 = vld [vmem:[#allocation3 + $0x60] sm:$0xff]
      %v2176 = vld [vmem:[#allocation3 + $0x68] sm:$0xff]
      %v2177 = vld [vmem:[#allocation3 + $0x70] sm:$0xff]
      %v2178 = vld [vmem:[#allocation3 + $0x78] sm:$0xff]
      %v2179 = vld [vmem:[#allocation3 + $0x80] sm:$0xff]
      %v2180 = vld [vmem:[#allocation3 + $0x88] sm:$0xff]
      %v2181 = vld [vmem:[#allocation3 + $0x90] sm:$0xff]
      %v2182 = vld [vmem:[#allocation3 + $0x98] sm:$0xff]
      %v2183 = vld [vmem:[#allocation3 + $0xa0] sm:$0xff]
      %v2184 = vld [vmem:[#allocation3 + $0xa8] sm:$0xff]
      %v2185 = vld [vmem:[#allocation3 + $0xb0] sm:$0xff]
      %v2186 = vld [vmem:[#allocation3 + $0xb8] sm:$0xff]
      %v2187 = vld [vmem:[#allocation3 + $0xc0] sm:$0xff]
      %v2188 = vld [vmem:[#allocation3 + $0xc8] sm:$0xff]
      %v2189 = vld [vmem:[#allocation3 + $0xd0] sm:$0xff]
      %v2190 = vld [vmem:[#allocation3 + $0xd8] sm:$0xff]
      %v2191 = vld [vmem:[#allocation3 + $0xe0] sm:$0xff]
      %v2192 = vld [vmem:[#allocation3 + $0xe8] sm:$0xff]
      %v2193 = vld [vmem:[#allocation3 + $0xf0] sm:$0xff]
      %v2194 = vld [vmem:[#allocation3 + $0xf8] sm:$0xff]
      %v2195 = vld [vmem:[%s1] sm:$0xff]
      %v2196 = vld [vmem:[%s1 + $0x8] sm:$0xff]
      %v2197 = vld [vmem:[%s1 + $0x10] sm:$0xff]
      %v2198 = vld [vmem:[%s1 + $0x18] sm:$0xff]
      %v2199 = vld [vmem:[%s1 + $0x20] sm:$0xf]
      %vm2200 = vcmask 293888
      %v2202 = vsel %vm2200, %v2163, 0
      %v2205 = vsel %vm2200, %v2164, 0
      %v2208 = vsel %vm2200, %v2165, 0
      %v2211 = vsel %vm2200, %v2166, 0
      %v2214 = vsel %vm2200, %v2167, 0
      %v2217 = vsel %vm2200, %v2168, 0
      %v2220 = vsel %vm2200, %v2169, 0
      %v2223 = vsel %vm2200, %v2170, 0
      %v2226 = vsel %vm2200, %v2171, 0
      %v2229 = vsel %vm2200, %v2172, 0
      %v2232 = vsel %vm2200, %v2173, 0
      %v2235 = vsel %vm2200, %v2174, 0
      %v2238 = vsel %vm2200, %v2175, 0
      %v2241 = vsel %vm2200, %v2176, 0
      %v2244 = vsel %vm2200, %v2177, 0
      %v2247 = vsel %vm2200, %v2178, 0
      %v2250 = vsel %vm2200, %v2179, 0
      %v2253 = vsel %vm2200, %v2180, 0
      %v2256 = vsel %vm2200, %v2181, 0
      %v2259 = vsel %vm2200, %v2182, 0
      %v2262 = vsel %vm2200, %v2183, 0
      %v2265 = vsel %vm2200, %v2184, 0
      %v2268 = vsel %vm2200, %v2185, 0
      %v2271 = vsel %vm2200, %v2186, 0
      %v2274 = vsel %vm2200, %v2187, 0
      %v2277 = vsel %vm2200, %v2188, 0
      %v2280 = vsel %vm2200, %v2189, 0
      %v2283 = vsel %vm2200, %v2190, 0
      %v2286 = vsel %vm2200, %v2191, 0
      %v2289 = vsel %vm2200, %v2192, 0
      %v2292 = vsel %vm2200, %v2193, 0
      %v2295 = vsel %vm2200, %v2194, 0
      %vm2297 = vcmask 1043456
      %v2299 = vsel %vm2297, %v2199, 0
      %2301 = vmatprep.subr.mxu0 0.0
      %2302 = vmatpush1.msra.mxu0 %v2195
      %2303 = vmatprep.subr.mxu0 0.0
      %2304 = vmatpush1.msra.mxu0 %v2196
      %2305 = vmatprep.subr.mxu0 0.0
      %2306 = vmatpush1.msra.mxu0 %v2197
      %2307 = vmatprep.subr.mxu0 0.0
      %2308 = vmatpush1.msra.mxu0 %v2198
      %2309 = vmatprep.subr.mxu0 0.0
      %2310 = vmatpush1.msra.mxu0 %v2299
      %2311 = vmatprep.subr.mxu0 0.0
      %2312 = vmatpush1.msra.mxu0 0.0
      %2313 = vmatprep.subr.mxu0 0.0
      %2314 = vmatpush1.msra.mxu0 0.0
      %2315 = vmatprep.subr.mxu0 0.0
      %2316 = vmatpush1.msra.mxu0 0.0
      %2317 = vmatprep.subr.mxu0 0.0
      %2318 = vmatpush1.msra.mxu0 0.0
      %2319 = vmatprep.subr.mxu0 0.0
      %2320 = vmatpush1.msra.mxu0 0.0
      %2321 = vmatprep.subr.mxu0 0.0
      %2322 = vmatpush1.msra.mxu0 0.0
      %2323 = vmatprep.subr.mxu0 0.0
      %2324 = vmatpush1.msra.mxu0 0.0
      %2325 = vmatprep.subr.mxu0 0.0
      %2326 = vmatpush1.msra.mxu0 0.0
      %2327 = vmatprep.subr.mxu0 0.0
      %2328 = vmatpush1.msra.mxu0 0.0
      %2329 = vmatprep.subr.mxu0 0.0
      %2330 = vmatpush1.msra.mxu0 0.0
      %2331 = vmatprep.subr.mxu0 0.0
      %2332 = vmatpush1.msra.mxu0 0.0
      %2333 = vmatprep.subr.mxu0 0.0
      %2334 = vmatpush1.msra.mxu0 0.0
      %2335 = vmatprep.subr.mxu0 0.0
      %2336 = vmatpush1.msra.mxu0 0.0
      %2337 = vmatprep.subr.mxu0 0.0
      %2338 = vmatpush1.msra.mxu0 0.0
      %2339 = vmatprep.subr.mxu0 0.0
      %2340 = vmatpush1.msra.mxu0 0.0
      %2341 = vmatprep.subr.mxu0 0.0
      %2342 = vmatpush1.msra.mxu0 0.0
      %2343 = vmatprep.subr.mxu0 0.0
      %2344 = vmatpush1.msra.mxu0 0.0
      %2345 = vmatprep.subr.mxu0 0.0
      %2346 = vmatpush1.msra.mxu0 0.0
      %2347 = vmatprep.subr.mxu0 0.0
      %2348 = vmatpush1.msra.mxu0 0.0
      %2349 = vmatprep.subr.mxu0 0.0
      %2350 = vmatpush1.msra.mxu0 0.0
      %2351 = vmatprep.subr.mxu0 0.0
      %2352 = vmatpush1.msra.mxu0 0.0
      %2353 = vmatprep.subr.mxu0 0.0
      %2354 = vmatpush1.msra.mxu0 0.0
      %2355 = vmatprep.subr.mxu0 0.0
      %2356 = vmatpush1.msra.mxu0 0.0
      %2357 = vmatprep.subr.mxu0 0.0
      %2358 = vmatpush1.msra.mxu0 0.0
      %2359 = vmatprep.subr.mxu0 0.0
      %2360 = vmatpush1.msra.mxu0 0.0
      %2361 = vmatprep.subr.mxu0 0.0
      %2362 = vmatpush1.msra.mxu0 0.0
      %2363 = vmatprep.subr.mxu0 0.0
      %2364 = vmatpush1.msra.mxu0 0.0
      %2365 = vmatprep.mubr.f32.mxu0 0.0
      %2366 = vmatmul.mubr.f32.gmra.mrb[0].mxu0 %v2202
      %v2367 = vpop.f32.mrb[0].mxu0
      %v2368 = vadd.f32 0.0, %v2367
      %v2369 = vpop.f32.mrb[0].mxu0
      %2370 = vmatprep.mubr.f32.mxu0 0.0
      %2371 = vmatmul.mubr.f32.gmra.mrb[0].mxu0 %v2205
      %v2372 = vpop.f32.mrb[0].mxu0
      %v2373 = vadd.f32 0.0, %v2372
      %v2374 = vpop.f32.mrb[0].mxu0
      %2375 = vmatprep.mubr.f32.mxu0 0.0
      %2376 = vmatmul.mubr.f32.gmra.mrb[0].mxu0 %v2208
      %v2377 = vpop.f32.mrb[0].mxu0
      %v2378 = vadd.f32 0.0, %v2377
      %v2379 = vpop.f32.mrb[0].mxu0
      %2380 = vmatprep.mubr.f32.mxu0 0.0
      %2381 = vmatmul.mubr.f32.gmra.mrb[0].mxu0 %v2211
      %v2382 = vpop.f32.mrb[0].mxu0
      %v2383 = vadd.f32 0.0, %v2382
      %v2384 = vpop.f32.mrb[0].mxu0
      %2385 = vmatprep.mubr.f32.mxu0 0.0
      %2386 = vmatmul.mubr.f32.gmra.mrb[0].mxu0 %v2214
      %v2387 = vpop.f32.mrb[0].mxu0
      %v2388 = vadd.f32 0.0, %v2387
      %v2389 = vpop.f32.mrb[0].mxu0
      %2390 = vmatprep.mubr.f32.mxu0 0.0
      %2391 = vmatmul.mubr.f32.gmra.mrb[0].mxu0 %v2217
      %v2392 = vpop.f32.mrb[0].mxu0
      %v2393 = vadd.f32 0.0, %v2392
      %v2394 = vpop.f32.mrb[0].mxu0
      %2395 = vmatprep.mubr.f32.mxu0 0.0
      %2396 = vmatmul.mubr.f32.gmra.mrb[0].mxu0 %v2220
      %v2397 = vpop.f32.mrb[0].mxu0
      %v2398 = vadd.f32 0.0, %v2397
      %v2399 = vpop.f32.mrb[0].mxu0
      %2400 = vmatprep.mubr.f32.mxu0 0.0
      %2401 = vmatmul.mubr.f32.gmra.mrb[0].mxu0 %v2223
      %v2402 = vpop.f32.mrb[0].mxu0
      %v2403 = vadd.f32 0.0, %v2402
      %v2404 = vpop.f32.mrb[0].mxu0
      %2405 = vmatprep.mubr.f32.mxu0 0.0
      %2406 = vmatmul.mubr.f32.gmra.mrb[0].mxu0 %v2226
      %v2407 = vpop.f32.mrb[0].mxu0
      %v2408 = vadd.f32 0.0, %v2407
      %v2409 = vpop.f32.mrb[0].mxu0
      %2410 = vmatprep.mubr.f32.mxu0 0.0
      %2411 = vmatmul.mubr.f32.gmra.mrb[0].mxu0 %v2229
      %v2412 = vpop.f32.mrb[0].mxu0
      %v2413 = vadd.f32 0.0, %v2412
      %v2414 = vpop.f32.mrb[0].mxu0
      %2415 = vmatprep.mubr.f32.mxu0 0.0
      %2416 = vmatmul.mubr.f32.gmra.mrb[0].mxu0 %v2232
      %v2417 = vpop.f32.mrb[0].mxu0
      %v2418 = vadd.f32 0.0, %v2417
      %v2419 = vpop.f32.mrb[0].mxu0
      %2420 = vmatprep.mubr.f32.mxu0 0.0
      %2421 = vmatmul.mubr.f32.gmra.mrb[0].mxu0 %v2235
      %v2422 = vpop.f32.mrb[0].mxu0
      %v2423 = vadd.f32 0.0, %v2422
      %v2424 = vpop.f32.mrb[0].mxu0
      %2425 = vmatprep.mubr.f32.mxu0 0.0
      %2426 = vmatmul.mubr.f32.gmra.mrb[0].mxu0 %v2238
      %v2427 = vpop.f32.mrb[0].mxu0
      %v2428 = vadd.f32 0.0, %v2427
      %v2429 = vpop.f32.mrb[0].mxu0
      %2430 = vmatprep.mubr.f32.mxu0 0.0
      %2431 = vmatmul.mubr.f32.gmra.mrb[0].mxu0 %v2241
      %v2432 = vpop.f32.mrb[0].mxu0
      %v2433 = vadd.f32 0.0, %v2432
      %v2434 = vpop.f32.mrb[0].mxu0
      %2435 = vmatprep.mubr.f32.mxu0 0.0
      %2436 = vmatmul.mubr.f32.gmra.mrb[0].mxu0 %v2244
      %v2437 = vpop.f32.mrb[0].mxu0
      %v2438 = vadd.f32 0.0, %v2437
      %v2439 = vpop.f32.mrb[0].mxu0
      %2440 = vmatprep.mubr.f32.mxu0 0.0
      %2441 = vmatmul.mubr.f32.gmra.mrb[0].mxu0 %v2247
      %v2442 = vpop.f32.mrb[0].mxu0
      %v2443 = vadd.f32 0.0, %v2442
      %v2444 = vpop.f32.mrb[0].mxu0
      %2445 = vmatprep.mubr.f32.mxu0 0.0
      %2446 = vmatmul.mubr.f32.gmra.mrb[0].mxu0 %v2250
      %v2447 = vpop.f32.mrb[0].mxu0
      %v2448 = vadd.f32 0.0, %v2447
      %v2449 = vpop.f32.mrb[0].mxu0
      %2450 = vmatprep.mubr.f32.mxu0 0.0
      %2451 = vmatmul.mubr.f32.gmra.mrb[0].mxu0 %v2253
      %v2452 = vpop.f32.mrb[0].mxu0
      %v2453 = vadd.f32 0.0, %v2452
      %v2454 = vpop.f32.mrb[0].mxu0
      %2455 = vmatprep.mubr.f32.mxu0 0.0
      %2456 = vmatmul.mubr.f32.gmra.mrb[0].mxu0 %v2256
      %v2457 = vpop.f32.mrb[0].mxu0
      %v2458 = vadd.f32 0.0, %v2457
      %v2459 = vpop.f32.mrb[0].mxu0
      %2460 = vmatprep.mubr.f32.mxu0 0.0
      %2461 = vmatmul.mubr.f32.gmra.mrb[0].mxu0 %v2259
      %v2462 = vpop.f32.mrb[0].mxu0
      %v2463 = vadd.f32 0.0, %v2462
      %v2464 = vpop.f32.mrb[0].mxu0
      %2465 = vmatprep.mubr.f32.mxu0 0.0
      %2466 = vmatmul.mubr.f32.gmra.mrb[0].mxu0 %v2262
      %v2467 = vpop.f32.mrb[0].mxu0
      %v2468 = vadd.f32 0.0, %v2467
      %v2469 = vpop.f32.mrb[0].mxu0
      %2470 = vmatprep.mubr.f32.mxu0 0.0
      %2471 = vmatmul.mubr.f32.gmra.mrb[0].mxu0 %v2265
      %v2472 = vpop.f32.mrb[0].mxu0
      %v2473 = vadd.f32 0.0, %v2472
      %v2474 = vpop.f32.mrb[0].mxu0
      %2475 = vmatprep.mubr.f32.mxu0 0.0
      %2476 = vmatmul.mubr.f32.gmra.mrb[0].mxu0 %v2268
      %v2477 = vpop.f32.mrb[0].mxu0
      %v2478 = vadd.f32 0.0, %v2477
      %v2479 = vpop.f32.mrb[0].mxu0
      %2480 = vmatprep.mubr.f32.mxu0 0.0
      %2481 = vmatmul.mubr.f32.gmra.mrb[0].mxu0 %v2271
      %v2482 = vpop.f32.mrb[0].mxu0
      %v2483 = vadd.f32 0.0, %v2482
      %v2484 = vpop.f32.mrb[0].mxu0
      %2485 = vmatprep.mubr.f32.mxu0 0.0
      %2486 = vmatmul.mubr.f32.gmra.mrb[0].mxu0 %v2274
      %v2487 = vpop.f32.mrb[0].mxu0
      %v2488 = vadd.f32 0.0, %v2487
      %v2489 = vpop.f32.mrb[0].mxu0
      %2490 = vmatprep.mubr.f32.mxu0 0.0
      %2491 = vmatmul.mubr.f32.gmra.mrb[0].mxu0 %v2277
      %v2492 = vpop.f32.mrb[0].mxu0
      %v2493 = vadd.f32 0.0, %v2492
      %v2494 = vpop.f32.mrb[0].mxu0
      %2495 = vmatprep.mubr.f32.mxu0 0.0
      %2496 = vmatmul.mubr.f32.gmra.mrb[0].mxu0 %v2280
      %v2497 = vpop.f32.mrb[0].mxu0
      %v2498 = vadd.f32 0.0, %v2497
      %v2499 = vpop.f32.mrb[0].mxu0
      %2500 = vmatprep.mubr.f32.mxu0 0.0
      %2501 = vmatmul.mubr.f32.gmra.mrb[0].mxu0 %v2283
      %v2502 = vpop.f32.mrb[0].mxu0
      %v2503 = vadd.f32 0.0, %v2502
      %v2504 = vpop.f32.mrb[0].mxu0
      %2505 = vmatprep.mubr.f32.mxu0 0.0
      %2506 = vmatmul.mubr.f32.gmra.mrb[0].mxu0 %v2286
      %v2507 = vpop.f32.mrb[0].mxu0
      %v2508 = vadd.f32 0.0, %v2507
      %v2509 = vpop.f32.mrb[0].mxu0
      %2510 = vmatprep.mubr.f32.mxu0 0.0
      %2511 = vmatmul.mubr.f32.gmra.mrb[0].mxu0 %v2289
      %v2512 = vpop.f32.mrb[0].mxu0
      %v2513 = vadd.f32 0.0, %v2512
      %v2514 = vpop.f32.mrb[0].mxu0
      %2515 = vmatprep.mubr.f32.mxu0 0.0
      %2516 = vmatmul.mubr.f32.gmra.mrb[0].mxu0 %v2292
      %v2517 = vpop.f32.mrb[0].mxu0
      %v2518 = vadd.f32 0.0, %v2517
      %v2519 = vpop.f32.mrb[0].mxu0
      %2520 = vmatprep.mubr.f32.mxu0 0.0
      %2521 = vmatmul.mubr.f32.gmra.mrb[0].mxu0 %v2295
      %v2522 = vpop.f32.mrb[0].mxu0
      %v2523 = vadd.f32 0.0, %v2522
      %v2524 = vpop.f32.mrb[0].mxu0
      %2525 = vdwg.mxu0
      %2526 = vst.msk [vmem:[%s231] sm:$0xff] %vm443, %v2368
      %2527 = vst.msk [vmem:[%s231 + $0x8] sm:$0xff] %vm443, %v2373
      %2528 = vst.msk [vmem:[%s231 + $0x10] sm:$0xff] %vm443, %v2378
      %2529 = vst.msk [vmem:[%s231 + $0x18] sm:$0xff] %vm443, %v2383
      %2530 = vst.msk [vmem:[%s231 + $0x20] sm:$0xff] %vm443, %v2388
      %2531 = vst.msk [vmem:[%s231 + $0x28] sm:$0xff] %vm443, %v2393
      %2532 = vst.msk [vmem:[%s231 + $0x30] sm:$0xff] %vm443, %v2398
      %2533 = vst.msk [vmem:[%s231 + $0x38] sm:$0xff] %vm443, %v2403
      %2534 = vst.msk [vmem:[%s231 + $0x40] sm:$0xff] %vm443, %v2408
      %2535 = vst.msk [vmem:[%s231 + $0x48] sm:$0xff] %vm443, %v2413
      %2536 = vst.msk [vmem:[%s231 + $0x50] sm:$0xff] %vm443, %v2418
      %2537 = vst.msk [vmem:[%s231 + $0x58] sm:$0xff] %vm443, %v2423
      %2538 = vst.msk [vmem:[%s231 + $0x60] sm:$0xff] %vm443, %v2428
      %2539 = vst.msk [vmem:[%s231 + $0x68] sm:$0xff] %vm443, %v2433
      %2540 = vst.msk [vmem:[%s231 + $0x70] sm:$0xff] %vm443, %v2438
      %2541 = vst.msk [vmem:[%s231 + $0x78] sm:$0xff] %vm443, %v2443
      %2542 = vst.msk [vmem:[%s231 + $0x80] sm:$0xff] %vm443, %v2448
      %2543 = vst.msk [vmem:[%s231 + $0x88] sm:$0xff] %vm443, %v2453
      %2544 = vst.msk [vmem:[%s231 + $0x90] sm:$0xff] %vm443, %v2458
      %2545 = vst.msk [vmem:[%s231 + $0x98] sm:$0xff] %vm443, %v2463
      %2546 = vst.msk [vmem:[%s231 + $0xa0] sm:$0xff] %vm443, %v2468
      %2547 = vst.msk [vmem:[%s231 + $0xa8] sm:$0xff] %vm443, %v2473
      %2548 = vst.msk [vmem:[%s231 + $0xb0] sm:$0xff] %vm443, %v2478
      %2549 = vst.msk [vmem:[%s231 + $0xb8] sm:$0xff] %vm443, %v2483
      %2550 = vst.msk [vmem:[%s231 + $0xc0] sm:$0xff] %vm443, %v2488
      %2551 = vst.msk [vmem:[%s231 + $0xc8] sm:$0xff] %vm443, %v2493
      %2552 = vst.msk [vmem:[%s231 + $0xd0] sm:$0xff] %vm443, %v2498
      %2553 = vst.msk [vmem:[%s231 + $0xd8] sm:$0xff] %vm443, %v2503
      %2554 = vst.msk [vmem:[%s231 + $0xe0] sm:$0xff] %vm443, %v2508
      %2555 = vst.msk [vmem:[%s231 + $0xe8] sm:$0xff] %vm443, %v2513
      %2556 = vst.msk [vmem:[%s231 + $0xf0] sm:$0xff] %vm443, %v2518
      %2557 = vst.msk [vmem:[%s231 + $0xf8] sm:$0xff] %vm443, %v2523
      %v2558 = vsel %vm443, %v2368, 0.0
      %v2559 = vsel %vm443, %v2373, 0.0
      %v2560 = vadd.f32 %v2558, %v2559
      %v2561 = vsel %vm443, %v2378, 0.0
      %v2562 = vadd.f32 %v2560, %v2561
      %v2563 = vsel %vm443, %v2383, 0.0
      %v2564 = vadd.f32 %v2562, %v2563
      %v2565 = vsel %vm443, %v2388, 0.0
      %v2566 = vadd.f32 %v2564, %v2565
      %v2567 = vsel %vm443, %v2393, 0.0
      %v2568 = vadd.f32 %v2566, %v2567
      %v2569 = vsel %vm443, %v2398, 0.0
      %v2570 = vadd.f32 %v2568, %v2569
      %v2571 = vsel %vm443, %v2403, 0.0
      %v2572 = vadd.f32 %v2570, %v2571
      %v2573 = vsel %vm443, %v2408, 0.0
      %v2574 = vadd.f32 %v2572, %v2573
      %v2575 = vsel %vm443, %v2413, 0.0
      %v2576 = vadd.f32 %v2574, %v2575
      %v2577 = vsel %vm443, %v2418, 0.0
      %v2578 = vadd.f32 %v2576, %v2577
      %v2579 = vsel %vm443, %v2423, 0.0
      %v2580 = vadd.f32 %v2578, %v2579
      %v2581 = vsel %vm443, %v2428, 0.0
      %v2582 = vadd.f32 %v2580, %v2581
      %v2583 = vsel %vm443, %v2433, 0.0
      %v2584 = vadd.f32 %v2582, %v2583
      %v2585 = vsel %vm443, %v2438, 0.0
      %v2586 = vadd.f32 %v2584, %v2585
      %v2587 = vsel %vm443, %v2443, 0.0
      %v2588 = vadd.f32 %v2586, %v2587
      %v2589 = vsel %vm443, %v2448, 0.0
      %v2590 = vadd.f32 %v2588, %v2589
      %v2591 = vsel %vm443, %v2453, 0.0
      %v2592 = vadd.f32 %v2590, %v2591
      %v2593 = vsel %vm443, %v2458, 0.0
      %v2594 = vadd.f32 %v2592, %v2593
      %v2595 = vsel %vm443, %v2463, 0.0
      %v2596 = vadd.f32 %v2594, %v2595
      %v2597 = vsel %vm443, %v2468, 0.0
      %v2598 = vadd.f32 %v2596, %v2597
      %v2599 = vsel %vm443, %v2473, 0.0
      %v2600 = vadd.f32 %v2598, %v2599
      %v2601 = vsel %vm443, %v2478, 0.0
      %v2602 = vadd.f32 %v2600, %v2601
      %v2603 = vsel %vm443, %v2483, 0.0
      %v2604 = vadd.f32 %v2602, %v2603
      %v2605 = vsel %vm443, %v2488, 0.0
      %v2606 = vadd.f32 %v2604, %v2605
      %v2607 = vsel %vm443, %v2493, 0.0
      %v2608 = vadd.f32 %v2606, %v2607
      %v2609 = vsel %vm443, %v2498, 0.0
      %v2610 = vadd.f32 %v2608, %v2609
      %v2611 = vsel %vm443, %v2503, 0.0
      %v2612 = vadd.f32 %v2610, %v2611
      %v2613 = vsel %vm443, %v2508, 0.0
      %v2614 = vadd.f32 %v2612, %v2613
      %v2615 = vsel %vm443, %v2513, 0.0
      %v2616 = vadd.f32 %v2614, %v2615
      %v2617 = vsel %vm443, %v2518, 0.0
      %v2618 = vadd.f32 %v2616, %v2617
      %v2619 = vsel %vm443, %v2523, 0.0
      %v2620 = vadd.f32 %v2618, %v2619
      %v2621 = vrot.slane %v2620, 4
      %v2622 = vadd.f32 %v2620, %v2621
      %v2623 = vrot.slane %v2622, 2
      %v2624 = vadd.f32 %v2622, %v2623
      %v2625 = vrot.slane %v2624, 1
      %v2626 = vadd.f32 %v2624, %v2625
      %v2627 = vadd.f32 %v2626, 0.0
      %v2628 = vmul.f32 %v2368, %v2368
      %v2629 = vmul.f32 %v2373, %v2373
      %v2630 = vmul.f32 %v2378, %v2378
      %v2631 = vmul.f32 %v2383, %v2383
      %v2632 = vmul.f32 %v2388, %v2388
      %v2633 = vmul.f32 %v2393, %v2393
      %v2634 = vmul.f32 %v2398, %v2398
      %v2635 = vmul.f32 %v2403, %v2403
      %v2636 = vmul.f32 %v2408, %v2408
      %v2637 = vmul.f32 %v2413, %v2413
      %v2638 = vmul.f32 %v2418, %v2418
      %v2639 = vmul.f32 %v2423, %v2423
      %v2640 = vmul.f32 %v2428, %v2428
      %v2641 = vmul.f32 %v2433, %v2433
      %v2642 = vmul.f32 %v2438, %v2438
      %v2643 = vmul.f32 %v2443, %v2443
      %v2644 = vmul.f32 %v2448, %v2448
      %v2645 = vmul.f32 %v2453, %v2453
      %v2646 = vmul.f32 %v2458, %v2458
      %v2647 = vmul.f32 %v2463, %v2463
      %v2648 = vmul.f32 %v2468, %v2468
      %v2649 = vmul.f32 %v2473, %v2473
      %v2650 = vmul.f32 %v2478, %v2478
      %v2651 = vmul.f32 %v2483, %v2483
      %v2652 = vmul.f32 %v2488, %v2488
      %v2653 = vmul.f32 %v2493, %v2493
      %v2654 = vmul.f32 %v2498, %v2498
      %v2655 = vmul.f32 %v2503, %v2503
      %v2656 = vmul.f32 %v2508, %v2508
      %v2657 = vmul.f32 %v2513, %v2513
      %v2658 = vmul.f32 %v2518, %v2518
      %v2659 = vmul.f32 %v2523, %v2523
      %v2660 = vsel %vm443, %v2628, 0.0
      %v2661 = vsel %vm443, %v2629, 0.0
      %v2662 = vadd.f32 %v2660, %v2661
      %v2663 = vsel %vm443, %v2630, 0.0
      %v2664 = vadd.f32 %v2662, %v2663
      %v2665 = vsel %vm443, %v2631, 0.0
      %v2666 = vadd.f32 %v2664, %v2665
      %v2667 = vsel %vm443, %v2632, 0.0
      %v2668 = vadd.f32 %v2666, %v2667
      %v2669 = vsel %vm443, %v2633, 0.0
      %v2670 = vadd.f32 %v2668, %v2669
      %v2671 = vsel %vm443, %v2634, 0.0
      %v2672 = vadd.f32 %v2670, %v2671
      %v2673 = vsel %vm443, %v2635, 0.0
      %v2674 = vadd.f32 %v2672, %v2673
      %v2675 = vsel %vm443, %v2636, 0.0
      %v2676 = vadd.f32 %v2674, %v2675
      %v2677 = vsel %vm443, %v2637, 0.0
      %v2678 = vadd.f32 %v2676, %v2677
      %v2679 = vsel %vm443, %v2638, 0.0
      %v2680 = vadd.f32 %v2678, %v2679
      %v2681 = vsel %vm443, %v2639, 0.0
      %v2682 = vadd.f32 %v2680, %v2681
      %v2683 = vsel %vm443, %v2640, 0.0
      %v2684 = vadd.f32 %v2682, %v2683
      %v2685 = vsel %vm443, %v2641, 0.0
      %v2686 = vadd.f32 %v2684, %v2685
      %v2687 = vsel %vm443, %v2642, 0.0
      %v2688 = vadd.f32 %v2686, %v2687
      %v2689 = vsel %vm443, %v2643, 0.0
      %v2690 = vadd.f32 %v2688, %v2689
      %v2691 = vsel %vm443, %v2644, 0.0
      %v2692 = vadd.f32 %v2690, %v2691
      %v2693 = vsel %vm443, %v2645, 0.0
      %v2694 = vadd.f32 %v2692, %v2693
      %v2695 = vsel %vm443, %v2646, 0.0
      %v2696 = vadd.f32 %v2694, %v2695
      %v2697 = vsel %vm443, %v2647, 0.0
      %v2698 = vadd.f32 %v2696, %v2697
      %v2699 = vsel %vm443, %v2648, 0.0
      %v2700 = vadd.f32 %v2698, %v2699
      %v2701 = vsel %vm443, %v2649, 0.0
      %v2702 = vadd.f32 %v2700, %v2701
      %v2703 = vsel %vm443, %v2650, 0.0
      %v2704 = vadd.f32 %v2702, %v2703
      %v2705 = vsel %vm443, %v2651, 0.0
      %v2706 = vadd.f32 %v2704, %v2705
      %v2707 = vsel %vm443, %v2652, 0.0
      %v2708 = vadd.f32 %v2706, %v2707
      %v2709 = vsel %vm443, %v2653, 0.0
      %v2710 = vadd.f32 %v2708, %v2709
      %v2711 = vsel %vm443, %v2654, 0.0
      %v2712 = vadd.f32 %v2710, %v2711
      %v2713 = vsel %vm443, %v2655, 0.0
      %v2714 = vadd.f32 %v2712, %v2713
      %v2715 = vsel %vm443, %v2656, 0.0
      %v2716 = vadd.f32 %v2714, %v2715
      %v2717 = vsel %vm443, %v2657, 0.0
      %v2718 = vadd.f32 %v2716, %v2717
      %v2719 = vsel %vm443, %v2658, 0.0
      %v2720 = vadd.f32 %v2718, %v2719
      %v2721 = vsel %vm443, %v2659, 0.0
      %v2722 = vadd.f32 %v2720, %v2721
      %v2723 = vrot.slane %v2722, 4
      %v2724 = vadd.f32 %v2722, %v2723
      %v2725 = vrot.slane %v2724, 2
      %v2726 = vadd.f32 %v2724, %v2725
      %v2727 = vrot.slane %v2726, 1
      %v2728 = vadd.f32 %v2726, %v2727
      %v2729 = vadd.f32 %v2728, 0.0
      %2730 = vst.msk [vmem:[%s235] sm:$0x1] %vm499, %v2627
      %2731 = vst.msk [vmem:[%s235 + $0x1] sm:$0x1] %vm499, %v2729
      %p2732 = scmp.lt.s32.totalorder %s17, 1
      %s2733 = scalar_select %p2732, %s17, 1
      %s2734 = smul.addr %s2733, 32
      %s2735 = smul.addr %s2734, 8
      %s2736 = scalar_lea.vmem %s4, %s2735
      %p2737 = scmp.lt.s32.totalorder %s17, 1
      %s2738 = scalar_select %p2737, %s17, 1
      %s2739 = smul.addr %s2738, 2
      %s2740 = scalar_lea.vmem %s5, %s2739
      // Predicated region
      $region37: #{residual_block_pallas.4} parent=35 // pred_check
        %p2741 = pneg %p124
      $region38: #{residual_block_pallas.4} parent=35 // pred_check_branch
        %2743 = sbr.rel (%p2741) target = $region40
      $region39: #{residual_block_pallas.4} parent=35 // pred_region
        _
      $region40: #{residual_block_pallas.4} parent=35 // pred_fallthru
        _
      // Predicated region
      $region41: #{residual_block_pallas.4} parent=35 // pred_check
        %p2744 = pneg %p150
      $region42: #{residual_block_pallas.4} parent=35 // pred_check_branch
        %2746 = sbr.rel (%p2744) target = $region44
      $region43: #{residual_block_pallas.4} parent=35 // pred_region
        _
      $region44: #{residual_block_pallas.4} parent=35 // pred_fallthru
        _
    $region36: #{residual_block_pallas.4} parent=5 // pred_fallthru
      _
    %p2747 = scmp.le.s32.totalorder 2, %s12
    // Predicated region
    $region45: #{residual_block_pallas.4} parent=5 // pred_check
      %p2748 = pneg %p2747
    $region46: #{residual_block_pallas.4} parent=5 // pred_check_branch
      %2750 = sbr.rel (%p2748) target = $region48
    $region47: #{residual_block_pallas.4} parent=5 // pred_region
      %s2751 = ssub.s32 %s12, 2
      // Predicated region
      $region49: #{residual_block_pallas.4} parent=47 // pred_check
        %p2752 = pneg %p130
      $region50: #{residual_block_pallas.4} parent=47 // pred_check_branch
        %2754 = sbr.rel (%p2752) target = $region52
      $region51: #{residual_block_pallas.4} parent=47 // pred_region
        %p2755 = scmp.lt.s32.totalorder %s18, 1
        %s2756 = scalar_select %p2755, %s18, 1
        %s2757 = smul.addr %s2756, 32
        %s2758 = smul.addr %s2757, 8
        %s2759 = scalar_lea.vmem %s4, %s2758
      $region52: #{residual_block_pallas.4} parent=47 // pred_fallthru
        _
      // Predicated region
      $region53: #{residual_block_pallas.4} parent=47 // pred_check
        %p2760 = pneg %p156
      $region54: #{residual_block_pallas.4} parent=47 // pred_check_branch
        %2762 = sbr.rel (%p2760) target = $region56
      $region55: #{residual_block_pallas.4} parent=47 // pred_region
        %p2763 = scmp.lt.s32.totalorder %s18, 1
        %s2764 = scalar_select %p2763, %s18, 1
        %s2765 = smul.addr %s2764, 2
        %s2766 = scalar_lea.vmem %s5, %s2765
      $region56: #{residual_block_pallas.4} parent=47 // pred_fallthru
        _
    $region48: #{residual_block_pallas.4} parent=5 // pred_fallthru
      _
  $region6: #{residual_block_pallas.4} parent=0 // loop_footer
    %s16 = sadd.s32 1, %s12
  $region7: #{residual_block_pallas.4} parent=0 // loop_footer_branch
    %11 = sbr.rel target = $region3
  $region8: #{residual_block_pallas.4} parent=0 // loop_exit
    _

</llo_original>
